<compile_context>
chip_gen: v6e
topology: v6e:2x2x1
jax: 0.10.0
libtpu: 0.0.40
codegen_flags: <defaults>
</compile_context>

<pallas_src>
import jax
import jax.numpy as jnp
from jax.experimental import pallas as pl
from jax.experimental.pallas import tpu as pltpu

EMBED_DIM = 128     # module default embed_dim
N_HEADS = 8         # module default n_heads
TANH_CLIP = 10.0    # module default tanh_clipping
BUDGET_DIM = 32     # nn.Linear(1, 32)
NEG_INF = -1e9


def _am_kernel(x_ref, masks_ref, hb_ref,
               wqkv_ref, wo_ref, wqd_ctx_ref, wqd_bud_ref,
               ctx_out_ref, logp_out_ref):
    """One batch block (TB elements) per grid step: encoder MHA + pooling + decoder."""
    TB, C, D = x_ref.shape
    H = N_HEADS
    hd = D // H

    x = x_ref[...]                                    # (TB, C, D) bf16
    mwp = masks_ref[:, 0, :]                          # (TB, C) 1.0 = padded courier
    mtot = masks_ref[:, 1, :]                         # (TB, C) 1.0 = masked for decoding
    hb = hb_ref[...]                                  # (TB, 32) f32 budget embedding

    # ---- AttentionEncoder: fused QKV, one (TB*C, D) @ (D, 3D) bf16 matmul ----
    x2 = x.reshape(TB * C, D)
    qkv = jnp.dot(x2, wqkv_ref[...], preferred_element_type=jnp.float32)   # (TB*C, 3D) f32
    qkv = qkv.astype(jnp.bfloat16)                    # single cast; attention dots run bf16
    q3 = qkv[:, 0 * D:1 * D].reshape(TB, C, D)        # 128-lane-aligned slices (free)
    k3 = qkv[:, 1 * D:2 * D].reshape(TB, C, D)
    v3 = qkv[:, 2 * D:3 * D].reshape(TB, C, D)

    key_bias = (mwp * NEG_INF)[:, None, :]            # (TB, 1, C) f32
    scale = 1.0 / jnp.sqrt(jnp.float32(hd))

    # Per-head attention, batched over the TB batch block (static 8-way unroll,
    # bf16 operands, f32 accumulation).  Head outputs are collected in-register.
    head_outs = []
    for h in range(H):
        sl = slice(h * hd, (h + 1) * hd)
        qh = q3[:, :, sl]                             # (TB, C, hd) bf16
        kh = k3[:, :, sl]
        vh = v3[:, :, sl]
        s = jnp.einsum('bqd,bkd->bqk', qh, kh,
                       preferred_element_type=jnp.float32) * scale          # (TB, C, C) f32
        s = s + key_bias                                                     # f32 masking
        s = s - jnp.max(s, axis=-1, keepdims=True)
        p = jnp.exp(s)
        p = p * pl.reciprocal(jnp.sum(p, axis=-1, keepdims=True), approx=True)
        oh = jnp.einsum('bqk,bkd->bqd', p.astype(jnp.bfloat16), vh,
                        preferred_element_type=jnp.float32)                  # (TB, C, hd) f32
        head_outs.append(oh)

    # In-register head concat (lane-dense (TB, C, D)) -> single Wo matmul.  No scratch.
    ocat = jnp.concatenate(head_outs, axis=-1)                               # (TB, C, D) f32
    attn = jnp.dot(ocat.reshape(TB * C, D).astype(jnp.bfloat16), wo_ref[...],
                   preferred_element_type=jnp.float32)                       # (TB*C, D) f32
    attn3 = attn.reshape(TB, C, D)

    # masked mean pooling over valid couriers -> state_context (TB, D).
    # Exact division: denom is a small integer count; approx reciprocal would
    # propagate ~1e-3 error into the decoder logits / log-likelihood.
    w_row = 1.0 - mwp                                                        # (TB, C)
    denom = jnp.maximum(jnp.sum(w_row, axis=-1, keepdims=True), 1.0)         # (TB, 1)
    ctx = jnp.sum(attn3 * w_row[:, :, None], axis=1) / denom                 # (TB, D)
    ctx_out_ref[...] = ctx.astype(ctx_out_ref.dtype)

    # ---- DecoderCell: pointer step, batched to M=TB ----
    # query from step_context = concat([state_context, h_budget]) as split matmul
    qd = (jnp.dot(ctx.astype(jnp.bfloat16), wqd_ctx_ref[...],
                  preferred_element_type=jnp.float32) +
          jnp.dot(hb.astype(jnp.bfloat16), wqd_bud_ref[...],
                  preferred_element_type=jnp.float32))                       # (TB, D) f32
    qd = qd * (1.0 / jnp.sqrt(jnp.float32(D)))        # fold 1/sqrt(D) into the query

    # per-courier compatibility <qd_b, x_bc>: VPU multiply + XLU lane reduce
    logits = jnp.sum(x.astype(jnp.float32) * qd[:, None, :], axis=-1)        # (TB, C)
    logits = TANH_CLIP * jnp.tanh(logits)
    logits = logits + mtot * NEG_INF                                         # f32 masking
    logits = logits - jnp.max(logits, axis=-1, keepdims=True)
    lse = jnp.log(jnp.sum(jnp.exp(logits), axis=-1, keepdims=True))
    # TODO(synk): all-masked rows degenerate to a uniform log-softmax (argmax picks
    # index 0), matching the reference's behavior; no sentinel is emitted.
    logp_out_ref[...] = (logits - lse).astype(logp_out_ref.dtype)


def _choose_tb(b):
    """Largest batch tile that still yields >= 4 grid steps (2 per TC on v7x)."""
    for tb in (256, 128, 64, 32, 16, 8):
        if b >= 4 * tb:
            return tb
    return 8


def am_pallas(state_h0, masks, h_budget, params):
    """state_h0: (B,C,D) bf16, masks: (B,2,C) f32, h_budget: (B,32) f32."""
    B, C, D = state_h0.shape
    TB = _choose_tb(B)
    Bp = ((B + TB - 1) // TB) * TB
    if Bp != B:
        pad = Bp - B
        state_h0 = jnp.pad(state_h0, ((0, pad), (0, 0), (0, 0)))
        masks = jnp.pad(masks, ((0, pad), (0, 0), (0, 0)), constant_values=1.0)
        h_budget = jnp.pad(h_budget, ((0, pad), (0, 0)))

    bf16 = jnp.bfloat16
    # Fused QKV weight: (D, 3D), packed once host-side.
    wqkv = jnp.concatenate([params["wq"], params["wk"], params["wv"]], axis=1).astype(bf16)

    in_specs = [
        pl.BlockSpec((TB, C, D), lambda b: (b, 0, 0)),            # state_h0 (bf16)
        pl.BlockSpec((TB, 2, C), lambda b: (b, 0, 0)),            # merged masks (f32)
        pl.BlockSpec((TB, BUDGET_DIM), lambda b: (b, 0)),         # h_budget (f32)
        pl.BlockSpec((D, 3 * D), lambda b: (0, 0)),               # fused Wqkv
        pl.BlockSpec((D, D), lambda b: (0, 0)),                   # Wo
        pl.BlockSpec((D, D), lambda b: (0, 0)),                   # Wq_dec (context part)
        pl.BlockSpec((BUDGET_DIM, D), lambda b: (0, 0)),          # Wq_dec (budget part)
    ]
    out_specs = [
        pl.BlockSpec((TB, D), lambda b: (b, 0)),                  # state_context (lane-dense)
        pl.BlockSpec((TB, C), lambda b: (b, 0)),                  # per-courier log-probs
    ]
    out_shape = (jax.ShapeDtypeStruct((Bp, D), jnp.float32),
                 jax.ShapeDtypeStruct((Bp, C), jnp.float32))

    ctx, logp = pl.pallas_call(
        _am_kernel,
        grid=(Bp // TB,),
        in_specs=in_specs,
        out_specs=out_specs,
        out_shape=out_shape,
        compiler_params=pltpu.CompilerParams(dimension_semantics=("parallel",)),
    )(state_h0, masks, h_budget, wqkv,
      params["wo"].astype(bf16), params["wqd_ctx"].astype(bf16),
      params["wqd_bud"].astype(bf16))
    return ctx[:B], logp[:B]


def attention_model_forward(params, x, encoder_output, rest_budget,
                            mask_has_no_task, decode_type="greedy"):
    x0, x1, x2 = x
    node_embeddings, graph_embedding, customers_embedding = encoder_output
    B, C, _ = customers_embedding.shape

    # mask_workerpad = ~x[2].sum(2, keepdims=True).bool();  mask = OR(workerpad, no_task)
    mask_workerpad = (jnp.sum(x2, axis=2, keepdims=True) == 0)            # (B, C, 1)
    mask = jnp.logical_or(mask_workerpad, mask_has_no_task)               # bool "+" == OR

    # TODO(synk): generate_state_hidden / DecoderCell / AttentionEncoder bodies are
    # not in the reference source; state_h0 is taken as customers_embedding
    # (== state.static_h) and the decoder is a single pointer step over couriers.
    state_h0 = customers_embedding.astype(jnp.bfloat16)                   # (B, C, D)

    # linear_budget: nn.Linear(1, 32) on (0.01 * rest_budget)[:, None, None]
    hb_in = (0.01 * rest_budget)[:, None]                                 # (B, 1)
    h_budget = (hb_in * params["w_budget"][None, :]
                + params["b_budget"][None, :]).astype(jnp.float32)        # (B, 32)

    masks = jnp.concatenate(
        [jnp.swapaxes(mask_workerpad, 1, 2), jnp.swapaxes(mask, 1, 2)],
        axis=1).astype(jnp.float32)                                       # (B, 2, C)

    ctx, logp = am_pallas(state_h0, masks, h_budget, params)

    state_context = ctx[:, None, :]                                       # (B, 1, D)
    total_logps = logp[:, None, :]                                        # (B, 1, C)

    # greedy decode (decode_type == 'greedy')
    total_tours = jnp.argmax(total_logps, axis=-1)                        # (B, 1)

    # get_log_likelihood: gather chosen log-prob per step and sum over steps
    ll = jnp.take_along_axis(total_logps, total_tours[..., None],
                             axis=2)[..., 0].sum(axis=1)                  # (B,)
    return ll, total_tours, state_context


def init_params(key, D=EMBED_DIM):
    ks = jax.random.split(key, 8)
    s = 1.0 / jnp.sqrt(jnp.float32(D))
    return {
        "wq": jax.random.normal(ks[0], (D, D), jnp.float32) * s,
        "wk": jax.random.normal(ks[1], (D, D), jnp.float32) * s,
        "wv": jax.random.normal(ks[2], (D, D), jnp.float32) * s,
        "wo": jax.random.normal(ks[3], (D, D), jnp.float32) * s,
        "wqd_ctx": jax.random.normal(ks[4], (D, D), jnp.float32) * s,
        "wqd_bud": jax.random.normal(ks[5], (BUDGET_DIM, D), jnp.float32)
                   / jnp.sqrt(jnp.float32(BUDGET_DIM)),
        "w_budget": jax.random.normal(ks[6], (BUDGET_DIM,), jnp.float32),  # Linear(1,32) weight col
        "b_budget": jax.random.normal(ks[7], (BUDGET_DIM,), jnp.float32) * 0.1,
    }


if __name__ == "__main__":
    key = jax.random.PRNGKey(0)
    k_par, k_dep, k_grd, k_cus, k_nod, k_cem, k_bud = jax.random.split(key, 7)

    B, C, D = 32, 8, EMBED_DIM          # batch, couriers, embed_dim (TB=8 -> 4 grid steps)
    max_n_customers = 4
    n_nodes = 16

    params = init_params(k_par)

    # x per the docstring
    depot = jax.random.normal(k_dep, (B, 1, 4), jnp.float32)
    grids = jax.random.normal(k_grd, (B, n_nodes - 1, 4), jnp.float32)
    customers = jnp.abs(jax.random.normal(k_cus, (B, C, 2 * max_n_customers), jnp.float32))
    customers = customers.at[:, -1, :].set(0.0)          # one padded courier -> masked

    # encoder_output (precomputed upstream in the reference model)
    node_embeddings = jax.random.normal(k_nod, (B, n_nodes, D), jnp.float32)
    graph_embedding = node_embeddings.mean(axis=1)
    customers_embedding = jax.random.normal(k_cem, (B, C, D), jnp.float32)

    rest_budget = jnp.abs(jax.random.normal(k_bud, (B,), jnp.float32)) * 100.0
    mask_has_no_task = jnp.zeros((B, C, 1), dtype=bool).at[0, 2, 0].set(True)

    ll, tours, state_context = attention_model_forward(
        params,
        (depot, grids, customers),
        (node_embeddings, graph_embedding, customers_embedding),
        rest_budget,
        mask_has_no_task,
        decode_type="greedy",
    )
    jax.block_until_ready((ll, tours, state_context))
    assert ll.shape == (B,)
    assert tours.shape == (B, 1)
    assert state_context.shape == (B, 1, D)
    assert bool(jnp.all(jnp.isfinite(ll)))
    assert bool(jnp.all(jnp.isfinite(state_context)))
    print("KERNEL_OK")
</pallas_src>

<mosaic_0001>
module attributes {stable_mosaic.version = 11 : i64} {
  func.func @_am_kernel(%arg0: i32, %arg1: memref<8x8x128xbf16, #tpu.memory_space<vmem>>, %arg2: memref<8x2x8xf32, #tpu.memory_space<vmem>>, %arg3: memref<8x32xf32, #tpu.memory_space<vmem>>, %arg4: memref<128x384xbf16, #tpu.memory_space<vmem>>, %arg5: memref<128x128xbf16, #tpu.memory_space<vmem>>, %arg6: memref<128x128xbf16, #tpu.memory_space<vmem>>, %arg7: memref<32x128xbf16, #tpu.memory_space<vmem>>, %arg8: memref<8x128xf32, #tpu.memory_space<vmem>>, %arg9: memref<8x8xf32, #tpu.memory_space<vmem>>) attributes {dimension_semantics = [#tpu.dimension_semantics<parallel>], iteration_bounds = array<i64: 4>, scalar_prefetch = 0 : i64, scratch_operands = 0 : i64, tpu.core_type = #tpu.core_type<tc>, window_params = [{transform_indices = @transform_0, window_bounds = array<i64: 8, 8, 128>}, {transform_indices = @transform_1, window_bounds = array<i64: 8, 2, 8>}, {transform_indices = @transform_2, window_bounds = array<i64: 8, 32>}, {pipeline_mode = #tpu.pipeline_mode<synchronous>, transform_indices = @transform_3, window_bounds = array<i64: 128, 384>}, {pipeline_mode = #tpu.pipeline_mode<synchronous>, transform_indices = @transform_4, window_bounds = array<i64: 128, 128>}, {pipeline_mode = #tpu.pipeline_mode<synchronous>, transform_indices = @transform_5, window_bounds = array<i64: 128, 128>}, {pipeline_mode = #tpu.pipeline_mode<synchronous>, transform_indices = @transform_6, window_bounds = array<i64: 32, 128>}, {transform_indices = @transform_7, window_bounds = array<i64: 8, 128>}, {transform_indices = @transform_8, window_bounds = array<i64: 8, 8>}]} {
    %c0 = arith.constant 0 : index
    %c0_0 = arith.constant 0 : index
    %c0_1 = arith.constant 0 : index
    %0 = vector.load %arg1[%c0, %c0_0, %c0_1] : memref<8x8x128xbf16, #tpu.memory_space<vmem>>, vector<8x8x128xbf16>
    %c0_2 = arith.constant 0 : index
    %c0_3 = arith.constant 0 : index
    %c0_4 = arith.constant 0 : index
    %1 = vector.load %arg2[%c0_2, %c0_3, %c0_4] : memref<8x2x8xf32, #tpu.memory_space<vmem>>, vector<8x1x8xf32>
    %2 = vector.shape_cast %1 : vector<8x1x8xf32> to vector<8x8xf32>
    %c0_5 = arith.constant 0 : index
    %c1 = arith.constant 1 : index
    %c0_6 = arith.constant 0 : index
    %3 = vector.load %arg2[%c0_5, %c1, %c0_6] : memref<8x2x8xf32, #tpu.memory_space<vmem>>, vector<8x1x8xf32>
    %4 = vector.shape_cast %3 : vector<8x1x8xf32> to vector<8x8xf32>
    %c0_7 = arith.constant 0 : index
    %c0_8 = arith.constant 0 : index
    %5 = vector.load %arg3[%c0_7, %c0_8] : memref<8x32xf32, #tpu.memory_space<vmem>>, vector<8x32xf32>
    %6 = vector.shape_cast %0 : vector<8x8x128xbf16> to vector<64x128xbf16>
    %c0_9 = arith.constant 0 : index
    %c0_10 = arith.constant 0 : index
    %7 = vector.load %arg4[%c0_9, %c0_10] : memref<128x384xbf16, #tpu.memory_space<vmem>>, vector<128x384xbf16>
    %cst = arith.constant dense<0.000000e+00> : vector<64x384xf32>
    %8 = tpu.matmul %6, %7, %cst {dimension_numbers = #tpu.dot_dimension_numbers<[1], [0], [0], [1], [0, 0, 1, 1], [], []>} : vector<64x128xbf16>, vector<128x384xbf16>, vector<64x384xf32> -> vector<64x384xf32>
    %9 = arith.truncf %8 : vector<64x384xf32> to vector<64x384xbf16>
    %10 = vector.extract_strided_slice %9 {offsets = [0, 0], sizes = [64, 128], strides = [1, 1]} : vector<64x384xbf16> to vector<64x128xbf16>
    %11 = vector.shape_cast %10 : vector<64x128xbf16> to vector<8x8x128xbf16>
    %12 = vector.extract_strided_slice %9 {offsets = [0, 128], sizes = [64, 128], strides = [1, 1]} : vector<64x384xbf16> to vector<64x128xbf16>
    %13 = vector.shape_cast %12 : vector<64x128xbf16> to vector<8x8x128xbf16>
    %14 = vector.extract_strided_slice %9 {offsets = [0, 256], sizes = [64, 128], strides = [1, 1]} : vector<64x384xbf16> to vector<64x128xbf16>
    %15 = vector.shape_cast %14 : vector<64x128xbf16> to vector<8x8x128xbf16>
    %cst_11 = arith.constant -1.000000e+09 : f32
    %16 = vector.broadcast %cst_11 : f32 to vector<8x8xf32>
    %17 = arith.mulf %2, %16 : vector<8x8xf32>
    %18 = vector.shape_cast %17 : vector<8x8xf32> to vector<8x1x8xf32>
    %cst_12 = arith.constant 1.600000e+01 : f32
    %19 = math.sqrt %cst_12 : f32
    %cst_13 = arith.constant 1.000000e+00 : f32
    %20 = arith.divf %cst_13, %19 : f32
    %21 = vector.extract_strided_slice %11 {offsets = [0, 0, 0], sizes = [8, 8, 16], strides = [1, 1, 1]} : vector<8x8x128xbf16> to vector<8x8x16xbf16>
    %22 = vector.extract_strided_slice %13 {offsets = [0, 0, 0], sizes = [8, 8, 16], strides = [1, 1, 1]} : vector<8x8x128xbf16> to vector<8x8x16xbf16>
    %23 = vector.extract_strided_slice %15 {offsets = [0, 0, 0], sizes = [8, 8, 16], strides = [1, 1, 1]} : vector<8x8x128xbf16> to vector<8x8x16xbf16>
    "tpu.trace_start"() <{level = 10 : i32, message = "bqd,bkd->bqk"}> : () -> ()
    %cst_14 = arith.constant dense<0.000000e+00> : vector<8x8x8xf32>
    %24 = tpu.matmul %21, %22, %cst_14 {dimension_numbers = #tpu.dot_dimension_numbers<[2], [2], [1], [1], [0, 0, 0, 1, 1, 1], [0], [0]>} : vector<8x8x16xbf16>, vector<8x8x16xbf16>, vector<8x8x8xf32> -> vector<8x8x8xf32>
    "tpu.trace_stop"() : () -> ()
    %25 = vector.broadcast %20 : f32 to vector<8x8x8xf32>
    %26 = arith.mulf %24, %25 : vector<8x8x8xf32>
    %27 = vector.broadcast %18 : vector<8x1x8xf32> to vector<8x8x8xf32>
    %28 = arith.addf %26, %27 : vector<8x8x8xf32>
    %cst_15 = arith.constant dense<0xFF800000> : vector<8x8xf32>
    %29 = vector.multi_reduction <maximumf>, %28, %cst_15 [2] : vector<8x8x8xf32> to vector<8x8xf32>
    %30 = vector.shape_cast %29 : vector<8x8xf32> to vector<8x8x1xf32>
    %31 = vector.broadcast %30 : vector<8x8x1xf32> to vector<8x8x8xf32>
    %32 = arith.subf %28, %31 : vector<8x8x8xf32>
    %33 = math.exp %32 : vector<8x8x8xf32>
    %cst_16 = arith.constant dense<0.000000e+00> : vector<8x8xf32>
    %34 = vector.multi_reduction <add>, %33, %cst_16 [2] : vector<8x8x8xf32> to vector<8x8xf32>
    %35 = vector.shape_cast %34 : vector<8x8xf32> to vector<8x8x1xf32>
    %36 = tpu.reciprocal %35 {approx = true} : vector<8x8x1xf32> -> vector<8x8x1xf32>
    %37 = vector.broadcast %36 : vector<8x8x1xf32> to vector<8x8x8xf32>
    %38 = arith.mulf %33, %37 : vector<8x8x8xf32>
    %39 = arith.truncf %38 : vector<8x8x8xf32> to vector<8x8x8xbf16>
    "tpu.trace_start"() <{level = 10 : i32, message = "bqk,bkd->bqd"}> : () -> ()
    %cst_17 = arith.constant dense<0.000000e+00> : vector<8x8x16xf32>
    %40 = tpu.matmul %39, %23, %cst_17 {dimension_numbers = #tpu.dot_dimension_numbers<[2], [1], [1], [2], [0, 0, 0, 1, 1, 2], [0], [0]>} : vector<8x8x8xbf16>, vector<8x8x16xbf16>, vector<8x8x16xf32> -> vector<8x8x16xf32>
    "tpu.trace_stop"() : () -> ()
    %41 = vector.extract_strided_slice %11 {offsets = [0, 0, 16], sizes = [8, 8, 16], strides = [1, 1, 1]} : vector<8x8x128xbf16> to vector<8x8x16xbf16>
    %42 = vector.extract_strided_slice %13 {offsets = [0, 0, 16], sizes = [8, 8, 16], strides = [1, 1, 1]} : vector<8x8x128xbf16> to vector<8x8x16xbf16>
    %43 = vector.extract_strided_slice %15 {offsets = [0, 0, 16], sizes = [8, 8, 16], strides = [1, 1, 1]} : vector<8x8x128xbf16> to vector<8x8x16xbf16>
    "tpu.trace_start"() <{level = 10 : i32, message = "bqd,bkd->bqk"}> : () -> ()
    %cst_18 = arith.constant dense<0.000000e+00> : vector<8x8x8xf32>
    %44 = tpu.matmul %41, %42, %cst_18 {dimension_numbers = #tpu.dot_dimension_numbers<[2], [2], [1], [1], [0, 0, 0, 1, 1, 1], [0], [0]>} : vector<8x8x16xbf16>, vector<8x8x16xbf16>, vector<8x8x8xf32> -> vector<8x8x8xf32>
    "tpu.trace_stop"() : () -> ()
    %45 = vector.broadcast %20 : f32 to vector<8x8x8xf32>
    %46 = arith.mulf %44, %45 : vector<8x8x8xf32>
    %47 = vector.broadcast %18 : vector<8x1x8xf32> to vector<8x8x8xf32>
    %48 = arith.addf %46, %47 : vector<8x8x8xf32>
    %cst_19 = arith.constant dense<0xFF800000> : vector<8x8xf32>
    %49 = vector.multi_reduction <maximumf>, %48, %cst_19 [2] : vector<8x8x8xf32> to vector<8x8xf32>
    %50 = vector.shape_cast %49 : vector<8x8xf32> to vector<8x8x1xf32>
    %51 = vector.broadcast %50 : vector<8x8x1xf32> to vector<8x8x8xf32>
    %52 = arith.subf %48, %51 : vector<8x8x8xf32>
    %53 = math.exp %52 : vector<8x8x8xf32>
    %cst_20 = arith.constant dense<0.000000e+00> : vector<8x8xf32>
    %54 = vector.multi_reduction <add>, %53, %cst_20 [2] : vector<8x8x8xf32> to vector<8x8xf32>
    %55 = vector.shape_cast %54 : vector<8x8xf32> to vector<8x8x1xf32>
    %56 = tpu.reciprocal %55 {approx = true} : vector<8x8x1xf32> -> vector<8x8x1xf32>
    %57 = vector.broadcast %56 : vector<8x8x1xf32> to vector<8x8x8xf32>
    %58 = arith.mulf %53, %57 : vector<8x8x8xf32>
    %59 = arith.truncf %58 : vector<8x8x8xf32> to vector<8x8x8xbf16>
    "tpu.trace_start"() <{level = 10 : i32, message = "bqk,bkd->bqd"}> : () -> ()
    %cst_21 = arith.constant dense<0.000000e+00> : vector<8x8x16xf32>
    %60 = tpu.matmul %59, %43, %cst_21 {dimension_numbers = #tpu.dot_dimension_numbers<[2], [1], [1], [2], [0, 0, 0, 1, 1, 2], [0], [0]>} : vector<8x8x8xbf16>, vector<8x8x16xbf16>, vector<8x8x16xf32> -> vector<8x8x16xf32>
    "tpu.trace_stop"() : () -> ()
    %61 = vector.extract_strided_slice %11 {offsets = [0, 0, 32], sizes = [8, 8, 16], strides = [1, 1, 1]} : vector<8x8x128xbf16> to vector<8x8x16xbf16>
    %62 = vector.extract_strided_slice %13 {offsets = [0, 0, 32], sizes = [8, 8, 16], strides = [1, 1, 1]} : vector<8x8x128xbf16> to vector<8x8x16xbf16>
    %63 = vector.extract_strided_slice %15 {offsets = [0, 0, 32], sizes = [8, 8, 16], strides = [1, 1, 1]} : vector<8x8x128xbf16> to vector<8x8x16xbf16>
    "tpu.trace_start"() <{level = 10 : i32, message = "bqd,bkd->bqk"}> : () -> ()
    %cst_22 = arith.constant dense<0.000000e+00> : vector<8x8x8xf32>
    %64 = tpu.matmul %61, %62, %cst_22 {dimension_numbers = #tpu.dot_dimension_numbers<[2], [2], [1], [1], [0, 0, 0, 1, 1, 1], [0], [0]>} : vector<8x8x16xbf16>, vector<8x8x16xbf16>, vector<8x8x8xf32> -> vector<8x8x8xf32>
    "tpu.trace_stop"() : () -> ()
    %65 = vector.broadcast %20 : f32 to vector<8x8x8xf32>
    %66 = arith.mulf %64, %65 : vector<8x8x8xf32>
    %67 = vector.broadcast %18 : vector<8x1x8xf32> to vector<8x8x8xf32>
    %68 = arith.addf %66, %67 : vector<8x8x8xf32>
    %cst_23 = arith.constant dense<0xFF800000> : vector<8x8xf32>
    %69 = vector.multi_reduction <maximumf>, %68, %cst_23 [2] : vector<8x8x8xf32> to vector<8x8xf32>
    %70 = vector.shape_cast %69 : vector<8x8xf32> to vector<8x8x1xf32>
    %71 = vector.broadcast %70 : vector<8x8x1xf32> to vector<8x8x8xf32>
    %72 = arith.subf %68, %71 : vector<8x8x8xf32>
    %73 = math.exp %72 : vector<8x8x8xf32>
    %cst_24 = arith.constant dense<0.000000e+00> : vector<8x8xf32>
    %74 = vector.multi_reduction <add>, %73, %cst_24 [2] : vector<8x8x8xf32> to vector<8x8xf32>
    %75 = vector.shape_cast %74 : vector<8x8xf32> to vector<8x8x1xf32>
    %76 = tpu.reciprocal %75 {approx = true} : vector<8x8x1xf32> -> vector<8x8x1xf32>
    %77 = vector.broadcast %76 : vector<8x8x1xf32> to vector<8x8x8xf32>
    %78 = arith.mulf %73, %77 : vector<8x8x8xf32>
    %79 = arith.truncf %78 : vector<8x8x8xf32> to vector<8x8x8xbf16>
    "tpu.trace_start"() <{level = 10 : i32, message = "bqk,bkd->bqd"}> : () -> ()
    %cst_25 = arith.constant dense<0.000000e+00> : vector<8x8x16xf32>
    %80 = tpu.matmul %79, %63, %cst_25 {dimension_numbers = #tpu.dot_dimension_numbers<[2], [1], [1], [2], [0, 0, 0, 1, 1, 2], [0], [0]>} : vector<8x8x8xbf16>, vector<8x8x16xbf16>, vector<8x8x16xf32> -> vector<8x8x16xf32>
    "tpu.trace_stop"() : () -> ()
    %81 = vector.extract_strided_slice %11 {offsets = [0, 0, 48], sizes = [8, 8, 16], strides = [1, 1, 1]} : vector<8x8x128xbf16> to vector<8x8x16xbf16>
    %82 = vector.extract_strided_slice %13 {offsets = [0, 0, 48], sizes = [8, 8, 16], strides = [1, 1, 1]} : vector<8x8x128xbf16> to vector<8x8x16xbf16>
    %83 = vector.extract_strided_slice %15 {offsets = [0, 0, 48], sizes = [8, 8, 16], strides = [1, 1, 1]} : vector<8x8x128xbf16> to vector<8x8x16xbf16>
    "tpu.trace_start"() <{level = 10 : i32, message = "bqd,bkd->bqk"}> : () -> ()
    %cst_26 = arith.constant dense<0.000000e+00> : vector<8x8x8xf32>
    %84 = tpu.matmul %81, %82, %cst_26 {dimension_numbers = #tpu.dot_dimension_numbers<[2], [2], [1], [1], [0, 0, 0, 1, 1, 1], [0], [0]>} : vector<8x8x16xbf16>, vector<8x8x16xbf16>, vector<8x8x8xf32> -> vector<8x8x8xf32>
    "tpu.trace_stop"() : () -> ()
    %85 = vector.broadcast %20 : f32 to vector<8x8x8xf32>
    %86 = arith.mulf %84, %85 : vector<8x8x8xf32>
    %87 = vector.broadcast %18 : vector<8x1x8xf32> to vector<8x8x8xf32>
    %88 = arith.addf %86, %87 : vector<8x8x8xf32>
    %cst_27 = arith.constant dense<0xFF800000> : vector<8x8xf32>
    %89 = vector.multi_reduction <maximumf>, %88, %cst_27 [2] : vector<8x8x8xf32> to vector<8x8xf32>
    %90 = vector.shape_cast %89 : vector<8x8xf32> to vector<8x8x1xf32>
    %91 = vector.broadcast %90 : vector<8x8x1xf32> to vector<8x8x8xf32>
    %92 = arith.subf %88, %91 : vector<8x8x8xf32>
    %93 = math.exp %92 : vector<8x8x8xf32>
    %cst_28 = arith.constant dense<0.000000e+00> : vector<8x8xf32>
    %94 = vector.multi_reduction <add>, %93, %cst_28 [2] : vector<8x8x8xf32> to vector<8x8xf32>
    %95 = vector.shape_cast %94 : vector<8x8xf32> to vector<8x8x1xf32>
    %96 = tpu.reciprocal %95 {approx = true} : vector<8x8x1xf32> -> vector<8x8x1xf32>
    %97 = vector.broadcast %96 : vector<8x8x1xf32> to vector<8x8x8xf32>
    %98 = arith.mulf %93, %97 : vector<8x8x8xf32>
    %99 = arith.truncf %98 : vector<8x8x8xf32> to vector<8x8x8xbf16>
    "tpu.trace_start"() <{level = 10 : i32, message = "bqk,bkd->bqd"}> : () -> ()
    %cst_29 = arith.constant dense<0.000000e+00> : vector<8x8x16xf32>
    %100 = tpu.matmul %99, %83, %cst_29 {dimension_numbers = #tpu.dot_dimension_numbers<[2], [1], [1], [2], [0, 0, 0, 1, 1, 2], [0], [0]>} : vector<8x8x8xbf16>, vector<8x8x16xbf16>, vector<8x8x16xf32> -> vector<8x8x16xf32>
    "tpu.trace_stop"() : () -> ()
    %101 = vector.extract_strided_slice %11 {offsets = [0, 0, 64], sizes = [8, 8, 16], strides = [1, 1, 1]} : vector<8x8x128xbf16> to vector<8x8x16xbf16>
    %102 = vector.extract_strided_slice %13 {offsets = [0, 0, 64], sizes = [8, 8, 16], strides = [1, 1, 1]} : vector<8x8x128xbf16> to vector<8x8x16xbf16>
    %103 = vector.extract_strided_slice %15 {offsets = [0, 0, 64], sizes = [8, 8, 16], strides = [1, 1, 1]} : vector<8x8x128xbf16> to vector<8x8x16xbf16>
    "tpu.trace_start"() <{level = 10 : i32, message = "bqd,bkd->bqk"}> : () -> ()
    %cst_30 = arith.constant dense<0.000000e+00> : vector<8x8x8xf32>
    %104 = tpu.matmul %101, %102, %cst_30 {dimension_numbers = #tpu.dot_dimension_numbers<[2], [2], [1], [1], [0, 0, 0, 1, 1, 1], [0], [0]>} : vector<8x8x16xbf16>, vector<8x8x16xbf16>, vector<8x8x8xf32> -> vector<8x8x8xf32>
    "tpu.trace_stop"() : () -> ()
    %105 = vector.broadcast %20 : f32 to vector<8x8x8xf32>
    %106 = arith.mulf %104, %105 : vector<8x8x8xf32>
    %107 = vector.broadcast %18 : vector<8x1x8xf32> to vector<8x8x8xf32>
    %108 = arith.addf %106, %107 : vector<8x8x8xf32>
    %cst_31 = arith.constant dense<0xFF800000> : vector<8x8xf32>
    %109 = vector.multi_reduction <maximumf>, %108, %cst_31 [2] : vector<8x8x8xf32> to vector<8x8xf32>
    %110 = vector.shape_cast %109 : vector<8x8xf32> to vector<8x8x1xf32>
    %111 = vector.broadcast %110 : vector<8x8x1xf32> to vector<8x8x8xf32>
    %112 = arith.subf %108, %111 : vector<8x8x8xf32>
    %113 = math.exp %112 : vector<8x8x8xf32>
    %cst_32 = arith.constant dense<0.000000e+00> : vector<8x8xf32>
    %114 = vector.multi_reduction <add>, %113, %cst_32 [2] : vector<8x8x8xf32> to vector<8x8xf32>
    %115 = vector.shape_cast %114 : vector<8x8xf32> to vector<8x8x1xf32>
    %116 = tpu.reciprocal %115 {approx = true} : vector<8x8x1xf32> -> vector<8x8x1xf32>
    %117 = vector.broadcast %116 : vector<8x8x1xf32> to vector<8x8x8xf32>
    %118 = arith.mulf %113, %117 : vector<8x8x8xf32>
    %119 = arith.truncf %118 : vector<8x8x8xf32> to vector<8x8x8xbf16>
    "tpu.trace_start"() <{level = 10 : i32, message = "bqk,bkd->bqd"}> : () -> ()
    %cst_33 = arith.constant dense<0.000000e+00> : vector<8x8x16xf32>
    %120 = tpu.matmul %119, %103, %cst_33 {dimension_numbers = #tpu.dot_dimension_numbers<[2], [1], [1], [2], [0, 0, 0, 1, 1, 2], [0], [0]>} : vector<8x8x8xbf16>, vector<8x8x16xbf16>, vector<8x8x16xf32> -> vector<8x8x16xf32>
    "tpu.trace_stop"() : () -> ()
    %121 = vector.extract_strided_slice %11 {offsets = [0, 0, 80], sizes = [8, 8, 16], strides = [1, 1, 1]} : vector<8x8x128xbf16> to vector<8x8x16xbf16>
    %122 = vector.extract_strided_slice %13 {offsets = [0, 0, 80], sizes = [8, 8, 16], strides = [1, 1, 1]} : vector<8x8x128xbf16> to vector<8x8x16xbf16>
    %123 = vector.extract_strided_slice %15 {offsets = [0, 0, 80], sizes = [8, 8, 16], strides = [1, 1, 1]} : vector<8x8x128xbf16> to vector<8x8x16xbf16>
    "tpu.trace_start"() <{level = 10 : i32, message = "bqd,bkd->bqk"}> : () -> ()
    %cst_34 = arith.constant dense<0.000000e+00> : vector<8x8x8xf32>
    %124 = tpu.matmul %121, %122, %cst_34 {dimension_numbers = #tpu.dot_dimension_numbers<[2], [2], [1], [1], [0, 0, 0, 1, 1, 1], [0], [0]>} : vector<8x8x16xbf16>, vector<8x8x16xbf16>, vector<8x8x8xf32> -> vector<8x8x8xf32>
    "tpu.trace_stop"() : () -> ()
    %125 = vector.broadcast %20 : f32 to vector<8x8x8xf32>
    %126 = arith.mulf %124, %125 : vector<8x8x8xf32>
    %127 = vector.broadcast %18 : vector<8x1x8xf32> to vector<8x8x8xf32>
    %128 = arith.addf %126, %127 : vector<8x8x8xf32>
    %cst_35 = arith.constant dense<0xFF800000> : vector<8x8xf32>
    %129 = vector.multi_reduction <maximumf>, %128, %cst_35 [2] : vector<8x8x8xf32> to vector<8x8xf32>
    %130 = vector.shape_cast %129 : vector<8x8xf32> to vector<8x8x1xf32>
    %131 = vector.broadcast %130 : vector<8x8x1xf32> to vector<8x8x8xf32>
    %132 = arith.subf %128, %131 : vector<8x8x8xf32>
    %133 = math.exp %132 : vector<8x8x8xf32>
    %cst_36 = arith.constant dense<0.000000e+00> : vector<8x8xf32>
    %134 = vector.multi_reduction <add>, %133, %cst_36 [2] : vector<8x8x8xf32> to vector<8x8xf32>
    %135 = vector.shape_cast %134 : vector<8x8xf32> to vector<8x8x1xf32>
    %136 = tpu.reciprocal %135 {approx = true} : vector<8x8x1xf32> -> vector<8x8x1xf32>
    %137 = vector.broadcast %136 : vector<8x8x1xf32> to vector<8x8x8xf32>
    %138 = arith.mulf %133, %137 : vector<8x8x8xf32>
    %139 = arith.truncf %138 : vector<8x8x8xf32> to vector<8x8x8xbf16>
    "tpu.trace_start"() <{level = 10 : i32, message = "bqk,bkd->bqd"}> : () -> ()
    %cst_37 = arith.constant dense<0.000000e+00> : vector<8x8x16xf32>
    %140 = tpu.matmul %139, %123, %cst_37 {dimension_numbers = #tpu.dot_dimension_numbers<[2], [1], [1], [2], [0, 0, 0, 1, 1, 2], [0], [0]>} : vector<8x8x8xbf16>, vector<8x8x16xbf16>, vector<8x8x16xf32> -> vector<8x8x16xf32>
    "tpu.trace_stop"() : () -> ()
    %141 = vector.extract_strided_slice %11 {offsets = [0, 0, 96], sizes = [8, 8, 16], strides = [1, 1, 1]} : vector<8x8x128xbf16> to vector<8x8x16xbf16>
    %142 = vector.extract_strided_slice %13 {offsets = [0, 0, 96], sizes = [8, 8, 16], strides = [1, 1, 1]} : vector<8x8x128xbf16> to vector<8x8x16xbf16>
    %143 = vector.extract_strided_slice %15 {offsets = [0, 0, 96], sizes = [8, 8, 16], strides = [1, 1, 1]} : vector<8x8x128xbf16> to vector<8x8x16xbf16>
    "tpu.trace_start"() <{level = 10 : i32, message = "bqd,bkd->bqk"}> : () -> ()
    %cst_38 = arith.constant dense<0.000000e+00> : vector<8x8x8xf32>
    %144 = tpu.matmul %141, %142, %cst_38 {dimension_numbers = #tpu.dot_dimension_numbers<[2], [2], [1], [1], [0, 0, 0, 1, 1, 1], [0], [0]>} : vector<8x8x16xbf16>, vector<8x8x16xbf16>, vector<8x8x8xf32> -> vector<8x8x8xf32>
    "tpu.trace_stop"() : () -> ()
    %145 = vector.broadcast %20 : f32 to vector<8x8x8xf32>
    %146 = arith.mulf %144, %145 : vector<8x8x8xf32>
    %147 = vector.broadcast %18 : vector<8x1x8xf32> to vector<8x8x8xf32>
    %148 = arith.addf %146, %147 : vector<8x8x8xf32>
    %cst_39 = arith.constant dense<0xFF800000> : vector<8x8xf32>
    %149 = vector.multi_reduction <maximumf>, %148, %cst_39 [2] : vector<8x8x8xf32> to vector<8x8xf32>
    %150 = vector.shape_cast %149 : vector<8x8xf32> to vector<8x8x1xf32>
    %151 = vector.broadcast %150 : vector<8x8x1xf32> to vector<8x8x8xf32>
    %152 = arith.subf %148, %151 : vector<8x8x8xf32>
    %153 = math.exp %152 : vector<8x8x8xf32>
    %cst_40 = arith.constant dense<0.000000e+00> : vector<8x8xf32>
    %154 = vector.multi_reduction <add>, %153, %cst_40 [2] : vector<8x8x8xf32> to vector<8x8xf32>
    %155 = vector.shape_cast %154 : vector<8x8xf32> to vector<8x8x1xf32>
    %156 = tpu.reciprocal %155 {approx = true} : vector<8x8x1xf32> -> vector<8x8x1xf32>
    %157 = vector.broadcast %156 : vector<8x8x1xf32> to vector<8x8x8xf32>
    %158 = arith.mulf %153, %157 : vector<8x8x8xf32>
    %159 = arith.truncf %158 : vector<8x8x8xf32> to vector<8x8x8xbf16>
    "tpu.trace_start"() <{level = 10 : i32, message = "bqk,bkd->bqd"}> : () -> ()
    %cst_41 = arith.constant dense<0.000000e+00> : vector<8x8x16xf32>
    %160 = tpu.matmul %159, %143, %cst_41 {dimension_numbers = #tpu.dot_dimension_numbers<[2], [1], [1], [2], [0, 0, 0, 1, 1, 2], [0], [0]>} : vector<8x8x8xbf16>, vector<8x8x16xbf16>, vector<8x8x16xf32> -> vector<8x8x16xf32>
    "tpu.trace_stop"() : () -> ()
    %161 = vector.extract_strided_slice %11 {offsets = [0, 0, 112], sizes = [8, 8, 16], strides = [1, 1, 1]} : vector<8x8x128xbf16> to vector<8x8x16xbf16>
    %162 = vector.extract_strided_slice %13 {offsets = [0, 0, 112], sizes = [8, 8, 16], strides = [1, 1, 1]} : vector<8x8x128xbf16> to vector<8x8x16xbf16>
    %163 = vector.extract_strided_slice %15 {offsets = [0, 0, 112], sizes = [8, 8, 16], strides = [1, 1, 1]} : vector<8x8x128xbf16> to vector<8x8x16xbf16>
    "tpu.trace_start"() <{level = 10 : i32, message = "bqd,bkd->bqk"}> : () -> ()
    %cst_42 = arith.constant dense<0.000000e+00> : vector<8x8x8xf32>
    %164 = tpu.matmul %161, %162, %cst_42 {dimension_numbers = #tpu.dot_dimension_numbers<[2], [2], [1], [1], [0, 0, 0, 1, 1, 1], [0], [0]>} : vector<8x8x16xbf16>, vector<8x8x16xbf16>, vector<8x8x8xf32> -> vector<8x8x8xf32>
    "tpu.trace_stop"() : () -> ()
    %165 = vector.broadcast %20 : f32 to vector<8x8x8xf32>
    %166 = arith.mulf %164, %165 : vector<8x8x8xf32>
    %167 = vector.broadcast %18 : vector<8x1x8xf32> to vector<8x8x8xf32>
    %168 = arith.addf %166, %167 : vector<8x8x8xf32>
    %cst_43 = arith.constant dense<0xFF800000> : vector<8x8xf32>
    %169 = vector.multi_reduction <maximumf>, %168, %cst_43 [2] : vector<8x8x8xf32> to vector<8x8xf32>
    %170 = vector.shape_cast %169 : vector<8x8xf32> to vector<8x8x1xf32>
    %171 = vector.broadcast %170 : vector<8x8x1xf32> to vector<8x8x8xf32>
    %172 = arith.subf %168, %171 : vector<8x8x8xf32>
    %173 = math.exp %172 : vector<8x8x8xf32>
    %cst_44 = arith.constant dense<0.000000e+00> : vector<8x8xf32>
    %174 = vector.multi_reduction <add>, %173, %cst_44 [2] : vector<8x8x8xf32> to vector<8x8xf32>
    %175 = vector.shape_cast %174 : vector<8x8xf32> to vector<8x8x1xf32>
    %176 = tpu.reciprocal %175 {approx = true} : vector<8x8x1xf32> -> vector<8x8x1xf32>
    %177 = vector.broadcast %176 : vector<8x8x1xf32> to vector<8x8x8xf32>
    %178 = arith.mulf %173, %177 : vector<8x8x8xf32>
    %179 = arith.truncf %178 : vector<8x8x8xf32> to vector<8x8x8xbf16>
    "tpu.trace_start"() <{level = 10 : i32, message = "bqk,bkd->bqd"}> : () -> ()
    %cst_45 = arith.constant dense<0.000000e+00> : vector<8x8x16xf32>
    %180 = tpu.matmul %179, %163, %cst_45 {dimension_numbers = #tpu.dot_dimension_numbers<[2], [1], [1], [2], [0, 0, 0, 1, 1, 2], [0], [0]>} : vector<8x8x8xbf16>, vector<8x8x16xbf16>, vector<8x8x16xf32> -> vector<8x8x16xf32>
    "tpu.trace_stop"() : () -> ()
    %181 = tpu.concatenate %40, %60, %80, %100, %120, %140, %160, %180 in 2 : vector<8x8x16xf32>, vector<8x8x16xf32>, vector<8x8x16xf32>, vector<8x8x16xf32>, vector<8x8x16xf32>, vector<8x8x16xf32>, vector<8x8x16xf32>, vector<8x8x16xf32> -> vector<8x8x128xf32>
    %182 = vector.shape_cast %181 : vector<8x8x128xf32> to vector<64x128xf32>
    %183 = arith.truncf %182 : vector<64x128xf32> to vector<64x128xbf16>
    %c0_46 = arith.constant 0 : index
    %c0_47 = arith.constant 0 : index
    %184 = vector.load %arg5[%c0_46, %c0_47] : memref<128x128xbf16, #tpu.memory_space<vmem>>, vector<128x128xbf16>
    %cst_48 = arith.constant dense<0.000000e+00> : vector<64x128xf32>
    %185 = tpu.matmul %183, %184, %cst_48 {dimension_numbers = #tpu.dot_dimension_numbers<[1], [0], [0], [1], [0, 0, 1, 1], [], []>} : vector<64x128xbf16>, vector<128x128xbf16>, vector<64x128xf32> -> vector<64x128xf32>
    %186 = vector.shape_cast %185 : vector<64x128xf32> to vector<8x8x128xf32>
    %cst_49 = arith.constant 1.000000e+00 : f32
    %187 = vector.broadcast %cst_49 : f32 to vector<8x8xf32>
    %188 = arith.subf %187, %2 : vector<8x8xf32>
    %cst_50 = arith.constant dense<0.000000e+00> : vector<8xf32>
    %189 = vector.multi_reduction <add>, %188, %cst_50 [1] : vector<8x8xf32> to vector<8xf32>
    %190 = vector.shape_cast %189 : vector<8xf32> to vector<8x1xf32>
    %cst_51 = arith.constant 1.000000e+00 : f32
    %191 = vector.broadcast %cst_51 : f32 to vector<8x1xf32>
    %192 = arith.maximumf %190, %191 : vector<8x1xf32>
    %193 = vector.shape_cast %188 : vector<8x8xf32> to vector<8x8x1xf32>
    %194 = vector.broadcast %193 : vector<8x8x1xf32> to vector<8x8x128xf32>
    %195 = arith.mulf %186, %194 : vector<8x8x128xf32>
    %cst_52 = arith.constant dense<0.000000e+00> : vector<8x128xf32>
    %196 = vector.multi_reduction <add>, %195, %cst_52 [1] : vector<8x8x128xf32> to vector<8x128xf32>
    %197 = vector.broadcast %192 : vector<8x1xf32> to vector<8x128xf32>
    %198 = arith.divf %196, %197 : vector<8x128xf32>
    %c0_53 = arith.constant 0 : index
    %c0_54 = arith.constant 0 : index
    %199 = vector.load %arg8[%c0_53, %c0_54] : memref<8x128xf32, #tpu.memory_space<vmem>>, vector<8x128xf32>
    tpu.vector_store %arg8[%c0_53, %c0_54], %198 {strides = array<i32>} : memref<8x128xf32, #tpu.memory_space<vmem>>, vector<8x128xf32>,
    %200 = arith.truncf %198 : vector<8x128xf32> to vector<8x128xbf16>
    %c0_55 = arith.constant 0 : index
    %c0_56 = arith.constant 0 : index
    %201 = vector.load %arg6[%c0_55, %c0_56] : memref<128x128xbf16, #tpu.memory_space<vmem>>, vector<128x128xbf16>
    %cst_57 = arith.constant dense<0.000000e+00> : vector<8x128xf32>
    %202 = tpu.matmul %200, %201, %cst_57 {dimension_numbers = #tpu.dot_dimension_numbers<[1], [0], [0], [1], [0, 0, 1, 1], [], []>} : vector<8x128xbf16>, vector<128x128xbf16>, vector<8x128xf32> -> vector<8x128xf32>
    %203 = arith.truncf %5 : vector<8x32xf32> to vector<8x32xbf16>
    %c0_58 = arith.constant 0 : index
    %c0_59 = arith.constant 0 : index
    %204 = vector.load %arg7[%c0_58, %c0_59] : memref<32x128xbf16, #tpu.memory_space<vmem>>, vector<32x128xbf16>
    %cst_60 = arith.constant dense<0.000000e+00> : vector<8x128xf32>
    %205 = tpu.matmul %203, %204, %cst_60 {dimension_numbers = #tpu.dot_dimension_numbers<[1], [0], [0], [1], [0, 0, 1, 1], [], []>} : vector<8x32xbf16>, vector<32x128xbf16>, vector<8x128xf32> -> vector<8x128xf32>
    %206 = arith.addf %202, %205 : vector<8x128xf32>
    %cst_61 = arith.constant 1.280000e+02 : f32
    %207 = math.sqrt %cst_61 : f32
    %cst_62 = arith.constant 1.000000e+00 : f32
    %208 = arith.divf %cst_62, %207 : f32
    %209 = vector.broadcast %208 : f32 to vector<8x128xf32>
    %210 = arith.mulf %206, %209 : vector<8x128xf32>
    %211 = arith.extf %0 : vector<8x8x128xbf16> to vector<8x8x128xf32>
    %212 = vector.shape_cast %210 : vector<8x128xf32> to vector<8x1x128xf32>
    %213 = vector.broadcast %212 : vector<8x1x128xf32> to vector<8x8x128xf32>
    %214 = arith.mulf %211, %213 : vector<8x8x128xf32>
    %cst_63 = arith.constant dense<0.000000e+00> : vector<8x8xf32>
    %215 = vector.multi_reduction <add>, %214, %cst_63 [2] : vector<8x8x128xf32> to vector<8x8xf32>
    %216 = math.tanh %215 : vector<8x8xf32>
    %cst_64 = arith.constant 1.000000e+01 : f32
    %217 = vector.broadcast %cst_64 : f32 to vector<8x8xf32>
    %218 = arith.mulf %217, %216 : vector<8x8xf32>
    %cst_65 = arith.constant -1.000000e+09 : f32
    %219 = vector.broadcast %cst_65 : f32 to vector<8x8xf32>
    %220 = arith.mulf %4, %219 : vector<8x8xf32>
    %221 = arith.addf %218, %220 : vector<8x8xf32>
    %cst_66 = arith.constant dense<0xFF800000> : vector<8xf32>
    %222 = vector.multi_reduction <maximumf>, %221, %cst_66 [1] : vector<8x8xf32> to vector<8xf32>
    %223 = vector.shape_cast %222 : vector<8xf32> to vector<8x1xf32>
    %224 = vector.broadcast %223 : vector<8x1xf32> to vector<8x8xf32>
    %225 = arith.subf %221, %224 : vector<8x8xf32>
    %226 = math.exp %225 : vector<8x8xf32>
    %cst_67 = arith.constant dense<0.000000e+00> : vector<8xf32>
    %227 = vector.multi_reduction <add>, %226, %cst_67 [1] : vector<8x8xf32> to vector<8xf32>
    %228 = vector.shape_cast %227 : vector<8xf32> to vector<8x1xf32>
    %229 = math.log %228 : vector<8x1xf32>
    %230 = vector.broadcast %229 : vector<8x1xf32> to vector<8x8xf32>
    %231 = arith.subf %225, %230 : vector<8x8xf32>
    %c0_68 = arith.constant 0 : index
    %c0_69 = arith.constant 0 : index
    %232 = vector.load %arg9[%c0_68, %c0_69] : memref<8x8xf32, #tpu.memory_space<vmem>>, vector<8x8xf32>
    tpu.vector_store %arg9[%c0_68, %c0_69], %231 {strides = array<i32>} : memref<8x8xf32, #tpu.memory_space<vmem>>, vector<8x8xf32>,
    return
  }
  func.func @transform_0(%arg0: i32) -> (i32, i32, i32) {
    %c0_i32 = arith.constant 0 : i32
    %c0_i32_0 = arith.constant 0 : i32
    %c0_i32_1 = arith.constant 0 : i32
    return %arg0, %c0_i32, %c0_i32_0 : i32, i32, i32
  }
  func.func @transform_1(%arg0: i32) -> (i32, i32, i32) {
    %c0_i32 = arith.constant 0 : i32
    %c0_i32_0 = arith.constant 0 : i32
    %c0_i32_1 = arith.constant 0 : i32
    return %arg0, %c0_i32, %c0_i32_0 : i32, i32, i32
  }
  func.func @transform_2(%arg0: i32) -> (i32, i32) {
    %c0_i32 = arith.constant 0 : i32
    %c0_i32_0 = arith.constant 0 : i32
    return %arg0, %c0_i32 : i32, i32
  }
  func.func @transform_3(%arg0: i32) -> (i32, i32) {
    %c0_i32 = arith.constant 0 : i32
    %c0_i32_0 = arith.constant 0 : i32
    %c0_i32_1 = arith.constant 0 : i32
    return %c0_i32, %c0_i32_0 : i32, i32
  }
  func.func @transform_4(%arg0: i32) -> (i32, i32) {
    %c0_i32 = arith.constant 0 : i32
    %c0_i32_0 = arith.constant 0 : i32
    %c0_i32_1 = arith.constant 0 : i32
    return %c0_i32, %c0_i32_0 : i32, i32
  }
  func.func @transform_5(%arg0: i32) -> (i32, i32) {
    %c0_i32 = arith.constant 0 : i32
    %c0_i32_0 = arith.constant 0 : i32
    %c0_i32_1 = arith.constant 0 : i32
    return %c0_i32, %c0_i32_0 : i32, i32
  }
  func.func @transform_6(%arg0: i32) -> (i32, i32) {
    %c0_i32 = arith.constant 0 : i32
    %c0_i32_0 = arith.constant 0 : i32
    %c0_i32_1 = arith.constant 0 : i32
    return %c0_i32, %c0_i32_0 : i32, i32
  }
  func.func @transform_7(%arg0: i32) -> (i32, i32) {
    %c0_i32 = arith.constant 0 : i32
    %c0_i32_0 = arith.constant 0 : i32
    return %arg0, %c0_i32 : i32, i32
  }
  func.func @transform_8(%arg0: i32) -> (i32, i32) {
    %c0_i32 = arith.constant 0 : i32
    %c0_i32_0 = arith.constant 0 : i32
    return %arg0, %c0_i32 : i32, i32
  }
}

</mosaic_0001>

<llo_original>
// kernel: tpu_custom_call.1
$region0: #{tpu_custom_call.1}
  #allocation0 [shape = 'u32[]', space=smem, size = 0x4, offset = 0x4, fixed_abs, tag = 'smem constant byte address 0x4 - core index']
  #allocation1 [shape = 'u32[144,128]{1,0:T(1,128)}', space=vmem, size = 0x12000, scoped, tag = 'internal scratch']
  %s0 = inlined_call_operand.hbm [shape: bf16[32,8,128], index: 0, kind: input, shape index: {}]
  %s1 = inlined_call_operand.vmem [shape: f32[32,2,8], index: 1, kind: input, shape index: {}]
  %s2 = inlined_call_operand.hbm [shape: f32[32,32], index: 2, kind: input, shape index: {}]
  %s3 = inlined_call_operand.hbm [shape: bf16[128,384], index: 3, kind: input, shape index: {}]
  %s4 = inlined_call_operand.vmem [shape: bf16[128,128], index: 4, kind: input, shape index: {}]
  %s5 = inlined_call_operand.hbm [shape: bf16[128,128], index: 5, kind: input, shape index: {}]
  %s6 = inlined_call_operand.vmem [shape: bf16[32,128], index: 6, kind: input, shape index: {}]
  %s7 = inlined_call_operand.hbm [shape: f32[32,128], index: 7, kind: output, shape index: {0}]
  %s8 = inlined_call_operand.vmem [shape: f32[32,8], index: 8, kind: output, shape index: {1}]
  %9 = xla_tuple %s7, %s8
  %s10 = sld [smem:[#allocation0]]
  $region85: #{tpu_custom_call.1} parent=0
    _
  %s12 = ssub.s32 1, %s10
  %s13 = scalar_select 0, %s12, %s10
  $region1: #{tpu_custom_call.1} parent=0
    #allocation2 [shape = 'u8[32768]{0}', space=vmem, size = 0x8000, scoped, tag = 'input window, operand 0']
    #allocation3 [shape = 's32[2]{0}', space=sflag, size = 0x8, scoped, tag = 'scoped memory for tpu_custom_call.1']
    #allocation4 [shape = 's32[2]{0}', space=sflag, size = 0x8, scoped, tag = 'scoped memory for tpu_custom_call.1']
    #allocation5 [shape = 'u8[8192]{0}', space=vmem, size = 0x2000, scoped, tag = 'input window, operand 2']
    #allocation6 [shape = 's32[2]{0}', space=sflag, size = 0x8, scoped, tag = 'scoped memory for tpu_custom_call.1']
    #allocation7 [shape = 'u8[98304]{0}', space=vmem, size = 0x18000, scoped, tag = 'input window, operand 3, single buffered']
    #allocation8 [shape = 'u8[32768]{0}', space=vmem, size = 0x8000, scoped, tag = 'input window, operand 5, single buffered']
    #allocation9 [shape = 's32[1]{0}', space=sflag, size = 0x4, scoped, tag = 'scoped memory for tpu_custom_call.1']
    #allocation10 [shape = 'u8[8192]{0}', space=vmem, size = 0x2000, scoped, tag = 'output window, operand 0']
    %14 = vsyncpa [#allocation3], 0
    %s15 = scalar_lea.sflag [#allocation3], 1
    %16 = vsyncpa %s15, 0
    %17 = vsyncpa [#allocation6], 0
    %s18 = scalar_lea.sflag [#allocation6], 1
    %19 = vsyncpa %s18, 0
    %20 = vsyncpa [#allocation9], 0
    %21 = vsyncpa [#allocation4], 0
    %s22 = scalar_lea.sflag [#allocation4], 1
    %23 = vsyncpa %s22, 0
    loop: start=0, step=1, limit=6
    $region2: #{tpu_custom_call.1} parent=1 // loop_pre_header
      _
    $region3: #{tpu_custom_call.1} parent=1 // loop_header
      %s25 = sphi 0, %s29
      %p26 = scmp.ge.s32.totalorder %s25, 6
      %s35 = sphi 0, %s37
      %s38 = sphi 0, %s35
      %s39 = sphi 0, %s38
      %s55 = sphi 0, %s39
      %s61 = sphi 0, %s63
      %s64 = sphi 0, %s61
      %s65 = sphi 0, %s64
      %s81 = sphi 0, %s65
      %s87 = sphi 0, %s89
      %s90 = sphi 0, %s87
      %s91 = sphi 0, %s90
      %s107 = sphi 0, %s91
      %s111 = sphi 0, %s111
      %s113 = sphi 0, %s111
      %s114 = sphi 0, %s113
      %s128 = sphi 0, %s114
      %s132 = sphi 0, %s132
      %s134 = sphi 0, %s132
      %s135 = sphi 0, %s134
      %s149 = sphi 0, %s135
      %s153 = sphi 0, %s153
      %s155 = sphi 0, %s153
      %s156 = sphi 0, %s155
      %s170 = sphi 0, %s156
      %s174 = sphi 0, %s174
      %s176 = sphi 0, %s174
      %s177 = sphi 0, %s176
      %s191 = sphi 0, %s177
      %s197 = sphi 0, %s199
      %s200 = sphi 0, %s197
      %s201 = sphi 0, %s200
      %s217 = sphi 0, %s201
      %s223 = sphi 0, %s225
      %s226 = sphi 0, %s223
      %s227 = sphi 0, %s226
      %s243 = sphi 0, %s227
    $region4: #{tpu_custom_call.1} parent=1 // loop_header_branch
      %28 = sbr.rel (%p26) target = $region8
    $region5: #{tpu_custom_call.1} parent=1 // loop_body
      %s30 = ssub.s32 %s25, 1
      %s31 = ssub.s32 %s25, 2
      %s32 = sadd.s32 %s25, 1
      %s33 = ssub.s32 %s25, %s32
      %p34 = scmp.eq.s32.totalorder %s33, 0
      %s36 = sadd.s32 %s35, 1
      %s37 = scalar_select %p34, %s35, %s36
      %p40 = pneg %p34
      %p41 = scmp.eq.s32.totalorder %s25, 3
      %p42 = por %p40, %p41
      %p43 = scmp.ne.s32.totalorder %s35, %s38
      %p44 = scmp.eq.s32.totalorder %s25, 0
      %p45 = por %p43, %p44
      %p46 = scmp.ne.s32.totalorder %s35, %s38
      %p47 = scmp.eq.s32.totalorder %s30, 3
      %p48 = por %p46, %p47
      %p49 = scmp.ne.s32.totalorder %s38, %s39
      %p50 = scmp.eq.s32.totalorder %s30, 0
      %p51 = por %p49, %p50
      %p52 = scmp.ne.s32.totalorder %s38, %s39
      %p53 = scmp.eq.s32.totalorder %s31, 3
      %p54 = por %p52, %p53
      %p56 = scmp.ne.s32.totalorder %s39, %s55
      %p57 = scmp.eq.s32.totalorder %s31, 0
      %p58 = por %p56, %p57
      %s59 = ssub.s32 %s25, %s32
      %p60 = scmp.eq.s32.totalorder %s59, 0
      %s62 = sadd.s32 %s61, 1
      %s63 = scalar_select %p60, %s61, %s62
      %p66 = pneg %p60
      %p67 = scmp.eq.s32.totalorder %s25, 3
      %p68 = por %p66, %p67
      %p69 = scmp.ne.s32.totalorder %s61, %s64
      %p70 = scmp.eq.s32.totalorder %s25, 0
      %p71 = por %p69, %p70
      %p72 = scmp.ne.s32.totalorder %s61, %s64
      %p73 = scmp.eq.s32.totalorder %s30, 3
      %p74 = por %p72, %p73
      %p75 = scmp.ne.s32.totalorder %s64, %s65
      %p76 = scmp.eq.s32.totalorder %s30, 0
      %p77 = por %p75, %p76
      %p78 = scmp.ne.s32.totalorder %s64, %s65
      %p79 = scmp.eq.s32.totalorder %s31, 3
      %p80 = por %p78, %p79
      %p82 = scmp.ne.s32.totalorder %s65, %s81
      %p83 = scmp.eq.s32.totalorder %s31, 0
      %p84 = por %p82, %p83
      %s85 = ssub.s32 %s25, %s32
      %p86 = scmp.eq.s32.totalorder %s85, 0
      %s88 = sadd.s32 %s87, 1
      %s89 = scalar_select %p86, %s87, %s88
      %p92 = pneg %p86
      %p93 = scmp.eq.s32.totalorder %s25, 3
      %p94 = por %p92, %p93
      %p95 = scmp.ne.s32.totalorder %s87, %s90
      %p96 = scmp.eq.s32.totalorder %s25, 0
      %p97 = por %p95, %p96
      %p98 = scmp.ne.s32.totalorder %s87, %s90
      %p99 = scmp.eq.s32.totalorder %s30, 3
      %p100 = por %p98, %p99
      %p101 = scmp.ne.s32.totalorder %s90, %s91
      %p102 = scmp.eq.s32.totalorder %s30, 0
      %p103 = por %p101, %p102
      %p104 = scmp.ne.s32.totalorder %s90, %s91
      %p105 = scmp.eq.s32.totalorder %s31, 3
      %p106 = por %p104, %p105
      %p108 = scmp.ne.s32.totalorder %s91, %s107
      %p109 = scmp.eq.s32.totalorder %s31, 0
      %p110 = por %p108, %p109
      %s112 = sadd.s32 %s111, 1
      %p115 = scmp.eq.s32.totalorder %s25, 3
      %p116 = scmp.ne.s32.totalorder %s111, %s113
      %p117 = scmp.eq.s32.totalorder %s25, 0
      %p118 = por %p116, %p117
      %p119 = scmp.ne.s32.totalorder %s111, %s113
      %p120 = scmp.eq.s32.totalorder %s30, 3
      %p121 = por %p119, %p120
      %p122 = scmp.ne.s32.totalorder %s113, %s114
      %p123 = scmp.eq.s32.totalorder %s30, 0
      %p124 = por %p122, %p123
      %p125 = scmp.ne.s32.totalorder %s113, %s114
      %p126 = scmp.eq.s32.totalorder %s31, 3
      %p127 = por %p125, %p126
      %p129 = scmp.ne.s32.totalorder %s114, %s128
      %p130 = scmp.eq.s32.totalorder %s31, 0
      %p131 = por %p129, %p130
      %s133 = sadd.s32 %s132, 1
      %p136 = scmp.eq.s32.totalorder %s25, 3
      %p137 = scmp.ne.s32.totalorder %s132, %s134
      %p138 = scmp.eq.s32.totalorder %s25, 0
      %p139 = por %p137, %p138
      %p140 = scmp.ne.s32.totalorder %s132, %s134
      %p141 = scmp.eq.s32.totalorder %s30, 3
      %p142 = por %p140, %p141
      %p143 = scmp.ne.s32.totalorder %s134, %s135
      %p144 = scmp.eq.s32.totalorder %s30, 0
      %p145 = por %p143, %p144
      %p146 = scmp.ne.s32.totalorder %s134, %s135
      %p147 = scmp.eq.s32.totalorder %s31, 3
      %p148 = por %p146, %p147
      %p150 = scmp.ne.s32.totalorder %s135, %s149
      %p151 = scmp.eq.s32.totalorder %s31, 0
      %p152 = por %p150, %p151
      %s154 = sadd.s32 %s153, 1
      %p157 = scmp.eq.s32.totalorder %s25, 3
      %p158 = scmp.ne.s32.totalorder %s153, %s155
      %p159 = scmp.eq.s32.totalorder %s25, 0
      %p160 = por %p158, %p159
      %p161 = scmp.ne.s32.totalorder %s153, %s155
      %p162 = scmp.eq.s32.totalorder %s30, 3
      %p163 = por %p161, %p162
      %p164 = scmp.ne.s32.totalorder %s155, %s156
      %p165 = scmp.eq.s32.totalorder %s30, 0
      %p166 = por %p164, %p165
      %p167 = scmp.ne.s32.totalorder %s155, %s156
      %p168 = scmp.eq.s32.totalorder %s31, 3
      %p169 = por %p167, %p168
      %p171 = scmp.ne.s32.totalorder %s156, %s170
      %p172 = scmp.eq.s32.totalorder %s31, 0
      %p173 = por %p171, %p172
      %s175 = sadd.s32 %s174, 1
      %p178 = scmp.eq.s32.totalorder %s25, 3
      %p179 = scmp.ne.s32.totalorder %s174, %s176
      %p180 = scmp.eq.s32.totalorder %s25, 0
      %p181 = por %p179, %p180
      %p182 = scmp.ne.s32.totalorder %s174, %s176
      %p183 = scmp.eq.s32.totalorder %s30, 3
      %p184 = por %p182, %p183
      %p185 = scmp.ne.s32.totalorder %s176, %s177
      %p186 = scmp.eq.s32.totalorder %s30, 0
      %p187 = por %p185, %p186
      %p188 = scmp.ne.s32.totalorder %s176, %s177
      %p189 = scmp.eq.s32.totalorder %s31, 3
      %p190 = por %p188, %p189
      %p192 = scmp.ne.s32.totalorder %s177, %s191
      %p193 = scmp.eq.s32.totalorder %s31, 0
      %p194 = por %p192, %p193
      %s195 = ssub.s32 %s25, %s32
      %p196 = scmp.eq.s32.totalorder %s195, 0
      %s198 = sadd.s32 %s197, 1
      %s199 = scalar_select %p196, %s197, %s198
      %p202 = pneg %p196
      %p203 = scmp.eq.s32.totalorder %s25, 3
      %p204 = por %p202, %p203
      %p205 = scmp.ne.s32.totalorder %s197, %s200
      %p206 = scmp.eq.s32.totalorder %s25, 0
      %p207 = por %p205, %p206
      %p208 = scmp.ne.s32.totalorder %s197, %s200
      %p209 = scmp.eq.s32.totalorder %s30, 3
      %p210 = por %p208, %p209
      %p211 = scmp.ne.s32.totalorder %s200, %s201
      %p212 = scmp.eq.s32.totalorder %s30, 0
      %p213 = por %p211, %p212
      %p214 = scmp.ne.s32.totalorder %s200, %s201
      %p215 = scmp.eq.s32.totalorder %s31, 3
      %p216 = por %p214, %p215
      %p218 = scmp.ne.s32.totalorder %s201, %s217
      %p219 = scmp.eq.s32.totalorder %s31, 0
      %p220 = por %p218, %p219
      %s221 = ssub.s32 %s25, %s32
      %p222 = scmp.eq.s32.totalorder %s221, 0
      %s224 = sadd.s32 %s223, 1
      %s225 = scalar_select %p222, %s223, %s224
      %p228 = pneg %p222
      %p229 = scmp.eq.s32.totalorder %s25, 3
      %p230 = por %p228, %p229
      %p231 = scmp.ne.s32.totalorder %s223, %s226
      %p232 = scmp.eq.s32.totalorder %s25, 0
      %p233 = por %p231, %p232
      %p234 = scmp.ne.s32.totalorder %s223, %s226
      %p235 = scmp.eq.s32.totalorder %s30, 3
      %p236 = por %p234, %p235
      %p237 = scmp.ne.s32.totalorder %s226, %s227
      %p238 = scmp.eq.s32.totalorder %s30, 0
      %p239 = por %p237, %p238
      %p240 = scmp.ne.s32.totalorder %s226, %s227
      %p241 = scmp.eq.s32.totalorder %s31, 3
      %p242 = por %p240, %p241
      %p244 = scmp.ne.s32.totalorder %s227, %s243
      %p245 = scmp.eq.s32.totalorder %s31, 0
      %p246 = por %p244, %p245
      %p247 = scmp.le.s32.totalorder 1, %s25
      %p248 = scmp.lt.s32.totalorder %s25, 5
      %p249 = pnand %p247, %p248
      %p250 = pneg %p249
      // Predicated region
      $region9: #{tpu_custom_call.1} parent=5 // pred_check
        _
      $region10: #{tpu_custom_call.1} parent=5 // pred_check_branch
        %252 = sbr.rel (%p249) target = $region12
      $region11: #{tpu_custom_call.1} parent=5 // pred_region
        %s253 = ssub.s32 %s25, 1
        // Predicated region
        $region13: #{tpu_custom_call.1} parent=11 // pred_check
          %p254 = pneg %p124
        $region14: #{tpu_custom_call.1} parent=11 // pred_check_branch
          %256 = sbr.rel (%p254) target = $region16
        $region15: #{tpu_custom_call.1} parent=11 // pred_region
          %s258 = ssub.s32 3072, 3072
          %259 = vsyncadd [#allocation6], %s258
          %s260 = sshll.u32 [#allocation7], 4
          %s261 = int_to_ptr.vmem [resolvable:$true] %s260
          %266 = dma.hbm_to_vmem [thread:$0]  %s3, 3072, %s261, [#allocation6], 192, 192, 12
        $region16: #{tpu_custom_call.1} parent=11 // pred_fallthru
          _
        // Predicated region
        $region17: #{tpu_custom_call.1} parent=11 // pred_check
          %p267 = pneg %p145
        $region18: #{tpu_custom_call.1} parent=11 // pred_check_branch
          %269 = sbr.rel (%p267) target = $region20
        $region19: #{tpu_custom_call.1} parent=11 // pred_region
          _
        $region20: #{tpu_custom_call.1} parent=11 // pred_fallthru
          _
        // Predicated region
        $region21: #{tpu_custom_call.1} parent=11 // pred_check
          %p270 = pneg %p166
        $region22: #{tpu_custom_call.1} parent=11 // pred_check_branch
          %272 = sbr.rel (%p270) target = $region24
        $region23: #{tpu_custom_call.1} parent=11 // pred_region
          %s274 = ssub.s32 1024, 1024
          %275 = vsyncadd [#allocation9], %s274
          %s276 = sshll.u32 [#allocation8], 4
          %s277 = int_to_ptr.vmem [resolvable:$true] %s276
          %282 = dma.hbm_to_vmem [thread:$0]  %s5, 1024, %s277, [#allocation9], 64, 64, 4
        $region24: #{tpu_custom_call.1} parent=11 // pred_fallthru
          _
        // Predicated region
        $region25: #{tpu_custom_call.1} parent=11 // pred_check
          %p283 = pneg %p187
        $region26: #{tpu_custom_call.1} parent=11 // pred_check_branch
          %285 = sbr.rel (%p283) target = $region28
        $region27: #{tpu_custom_call.1} parent=11 // pred_region
          _
        $region28: #{tpu_custom_call.1} parent=11 // pred_fallthru
          _
      $region12: #{tpu_custom_call.1} parent=5 // pred_fallthru
        _
      %p286 = scmp.lt.s32.totalorder %s25, 4
      // Predicated region
      $region29: #{tpu_custom_call.1} parent=5 // pred_check
        %p287 = pneg %p286
      $region30: #{tpu_custom_call.1} parent=5 // pred_check_branch
        %289 = sbr.rel (%p287) target = $region32
      $region31: #{tpu_custom_call.1} parent=5 // pred_region
        // Predicated region
        $region33: #{tpu_custom_call.1} parent=31 // pred_check
          %p290 = pneg %p45
        $region34: #{tpu_custom_call.1} parent=31 // pred_check_branch
          %292 = sbr.rel (%p290) target = $region36
        $region35: #{tpu_custom_call.1} parent=31 // pred_region
          %s293 = sand.u32 %s35, 1
          %s294 = scalar_lea.sflag [#allocation3], %s293
          %s295 = sand.u32 %s35, 1
          %s296 = smul.addr %s295, 32
          %s297 = scalar_lea.vmem [#allocation2], %s296
          %s298 = smul.u32 8, %s25
          %s300 = ssub.s32 512, 512
          %301 = vsyncadd %s294, %s300
          %s302 = smul.addr %s298, 64
          %s303 = scalar_lea.hbm %s0, %s302
          %s304 = sshll.u32 %s297, 4
          %s305 = int_to_ptr.vmem [resolvable:$true] %s304
          %310 = dma.hbm_to_vmem [thread:$0]  %s303, 512, %s305, %s294, 64, 64, 4
        $region36: #{tpu_custom_call.1} parent=31 // pred_fallthru
          _
        // Predicated region
        $region37: #{tpu_custom_call.1} parent=31 // pred_check
          %p311 = pneg %p71
        $region38: #{tpu_custom_call.1} parent=31 // pred_check_branch
          %313 = sbr.rel (%p311) target = $region40
        $region39: #{tpu_custom_call.1} parent=31 // pred_region
          %s314 = smul.u32 8, %s25
          %p315 = scmp.lt.s32.totalorder %s314, 31
          %s316 = scalar_select %p315, %s314, 31
          %s317 = smul.addr %s316, 2
          %s318 = scalar_lea.vmem %s1, %s317
          %s319 = smul.u32 8, %s25
        $region40: #{tpu_custom_call.1} parent=31 // pred_fallthru
          _
        // Predicated region
        $region41: #{tpu_custom_call.1} parent=31 // pred_check
          %p320 = pneg %p97
        $region42: #{tpu_custom_call.1} parent=31 // pred_check_branch
          %322 = sbr.rel (%p320) target = $region44
        $region43: #{tpu_custom_call.1} parent=31 // pred_region
          %s323 = sand.u32 %s25, 1
          %s324 = scalar_lea.sflag [#allocation6], %s323
          %s325 = sand.u32 %s87, 1
          %s326 = smul.addr %s325, 8
          %s327 = scalar_lea.vmem [#allocation5], %s326
          %s329 = ssub.s32 128, 128
          %330 = vsyncadd %s324, %s329
          %s331 = smul.addr %s25, 128
          %s332 = scalar_lea.hbm %s2, %s331
          %s334 = sshll.u32 %s327, 4
          %s335 = int_to_ptr.vmem [resolvable:$true] %s334
          %337 = dma.hbm_to_vmem [thread:$0]  %s332, 128, %s335, %s324
        $region44: #{tpu_custom_call.1} parent=31 // pred_fallthru
          _
      $region32: #{tpu_custom_call.1} parent=5 // pred_fallthru
        _
      %p338 = scmp.le.s32.totalorder 1, %s25
      %p339 = scmp.lt.s32.totalorder %s25, 5
      %p340 = pnand %p338, %p339
      %p341 = pneg %p340
      // Predicated region
      $region45: #{tpu_custom_call.1} parent=5 // pred_check
        _
      $region46: #{tpu_custom_call.1} parent=5 // pred_check_branch
        %343 = sbr.rel (%p340) target = $region48
      $region47: #{tpu_custom_call.1} parent=5 // pred_region
        %s344 = ssub.s32 %s25, 1
        %s345 = sand.u32 %s38, 1
        %s346 = scalar_lea.sflag [#allocation3], %s345
        %s347 = sand.u32 %s38, 1
        %s348 = smul.addr %s347, 32
        %s349 = scalar_lea.vmem [#allocation2], %s348
        // Predicated region
        $region49: #{tpu_custom_call.1} parent=47 // pred_check
          %p350 = pneg %p51
        $region50: #{tpu_custom_call.1} parent=47 // pred_check_branch
          %352 = sbr.rel (%p350) target = $region52
        $region51: #{tpu_custom_call.1} parent=47 // pred_region
          %353 = dma.done %s346, 512
        $region52: #{tpu_custom_call.1} parent=47 // pred_fallthru
          _
        %s354 = sand.u32 %s30, 1
        %s355 = scalar_lea.sflag [#allocation6], %s354
        %s356 = sand.u32 %s90, 1
        %s357 = smul.addr %s356, 8
        %s358 = scalar_lea.vmem [#allocation5], %s357
        // Predicated region
        $region53: #{tpu_custom_call.1} parent=47 // pred_check
          %p359 = pneg %p103
        $region54: #{tpu_custom_call.1} parent=47 // pred_check_branch
          %361 = sbr.rel (%p359) target = $region56
        $region55: #{tpu_custom_call.1} parent=47 // pred_region
          %362 = dma.done %s355, 128
        $region56: #{tpu_custom_call.1} parent=47 // pred_fallthru
          _
        // Predicated region
        $region57: #{tpu_custom_call.1} parent=47 // pred_check
          %p363 = pneg %p124
        $region58: #{tpu_custom_call.1} parent=47 // pred_check_branch
          %365 = sbr.rel (%p363) target = $region60
        $region59: #{tpu_custom_call.1} parent=47 // pred_region
          %366 = dma.done [#allocation6], 3072
        $region60: #{tpu_custom_call.1} parent=47 // pred_fallthru
          _
        // Predicated region
        $region61: #{tpu_custom_call.1} parent=47 // pred_check
          %p367 = pneg %p166
        $region62: #{tpu_custom_call.1} parent=47 // pred_check_branch
          %369 = sbr.rel (%p367) target = $region64
        $region63: #{tpu_custom_call.1} parent=47 // pred_region
          %370 = dma.done [#allocation9], 1024
        $region64: #{tpu_custom_call.1} parent=47 // pred_fallthru
          _
        %s371 = sand.u32 %s38, 1
        %s372 = scalar_lea.sflag [#allocation3], %s371
        %s373 = sand.u32 %s38, 1
        %s374 = smul.addr %s373, 32
        %s375 = scalar_lea.vmem [#allocation2], %s374
        %p376 = pneg %p51
        %p377 = pneg %p48
        %s378 = smul.u32 8, %s30
        %p379 = scmp.lt.s32.totalorder %s378, 31
        %s380 = scalar_select %p379, %s378, 31
        %s381 = smul.addr %s380, 2
        %s382 = scalar_lea.vmem %s1, %s381
        %p383 = pneg %p77
        %p384 = pneg %p74
        %s385 = sand.u32 %s30, 1
        %s386 = scalar_lea.sflag [#allocation6], %s385
        %s387 = sand.u32 %s90, 1
        %s388 = smul.addr %s387, 8
        %s389 = scalar_lea.vmem [#allocation5], %s388
        %p390 = pneg %p103
        %p391 = pneg %p100
        %p392 = pneg %p124
        %p393 = pneg %p121
        %p394 = pneg %p145
        %p395 = pneg %p142
        %p396 = pneg %p166
        %p397 = pneg %p163
        %p398 = pneg %p187
        %p399 = pneg %p184
        %p400 = pneg %p213
        %p401 = pneg %p210
        %s402 = sand.u32 %s200, 1
        %s403 = scalar_lea.sflag [#allocation4], %s402
        %s404 = sand.u32 %s200, 1
        %s405 = smul.addr %s404, 8
        %s406 = scalar_lea.vmem [#allocation10], %s405
        %p407 = pneg %p239
        %p408 = pneg %p236
        %p409 = scmp.lt.s32.totalorder %s30, 3
        %s410 = scalar_select %p409, %s30, 3
        %s411 = smul.addr %s410, 8
        %s412 = scalar_lea.vmem %s8, %s411
        %s413 = smul.u32 8, %s30
        %s414 = smul.u32 8, %s30
        %p415 = scmp.lt.s32.totalorder %s414, 31
        %s416 = scalar_select %p415, %s414, 31
        %s417 = smul.addr %s416, 2
        %s418 = scalar_lea.vmem %s1, %s417
        %s419 = smul.u32 8, %s30
        %p420 = scmp.lt.s32.totalorder %s30, 3
        %s421 = scalar_select %p420, %s30, 3
        %s422 = smul.addr %s421, 8
        %s423 = scalar_lea.vmem %s8, %s422
        %v425 = vld [vmem:[%s349] sm:$0xf]
        %v426 = vld [vmem:[%s349 + $0x4] sm:$0xf]
        %v427 = vld [vmem:[%s349 + $0x8] sm:$0xf]
        %v428 = vld [vmem:[%s349 + $0xc] sm:$0xf]
        %v429 = vld [vmem:[%s349 + $0x10] sm:$0xf]
        %v430 = vld [vmem:[%s349 + $0x14] sm:$0xf]
        %v431 = vld [vmem:[%s349 + $0x18] sm:$0xf]
        %v432 = vld [vmem:[%s349 + $0x1c] sm:$0xf]
        %v433 = vld [vmem:[%s418] sm:$0x1]
        %v434 = vld [vmem:[%s418 + $0x2] sm:$0x1]
        %v435 = vld [vmem:[%s418 + $0x4] sm:$0x1]
        %v436 = vld [vmem:[%s418 + $0x6] sm:$0x1]
        %v437 = vld [vmem:[%s418 + $0x8] sm:$0x1]
        %v438 = vld [vmem:[%s418 + $0xa] sm:$0x1]
        %v439 = vld [vmem:[%s418 + $0xc] sm:$0x1]
        %v440 = vld [vmem:[%s418 + $0xe] sm:$0x1]
        %v441 = vld [vmem:[%s418 + $0x1] sm:$0x1]
        %v442 = vld [vmem:[%s418 + $0x3] sm:$0x1]
        %v443 = vld [vmem:[%s418 + $0x5] sm:$0x1]
        %v444 = vld [vmem:[%s418 + $0x7] sm:$0x1]
        %v445 = vld [vmem:[%s418 + $0x9] sm:$0x1]
        %v446 = vld [vmem:[%s418 + $0xb] sm:$0x1]
        %v447 = vld [vmem:[%s418 + $0xd] sm:$0x1]
        %v448 = vld [vmem:[%s418 + $0xf] sm:$0x1]
        %v449 = vld [vmem:[%s358] sm:$0xff]
        %v450 = vld [vmem:[#allocation7] sm:$0xff]
        %v451 = vld [vmem:[#allocation7 + $0x8] sm:$0xf]
        %v452 = vld [vmem:[#allocation7 + $0xc] sm:$0xff]
        %v453 = vld [vmem:[#allocation7 + $0x14] sm:$0xf]
        %v454 = vld [vmem:[#allocation7 + $0x18] sm:$0xff]
        %v455 = vld [vmem:[#allocation7 + $0x20] sm:$0xf]
        %v456 = vld [vmem:[#allocation7 + $0x24] sm:$0xff]
        %v457 = vld [vmem:[#allocation7 + $0x2c] sm:$0xf]
        %v458 = vld [vmem:[#allocation7 + $0x30] sm:$0xff]
        %v459 = vld [vmem:[#allocation7 + $0x38] sm:$0xf]
        %v460 = vld [vmem:[#allocation7 + $0x3c] sm:$0xff]
        %v461 = vld [vmem:[#allocation7 + $0x44] sm:$0xf]
        %v462 = vld [vmem:[#allocation7 + $0x48] sm:$0xff]
        %v463 = vld [vmem:[#allocation7 + $0x50] sm:$0xf]
        %v464 = vld [vmem:[#allocation7 + $0x54] sm:$0xff]
        %v465 = vld [vmem:[#allocation7 + $0x5c] sm:$0xf]
        %v466 = vld [vmem:[#allocation7 + $0x60] sm:$0xff]
        %v467 = vld [vmem:[#allocation7 + $0x68] sm:$0xf]
        %v468 = vld [vmem:[#allocation7 + $0x6c] sm:$0xff]
        %v469 = vld [vmem:[#allocation7 + $0x74] sm:$0xf]
        %v470 = vld [vmem:[#allocation7 + $0x78] sm:$0xff]
        %v471 = vld [vmem:[#allocation7 + $0x80] sm:$0xf]
        %v472 = vld [vmem:[#allocation7 + $0x84] sm:$0xff]
        %v473 = vld [vmem:[#allocation7 + $0x8c] sm:$0xf]
        %v474 = vld [vmem:[#allocation7 + $0x90] sm:$0xff]
        %v475 = vld [vmem:[#allocation7 + $0x98] sm:$0xf]
        %v476 = vld [vmem:[#allocation7 + $0x9c] sm:$0xff]
        %v477 = vld [vmem:[#allocation7 + $0xa4] sm:$0xf]
        %v478 = vld [vmem:[#allocation7 + $0xa8] sm:$0xff]
        %v479 = vld [vmem:[#allocation7 + $0xb0] sm:$0xf]
        %v480 = vld [vmem:[#allocation7 + $0xb4] sm:$0xff]
        %v481 = vld [vmem:[#allocation7 + $0xbc] sm:$0xf]
        %v490 = vunpack.c.l.b16 %v425
        %v491 = vunpack.c.l.b16 %v426
        %v492 = vunpack.c.l.b16 %v427
        %v493 = vunpack.c.l.b16 %v428
        %v494 = vunpack.c.l.b16 %v429
        %v495 = vunpack.c.l.b16 %v430
        %v496 = vunpack.c.l.b16 %v431
        %v497 = vunpack.c.l.b16 %v432
        %v498 = vpack.c.b16 %v491, %v490
        %v499 = vpack.c.b16 %v493, %v492
        %v500 = vpack.c.b16 %v495, %v494
        %v501 = vpack.c.b16 %v497, %v496
        %v538 = vunpack.c.l.b16 %v450
        %v539 = vunpack.c.h.b16 %v450
        %v540 = vunpack.c.l.b16 %v451
        %v541 = vunpack.c.l.b16 %v452
        %v542 = vunpack.c.h.b16 %v452
        %v543 = vunpack.c.l.b16 %v453
        %v544 = vunpack.c.l.b16 %v454
        %v545 = vunpack.c.h.b16 %v454
        %v546 = vunpack.c.l.b16 %v455
        %v547 = vunpack.c.l.b16 %v456
        %v548 = vunpack.c.h.b16 %v456
        %v549 = vunpack.c.l.b16 %v457
        %v550 = vunpack.c.l.b16 %v458
        %v551 = vunpack.c.h.b16 %v458
        %v552 = vunpack.c.l.b16 %v459
        %v553 = vunpack.c.l.b16 %v460
        %v554 = vunpack.c.h.b16 %v460
        %v555 = vunpack.c.l.b16 %v461
        %v556 = vunpack.c.l.b16 %v462
        %v557 = vunpack.c.h.b16 %v462
        %v558 = vunpack.c.l.b16 %v463
        %v559 = vunpack.c.l.b16 %v464
        %v560 = vunpack.c.h.b16 %v464
        %v561 = vunpack.c.l.b16 %v465
        %v562 = vunpack.c.l.b16 %v466
        %v563 = vunpack.c.h.b16 %v466
        %v564 = vunpack.c.l.b16 %v467
        %v565 = vunpack.c.l.b16 %v468
        %v566 = vunpack.c.h.b16 %v468
        %v567 = vunpack.c.l.b16 %v469
        %v568 = vunpack.c.l.b16 %v470
        %v569 = vunpack.c.h.b16 %v470
        %v570 = vunpack.c.l.b16 %v471
        %v571 = vunpack.c.l.b16 %v472
        %v572 = vunpack.c.h.b16 %v472
        %v573 = vunpack.c.l.b16 %v473
        %v574 = vunpack.c.l.b16 %v474
        %v575 = vunpack.c.h.b16 %v474
        %v576 = vunpack.c.l.b16 %v475
        %v577 = vunpack.c.l.b16 %v476
        %v578 = vunpack.c.h.b16 %v476
        %v579 = vunpack.c.l.b16 %v477
        %v580 = vunpack.c.l.b16 %v478
        %v581 = vunpack.c.h.b16 %v478
        %v582 = vunpack.c.l.b16 %v479
        %v583 = vunpack.c.l.b16 %v480
        %v584 = vunpack.c.h.b16 %v480
        %v585 = vunpack.c.l.b16 %v481
        %v586 = vpack.c.b16 %v541, %v538
        %v587 = vpack.c.b16 %v542, %v539
        %v588 = vpack.c.b16 %v543, %v540
        %v589 = vpack.c.b16 %v547, %v544
        %v590 = vpack.c.b16 %v548, %v545
        %v591 = vpack.c.b16 %v549, %v546
        %v592 = vpack.c.b16 %v553, %v550
        %v593 = vpack.c.b16 %v554, %v551
        %v594 = vpack.c.b16 %v555, %v552
        %v595 = vpack.c.b16 %v559, %v556
        %v596 = vpack.c.b16 %v560, %v557
        %v597 = vpack.c.b16 %v561, %v558
        %v598 = vpack.c.b16 %v565, %v562
        %v599 = vpack.c.b16 %v566, %v563
        %v600 = vpack.c.b16 %v567, %v564
        %v601 = vpack.c.b16 %v571, %v568
        %v602 = vpack.c.b16 %v572, %v569
        %v603 = vpack.c.b16 %v573, %v570
        %v604 = vpack.c.b16 %v577, %v574
        %v605 = vpack.c.b16 %v578, %v575
        %v606 = vpack.c.b16 %v579, %v576
        %v607 = vpack.c.b16 %v583, %v580
        %v608 = vpack.c.b16 %v584, %v581
        %v609 = vpack.c.b16 %v585, %v582
        %634 = vmatprep.subr.bf16.mxu0 %v608
        %635 = vmatpush1.bf16.msra.mxu0 %v607
        %636 = vmatprep.subr.bf16.mxu0 %v605
        %637 = vmatpush1.bf16.msra.mxu0 %v604
        %638 = vmatprep.subr.bf16.mxu0 %v602
        %639 = vmatpush1.bf16.msra.mxu0 %v601
        %640 = vmatprep.subr.bf16.mxu0 %v599
        %641 = vmatpush1.bf16.msra.mxu0 %v598
        %642 = vmatprep.subr.bf16.mxu0 %v596
        %643 = vmatpush1.bf16.msra.mxu0 %v595
        %644 = vmatprep.subr.bf16.mxu0 %v593
        %645 = vmatpush1.bf16.msra.mxu0 %v592
        %646 = vmatprep.subr.bf16.mxu0 %v590
        %647 = vmatpush1.bf16.msra.mxu0 %v589
        %648 = vmatprep.subr.bf16.mxu0 %v587
        %649 = vmatpush1.bf16.msra.mxu0 %v586
        %650 = vmatprep.subr.bf16.mxu0 0
        %651 = vmatpush2.bf16.msra.mxu0 0
        %652 = vmatprep.subr.bf16.mxu0 0
        %653 = vmatpush2.bf16.msra.mxu0 0
        %654 = vmatprep.subr.bf16.mxu0 0
        %655 = vmatpush2.bf16.msra.mxu0 0
        %656 = vmatprep.subr.bf16.mxu0 0
        %657 = vmatpush2.bf16.msra.mxu0 0
        %658 = vmatprep.subr.bf16.mxu0 0
        %659 = vmatpush2.bf16.msra.mxu0 0
        %660 = vmatprep.subr.bf16.mxu0 0
        %661 = vmatpush2.bf16.msra.mxu0 0
        %662 = vmatprep.subr.bf16.mxu0 0
        %663 = vmatpush2.bf16.msra.mxu0 0
        %664 = vmatprep.subr.bf16.mxu0 0
        %665 = vmatpush2.bf16.msra.mxu0 0
        %666 = vmatprep.mubr.bf16.mxu0 0
        %667 = vmatmul.mubr.bf16.gmra.mxu0 %v498
        %v668 = vpop.f32.mrf.mxu0
        %v669 = vadd.f32 0.0, %v668
        %v670 = vpop.f32.mrf.mxu0
        %v671 = vadd.f32 0.0, %v670
        %v672 = vpop.f32.mrf.mxu0
        %v673 = vadd.f32 0.0, %v672
        %v674 = vpop.f32.mrf.mxu0
        %v675 = vadd.f32 0.0, %v674
        %676 = vmatprep.mubr.bf16.mxu0 0
        %677 = vmatmul.mubr.bf16.gmra.mxu0 %v499
        %v678 = vpop.f32.mrf.mxu0
        %v679 = vadd.f32 0.0, %v678
        %v680 = vpop.f32.mrf.mxu0
        %v681 = vadd.f32 0.0, %v680
        %v682 = vpop.f32.mrf.mxu0
        %v683 = vadd.f32 0.0, %v682
        %v684 = vpop.f32.mrf.mxu0
        %v685 = vadd.f32 0.0, %v684
        %686 = vmatprep.mubr.bf16.mxu0 0
        %687 = vmatmul.mubr.bf16.gmra.mxu0 %v500
        %v688 = vpop.f32.mrf.mxu0
        %v689 = vadd.f32 0.0, %v688
        %v690 = vpop.f32.mrf.mxu0
        %v691 = vadd.f32 0.0, %v690
        %v692 = vpop.f32.mrf.mxu0
        %v693 = vadd.f32 0.0, %v692
        %v694 = vpop.f32.mrf.mxu0
        %v695 = vadd.f32 0.0, %v694
        %696 = vmatprep.mubr.bf16.mxu0 0
        %697 = vmatmul.mubr.bf16.gmra.mxu0 %v501
        %v698 = vpop.f32.mrf.mxu0
        %v699 = vadd.f32 0.0, %v698
        %v700 = vpop.f32.mrf.mxu0
        %v701 = vadd.f32 0.0, %v700
        %v702 = vpop.f32.mrf.mxu0
        %v703 = vadd.f32 0.0, %v702
        %v704 = vpop.f32.mrf.mxu0
        %v705 = vadd.f32 0.0, %v704
        %706 = vdwg.mxu0
        %707 = vmatprep.subr.bf16.mxu0 0
        %708 = vmatpush1.bf16.msra.mxu0 %v609
        %709 = vmatprep.subr.bf16.mxu0 0
        %710 = vmatpush1.bf16.msra.mxu0 %v606
        %711 = vmatprep.subr.bf16.mxu0 0
        %712 = vmatpush1.bf16.msra.mxu0 %v603
        %713 = vmatprep.subr.bf16.mxu0 0
        %714 = vmatpush1.bf16.msra.mxu0 %v600
        %715 = vmatprep.subr.bf16.mxu0 0
        %716 = vmatpush1.bf16.msra.mxu0 %v597
        %717 = vmatprep.subr.bf16.mxu0 0
        %718 = vmatpush1.bf16.msra.mxu0 %v594
        %719 = vmatprep.subr.bf16.mxu0 0
        %720 = vmatpush1.bf16.msra.mxu0 %v591
        %721 = vmatprep.subr.bf16.mxu0 0
        %722 = vmatpush1.bf16.msra.mxu0 %v588
        %723 = vmatprep.subr.bf16.mxu0 0
        %724 = vmatpush2.bf16.msra.mxu0 0
        %725 = vmatprep.subr.bf16.mxu0 0
        %726 = vmatpush2.bf16.msra.mxu0 0
        %727 = vmatprep.subr.bf16.mxu0 0
        %728 = vmatpush2.bf16.msra.mxu0 0
        %729 = vmatprep.subr.bf16.mxu0 0
        %730 = vmatpush2.bf16.msra.mxu0 0
        %731 = vmatprep.subr.bf16.mxu0 0
        %732 = vmatpush2.bf16.msra.mxu0 0
        %733 = vmatprep.subr.bf16.mxu0 0
        %734 = vmatpush2.bf16.msra.mxu0 0
        %735 = vmatprep.subr.bf16.mxu0 0
        %736 = vmatpush2.bf16.msra.mxu0 0
        %737 = vmatprep.subr.bf16.mxu0 0
        %738 = vmatpush2.bf16.msra.mxu0 0
        %739 = vmatprep.mubr.bf16.mxu0 0
        %740 = vmatmul.mubr.bf16.gmra.mxu0 %v498
        %v741 = vpop.f32.mrf.mxu0
        %v742 = vadd.f32 0.0, %v741
        %v743 = vpop.f32.mrf.mxu0
        %v744 = vpop.f32.mrf.mxu0
        %v745 = vadd.f32 0.0, %v744
        %v746 = vpop.f32.mrf.mxu0
        %747 = vmatprep.mubr.bf16.mxu0 0
        %748 = vmatmul.mubr.bf16.gmra.mxu0 %v499
        %v749 = vpop.f32.mrf.mxu0
        %v750 = vadd.f32 0.0, %v749
        %v751 = vpop.f32.mrf.mxu0
        %v752 = vpop.f32.mrf.mxu0
        %v753 = vadd.f32 0.0, %v752
        %v754 = vpop.f32.mrf.mxu0
        %755 = vmatprep.mubr.bf16.mxu0 0
        %756 = vmatmul.mubr.bf16.gmra.mxu0 %v500
        %v757 = vpop.f32.mrf.mxu0
        %v758 = vadd.f32 0.0, %v757
        %v759 = vpop.f32.mrf.mxu0
        %v760 = vpop.f32.mrf.mxu0
        %v761 = vadd.f32 0.0, %v760
        %v762 = vpop.f32.mrf.mxu0
        %763 = vmatprep.mubr.bf16.mxu0 0
        %764 = vmatmul.mubr.bf16.gmra.mxu0 %v501
        %v765 = vpop.f32.mrf.mxu0
        %v766 = vadd.f32 0.0, %v765
        %v767 = vpop.f32.mrf.mxu0
        %v768 = vpop.f32.mrf.mxu0
        %v769 = vadd.f32 0.0, %v768
        %v770 = vpop.f32.mrf.mxu0
        %771 = vdwg.mxu0
        %v772 = vpack.c.bf16 %v673, %v669
        %v773 = vpack.c.bf16 %v675, %v671
        %v774 = vpack.c.bf16 %v745, %v742
        %v775 = vpack.c.bf16 %v683, %v679
        %v776 = vpack.c.bf16 %v685, %v681
        %v777 = vpack.c.bf16 %v753, %v750
        %v778 = vpack.c.bf16 %v693, %v689
        %v779 = vpack.c.bf16 %v695, %v691
        %v780 = vpack.c.bf16 %v761, %v758
        %v781 = vpack.c.bf16 %v703, %v699
        %v782 = vpack.c.bf16 %v705, %v701
        %v783 = vpack.c.bf16 %v769, %v766
        %v788 = vunpack.c.l.b16 %v772
        %v789 = vunpack.c.h.b16 %v772
        %v790 = vunpack.c.l.b16 %v775
        %v791 = vunpack.c.h.b16 %v775
        %v792 = vunpack.c.l.b16 %v778
        %v793 = vunpack.c.h.b16 %v778
        %v794 = vunpack.c.l.b16 %v781
        %v795 = vunpack.c.h.b16 %v781
        %v796 = vpack.c.b16 %v788, %v788
        %v797 = vpack.c.b16 %v789, %v789
        %v798 = vpack.c.b16 %v790, %v790
        %v799 = vpack.c.b16 %v791, %v791
        %v800 = vpack.c.b16 %v792, %v792
        %v801 = vpack.c.b16 %v793, %v793
        %v802 = vpack.c.b16 %v794, %v794
        %v803 = vpack.c.b16 %v795, %v795
        %v808 = vunpack.c.l.b16 %v773
        %v809 = vunpack.c.h.b16 %v773
        %v810 = vunpack.c.l.b16 %v776
        %v811 = vunpack.c.h.b16 %v776
        %v812 = vunpack.c.l.b16 %v779
        %v813 = vunpack.c.h.b16 %v779
        %v814 = vunpack.c.l.b16 %v782
        %v815 = vunpack.c.h.b16 %v782
        %v816 = vpack.c.b16 %v808, %v808
        %v817 = vpack.c.b16 %v809, %v809
        %v818 = vpack.c.b16 %v810, %v810
        %v819 = vpack.c.b16 %v811, %v811
        %v820 = vpack.c.b16 %v812, %v812
        %v821 = vpack.c.b16 %v813, %v813
        %v822 = vpack.c.b16 %v814, %v814
        %v823 = vpack.c.b16 %v815, %v815
        %v828 = vunpack.c.l.b16 %v774
        %v829 = vunpack.c.h.b16 %v774
        %v830 = vunpack.c.l.b16 %v777
        %v831 = vunpack.c.h.b16 %v777
        %v832 = vunpack.c.l.b16 %v780
        %v833 = vunpack.c.h.b16 %v780
        %v834 = vunpack.c.l.b16 %v783
        %v835 = vunpack.c.h.b16 %v783
        %v836 = vpack.c.b16 %v828, %v828
        %v837 = vpack.c.b16 %v829, %v829
        %v838 = vpack.c.b16 %v830, %v830
        %v839 = vpack.c.b16 %v831, %v831
        %v840 = vpack.c.b16 %v832, %v832
        %v841 = vpack.c.b16 %v833, %v833
        %v842 = vpack.c.b16 %v834, %v834
        %v843 = vpack.c.b16 %v835, %v835
        %v844 = vmul.f32 %v433, -1e+09
        %v845 = vmul.f32 %v434, -1e+09
        %v846 = vmul.f32 %v435, -1e+09
        %v847 = vmul.f32 %v436, -1e+09
        %v848 = vmul.f32 %v437, -1e+09
        %v849 = vmul.f32 %v438, -1e+09
        %v850 = vmul.f32 %v439, -1e+09
        %v851 = vmul.f32 %v440, -1e+09
        %vm852 = vcmask 130048
        %v854 = vsel %vm852, %v796, 0
        %v857 = vsel %vm852, %v816, 0
        %859 = vmatprep.subr.bf16.mxu0 0
        %860 = vmatpush1.bf16.xpose.msra.mxu0 0
        %861 = vmatprep.subr.bf16.mxu0 0
        %862 = vmatpush1.bf16.xpose.msra.mxu0 0
        %863 = vmatprep.subr.bf16.mxu0 0
        %864 = vmatpush1.bf16.xpose.msra.mxu0 0
        %865 = vmatprep.subr.bf16.mxu0 0
        %866 = vmatpush1.bf16.xpose.msra.mxu0 0
        %867 = vmatprep.subr.bf16.mxu0 0
        %868 = vmatpush1.bf16.xpose.msra.mxu0 0
        %869 = vmatprep.subr.bf16.mxu0 0
        %870 = vmatpush1.bf16.xpose.msra.mxu0 0
        %871 = vmatprep.subr.bf16.mxu0 0
        %872 = vmatpush1.bf16.xpose.msra.mxu0 0
        %873 = vmatprep.subr.bf16.mxu0 0
        %874 = vmatpush1.bf16.xpose.msra.mxu0 %v857
        %875 = vmatprep.subr.bf16.mxu0 0
        %876 = vmatpush2.bf16.xpose.msra.mxu0 0
        %877 = vmatprep.subr.bf16.mxu0 0
        %878 = vmatpush2.bf16.xpose.msra.mxu0 0
        %879 = vmatprep.subr.bf16.mxu0 0
        %880 = vmatpush2.bf16.xpose.msra.mxu0 0
        %881 = vmatprep.subr.bf16.mxu0 0
        %882 = vmatpush2.bf16.xpose.msra.mxu0 0
        %883 = vmatprep.subr.bf16.mxu0 0
        %884 = vmatpush2.bf16.xpose.msra.mxu0 0
        %885 = vmatprep.subr.bf16.mxu0 0
        %886 = vmatpush2.bf16.xpose.msra.mxu0 0
        %887 = vmatprep.subr.bf16.mxu0 0
        %888 = vmatpush2.bf16.xpose.msra.mxu0 0
        %889 = vmatprep.subr.bf16.mxu0 0
        %890 = vmatpush2.bf16.xpose.msra.mxu0 0
        %891 = vmatprep.mubr.bf16.mxu0 0
        %892 = vmatmul.mubr.bf16.gmra.mxu0 %v854
        %v893 = vpop.f32.mrf.mxu0
        %v894 = vadd.f32 0.0, %v893
        %v895 = vpop.f32.mrf.mxu0
        %v896 = vpop.f32.mrf.mxu0
        %v897 = vpop.f32.mrf.mxu0
        %898 = vdwg.mxu0
        %v900 = vsel %vm852, %v797, 0
        %v903 = vsel %vm852, %v817, 0
        %905 = vmatprep.subr.bf16.mxu0 0
        %906 = vmatpush1.bf16.xpose.msra.mxu0 0
        %907 = vmatprep.subr.bf16.mxu0 0
        %908 = vmatpush1.bf16.xpose.msra.mxu0 0
        %909 = vmatprep.subr.bf16.mxu0 0
        %910 = vmatpush1.bf16.xpose.msra.mxu0 0
        %911 = vmatprep.subr.bf16.mxu0 0
        %912 = vmatpush1.bf16.xpose.msra.mxu0 0
        %913 = vmatprep.subr.bf16.mxu0 0
        %914 = vmatpush1.bf16.xpose.msra.mxu0 0
        %915 = vmatprep.subr.bf16.mxu0 0
        %916 = vmatpush1.bf16.xpose.msra.mxu0 0
        %917 = vmatprep.subr.bf16.mxu0 0
        %918 = vmatpush1.bf16.xpose.msra.mxu0 0
        %919 = vmatprep.subr.bf16.mxu0 0
        %920 = vmatpush1.bf16.xpose.msra.mxu0 %v903
        %921 = vmatprep.subr.bf16.mxu0 0
        %922 = vmatpush2.bf16.xpose.msra.mxu0 0
        %923 = vmatprep.subr.bf16.mxu0 0
        %924 = vmatpush2.bf16.xpose.msra.mxu0 0
        %925 = vmatprep.subr.bf16.mxu0 0
        %926 = vmatpush2.bf16.xpose.msra.mxu0 0
        %927 = vmatprep.subr.bf16.mxu0 0
        %928 = vmatpush2.bf16.xpose.msra.mxu0 0
        %929 = vmatprep.subr.bf16.mxu0 0
        %930 = vmatpush2.bf16.xpose.msra.mxu0 0
        %931 = vmatprep.subr.bf16.mxu0 0
        %932 = vmatpush2.bf16.xpose.msra.mxu0 0
        %933 = vmatprep.subr.bf16.mxu0 0
        %934 = vmatpush2.bf16.xpose.msra.mxu0 0
        %935 = vmatprep.subr.bf16.mxu0 0
        %936 = vmatpush2.bf16.xpose.msra.mxu0 0
        %937 = vmatprep.mubr.bf16.mxu0 0
        %938 = vmatmul.mubr.bf16.gmra.mxu0 %v900
        %v939 = vpop.f32.mrf.mxu0
        %v940 = vadd.f32 0.0, %v939
        %v941 = vpop.f32.mrf.mxu0
        %v942 = vpop.f32.mrf.mxu0
        %v943 = vpop.f32.mrf.mxu0
        %944 = vdwg.mxu0
        %v946 = vsel %vm852, %v798, 0
        %v949 = vsel %vm852, %v818, 0
        %951 = vmatprep.subr.bf16.mxu0 0
        %952 = vmatpush1.bf16.xpose.msra.mxu0 0
        %953 = vmatprep.subr.bf16.mxu0 0
        %954 = vmatpush1.bf16.xpose.msra.mxu0 0
        %955 = vmatprep.subr.bf16.mxu0 0
        %956 = vmatpush1.bf16.xpose.msra.mxu0 0
        %957 = vmatprep.subr.bf16.mxu0 0
        %958 = vmatpush1.bf16.xpose.msra.mxu0 0
        %959 = vmatprep.subr.bf16.mxu0 0
        %960 = vmatpush1.bf16.xpose.msra.mxu0 0
        %961 = vmatprep.subr.bf16.mxu0 0
        %962 = vmatpush1.bf16.xpose.msra.mxu0 0
        %963 = vmatprep.subr.bf16.mxu0 0
        %964 = vmatpush1.bf16.xpose.msra.mxu0 0
        %965 = vmatprep.subr.bf16.mxu0 0
        %966 = vmatpush1.bf16.xpose.msra.mxu0 %v949
        %967 = vmatprep.subr.bf16.mxu0 0
        %968 = vmatpush2.bf16.xpose.msra.mxu0 0
        %969 = vmatprep.subr.bf16.mxu0 0
        %970 = vmatpush2.bf16.xpose.msra.mxu0 0
        %971 = vmatprep.subr.bf16.mxu0 0
        %972 = vmatpush2.bf16.xpose.msra.mxu0 0
        %973 = vmatprep.subr.bf16.mxu0 0
        %974 = vmatpush2.bf16.xpose.msra.mxu0 0
        %975 = vmatprep.subr.bf16.mxu0 0
        %976 = vmatpush2.bf16.xpose.msra.mxu0 0
        %977 = vmatprep.subr.bf16.mxu0 0
        %978 = vmatpush2.bf16.xpose.msra.mxu0 0
        %979 = vmatprep.subr.bf16.mxu0 0
        %980 = vmatpush2.bf16.xpose.msra.mxu0 0
        %981 = vmatprep.subr.bf16.mxu0 0
        %982 = vmatpush2.bf16.xpose.msra.mxu0 0
        %983 = vmatprep.mubr.bf16.mxu0 0
        %984 = vmatmul.mubr.bf16.gmra.mxu0 %v946
        %v985 = vpop.f32.mrf.mxu0
        %v986 = vadd.f32 0.0, %v985
        %v987 = vpop.f32.mrf.mxu0
        %v988 = vpop.f32.mrf.mxu0
        %v989 = vpop.f32.mrf.mxu0
        %990 = vdwg.mxu0
        %v992 = vsel %vm852, %v799, 0
        %v995 = vsel %vm852, %v819, 0
        %997 = vmatprep.subr.bf16.mxu0 0
        %998 = vmatpush1.bf16.xpose.msra.mxu0 0
        %999 = vmatprep.subr.bf16.mxu0 0
        %1000 = vmatpush1.bf16.xpose.msra.mxu0 0
        %1001 = vmatprep.subr.bf16.mxu0 0
        %1002 = vmatpush1.bf16.xpose.msra.mxu0 0
        %1003 = vmatprep.subr.bf16.mxu0 0
        %1004 = vmatpush1.bf16.xpose.msra.mxu0 0
        %1005 = vmatprep.subr.bf16.mxu0 0
        %1006 = vmatpush1.bf16.xpose.msra.mxu0 0
        %1007 = vmatprep.subr.bf16.mxu0 0
        %1008 = vmatpush1.bf16.xpose.msra.mxu0 0
        %1009 = vmatprep.subr.bf16.mxu0 0
        %1010 = vmatpush1.bf16.xpose.msra.mxu0 0
        %1011 = vmatprep.subr.bf16.mxu0 0
        %1012 = vmatpush1.bf16.xpose.msra.mxu0 %v995
        %1013 = vmatprep.subr.bf16.mxu0 0
        %1014 = vmatpush2.bf16.xpose.msra.mxu0 0
        %1015 = vmatprep.subr.bf16.mxu0 0
        %1016 = vmatpush2.bf16.xpose.msra.mxu0 0
        %1017 = vmatprep.subr.bf16.mxu0 0
        %1018 = vmatpush2.bf16.xpose.msra.mxu0 0
        %1019 = vmatprep.subr.bf16.mxu0 0
        %1020 = vmatpush2.bf16.xpose.msra.mxu0 0
        %1021 = vmatprep.subr.bf16.mxu0 0
        %1022 = vmatpush2.bf16.xpose.msra.mxu0 0
        %1023 = vmatprep.subr.bf16.mxu0 0
        %1024 = vmatpush2.bf16.xpose.msra.mxu0 0
        %1025 = vmatprep.subr.bf16.mxu0 0
        %1026 = vmatpush2.bf16.xpose.msra.mxu0 0
        %1027 = vmatprep.subr.bf16.mxu0 0
        %1028 = vmatpush2.bf16.xpose.msra.mxu0 0
        %1029 = vmatprep.mubr.bf16.mxu0 0
        %1030 = vmatmul.mubr.bf16.gmra.mxu0 %v992
        %v1031 = vpop.f32.mrf.mxu0
        %v1032 = vadd.f32 0.0, %v1031
        %v1033 = vpop.f32.mrf.mxu0
        %v1034 = vpop.f32.mrf.mxu0
        %v1035 = vpop.f32.mrf.mxu0
        %1036 = vdwg.mxu0
        %v1038 = vsel %vm852, %v800, 0
        %v1041 = vsel %vm852, %v820, 0
        %1043 = vmatprep.subr.bf16.mxu0 0
        %1044 = vmatpush1.bf16.xpose.msra.mxu0 0
        %1045 = vmatprep.subr.bf16.mxu0 0
        %1046 = vmatpush1.bf16.xpose.msra.mxu0 0
        %1047 = vmatprep.subr.bf16.mxu0 0
        %1048 = vmatpush1.bf16.xpose.msra.mxu0 0
        %1049 = vmatprep.subr.bf16.mxu0 0
        %1050 = vmatpush1.bf16.xpose.msra.mxu0 0
        %1051 = vmatprep.subr.bf16.mxu0 0
        %1052 = vmatpush1.bf16.xpose.msra.mxu0 0
        %1053 = vmatprep.subr.bf16.mxu0 0
        %1054 = vmatpush1.bf16.xpose.msra.mxu0 0
        %1055 = vmatprep.subr.bf16.mxu0 0
        %1056 = vmatpush1.bf16.xpose.msra.mxu0 0
        %1057 = vmatprep.subr.bf16.mxu0 0
        %1058 = vmatpush1.bf16.xpose.msra.mxu0 %v1041
        %1059 = vmatprep.subr.bf16.mxu0 0
        %1060 = vmatpush2.bf16.xpose.msra.mxu0 0
        %1061 = vmatprep.subr.bf16.mxu0 0
        %1062 = vmatpush2.bf16.xpose.msra.mxu0 0
        %1063 = vmatprep.subr.bf16.mxu0 0
        %1064 = vmatpush2.bf16.xpose.msra.mxu0 0
        %1065 = vmatprep.subr.bf16.mxu0 0
        %1066 = vmatpush2.bf16.xpose.msra.mxu0 0
        %1067 = vmatprep.subr.bf16.mxu0 0
        %1068 = vmatpush2.bf16.xpose.msra.mxu0 0
        %1069 = vmatprep.subr.bf16.mxu0 0
        %1070 = vmatpush2.bf16.xpose.msra.mxu0 0
        %1071 = vmatprep.subr.bf16.mxu0 0
        %1072 = vmatpush2.bf16.xpose.msra.mxu0 0
        %1073 = vmatprep.subr.bf16.mxu0 0
        %1074 = vmatpush2.bf16.xpose.msra.mxu0 0
        %1075 = vmatprep.mubr.bf16.mxu0 0
        %1076 = vmatmul.mubr.bf16.gmra.mxu0 %v1038
        %v1077 = vpop.f32.mrf.mxu0
        %v1078 = vadd.f32 0.0, %v1077
        %v1079 = vpop.f32.mrf.mxu0
        %v1080 = vpop.f32.mrf.mxu0
        %v1081 = vpop.f32.mrf.mxu0
        %1082 = vdwg.mxu0
        %v1084 = vsel %vm852, %v801, 0
        %v1087 = vsel %vm852, %v821, 0
        %1089 = vmatprep.subr.bf16.mxu0 0
        %1090 = vmatpush1.bf16.xpose.msra.mxu0 0
        %1091 = vmatprep.subr.bf16.mxu0 0
        %1092 = vmatpush1.bf16.xpose.msra.mxu0 0
        %1093 = vmatprep.subr.bf16.mxu0 0
        %1094 = vmatpush1.bf16.xpose.msra.mxu0 0
        %1095 = vmatprep.subr.bf16.mxu0 0
        %1096 = vmatpush1.bf16.xpose.msra.mxu0 0
        %1097 = vmatprep.subr.bf16.mxu0 0
        %1098 = vmatpush1.bf16.xpose.msra.mxu0 0
        %1099 = vmatprep.subr.bf16.mxu0 0
        %1100 = vmatpush1.bf16.xpose.msra.mxu0 0
        %1101 = vmatprep.subr.bf16.mxu0 0
        %1102 = vmatpush1.bf16.xpose.msra.mxu0 0
        %1103 = vmatprep.subr.bf16.mxu0 0
        %1104 = vmatpush1.bf16.xpose.msra.mxu0 %v1087
        %1105 = vmatprep.subr.bf16.mxu0 0
        %1106 = vmatpush2.bf16.xpose.msra.mxu0 0
        %1107 = vmatprep.subr.bf16.mxu0 0
        %1108 = vmatpush2.bf16.xpose.msra.mxu0 0
        %1109 = vmatprep.subr.bf16.mxu0 0
        %1110 = vmatpush2.bf16.xpose.msra.mxu0 0
        %1111 = vmatprep.subr.bf16.mxu0 0
        %1112 = vmatpush2.bf16.xpose.msra.mxu0 0
        %1113 = vmatprep.subr.bf16.mxu0 0
        %1114 = vmatpush2.bf16.xpose.msra.mxu0 0
        %1115 = vmatprep.subr.bf16.mxu0 0
        %1116 = vmatpush2.bf16.xpose.msra.mxu0 0
        %1117 = vmatprep.subr.bf16.mxu0 0
        %1118 = vmatpush2.bf16.xpose.msra.mxu0 0
        %1119 = vmatprep.subr.bf16.mxu0 0
        %1120 = vmatpush2.bf16.xpose.msra.mxu0 0
        %1121 = vmatprep.mubr.bf16.mxu0 0
        %1122 = vmatmul.mubr.bf16.gmra.mxu0 %v1084
        %v1123 = vpop.f32.mrf.mxu0
        %v1124 = vadd.f32 0.0, %v1123
        %v1125 = vpop.f32.mrf.mxu0
        %v1126 = vpop.f32.mrf.mxu0
        %v1127 = vpop.f32.mrf.mxu0
        %1128 = vdwg.mxu0
        %v1130 = vsel %vm852, %v802, 0
        %v1133 = vsel %vm852, %v822, 0
        %1135 = vmatprep.subr.bf16.mxu0 0
        %1136 = vmatpush1.bf16.xpose.msra.mxu0 0
        %1137 = vmatprep.subr.bf16.mxu0 0
        %1138 = vmatpush1.bf16.xpose.msra.mxu0 0
        %1139 = vmatprep.subr.bf16.mxu0 0
        %1140 = vmatpush1.bf16.xpose.msra.mxu0 0
        %1141 = vmatprep.subr.bf16.mxu0 0
        %1142 = vmatpush1.bf16.xpose.msra.mxu0 0
        %1143 = vmatprep.subr.bf16.mxu0 0
        %1144 = vmatpush1.bf16.xpose.msra.mxu0 0
        %1145 = vmatprep.subr.bf16.mxu0 0
        %1146 = vmatpush1.bf16.xpose.msra.mxu0 0
        %1147 = vmatprep.subr.bf16.mxu0 0
        %1148 = vmatpush1.bf16.xpose.msra.mxu0 0
        %1149 = vmatprep.subr.bf16.mxu0 0
        %1150 = vmatpush1.bf16.xpose.msra.mxu0 %v1133
        %1151 = vmatprep.subr.bf16.mxu0 0
        %1152 = vmatpush2.bf16.xpose.msra.mxu0 0
        %1153 = vmatprep.subr.bf16.mxu0 0
        %1154 = vmatpush2.bf16.xpose.msra.mxu0 0
        %1155 = vmatprep.subr.bf16.mxu0 0
        %1156 = vmatpush2.bf16.xpose.msra.mxu0 0
        %1157 = vmatprep.subr.bf16.mxu0 0
        %1158 = vmatpush2.bf16.xpose.msra.mxu0 0
        %1159 = vmatprep.subr.bf16.mxu0 0
        %1160 = vmatpush2.bf16.xpose.msra.mxu0 0
        %1161 = vmatprep.subr.bf16.mxu0 0
        %1162 = vmatpush2.bf16.xpose.msra.mxu0 0
        %1163 = vmatprep.subr.bf16.mxu0 0
        %1164 = vmatpush2.bf16.xpose.msra.mxu0 0
        %1165 = vmatprep.subr.bf16.mxu0 0
        %1166 = vmatpush2.bf16.xpose.msra.mxu0 0
        %1167 = vmatprep.mubr.bf16.mxu0 0
        %1168 = vmatmul.mubr.bf16.gmra.mxu0 %v1130
        %v1169 = vpop.f32.mrf.mxu0
        %v1170 = vadd.f32 0.0, %v1169
        %v1171 = vpop.f32.mrf.mxu0
        %v1172 = vpop.f32.mrf.mxu0
        %v1173 = vpop.f32.mrf.mxu0
        %1174 = vdwg.mxu0
        %v1176 = vsel %vm852, %v803, 0
        %v1179 = vsel %vm852, %v823, 0
        %1181 = vmatprep.subr.bf16.mxu0 0
        %1182 = vmatpush1.bf16.xpose.msra.mxu0 0
        %1183 = vmatprep.subr.bf16.mxu0 0
        %1184 = vmatpush1.bf16.xpose.msra.mxu0 0
        %1185 = vmatprep.subr.bf16.mxu0 0
        %1186 = vmatpush1.bf16.xpose.msra.mxu0 0
        %1187 = vmatprep.subr.bf16.mxu0 0
        %1188 = vmatpush1.bf16.xpose.msra.mxu0 0
        %1189 = vmatprep.subr.bf16.mxu0 0
        %1190 = vmatpush1.bf16.xpose.msra.mxu0 0
        %1191 = vmatprep.subr.bf16.mxu0 0
        %1192 = vmatpush1.bf16.xpose.msra.mxu0 0
        %1193 = vmatprep.subr.bf16.mxu0 0
        %1194 = vmatpush1.bf16.xpose.msra.mxu0 0
        %1195 = vmatprep.subr.bf16.mxu0 0
        %1196 = vmatpush1.bf16.xpose.msra.mxu0 %v1179
        %1197 = vmatprep.subr.bf16.mxu0 0
        %1198 = vmatpush2.bf16.xpose.msra.mxu0 0
        %1199 = vmatprep.subr.bf16.mxu0 0
        %1200 = vmatpush2.bf16.xpose.msra.mxu0 0
        %1201 = vmatprep.subr.bf16.mxu0 0
        %1202 = vmatpush2.bf16.xpose.msra.mxu0 0
        %1203 = vmatprep.subr.bf16.mxu0 0
        %1204 = vmatpush2.bf16.xpose.msra.mxu0 0
        %1205 = vmatprep.subr.bf16.mxu0 0
        %1206 = vmatpush2.bf16.xpose.msra.mxu0 0
        %1207 = vmatprep.subr.bf16.mxu0 0
        %1208 = vmatpush2.bf16.xpose.msra.mxu0 0
        %1209 = vmatprep.subr.bf16.mxu0 0
        %1210 = vmatpush2.bf16.xpose.msra.mxu0 0
        %1211 = vmatprep.subr.bf16.mxu0 0
        %1212 = vmatpush2.bf16.xpose.msra.mxu0 0
        %1213 = vmatprep.mubr.bf16.mxu0 0
        %1214 = vmatmul.mubr.bf16.gmra.mxu0 %v1176
        %v1215 = vpop.f32.mrf.mxu0
        %v1216 = vadd.f32 0.0, %v1215
        %v1217 = vpop.f32.mrf.mxu0
        %v1218 = vpop.f32.mrf.mxu0
        %v1219 = vpop.f32.mrf.mxu0
        %1220 = vdwg.mxu0
        %v1221 = vmul.f32 %v894, 0.25
        %v1222 = vmul.f32 %v940, 0.25
        %v1223 = vmul.f32 %v986, 0.25
        %v1224 = vmul.f32 %v1032, 0.25
        %v1225 = vmul.f32 %v1078, 0.25
        %v1226 = vmul.f32 %v1124, 0.25
        %v1227 = vmul.f32 %v1170, 0.25
        %v1228 = vmul.f32 %v1216, 0.25
        %v1229 = vlaneseq
        %v1230 = vshrl.u32 %v1229, 7
        %v1231 = vsub.s32 0, %v1230
        %v1232 = vrot.slane %v844, %v1231
        %v1233 = vlaneseq
        %v1234 = vshrl.u32 %v1233, 7
        %v1235 = vsub.s32 0, %v1234
        %v1236 = vrot.slane %v845, %v1235
        %v1237 = vlaneseq
        %v1238 = vshrl.u32 %v1237, 7
        %v1239 = vsub.s32 0, %v1238
        %v1240 = vrot.slane %v846, %v1239
        %v1241 = vlaneseq
        %v1242 = vshrl.u32 %v1241, 7
        %v1243 = vsub.s32 0, %v1242
        %v1244 = vrot.slane %v847, %v1243
        %v1245 = vlaneseq
        %v1246 = vshrl.u32 %v1245, 7
        %v1247 = vsub.s32 0, %v1246
        %v1248 = vrot.slane %v848, %v1247
        %v1249 = vlaneseq
        %v1250 = vshrl.u32 %v1249, 7
        %v1251 = vsub.s32 0, %v1250
        %v1252 = vrot.slane %v849, %v1251
        %v1253 = vlaneseq
        %v1254 = vshrl.u32 %v1253, 7
        %v1255 = vsub.s32 0, %v1254
        %v1256 = vrot.slane %v850, %v1255
        %v1257 = vlaneseq
        %v1258 = vshrl.u32 %v1257, 7
        %v1259 = vsub.s32 0, %v1258
        %v1260 = vrot.slane %v851, %v1259
        %v1261 = vadd.f32 %v1221, %v1232
        %v1262 = vadd.f32 %v1222, %v1236
        %v1263 = vadd.f32 %v1223, %v1240
        %v1264 = vadd.f32 %v1224, %v1244
        %v1265 = vadd.f32 %v1225, %v1248
        %v1266 = vadd.f32 %v1226, %v1252
        %v1267 = vadd.f32 %v1227, %v1256
        %v1268 = vadd.f32 %v1228, %v1260
        %vm1269 = vcmask 64512
        %v1270 = vsel %vm1269, %v1261, -inf
        %1271 = vmax.xlane.f32.xlu0 %v1270
        %v1272 = vpop.xlane.xlu0 %1271
        %v1273 = vsel %vm1269, %v1262, -inf
        %1274 = vmax.xlane.f32.xlu0 %v1273
        %v1275 = vpop.xlane.xlu0 %1274
        %v1276 = vsel %vm1269, %v1263, -inf
        %1277 = vmax.xlane.f32.xlu0 %v1276
        %v1278 = vpop.xlane.xlu0 %1277
        %v1279 = vsel %vm1269, %v1264, -inf
        %1280 = vmax.xlane.f32.xlu0 %v1279
        %v1281 = vpop.xlane.xlu0 %1280
        %v1282 = vsel %vm1269, %v1265, -inf
        %1283 = vmax.xlane.f32.xlu0 %v1282
        %v1284 = vpop.xlane.xlu0 %1283
        %v1285 = vsel %vm1269, %v1266, -inf
        %1286 = vmax.xlane.f32.xlu0 %v1285
        %v1287 = vpop.xlane.xlu0 %1286
        %v1288 = vsel %vm1269, %v1267, -inf
        %1289 = vmax.xlane.f32.xlu0 %v1288
        %v1290 = vpop.xlane.xlu0 %1289
        %v1291 = vsel %vm1269, %v1268, -inf
        %1292 = vmax.xlane.f32.xlu0 %v1291
        %v1293 = vpop.xlane.xlu0 %1292
        %v1294 = vsub.f32 %v1261, %v1272
        %v1295 = vsub.f32 %v1262, %v1275
        %v1296 = vsub.f32 %v1263, %v1278
        %v1297 = vsub.f32 %v1264, %v1281
        %v1298 = vsub.f32 %v1265, %v1284
        %v1299 = vsub.f32 %v1266, %v1287
        %v1300 = vsub.f32 %v1267, %v1290
        %v1301 = vsub.f32 %v1268, %v1293
        %v1302 = vmul.f32 %v1294, 1.442695
        %v1303 = vpow.pop %v1302
        %v1304 = vmul.f32 %v1295, 1.442695
        %v1305 = vpow.pop %v1304
        %v1306 = vmul.f32 %v1296, 1.442695
        %v1307 = vpow.pop %v1306
        %v1308 = vmul.f32 %v1297, 1.442695
        %v1309 = vpow.pop %v1308
        %v1310 = vmul.f32 %v1298, 1.442695
        %v1311 = vpow.pop %v1310
        %v1312 = vmul.f32 %v1299, 1.442695
        %v1313 = vpow.pop %v1312
        %v1314 = vmul.f32 %v1300, 1.442695
        %v1315 = vpow.pop %v1314
        %v1316 = vmul.f32 %v1301, 1.442695
        %v1317 = vpow.pop %v1316
        %v1318 = vsel %vm1269, %v1303, 0.0
        %1319 = vadd.xlane.f32.xlu0 %v1318
        %v1320 = vpop.xlane.xlu0 %1319
        %v1321 = vsel %vm1269, %v1305, 0.0
        %1322 = vadd.xlane.f32.xlu0 %v1321
        %v1323 = vpop.xlane.xlu0 %1322
        %v1324 = vsel %vm1269, %v1307, 0.0
        %1325 = vadd.xlane.f32.xlu0 %v1324
        %v1326 = vpop.xlane.xlu0 %1325
        %v1327 = vsel %vm1269, %v1309, 0.0
        %1328 = vadd.xlane.f32.xlu0 %v1327
        %v1329 = vpop.xlane.xlu0 %1328
        %v1330 = vsel %vm1269, %v1311, 0.0
        %1331 = vadd.xlane.f32.xlu0 %v1330
        %v1332 = vpop.xlane.xlu0 %1331
        %v1333 = vsel %vm1269, %v1313, 0.0
        %1334 = vadd.xlane.f32.xlu0 %v1333
        %v1335 = vpop.xlane.xlu0 %1334
        %v1336 = vsel %vm1269, %v1315, 0.0
        %1337 = vadd.xlane.f32.xlu0 %v1336
        %v1338 = vpop.xlane.xlu0 %1337
        %v1339 = vsel %vm1269, %v1317, 0.0
        %1340 = vadd.xlane.f32.xlu0 %v1339
        %v1341 = vpop.xlane.xlu0 %1340
        %v1342 = vrcp.pop %v1320
        %v1343 = vrcp.pop %v1323
        %v1344 = vrcp.pop %v1326
        %v1345 = vrcp.pop %v1329
        %v1346 = vrcp.pop %v1332
        %v1347 = vrcp.pop %v1335
        %v1348 = vrcp.pop %v1338
        %v1349 = vrcp.pop %v1341
        %v1350 = vmul.f32 %v1303, %v1342
        %v1351 = vmul.f32 %v1305, %v1343
        %v1352 = vmul.f32 %v1307, %v1344
        %v1353 = vmul.f32 %v1309, %v1345
        %v1354 = vmul.f32 %v1311, %v1346
        %v1355 = vmul.f32 %v1313, %v1347
        %v1356 = vmul.f32 %v1315, %v1348
        %v1357 = vmul.f32 %v1317, %v1349
        %v1358 = vpack.c.bf16 %v1350, %v1350
        %v1359 = vpack.c.bf16 %v1351, %v1351
        %v1360 = vpack.c.bf16 %v1352, %v1352
        %v1361 = vpack.c.bf16 %v1353, %v1353
        %v1362 = vpack.c.bf16 %v1354, %v1354
        %v1363 = vpack.c.bf16 %v1355, %v1355
        %v1364 = vpack.c.bf16 %v1356, %v1356
        %v1365 = vpack.c.bf16 %v1357, %v1357
        %v1367 = vsel %vm1269, %v1358, 0
        %vm1369 = vcmask 1043456
        %v1371 = vsel %vm1369, %v836, 0
        %1373 = vmatprep.subr.bf16.mxu0 0
        %1374 = vmatpush1.bf16.msra.mxu0 0
        %1375 = vmatprep.subr.bf16.mxu0 0
        %1376 = vmatpush1.bf16.msra.mxu0 0
        %1377 = vmatprep.subr.bf16.mxu0 0
        %1378 = vmatpush1.bf16.msra.mxu0 0
        %1379 = vmatprep.subr.bf16.mxu0 0
        %1380 = vmatpush1.bf16.msra.mxu0 0
        %1381 = vmatprep.subr.bf16.mxu0 0
        %1382 = vmatpush1.bf16.msra.mxu0 0
        %1383 = vmatprep.subr.bf16.mxu0 0
        %1384 = vmatpush1.bf16.msra.mxu0 0
        %1385 = vmatprep.subr.bf16.mxu0 0
        %1386 = vmatpush1.bf16.msra.mxu0 0
        %1387 = vmatprep.subr.bf16.mxu0 0
        %1388 = vmatpush1.bf16.msra.mxu0 %v1371
        %1389 = vmatprep.subr.bf16.mxu0 0
        %1390 = vmatpush2.bf16.msra.mxu0 0
        %1391 = vmatprep.subr.bf16.mxu0 0
        %1392 = vmatpush2.bf16.msra.mxu0 0
        %1393 = vmatprep.subr.bf16.mxu0 0
        %1394 = vmatpush2.bf16.msra.mxu0 0
        %1395 = vmatprep.subr.bf16.mxu0 0
        %1396 = vmatpush2.bf16.msra.mxu0 0
        %1397 = vmatprep.subr.bf16.mxu0 0
        %1398 = vmatpush2.bf16.msra.mxu0 0
        %1399 = vmatprep.subr.bf16.mxu0 0
        %1400 = vmatpush2.bf16.msra.mxu0 0
        %1401 = vmatprep.subr.bf16.mxu0 0
        %1402 = vmatpush2.bf16.msra.mxu0 0
        %1403 = vmatprep.subr.bf16.mxu0 0
        %1404 = vmatpush2.bf16.msra.mxu0 0
        %1405 = vmatprep.mubr.bf16.mxu0 0
        %1406 = vmatmul.mubr.bf16.gmra.mxu0 %v1367
        %v1407 = vpop.f32.mrf.mxu0
        %v1408 = vadd.f32 0.0, %v1407
        %v1409 = vpop.f32.mrf.mxu0
        %v1410 = vpop.f32.mrf.mxu0
        %v1411 = vpop.f32.mrf.mxu0
        %1412 = vdwg.mxu0
        %v1414 = vsel %vm1269, %v1359, 0
        %v1417 = vsel %vm1369, %v837, 0
        %1419 = vmatprep.subr.bf16.mxu0 0
        %1420 = vmatpush1.bf16.msra.mxu0 0
        %1421 = vmatprep.subr.bf16.mxu0 0
        %1422 = vmatpush1.bf16.msra.mxu0 0
        %1423 = vmatprep.subr.bf16.mxu0 0
        %1424 = vmatpush1.bf16.msra.mxu0 0
        %1425 = vmatprep.subr.bf16.mxu0 0
        %1426 = vmatpush1.bf16.msra.mxu0 0
        %1427 = vmatprep.subr.bf16.mxu0 0
        %1428 = vmatpush1.bf16.msra.mxu0 0
        %1429 = vmatprep.subr.bf16.mxu0 0
        %1430 = vmatpush1.bf16.msra.mxu0 0
        %1431 = vmatprep.subr.bf16.mxu0 0
        %1432 = vmatpush1.bf16.msra.mxu0 0
        %1433 = vmatprep.subr.bf16.mxu0 0
        %1434 = vmatpush1.bf16.msra.mxu0 %v1417
        %1435 = vmatprep.subr.bf16.mxu0 0
        %1436 = vmatpush2.bf16.msra.mxu0 0
        %1437 = vmatprep.subr.bf16.mxu0 0
        %1438 = vmatpush2.bf16.msra.mxu0 0
        %1439 = vmatprep.subr.bf16.mxu0 0
        %1440 = vmatpush2.bf16.msra.mxu0 0
        %1441 = vmatprep.subr.bf16.mxu0 0
        %1442 = vmatpush2.bf16.msra.mxu0 0
        %1443 = vmatprep.subr.bf16.mxu0 0
        %1444 = vmatpush2.bf16.msra.mxu0 0
        %1445 = vmatprep.subr.bf16.mxu0 0
        %1446 = vmatpush2.bf16.msra.mxu0 0
        %1447 = vmatprep.subr.bf16.mxu0 0
        %1448 = vmatpush2.bf16.msra.mxu0 0
        %1449 = vmatprep.subr.bf16.mxu0 0
        %1450 = vmatpush2.bf16.msra.mxu0 0
        %1451 = vmatprep.mubr.bf16.mxu0 0
        %1452 = vmatmul.mubr.bf16.gmra.mxu0 %v1414
        %v1453 = vpop.f32.mrf.mxu0
        %v1454 = vadd.f32 0.0, %v1453
        %v1455 = vpop.f32.mrf.mxu0
        %v1456 = vpop.f32.mrf.mxu0
        %v1457 = vpop.f32.mrf.mxu0
        %1458 = vdwg.mxu0
        %v1460 = vsel %vm1269, %v1360, 0
        %v1463 = vsel %vm1369, %v838, 0
        %1465 = vmatprep.subr.bf16.mxu0 0
        %1466 = vmatpush1.bf16.msra.mxu0 0
        %1467 = vmatprep.subr.bf16.mxu0 0
        %1468 = vmatpush1.bf16.msra.mxu0 0
        %1469 = vmatprep.subr.bf16.mxu0 0
        %1470 = vmatpush1.bf16.msra.mxu0 0
        %1471 = vmatprep.subr.bf16.mxu0 0
        %1472 = vmatpush1.bf16.msra.mxu0 0
        %1473 = vmatprep.subr.bf16.mxu0 0
        %1474 = vmatpush1.bf16.msra.mxu0 0
        %1475 = vmatprep.subr.bf16.mxu0 0
        %1476 = vmatpush1.bf16.msra.mxu0 0
        %1477 = vmatprep.subr.bf16.mxu0 0
        %1478 = vmatpush1.bf16.msra.mxu0 0
        %1479 = vmatprep.subr.bf16.mxu0 0
        %1480 = vmatpush1.bf16.msra.mxu0 %v1463
        %1481 = vmatprep.subr.bf16.mxu0 0
        %1482 = vmatpush2.bf16.msra.mxu0 0
        %1483 = vmatprep.subr.bf16.mxu0 0
        %1484 = vmatpush2.bf16.msra.mxu0 0
        %1485 = vmatprep.subr.bf16.mxu0 0
        %1486 = vmatpush2.bf16.msra.mxu0 0
        %1487 = vmatprep.subr.bf16.mxu0 0
        %1488 = vmatpush2.bf16.msra.mxu0 0
        %1489 = vmatprep.subr.bf16.mxu0 0
        %1490 = vmatpush2.bf16.msra.mxu0 0
        %1491 = vmatprep.subr.bf16.mxu0 0
        %1492 = vmatpush2.bf16.msra.mxu0 0
        %1493 = vmatprep.subr.bf16.mxu0 0
        %1494 = vmatpush2.bf16.msra.mxu0 0
        %1495 = vmatprep.subr.bf16.mxu0 0
        %1496 = vmatpush2.bf16.msra.mxu0 0
        %1497 = vmatprep.mubr.bf16.mxu0 0
        %1498 = vmatmul.mubr.bf16.gmra.mxu0 %v1460
        %v1499 = vpop.f32.mrf.mxu0
        %v1500 = vadd.f32 0.0, %v1499
        %v1501 = vpop.f32.mrf.mxu0
        %v1502 = vpop.f32.mrf.mxu0
        %v1503 = vpop.f32.mrf.mxu0
        %1504 = vdwg.mxu0
        %v1506 = vsel %vm1269, %v1361, 0
        %v1509 = vsel %vm1369, %v839, 0
        %1511 = vmatprep.subr.bf16.mxu0 0
        %1512 = vmatpush1.bf16.msra.mxu0 0
        %1513 = vmatprep.subr.bf16.mxu0 0
        %1514 = vmatpush1.bf16.msra.mxu0 0
        %1515 = vmatprep.subr.bf16.mxu0 0
        %1516 = vmatpush1.bf16.msra.mxu0 0
        %1517 = vmatprep.subr.bf16.mxu0 0
        %1518 = vmatpush1.bf16.msra.mxu0 0
        %1519 = vmatprep.subr.bf16.mxu0 0
        %1520 = vmatpush1.bf16.msra.mxu0 0
        %1521 = vmatprep.subr.bf16.mxu0 0
        %1522 = vmatpush1.bf16.msra.mxu0 0
        %1523 = vmatprep.subr.bf16.mxu0 0
        %1524 = vmatpush1.bf16.msra.mxu0 0
        %1525 = vmatprep.subr.bf16.mxu0 0
        %1526 = vmatpush1.bf16.msra.mxu0 %v1509
        %1527 = vmatprep.subr.bf16.mxu0 0
        %1528 = vmatpush2.bf16.msra.mxu0 0
        %1529 = vmatprep.subr.bf16.mxu0 0
        %1530 = vmatpush2.bf16.msra.mxu0 0
        %1531 = vmatprep.subr.bf16.mxu0 0
        %1532 = vmatpush2.bf16.msra.mxu0 0
        %1533 = vmatprep.subr.bf16.mxu0 0
        %1534 = vmatpush2.bf16.msra.mxu0 0
        %1535 = vmatprep.subr.bf16.mxu0 0
        %1536 = vmatpush2.bf16.msra.mxu0 0
        %1537 = vmatprep.subr.bf16.mxu0 0
        %1538 = vmatpush2.bf16.msra.mxu0 0
        %1539 = vmatprep.subr.bf16.mxu0 0
        %1540 = vmatpush2.bf16.msra.mxu0 0
        %1541 = vmatprep.subr.bf16.mxu0 0
        %1542 = vmatpush2.bf16.msra.mxu0 0
        %1543 = vmatprep.mubr.bf16.mxu0 0
        %1544 = vmatmul.mubr.bf16.gmra.mxu0 %v1506
        %v1545 = vpop.f32.mrf.mxu0
        %v1546 = vadd.f32 0.0, %v1545
        %v1547 = vpop.f32.mrf.mxu0
        %v1548 = vpop.f32.mrf.mxu0
        %v1549 = vpop.f32.mrf.mxu0
        %1550 = vdwg.mxu0
        %v1552 = vsel %vm1269, %v1362, 0
        %v1555 = vsel %vm1369, %v840, 0
        %1557 = vmatprep.subr.bf16.mxu0 0
        %1558 = vmatpush1.bf16.msra.mxu0 0
        %1559 = vmatprep.subr.bf16.mxu0 0
        %1560 = vmatpush1.bf16.msra.mxu0 0
        %1561 = vmatprep.subr.bf16.mxu0 0
        %1562 = vmatpush1.bf16.msra.mxu0 0
        %1563 = vmatprep.subr.bf16.mxu0 0
        %1564 = vmatpush1.bf16.msra.mxu0 0
        %1565 = vmatprep.subr.bf16.mxu0 0
        %1566 = vmatpush1.bf16.msra.mxu0 0
        %1567 = vmatprep.subr.bf16.mxu0 0
        %1568 = vmatpush1.bf16.msra.mxu0 0
        %1569 = vmatprep.subr.bf16.mxu0 0
        %1570 = vmatpush1.bf16.msra.mxu0 0
        %1571 = vmatprep.subr.bf16.mxu0 0
        %1572 = vmatpush1.bf16.msra.mxu0 %v1555
        %1573 = vmatprep.subr.bf16.mxu0 0
        %1574 = vmatpush2.bf16.msra.mxu0 0
        %1575 = vmatprep.subr.bf16.mxu0 0
        %1576 = vmatpush2.bf16.msra.mxu0 0
        %1577 = vmatprep.subr.bf16.mxu0 0
        %1578 = vmatpush2.bf16.msra.mxu0 0
        %1579 = vmatprep.subr.bf16.mxu0 0
        %1580 = vmatpush2.bf16.msra.mxu0 0
        %1581 = vmatprep.subr.bf16.mxu0 0
        %1582 = vmatpush2.bf16.msra.mxu0 0
        %1583 = vmatprep.subr.bf16.mxu0 0
        %1584 = vmatpush2.bf16.msra.mxu0 0
        %1585 = vmatprep.subr.bf16.mxu0 0
        %1586 = vmatpush2.bf16.msra.mxu0 0
        %1587 = vmatprep.subr.bf16.mxu0 0
        %1588 = vmatpush2.bf16.msra.mxu0 0
        %1589 = vmatprep.mubr.bf16.mxu0 0
        %1590 = vmatmul.mubr.bf16.gmra.mxu0 %v1552
        %v1591 = vpop.f32.mrf.mxu0
        %v1592 = vadd.f32 0.0, %v1591
        %v1593 = vpop.f32.mrf.mxu0
        %v1594 = vpop.f32.mrf.mxu0
        %v1595 = vpop.f32.mrf.mxu0
        %1596 = vdwg.mxu0
        %v1598 = vsel %vm1269, %v1363, 0
        %v1601 = vsel %vm1369, %v841, 0
        %1603 = vmatprep.subr.bf16.mxu0 0
        %1604 = vmatpush1.bf16.msra.mxu0 0
        %1605 = vmatprep.subr.bf16.mxu0 0
        %1606 = vmatpush1.bf16.msra.mxu0 0
        %1607 = vmatprep.subr.bf16.mxu0 0
        %1608 = vmatpush1.bf16.msra.mxu0 0
        %1609 = vmatprep.subr.bf16.mxu0 0
        %1610 = vmatpush1.bf16.msra.mxu0 0
        %1611 = vmatprep.subr.bf16.mxu0 0
        %1612 = vmatpush1.bf16.msra.mxu0 0
        %1613 = vmatprep.subr.bf16.mxu0 0
        %1614 = vmatpush1.bf16.msra.mxu0 0
        %1615 = vmatprep.subr.bf16.mxu0 0
        %1616 = vmatpush1.bf16.msra.mxu0 0
        %1617 = vmatprep.subr.bf16.mxu0 0
        %1618 = vmatpush1.bf16.msra.mxu0 %v1601
        %1619 = vmatprep.subr.bf16.mxu0 0
        %1620 = vmatpush2.bf16.msra.mxu0 0
        %1621 = vmatprep.subr.bf16.mxu0 0
        %1622 = vmatpush2.bf16.msra.mxu0 0
        %1623 = vmatprep.subr.bf16.mxu0 0
        %1624 = vmatpush2.bf16.msra.mxu0 0
        %1625 = vmatprep.subr.bf16.mxu0 0
        %1626 = vmatpush2.bf16.msra.mxu0 0
        %1627 = vmatprep.subr.bf16.mxu0 0
        %1628 = vmatpush2.bf16.msra.mxu0 0
        %1629 = vmatprep.subr.bf16.mxu0 0
        %1630 = vmatpush2.bf16.msra.mxu0 0
        %1631 = vmatprep.subr.bf16.mxu0 0
        %1632 = vmatpush2.bf16.msra.mxu0 0
        %1633 = vmatprep.subr.bf16.mxu0 0
        %1634 = vmatpush2.bf16.msra.mxu0 0
        %1635 = vmatprep.mubr.bf16.mxu0 0
        %1636 = vmatmul.mubr.bf16.gmra.mxu0 %v1598
        %v1637 = vpop.f32.mrf.mxu0
        %v1638 = vadd.f32 0.0, %v1637
        %v1639 = vpop.f32.mrf.mxu0
        %v1640 = vpop.f32.mrf.mxu0
        %v1641 = vpop.f32.mrf.mxu0
        %1642 = vdwg.mxu0
        %v1644 = vsel %vm1269, %v1364, 0
        %v1647 = vsel %vm1369, %v842, 0
        %1649 = vmatprep.subr.bf16.mxu0 0
        %1650 = vmatpush1.bf16.msra.mxu0 0
        %1651 = vmatprep.subr.bf16.mxu0 0
        %1652 = vmatpush1.bf16.msra.mxu0 0
        %1653 = vmatprep.subr.bf16.mxu0 0
        %1654 = vmatpush1.bf16.msra.mxu0 0
        %1655 = vmatprep.subr.bf16.mxu0 0
        %1656 = vmatpush1.bf16.msra.mxu0 0
        %1657 = vmatprep.subr.bf16.mxu0 0
        %1658 = vmatpush1.bf16.msra.mxu0 0
        %1659 = vmatprep.subr.bf16.mxu0 0
        %1660 = vmatpush1.bf16.msra.mxu0 0
        %1661 = vmatprep.subr.bf16.mxu0 0
        %1662 = vmatpush1.bf16.msra.mxu0 0
        %1663 = vmatprep.subr.bf16.mxu0 0
        %1664 = vmatpush1.bf16.msra.mxu0 %v1647
        %1665 = vmatprep.subr.bf16.mxu0 0
        %1666 = vmatpush2.bf16.msra.mxu0 0
        %1667 = vmatprep.subr.bf16.mxu0 0
        %1668 = vmatpush2.bf16.msra.mxu0 0
        %1669 = vmatprep.subr.bf16.mxu0 0
        %1670 = vmatpush2.bf16.msra.mxu0 0
        %1671 = vmatprep.subr.bf16.mxu0 0
        %1672 = vmatpush2.bf16.msra.mxu0 0
        %1673 = vmatprep.subr.bf16.mxu0 0
        %1674 = vmatpush2.bf16.msra.mxu0 0
        %1675 = vmatprep.subr.bf16.mxu0 0
        %1676 = vmatpush2.bf16.msra.mxu0 0
        %1677 = vmatprep.subr.bf16.mxu0 0
        %1678 = vmatpush2.bf16.msra.mxu0 0
        %1679 = vmatprep.subr.bf16.mxu0 0
        %1680 = vmatpush2.bf16.msra.mxu0 0
        %1681 = vmatprep.mubr.bf16.mxu0 0
        %1682 = vmatmul.mubr.bf16.gmra.mxu0 %v1644
        %v1683 = vpop.f32.mrf.mxu0
        %v1684 = vadd.f32 0.0, %v1683
        %v1685 = vpop.f32.mrf.mxu0
        %v1686 = vpop.f32.mrf.mxu0
        %v1687 = vpop.f32.mrf.mxu0
        %1688 = vdwg.mxu0
        %v1690 = vsel %vm1269, %v1365, 0
        %v1693 = vsel %vm1369, %v843, 0
        %1695 = vmatprep.subr.bf16.mxu0 0
        %1696 = vmatpush1.bf16.msra.mxu0 0
        %1697 = vmatprep.subr.bf16.mxu0 0
        %1698 = vmatpush1.bf16.msra.mxu0 0
        %1699 = vmatprep.subr.bf16.mxu0 0
        %1700 = vmatpush1.bf16.msra.mxu0 0
        %1701 = vmatprep.subr.bf16.mxu0 0
        %1702 = vmatpush1.bf16.msra.mxu0 0
        %1703 = vmatprep.subr.bf16.mxu0 0
        %1704 = vmatpush1.bf16.msra.mxu0 0
        %1705 = vmatprep.subr.bf16.mxu0 0
        %1706 = vmatpush1.bf16.msra.mxu0 0
        %1707 = vmatprep.subr.bf16.mxu0 0
        %1708 = vmatpush1.bf16.msra.mxu0 0
        %1709 = vmatprep.subr.bf16.mxu0 0
        %1710 = vmatpush1.bf16.msra.mxu0 %v1693
        %1711 = vmatprep.subr.bf16.mxu0 0
        %1712 = vmatpush2.bf16.msra.mxu0 0
        %1713 = vmatprep.subr.bf16.mxu0 0
        %1714 = vmatpush2.bf16.msra.mxu0 0
        %1715 = vmatprep.subr.bf16.mxu0 0
        %1716 = vmatpush2.bf16.msra.mxu0 0
        %1717 = vmatprep.subr.bf16.mxu0 0
        %1718 = vmatpush2.bf16.msra.mxu0 0
        %1719 = vmatprep.subr.bf16.mxu0 0
        %1720 = vmatpush2.bf16.msra.mxu0 0
        %1721 = vmatprep.subr.bf16.mxu0 0
        %1722 = vmatpush2.bf16.msra.mxu0 0
        %1723 = vmatprep.subr.bf16.mxu0 0
        %1724 = vmatpush2.bf16.msra.mxu0 0
        %1725 = vmatprep.subr.bf16.mxu0 0
        %1726 = vmatpush2.bf16.msra.mxu0 0
        %1727 = vmatprep.mubr.bf16.mxu0 0
        %1728 = vmatmul.mubr.bf16.gmra.mxu0 %v1690
        %v1729 = vpop.f32.mrf.mxu0
        %v1730 = vadd.f32 0.0, %v1729
        %v1731 = vpop.f32.mrf.mxu0
        %v1732 = vpop.f32.mrf.mxu0
        %v1733 = vpop.f32.mrf.mxu0
        %1734 = vdwg.mxu0
        %1735 = vrot.lane.b32.xlu0 %v796, 112
        %v1736 = vpop.permute.xlu0 %1735
        %1737 = vrot.lane.b32.xlu0 %v816, 112
        %v1738 = vpop.permute.xlu0 %1737
        %v1740 = vsel %vm852, %v1736, 0
        %v1743 = vsel %vm852, %v1738, 0
        %1745 = vmatprep.subr.bf16.mxu0 0
        %1746 = vmatpush1.bf16.xpose.msra.mxu0 0
        %1747 = vmatprep.subr.bf16.mxu0 0
        %1748 = vmatpush1.bf16.xpose.msra.mxu0 0
        %1749 = vmatprep.subr.bf16.mxu0 0
        %1750 = vmatpush1.bf16.xpose.msra.mxu0 0
        %1751 = vmatprep.subr.bf16.mxu0 0
        %1752 = vmatpush1.bf16.xpose.msra.mxu0 0
        %1753 = vmatprep.subr.bf16.mxu0 0
        %1754 = vmatpush1.bf16.xpose.msra.mxu0 0
        %1755 = vmatprep.subr.bf16.mxu0 0
        %1756 = vmatpush1.bf16.xpose.msra.mxu0 0
        %1757 = vmatprep.subr.bf16.mxu0 0
        %1758 = vmatpush1.bf16.xpose.msra.mxu0 0
        %1759 = vmatprep.subr.bf16.mxu0 0
        %1760 = vmatpush1.bf16.xpose.msra.mxu0 %v1743
        %1761 = vmatprep.subr.bf16.mxu0 0
        %1762 = vmatpush2.bf16.xpose.msra.mxu0 0
        %1763 = vmatprep.subr.bf16.mxu0 0
        %1764 = vmatpush2.bf16.xpose.msra.mxu0 0
        %1765 = vmatprep.subr.bf16.mxu0 0
        %1766 = vmatpush2.bf16.xpose.msra.mxu0 0
        %1767 = vmatprep.subr.bf16.mxu0 0
        %1768 = vmatpush2.bf16.xpose.msra.mxu0 0
        %1769 = vmatprep.subr.bf16.mxu0 0
        %1770 = vmatpush2.bf16.xpose.msra.mxu0 0
        %1771 = vmatprep.subr.bf16.mxu0 0
        %1772 = vmatpush2.bf16.xpose.msra.mxu0 0
        %1773 = vmatprep.subr.bf16.mxu0 0
        %1774 = vmatpush2.bf16.xpose.msra.mxu0 0
        %1775 = vmatprep.subr.bf16.mxu0 0
        %1776 = vmatpush2.bf16.xpose.msra.mxu0 0
        %1777 = vmatprep.mubr.bf16.mxu0 0
        %1778 = vmatmul.mubr.bf16.gmra.mxu0 %v1740
        %v1779 = vpop.f32.mrf.mxu0
        %v1780 = vadd.f32 0.0, %v1779
        %v1781 = vpop.f32.mrf.mxu0
        %v1782 = vpop.f32.mrf.mxu0
        %v1783 = vpop.f32.mrf.mxu0
        %1784 = vdwg.mxu0
        %1785 = vrot.lane.b32.xlu0 %v797, 112
        %v1786 = vpop.permute.xlu0 %1785
        %1787 = vrot.lane.b32.xlu0 %v817, 112
        %v1788 = vpop.permute.xlu0 %1787
        %v1790 = vsel %vm852, %v1786, 0
        %v1793 = vsel %vm852, %v1788, 0
        %1795 = vmatprep.subr.bf16.mxu0 0
        %1796 = vmatpush1.bf16.xpose.msra.mxu0 0
        %1797 = vmatprep.subr.bf16.mxu0 0
        %1798 = vmatpush1.bf16.xpose.msra.mxu0 0
        %1799 = vmatprep.subr.bf16.mxu0 0
        %1800 = vmatpush1.bf16.xpose.msra.mxu0 0
        %1801 = vmatprep.subr.bf16.mxu0 0
        %1802 = vmatpush1.bf16.xpose.msra.mxu0 0
        %1803 = vmatprep.subr.bf16.mxu0 0
        %1804 = vmatpush1.bf16.xpose.msra.mxu0 0
        %1805 = vmatprep.subr.bf16.mxu0 0
        %1806 = vmatpush1.bf16.xpose.msra.mxu0 0
        %1807 = vmatprep.subr.bf16.mxu0 0
        %1808 = vmatpush1.bf16.xpose.msra.mxu0 0
        %1809 = vmatprep.subr.bf16.mxu0 0
        %1810 = vmatpush1.bf16.xpose.msra.mxu0 %v1793
        %1811 = vmatprep.subr.bf16.mxu0 0
        %1812 = vmatpush2.bf16.xpose.msra.mxu0 0
        %1813 = vmatprep.subr.bf16.mxu0 0
        %1814 = vmatpush2.bf16.xpose.msra.mxu0 0
        %1815 = vmatprep.subr.bf16.mxu0 0
        %1816 = vmatpush2.bf16.xpose.msra.mxu0 0
        %1817 = vmatprep.subr.bf16.mxu0 0
        %1818 = vmatpush2.bf16.xpose.msra.mxu0 0
        %1819 = vmatprep.subr.bf16.mxu0 0
        %1820 = vmatpush2.bf16.xpose.msra.mxu0 0
        %1821 = vmatprep.subr.bf16.mxu0 0
        %1822 = vmatpush2.bf16.xpose.msra.mxu0 0
        %1823 = vmatprep.subr.bf16.mxu0 0
        %1824 = vmatpush2.bf16.xpose.msra.mxu0 0
        %1825 = vmatprep.subr.bf16.mxu0 0
        %1826 = vmatpush2.bf16.xpose.msra.mxu0 0
        %1827 = vmatprep.mubr.bf16.mxu0 0
        %1828 = vmatmul.mubr.bf16.gmra.mxu0 %v1790
        %v1829 = vpop.f32.mrf.mxu0
        %v1830 = vadd.f32 0.0, %v1829
        %v1831 = vpop.f32.mrf.mxu0
        %v1832 = vpop.f32.mrf.mxu0
        %v1833 = vpop.f32.mrf.mxu0
        %1834 = vdwg.mxu0
        %1835 = vrot.lane.b32.xlu0 %v798, 112
        %v1836 = vpop.permute.xlu0 %1835
        %1837 = vrot.lane.b32.xlu0 %v818, 112
        %v1838 = vpop.permute.xlu0 %1837
        %v1840 = vsel %vm852, %v1836, 0
        %v1843 = vsel %vm852, %v1838, 0
        %1845 = vmatprep.subr.bf16.mxu0 0
        %1846 = vmatpush1.bf16.xpose.msra.mxu0 0
        %1847 = vmatprep.subr.bf16.mxu0 0
        %1848 = vmatpush1.bf16.xpose.msra.mxu0 0
        %1849 = vmatprep.subr.bf16.mxu0 0
        %1850 = vmatpush1.bf16.xpose.msra.mxu0 0
        %1851 = vmatprep.subr.bf16.mxu0 0
        %1852 = vmatpush1.bf16.xpose.msra.mxu0 0
        %1853 = vmatprep.subr.bf16.mxu0 0
        %1854 = vmatpush1.bf16.xpose.msra.mxu0 0
        %1855 = vmatprep.subr.bf16.mxu0 0
        %1856 = vmatpush1.bf16.xpose.msra.mxu0 0
        %1857 = vmatprep.subr.bf16.mxu0 0
        %1858 = vmatpush1.bf16.xpose.msra.mxu0 0
        %1859 = vmatprep.subr.bf16.mxu0 0
        %1860 = vmatpush1.bf16.xpose.msra.mxu0 %v1843
        %1861 = vmatprep.subr.bf16.mxu0 0
        %1862 = vmatpush2.bf16.xpose.msra.mxu0 0
        %1863 = vmatprep.subr.bf16.mxu0 0
        %1864 = vmatpush2.bf16.xpose.msra.mxu0 0
        %1865 = vmatprep.subr.bf16.mxu0 0
        %1866 = vmatpush2.bf16.xpose.msra.mxu0 0
        %1867 = vmatprep.subr.bf16.mxu0 0
        %1868 = vmatpush2.bf16.xpose.msra.mxu0 0
        %1869 = vmatprep.subr.bf16.mxu0 0
        %1870 = vmatpush2.bf16.xpose.msra.mxu0 0
        %1871 = vmatprep.subr.bf16.mxu0 0
        %1872 = vmatpush2.bf16.xpose.msra.mxu0 0
        %1873 = vmatprep.subr.bf16.mxu0 0
        %1874 = vmatpush2.bf16.xpose.msra.mxu0 0
        %1875 = vmatprep.subr.bf16.mxu0 0
        %1876 = vmatpush2.bf16.xpose.msra.mxu0 0
        %1877 = vmatprep.mubr.bf16.mxu0 0
        %1878 = vmatmul.mubr.bf16.gmra.mxu0 %v1840
        %v1879 = vpop.f32.mrf.mxu0
        %v1880 = vadd.f32 0.0, %v1879
        %v1881 = vpop.f32.mrf.mxu0
        %v1882 = vpop.f32.mrf.mxu0
        %v1883 = vpop.f32.mrf.mxu0
        %1884 = vdwg.mxu0
        %1885 = vrot.lane.b32.xlu0 %v799, 112
        %v1886 = vpop.permute.xlu0 %1885
        %1887 = vrot.lane.b32.xlu0 %v819, 112
        %v1888 = vpop.permute.xlu0 %1887
        %v1890 = vsel %vm852, %v1886, 0
        %v1893 = vsel %vm852, %v1888, 0
        %1895 = vmatprep.subr.bf16.mxu0 0
        %1896 = vmatpush1.bf16.xpose.msra.mxu0 0
        %1897 = vmatprep.subr.bf16.mxu0 0
        %1898 = vmatpush1.bf16.xpose.msra.mxu0 0
        %1899 = vmatprep.subr.bf16.mxu0 0
        %1900 = vmatpush1.bf16.xpose.msra.mxu0 0
        %1901 = vmatprep.subr.bf16.mxu0 0
        %1902 = vmatpush1.bf16.xpose.msra.mxu0 0
        %1903 = vmatprep.subr.bf16.mxu0 0
        %1904 = vmatpush1.bf16.xpose.msra.mxu0 0
        %1905 = vmatprep.subr.bf16.mxu0 0
        %1906 = vmatpush1.bf16.xpose.msra.mxu0 0
        %1907 = vmatprep.subr.bf16.mxu0 0
        %1908 = vmatpush1.bf16.xpose.msra.mxu0 0
        %1909 = vmatprep.subr.bf16.mxu0 0
        %1910 = vmatpush1.bf16.xpose.msra.mxu0 %v1893
        %1911 = vmatprep.subr.bf16.mxu0 0
        %1912 = vmatpush2.bf16.xpose.msra.mxu0 0
        %1913 = vmatprep.subr.bf16.mxu0 0
        %1914 = vmatpush2.bf16.xpose.msra.mxu0 0
        %1915 = vmatprep.subr.bf16.mxu0 0
        %1916 = vmatpush2.bf16.xpose.msra.mxu0 0
        %1917 = vmatprep.subr.bf16.mxu0 0
        %1918 = vmatpush2.bf16.xpose.msra.mxu0 0
        %1919 = vmatprep.subr.bf16.mxu0 0
        %1920 = vmatpush2.bf16.xpose.msra.mxu0 0
        %1921 = vmatprep.subr.bf16.mxu0 0
        %1922 = vmatpush2.bf16.xpose.msra.mxu0 0
        %1923 = vmatprep.subr.bf16.mxu0 0
        %1924 = vmatpush2.bf16.xpose.msra.mxu0 0
        %1925 = vmatprep.subr.bf16.mxu0 0
        %1926 = vmatpush2.bf16.xpose.msra.mxu0 0
        %1927 = vmatprep.mubr.bf16.mxu0 0
        %1928 = vmatmul.mubr.bf16.gmra.mxu0 %v1890
        %v1929 = vpop.f32.mrf.mxu0
        %v1930 = vadd.f32 0.0, %v1929
        %v1931 = vpop.f32.mrf.mxu0
        %v1932 = vpop.f32.mrf.mxu0
        %v1933 = vpop.f32.mrf.mxu0
        %1934 = vdwg.mxu0
        %1935 = vrot.lane.b32.xlu0 %v800, 112
        %v1936 = vpop.permute.xlu0 %1935
        %1937 = vrot.lane.b32.xlu0 %v820, 112
        %v1938 = vpop.permute.xlu0 %1937
        %v1940 = vsel %vm852, %v1936, 0
        %v1943 = vsel %vm852, %v1938, 0
        %1945 = vmatprep.subr.bf16.mxu0 0
        %1946 = vmatpush1.bf16.xpose.msra.mxu0 0
        %1947 = vmatprep.subr.bf16.mxu0 0
        %1948 = vmatpush1.bf16.xpose.msra.mxu0 0
        %1949 = vmatprep.subr.bf16.mxu0 0
        %1950 = vmatpush1.bf16.xpose.msra.mxu0 0
        %1951 = vmatprep.subr.bf16.mxu0 0
        %1952 = vmatpush1.bf16.xpose.msra.mxu0 0
        %1953 = vmatprep.subr.bf16.mxu0 0
        %1954 = vmatpush1.bf16.xpose.msra.mxu0 0
        %1955 = vmatprep.subr.bf16.mxu0 0
        %1956 = vmatpush1.bf16.xpose.msra.mxu0 0
        %1957 = vmatprep.subr.bf16.mxu0 0
        %1958 = vmatpush1.bf16.xpose.msra.mxu0 0
        %1959 = vmatprep.subr.bf16.mxu0 0
        %1960 = vmatpush1.bf16.xpose.msra.mxu0 %v1943
        %1961 = vmatprep.subr.bf16.mxu0 0
        %1962 = vmatpush2.bf16.xpose.msra.mxu0 0
        %1963 = vmatprep.subr.bf16.mxu0 0
        %1964 = vmatpush2.bf16.xpose.msra.mxu0 0
        %1965 = vmatprep.subr.bf16.mxu0 0
        %1966 = vmatpush2.bf16.xpose.msra.mxu0 0
        %1967 = vmatprep.subr.bf16.mxu0 0
        %1968 = vmatpush2.bf16.xpose.msra.mxu0 0
        %1969 = vmatprep.subr.bf16.mxu0 0
        %1970 = vmatpush2.bf16.xpose.msra.mxu0 0
        %1971 = vmatprep.subr.bf16.mxu0 0
        %1972 = vmatpush2.bf16.xpose.msra.mxu0 0
        %1973 = vmatprep.subr.bf16.mxu0 0
        %1974 = vmatpush2.bf16.xpose.msra.mxu0 0
        %1975 = vmatprep.subr.bf16.mxu0 0
        %1976 = vmatpush2.bf16.xpose.msra.mxu0 0
        %1977 = vmatprep.mubr.bf16.mxu0 0
        %1978 = vmatmul.mubr.bf16.gmra.mxu0 %v1940
        %v1979 = vpop.f32.mrf.mxu0
        %v1980 = vadd.f32 0.0, %v1979
        %v1981 = vpop.f32.mrf.mxu0
        %v1982 = vpop.f32.mrf.mxu0
        %v1983 = vpop.f32.mrf.mxu0
        %1984 = vdwg.mxu0
        %1985 = vrot.lane.b32.xlu0 %v801, 112
        %v1986 = vpop.permute.xlu0 %1985
        %1987 = vrot.lane.b32.xlu0 %v821, 112
        %v1988 = vpop.permute.xlu0 %1987
        %v1990 = vsel %vm852, %v1986, 0
        %v1993 = vsel %vm852, %v1988, 0
        %1995 = vmatprep.subr.bf16.mxu0 0
        %1996 = vmatpush1.bf16.xpose.msra.mxu0 0
        %1997 = vmatprep.subr.bf16.mxu0 0
        %1998 = vmatpush1.bf16.xpose.msra.mxu0 0
        %1999 = vmatprep.subr.bf16.mxu0 0
        %2000 = vmatpush1.bf16.xpose.msra.mxu0 0
        %2001 = vmatprep.subr.bf16.mxu0 0
        %2002 = vmatpush1.bf16.xpose.msra.mxu0 0
        %2003 = vmatprep.subr.bf16.mxu0 0
        %2004 = vmatpush1.bf16.xpose.msra.mxu0 0
        %2005 = vmatprep.subr.bf16.mxu0 0
        %2006 = vmatpush1.bf16.xpose.msra.mxu0 0
        %2007 = vmatprep.subr.bf16.mxu0 0
        %2008 = vmatpush1.bf16.xpose.msra.mxu0 0
        %2009 = vmatprep.subr.bf16.mxu0 0
        %2010 = vmatpush1.bf16.xpose.msra.mxu0 %v1993
        %2011 = vmatprep.subr.bf16.mxu0 0
        %2012 = vmatpush2.bf16.xpose.msra.mxu0 0
        %2013 = vmatprep.subr.bf16.mxu0 0
        %2014 = vmatpush2.bf16.xpose.msra.mxu0 0
        %2015 = vmatprep.subr.bf16.mxu0 0
        %2016 = vmatpush2.bf16.xpose.msra.mxu0 0
        %2017 = vmatprep.subr.bf16.mxu0 0
        %2018 = vmatpush2.bf16.xpose.msra.mxu0 0
        %2019 = vmatprep.subr.bf16.mxu0 0
        %2020 = vmatpush2.bf16.xpose.msra.mxu0 0
        %2021 = vmatprep.subr.bf16.mxu0 0
        %2022 = vmatpush2.bf16.xpose.msra.mxu0 0
        %2023 = vmatprep.subr.bf16.mxu0 0
        %2024 = vmatpush2.bf16.xpose.msra.mxu0 0
        %2025 = vmatprep.subr.bf16.mxu0 0
        %2026 = vmatpush2.bf16.xpose.msra.mxu0 0
        %2027 = vmatprep.mubr.bf16.mxu0 0
        %2028 = vmatmul.mubr.bf16.gmra.mxu0 %v1990
        %v2029 = vpop.f32.mrf.mxu0
        %v2030 = vadd.f32 0.0, %v2029
        %v2031 = vpop.f32.mrf.mxu0
        %v2032 = vpop.f32.mrf.mxu0
        %v2033 = vpop.f32.mrf.mxu0
        %2034 = vdwg.mxu0
        %2035 = vrot.lane.b32.xlu0 %v802, 112
        %v2036 = vpop.permute.xlu0 %2035
        %2037 = vrot.lane.b32.xlu0 %v822, 112
        %v2038 = vpop.permute.xlu0 %2037
        %v2040 = vsel %vm852, %v2036, 0
        %v2043 = vsel %vm852, %v2038, 0
        %2045 = vmatprep.subr.bf16.mxu0 0
        %2046 = vmatpush1.bf16.xpose.msra.mxu0 0
        %2047 = vmatprep.subr.bf16.mxu0 0
        %2048 = vmatpush1.bf16.xpose.msra.mxu0 0
        %2049 = vmatprep.subr.bf16.mxu0 0
        %2050 = vmatpush1.bf16.xpose.msra.mxu0 0
        %2051 = vmatprep.subr.bf16.mxu0 0
        %2052 = vmatpush1.bf16.xpose.msra.mxu0 0
        %2053 = vmatprep.subr.bf16.mxu0 0
        %2054 = vmatpush1.bf16.xpose.msra.mxu0 0
        %2055 = vmatprep.subr.bf16.mxu0 0
        %2056 = vmatpush1.bf16.xpose.msra.mxu0 0
        %2057 = vmatprep.subr.bf16.mxu0 0
        %2058 = vmatpush1.bf16.xpose.msra.mxu0 0
        %2059 = vmatprep.subr.bf16.mxu0 0
        %2060 = vmatpush1.bf16.xpose.msra.mxu0 %v2043
        %2061 = vmatprep.subr.bf16.mxu0 0
        %2062 = vmatpush2.bf16.xpose.msra.mxu0 0
        %2063 = vmatprep.subr.bf16.mxu0 0
        %2064 = vmatpush2.bf16.xpose.msra.mxu0 0
        %2065 = vmatprep.subr.bf16.mxu0 0
        %2066 = vmatpush2.bf16.xpose.msra.mxu0 0
        %2067 = vmatprep.subr.bf16.mxu0 0
        %2068 = vmatpush2.bf16.xpose.msra.mxu0 0
        %2069 = vmatprep.subr.bf16.mxu0 0
        %2070 = vmatpush2.bf16.xpose.msra.mxu0 0
        %2071 = vmatprep.subr.bf16.mxu0 0
        %2072 = vmatpush2.bf16.xpose.msra.mxu0 0
        %2073 = vmatprep.subr.bf16.mxu0 0
        %2074 = vmatpush2.bf16.xpose.msra.mxu0 0
        %2075 = vmatprep.subr.bf16.mxu0 0
        %2076 = vmatpush2.bf16.xpose.msra.mxu0 0
        %2077 = vmatprep.mubr.bf16.mxu0 0
        %2078 = vmatmul.mubr.bf16.gmra.mxu0 %v2040
        %v2079 = vpop.f32.mrf.mxu0
        %v2080 = vadd.f32 0.0, %v2079
        %v2081 = vpop.f32.mrf.mxu0
        %v2082 = vpop.f32.mrf.mxu0
        %v2083 = vpop.f32.mrf.mxu0
        %2084 = vdwg.mxu0
        %2085 = vrot.lane.b32.xlu0 %v803, 112
        %v2086 = vpop.permute.xlu0 %2085
        %2087 = vrot.lane.b32.xlu0 %v823, 112
        %v2088 = vpop.permute.xlu0 %2087
        %v2090 = vsel %vm852, %v2086, 0
        %v2093 = vsel %vm852, %v2088, 0
        %2095 = vmatprep.subr.bf16.mxu0 0
        %2096 = vmatpush1.bf16.xpose.msra.mxu0 0
        %2097 = vmatprep.subr.bf16.mxu0 0
        %2098 = vmatpush1.bf16.xpose.msra.mxu0 0
        %2099 = vmatprep.subr.bf16.mxu0 0
        %2100 = vmatpush1.bf16.xpose.msra.mxu0 0
        %2101 = vmatprep.subr.bf16.mxu0 0
        %2102 = vmatpush1.bf16.xpose.msra.mxu0 0
        %2103 = vmatprep.subr.bf16.mxu0 0
        %2104 = vmatpush1.bf16.xpose.msra.mxu0 0
        %2105 = vmatprep.subr.bf16.mxu0 0
        %2106 = vmatpush1.bf16.xpose.msra.mxu0 0
        %2107 = vmatprep.subr.bf16.mxu0 0
        %2108 = vmatpush1.bf16.xpose.msra.mxu0 0
        %2109 = vmatprep.subr.bf16.mxu0 0
        %2110 = vmatpush1.bf16.xpose.msra.mxu0 %v2093
        %2111 = vmatprep.subr.bf16.mxu0 0
        %2112 = vmatpush2.bf16.xpose.msra.mxu0 0
        %2113 = vmatprep.subr.bf16.mxu0 0
        %2114 = vmatpush2.bf16.xpose.msra.mxu0 0
        %2115 = vmatprep.subr.bf16.mxu0 0
        %2116 = vmatpush2.bf16.xpose.msra.mxu0 0
        %2117 = vmatprep.subr.bf16.mxu0 0
        %2118 = vmatpush2.bf16.xpose.msra.mxu0 0
        %2119 = vmatprep.subr.bf16.mxu0 0
        %2120 = vmatpush2.bf16.xpose.msra.mxu0 0
        %2121 = vmatprep.subr.bf16.mxu0 0
        %2122 = vmatpush2.bf16.xpose.msra.mxu0 0
        %2123 = vmatprep.subr.bf16.mxu0 0
        %2124 = vmatpush2.bf16.xpose.msra.mxu0 0
        %2125 = vmatprep.subr.bf16.mxu0 0
        %2126 = vmatpush2.bf16.xpose.msra.mxu0 0
        %2127 = vmatprep.mubr.bf16.mxu0 0
        %2128 = vmatmul.mubr.bf16.gmra.mxu0 %v2090
        %v2129 = vpop.f32.mrf.mxu0
        %v2130 = vadd.f32 0.0, %v2129
        %v2131 = vpop.f32.mrf.mxu0
        %v2132 = vpop.f32.mrf.mxu0
        %v2133 = vpop.f32.mrf.mxu0
        %2134 = vdwg.mxu0
        %v2135 = vmul.f32 %v1780, 0.25
        %v2136 = vmul.f32 %v1830, 0.25
        %v2137 = vmul.f32 %v1880, 0.25
        %v2138 = vmul.f32 %v1930, 0.25
        %v2139 = vmul.f32 %v1980, 0.25
        %v2140 = vmul.f32 %v2030, 0.25
        %v2141 = vmul.f32 %v2080, 0.25
        %v2142 = vmul.f32 %v2130, 0.25
        %v2143 = vadd.f32 %v2135, %v1232
        %v2144 = vadd.f32 %v2136, %v1236
        %v2145 = vadd.f32 %v2137, %v1240
        %v2146 = vadd.f32 %v2138, %v1244
        %v2147 = vadd.f32 %v2139, %v1248
        %v2148 = vadd.f32 %v2140, %v1252
        %v2149 = vadd.f32 %v2141, %v1256
        %v2150 = vadd.f32 %v2142, %v1260
        %v2151 = vsel %vm1269, %v2143, -inf
        %2152 = vmax.xlane.f32.xlu0 %v2151
        %v2153 = vpop.xlane.xlu0 %2152
        %v2154 = vsel %vm1269, %v2144, -inf
        %2155 = vmax.xlane.f32.xlu0 %v2154
        %v2156 = vpop.xlane.xlu0 %2155
        %v2157 = vsel %vm1269, %v2145, -inf
        %2158 = vmax.xlane.f32.xlu0 %v2157
        %v2159 = vpop.xlane.xlu0 %2158
        %v2160 = vsel %vm1269, %v2146, -inf
        %2161 = vmax.xlane.f32.xlu0 %v2160
        %v2162 = vpop.xlane.xlu0 %2161
        %v2163 = vsel %vm1269, %v2147, -inf
        %2164 = vmax.xlane.f32.xlu0 %v2163
        %v2165 = vpop.xlane.xlu0 %2164
        %v2166 = vsel %vm1269, %v2148, -inf
        %2167 = vmax.xlane.f32.xlu0 %v2166
        %v2168 = vpop.xlane.xlu0 %2167
        %v2169 = vsel %vm1269, %v2149, -inf
        %2170 = vmax.xlane.f32.xlu0 %v2169
        %v2171 = vpop.xlane.xlu0 %2170
        %v2172 = vsel %vm1269, %v2150, -inf
        %2173 = vmax.xlane.f32.xlu0 %v2172
        %v2174 = vpop.xlane.xlu0 %2173
        %v2175 = vsub.f32 %v2143, %v2153
        %v2176 = vsub.f32 %v2144, %v2156
        %v2177 = vsub.f32 %v2145, %v2159
        %v2178 = vsub.f32 %v2146, %v2162
        %v2179 = vsub.f32 %v2147, %v2165
        %v2180 = vsub.f32 %v2148, %v2168
        %v2181 = vsub.f32 %v2149, %v2171
        %v2182 = vsub.f32 %v2150, %v2174
        %v2183 = vmul.f32 %v2175, 1.442695
        %v2184 = vpow.pop %v2183
        %v2185 = vmul.f32 %v2176, 1.442695
        %v2186 = vpow.pop %v2185
        %v2187 = vmul.f32 %v2177, 1.442695
        %v2188 = vpow.pop %v2187
        %v2189 = vmul.f32 %v2178, 1.442695
        %v2190 = vpow.pop %v2189
        %v2191 = vmul.f32 %v2179, 1.442695
        %v2192 = vpow.pop %v2191
        %v2193 = vmul.f32 %v2180, 1.442695
        %v2194 = vpow.pop %v2193
        %v2195 = vmul.f32 %v2181, 1.442695
        %v2196 = vpow.pop %v2195
        %v2197 = vmul.f32 %v2182, 1.442695
        %v2198 = vpow.pop %v2197
        %v2199 = vsel %vm1269, %v2184, 0.0
        %2200 = vadd.xlane.f32.xlu0 %v2199
        %v2201 = vpop.xlane.xlu0 %2200
        %v2202 = vsel %vm1269, %v2186, 0.0
        %2203 = vadd.xlane.f32.xlu0 %v2202
        %v2204 = vpop.xlane.xlu0 %2203
        %v2205 = vsel %vm1269, %v2188, 0.0
        %2206 = vadd.xlane.f32.xlu0 %v2205
        %v2207 = vpop.xlane.xlu0 %2206
        %v2208 = vsel %vm1269, %v2190, 0.0
        %2209 = vadd.xlane.f32.xlu0 %v2208
        %v2210 = vpop.xlane.xlu0 %2209
        %v2211 = vsel %vm1269, %v2192, 0.0
        %2212 = vadd.xlane.f32.xlu0 %v2211
        %v2213 = vpop.xlane.xlu0 %2212
        %v2214 = vsel %vm1269, %v2194, 0.0
        %2215 = vadd.xlane.f32.xlu0 %v2214
        %v2216 = vpop.xlane.xlu0 %2215
        %v2217 = vsel %vm1269, %v2196, 0.0
        %2218 = vadd.xlane.f32.xlu0 %v2217
        %v2219 = vpop.xlane.xlu0 %2218
        %v2220 = vsel %vm1269, %v2198, 0.0
        %2221 = vadd.xlane.f32.xlu0 %v2220
        %v2222 = vpop.xlane.xlu0 %2221
        %v2223 = vrcp.pop %v2201
        %v2224 = vrcp.pop %v2204
        %v2225 = vrcp.pop %v2207
        %v2226 = vrcp.pop %v2210
        %v2227 = vrcp.pop %v2213
        %v2228 = vrcp.pop %v2216
        %v2229 = vrcp.pop %v2219
        %v2230 = vrcp.pop %v2222
        %v2231 = vmul.f32 %v2184, %v2223
        %v2232 = vmul.f32 %v2186, %v2224
        %v2233 = vmul.f32 %v2188, %v2225
        %v2234 = vmul.f32 %v2190, %v2226
        %v2235 = vmul.f32 %v2192, %v2227
        %v2236 = vmul.f32 %v2194, %v2228
        %v2237 = vmul.f32 %v2196, %v2229
        %v2238 = vmul.f32 %v2198, %v2230
        %v2239 = vpack.c.bf16 %v2231, %v2231
        %v2240 = vpack.c.bf16 %v2232, %v2232
        %v2241 = vpack.c.bf16 %v2233, %v2233
        %v2242 = vpack.c.bf16 %v2234, %v2234
        %v2243 = vpack.c.bf16 %v2235, %v2235
        %v2244 = vpack.c.bf16 %v2236, %v2236
        %v2245 = vpack.c.bf16 %v2237, %v2237
        %v2246 = vpack.c.bf16 %v2238, %v2238
        %2247 = vrot.lane.b32.xlu0 %v836, 112
        %v2248 = vpop.permute.xlu0 %2247
        %v2250 = vsel %vm1269, %v2239, 0
        %v2253 = vsel %vm1369, %v2248, 0
        %2255 = vmatprep.subr.bf16.mxu0 0
        %2256 = vmatpush1.bf16.msra.mxu0 0
        %2257 = vmatprep.subr.bf16.mxu0 0
        %2258 = vmatpush1.bf16.msra.mxu0 0
        %2259 = vmatprep.subr.bf16.mxu0 0
        %2260 = vmatpush1.bf16.msra.mxu0 0
        %2261 = vmatprep.subr.bf16.mxu0 0
        %2262 = vmatpush1.bf16.msra.mxu0 0
        %2263 = vmatprep.subr.bf16.mxu0 0
        %2264 = vmatpush1.bf16.msra.mxu0 0
        %2265 = vmatprep.subr.bf16.mxu0 0
        %2266 = vmatpush1.bf16.msra.mxu0 0
        %2267 = vmatprep.subr.bf16.mxu0 0
        %2268 = vmatpush1.bf16.msra.mxu0 0
        %2269 = vmatprep.subr.bf16.mxu0 0
        %2270 = vmatpush1.bf16.msra.mxu0 %v2253
        %2271 = vmatprep.subr.bf16.mxu0 0
        %2272 = vmatpush2.bf16.msra.mxu0 0
        %2273 = vmatprep.subr.bf16.mxu0 0
        %2274 = vmatpush2.bf16.msra.mxu0 0
        %2275 = vmatprep.subr.bf16.mxu0 0
        %2276 = vmatpush2.bf16.msra.mxu0 0
        %2277 = vmatprep.subr.bf16.mxu0 0
        %2278 = vmatpush2.bf16.msra.mxu0 0
        %2279 = vmatprep.subr.bf16.mxu0 0
        %2280 = vmatpush2.bf16.msra.mxu0 0
        %2281 = vmatprep.subr.bf16.mxu0 0
        %2282 = vmatpush2.bf16.msra.mxu0 0
        %2283 = vmatprep.subr.bf16.mxu0 0
        %2284 = vmatpush2.bf16.msra.mxu0 0
        %2285 = vmatprep.subr.bf16.mxu0 0
        %2286 = vmatpush2.bf16.msra.mxu0 0
        %2287 = vmatprep.mubr.bf16.mxu0 0
        %2288 = vmatmul.mubr.bf16.gmra.mxu0 %v2250
        %v2289 = vpop.f32.mrf.mxu0
        %v2290 = vadd.f32 0.0, %v2289
        %v2291 = vpop.f32.mrf.mxu0
        %v2292 = vpop.f32.mrf.mxu0
        %v2293 = vpop.f32.mrf.mxu0
        %2294 = vdwg.mxu0
        %2295 = vrot.lane.b32.xlu0 %v837, 112
        %v2296 = vpop.permute.xlu0 %2295
        %v2298 = vsel %vm1269, %v2240, 0
        %v2301 = vsel %vm1369, %v2296, 0
        %2303 = vmatprep.subr.bf16.mxu0 0
        %2304 = vmatpush1.bf16.msra.mxu0 0
        %2305 = vmatprep.subr.bf16.mxu0 0
        %2306 = vmatpush1.bf16.msra.mxu0 0
        %2307 = vmatprep.subr.bf16.mxu0 0
        %2308 = vmatpush1.bf16.msra.mxu0 0
        %2309 = vmatprep.subr.bf16.mxu0 0
        %2310 = vmatpush1.bf16.msra.mxu0 0
        %2311 = vmatprep.subr.bf16.mxu0 0
        %2312 = vmatpush1.bf16.msra.mxu0 0
        %2313 = vmatprep.subr.bf16.mxu0 0
        %2314 = vmatpush1.bf16.msra.mxu0 0
        %2315 = vmatprep.subr.bf16.mxu0 0
        %2316 = vmatpush1.bf16.msra.mxu0 0
        %2317 = vmatprep.subr.bf16.mxu0 0
        %2318 = vmatpush1.bf16.msra.mxu0 %v2301
        %2319 = vmatprep.subr.bf16.mxu0 0
        %2320 = vmatpush2.bf16.msra.mxu0 0
        %2321 = vmatprep.subr.bf16.mxu0 0
        %2322 = vmatpush2.bf16.msra.mxu0 0
        %2323 = vmatprep.subr.bf16.mxu0 0
        %2324 = vmatpush2.bf16.msra.mxu0 0
        %2325 = vmatprep.subr.bf16.mxu0 0
        %2326 = vmatpush2.bf16.msra.mxu0 0
        %2327 = vmatprep.subr.bf16.mxu0 0
        %2328 = vmatpush2.bf16.msra.mxu0 0
        %2329 = vmatprep.subr.bf16.mxu0 0
        %2330 = vmatpush2.bf16.msra.mxu0 0
        %2331 = vmatprep.subr.bf16.mxu0 0
        %2332 = vmatpush2.bf16.msra.mxu0 0
        %2333 = vmatprep.subr.bf16.mxu0 0
        %2334 = vmatpush2.bf16.msra.mxu0 0
        %2335 = vmatprep.mubr.bf16.mxu0 0
        %2336 = vmatmul.mubr.bf16.gmra.mxu0 %v2298
        %v2337 = vpop.f32.mrf.mxu0
        %v2338 = vadd.f32 0.0, %v2337
        %v2339 = vpop.f32.mrf.mxu0
        %v2340 = vpop.f32.mrf.mxu0
        %v2341 = vpop.f32.mrf.mxu0
        %2342 = vdwg.mxu0
        %2343 = vrot.lane.b32.xlu0 %v838, 112
        %v2344 = vpop.permute.xlu0 %2343
        %v2346 = vsel %vm1269, %v2241, 0
        %v2349 = vsel %vm1369, %v2344, 0
        %2351 = vmatprep.subr.bf16.mxu0 0
        %2352 = vmatpush1.bf16.msra.mxu0 0
        %2353 = vmatprep.subr.bf16.mxu0 0
        %2354 = vmatpush1.bf16.msra.mxu0 0
        %2355 = vmatprep.subr.bf16.mxu0 0
        %2356 = vmatpush1.bf16.msra.mxu0 0
        %2357 = vmatprep.subr.bf16.mxu0 0
        %2358 = vmatpush1.bf16.msra.mxu0 0
        %2359 = vmatprep.subr.bf16.mxu0 0
        %2360 = vmatpush1.bf16.msra.mxu0 0
        %2361 = vmatprep.subr.bf16.mxu0 0
        %2362 = vmatpush1.bf16.msra.mxu0 0
        %2363 = vmatprep.subr.bf16.mxu0 0
        %2364 = vmatpush1.bf16.msra.mxu0 0
        %2365 = vmatprep.subr.bf16.mxu0 0
        %2366 = vmatpush1.bf16.msra.mxu0 %v2349
        %2367 = vmatprep.subr.bf16.mxu0 0
        %2368 = vmatpush2.bf16.msra.mxu0 0
        %2369 = vmatprep.subr.bf16.mxu0 0
        %2370 = vmatpush2.bf16.msra.mxu0 0
        %2371 = vmatprep.subr.bf16.mxu0 0
        %2372 = vmatpush2.bf16.msra.mxu0 0
        %2373 = vmatprep.subr.bf16.mxu0 0
        %2374 = vmatpush2.bf16.msra.mxu0 0
        %2375 = vmatprep.subr.bf16.mxu0 0
        %2376 = vmatpush2.bf16.msra.mxu0 0
        %2377 = vmatprep.subr.bf16.mxu0 0
        %2378 = vmatpush2.bf16.msra.mxu0 0
        %2379 = vmatprep.subr.bf16.mxu0 0
        %2380 = vmatpush2.bf16.msra.mxu0 0
        %2381 = vmatprep.subr.bf16.mxu0 0
        %2382 = vmatpush2.bf16.msra.mxu0 0
        %2383 = vmatprep.mubr.bf16.mxu0 0
        %2384 = vmatmul.mubr.bf16.gmra.mxu0 %v2346
        %v2385 = vpop.f32.mrf.mxu0
        %v2386 = vadd.f32 0.0, %v2385
        %v2387 = vpop.f32.mrf.mxu0
        %v2388 = vpop.f32.mrf.mxu0
        %v2389 = vpop.f32.mrf.mxu0
        %2390 = vdwg.mxu0
        %2391 = vrot.lane.b32.xlu0 %v839, 112
        %v2392 = vpop.permute.xlu0 %2391
        %v2394 = vsel %vm1269, %v2242, 0
        %v2397 = vsel %vm1369, %v2392, 0
        %2399 = vmatprep.subr.bf16.mxu0 0
        %2400 = vmatpush1.bf16.msra.mxu0 0
        %2401 = vmatprep.subr.bf16.mxu0 0
        %2402 = vmatpush1.bf16.msra.mxu0 0
        %2403 = vmatprep.subr.bf16.mxu0 0
        %2404 = vmatpush1.bf16.msra.mxu0 0
        %2405 = vmatprep.subr.bf16.mxu0 0
        %2406 = vmatpush1.bf16.msra.mxu0 0
        %2407 = vmatprep.subr.bf16.mxu0 0
        %2408 = vmatpush1.bf16.msra.mxu0 0
        %2409 = vmatprep.subr.bf16.mxu0 0
        %2410 = vmatpush1.bf16.msra.mxu0 0
        %2411 = vmatprep.subr.bf16.mxu0 0
        %2412 = vmatpush1.bf16.msra.mxu0 0
        %2413 = vmatprep.subr.bf16.mxu0 0
        %2414 = vmatpush1.bf16.msra.mxu0 %v2397
        %2415 = vmatprep.subr.bf16.mxu0 0
        %2416 = vmatpush2.bf16.msra.mxu0 0
        %2417 = vmatprep.subr.bf16.mxu0 0
        %2418 = vmatpush2.bf16.msra.mxu0 0
        %2419 = vmatprep.subr.bf16.mxu0 0
        %2420 = vmatpush2.bf16.msra.mxu0 0
        %2421 = vmatprep.subr.bf16.mxu0 0
        %2422 = vmatpush2.bf16.msra.mxu0 0
        %2423 = vmatprep.subr.bf16.mxu0 0
        %2424 = vmatpush2.bf16.msra.mxu0 0
        %2425 = vmatprep.subr.bf16.mxu0 0
        %2426 = vmatpush2.bf16.msra.mxu0 0
        %2427 = vmatprep.subr.bf16.mxu0 0
        %2428 = vmatpush2.bf16.msra.mxu0 0
        %2429 = vmatprep.subr.bf16.mxu0 0
        %2430 = vmatpush2.bf16.msra.mxu0 0
        %2431 = vmatprep.mubr.bf16.mxu0 0
        %2432 = vmatmul.mubr.bf16.gmra.mxu0 %v2394
        %v2433 = vpop.f32.mrf.mxu0
        %v2434 = vadd.f32 0.0, %v2433
        %v2435 = vpop.f32.mrf.mxu0
        %v2436 = vpop.f32.mrf.mxu0
        %v2437 = vpop.f32.mrf.mxu0
        %2438 = vdwg.mxu0
        %2439 = vrot.lane.b32.xlu0 %v840, 112
        %v2440 = vpop.permute.xlu0 %2439
        %v2442 = vsel %vm1269, %v2243, 0
        %v2445 = vsel %vm1369, %v2440, 0
        %2447 = vmatprep.subr.bf16.mxu0 0
        %2448 = vmatpush1.bf16.msra.mxu0 0
        %2449 = vmatprep.subr.bf16.mxu0 0
        %2450 = vmatpush1.bf16.msra.mxu0 0
        %2451 = vmatprep.subr.bf16.mxu0 0
        %2452 = vmatpush1.bf16.msra.mxu0 0
        %2453 = vmatprep.subr.bf16.mxu0 0
        %2454 = vmatpush1.bf16.msra.mxu0 0
        %2455 = vmatprep.subr.bf16.mxu0 0
        %2456 = vmatpush1.bf16.msra.mxu0 0
        %2457 = vmatprep.subr.bf16.mxu0 0
        %2458 = vmatpush1.bf16.msra.mxu0 0
        %2459 = vmatprep.subr.bf16.mxu0 0
        %2460 = vmatpush1.bf16.msra.mxu0 0
        %2461 = vmatprep.subr.bf16.mxu0 0
        %2462 = vmatpush1.bf16.msra.mxu0 %v2445
        %2463 = vmatprep.subr.bf16.mxu0 0
        %2464 = vmatpush2.bf16.msra.mxu0 0
        %2465 = vmatprep.subr.bf16.mxu0 0
        %2466 = vmatpush2.bf16.msra.mxu0 0
        %2467 = vmatprep.subr.bf16.mxu0 0
        %2468 = vmatpush2.bf16.msra.mxu0 0
        %2469 = vmatprep.subr.bf16.mxu0 0
        %2470 = vmatpush2.bf16.msra.mxu0 0
        %2471 = vmatprep.subr.bf16.mxu0 0
        %2472 = vmatpush2.bf16.msra.mxu0 0
        %2473 = vmatprep.subr.bf16.mxu0 0
        %2474 = vmatpush2.bf16.msra.mxu0 0
        %2475 = vmatprep.subr.bf16.mxu0 0
        %2476 = vmatpush2.bf16.msra.mxu0 0
        %2477 = vmatprep.subr.bf16.mxu0 0
        %2478 = vmatpush2.bf16.msra.mxu0 0
        %2479 = vmatprep.mubr.bf16.mxu0 0
        %2480 = vmatmul.mubr.bf16.gmra.mxu0 %v2442
        %v2481 = vpop.f32.mrf.mxu0
        %v2482 = vadd.f32 0.0, %v2481
        %v2483 = vpop.f32.mrf.mxu0
        %v2484 = vpop.f32.mrf.mxu0
        %v2485 = vpop.f32.mrf.mxu0
        %2486 = vdwg.mxu0
        %2487 = vrot.lane.b32.xlu0 %v841, 112
        %v2488 = vpop.permute.xlu0 %2487
        %v2490 = vsel %vm1269, %v2244, 0
        %v2493 = vsel %vm1369, %v2488, 0
        %2495 = vmatprep.subr.bf16.mxu0 0
        %2496 = vmatpush1.bf16.msra.mxu0 0
        %2497 = vmatprep.subr.bf16.mxu0 0
        %2498 = vmatpush1.bf16.msra.mxu0 0
        %2499 = vmatprep.subr.bf16.mxu0 0
        %2500 = vmatpush1.bf16.msra.mxu0 0
        %2501 = vmatprep.subr.bf16.mxu0 0
        %2502 = vmatpush1.bf16.msra.mxu0 0
        %2503 = vmatprep.subr.bf16.mxu0 0
        %2504 = vmatpush1.bf16.msra.mxu0 0
        %2505 = vmatprep.subr.bf16.mxu0 0
        %2506 = vmatpush1.bf16.msra.mxu0 0
        %2507 = vmatprep.subr.bf16.mxu0 0
        %2508 = vmatpush1.bf16.msra.mxu0 0
        %2509 = vmatprep.subr.bf16.mxu0 0
        %2510 = vmatpush1.bf16.msra.mxu0 %v2493
        %2511 = vmatprep.subr.bf16.mxu0 0
        %2512 = vmatpush2.bf16.msra.mxu0 0
        %2513 = vmatprep.subr.bf16.mxu0 0
        %2514 = vmatpush2.bf16.msra.mxu0 0
        %2515 = vmatprep.subr.bf16.mxu0 0
        %2516 = vmatpush2.bf16.msra.mxu0 0
        %2517 = vmatprep.subr.bf16.mxu0 0
        %2518 = vmatpush2.bf16.msra.mxu0 0
        %2519 = vmatprep.subr.bf16.mxu0 0
        %2520 = vmatpush2.bf16.msra.mxu0 0
        %2521 = vmatprep.subr.bf16.mxu0 0
        %2522 = vmatpush2.bf16.msra.mxu0 0
        %2523 = vmatprep.subr.bf16.mxu0 0
        %2524 = vmatpush2.bf16.msra.mxu0 0
        %2525 = vmatprep.subr.bf16.mxu0 0
        %2526 = vmatpush2.bf16.msra.mxu0 0
        %2527 = vmatprep.mubr.bf16.mxu0 0
        %2528 = vmatmul.mubr.bf16.gmra.mxu0 %v2490
        %v2529 = vpop.f32.mrf.mxu0
        %v2530 = vadd.f32 0.0, %v2529
        %v2531 = vpop.f32.mrf.mxu0
        %v2532 = vpop.f32.mrf.mxu0
        %v2533 = vpop.f32.mrf.mxu0
        %2534 = vdwg.mxu0
        %2535 = vrot.lane.b32.xlu0 %v842, 112
        %v2536 = vpop.permute.xlu0 %2535
        %v2538 = vsel %vm1269, %v2245, 0
        %v2541 = vsel %vm1369, %v2536, 0
        %2543 = vmatprep.subr.bf16.mxu0 0
        %2544 = vmatpush1.bf16.msra.mxu0 0
        %2545 = vmatprep.subr.bf16.mxu0 0
        %2546 = vmatpush1.bf16.msra.mxu0 0
        %2547 = vmatprep.subr.bf16.mxu0 0
        %2548 = vmatpush1.bf16.msra.mxu0 0
        %2549 = vmatprep.subr.bf16.mxu0 0
        %2550 = vmatpush1.bf16.msra.mxu0 0
        %2551 = vmatprep.subr.bf16.mxu0 0
        %2552 = vmatpush1.bf16.msra.mxu0 0
        %2553 = vmatprep.subr.bf16.mxu0 0
        %2554 = vmatpush1.bf16.msra.mxu0 0
        %2555 = vmatprep.subr.bf16.mxu0 0
        %2556 = vmatpush1.bf16.msra.mxu0 0
        %2557 = vmatprep.subr.bf16.mxu0 0
        %2558 = vmatpush1.bf16.msra.mxu0 %v2541
        %2559 = vmatprep.subr.bf16.mxu0 0
        %2560 = vmatpush2.bf16.msra.mxu0 0
        %2561 = vmatprep.subr.bf16.mxu0 0
        %2562 = vmatpush2.bf16.msra.mxu0 0
        %2563 = vmatprep.subr.bf16.mxu0 0
        %2564 = vmatpush2.bf16.msra.mxu0 0
        %2565 = vmatprep.subr.bf16.mxu0 0
        %2566 = vmatpush2.bf16.msra.mxu0 0
        %2567 = vmatprep.subr.bf16.mxu0 0
        %2568 = vmatpush2.bf16.msra.mxu0 0
        %2569 = vmatprep.subr.bf16.mxu0 0
        %2570 = vmatpush2.bf16.msra.mxu0 0
        %2571 = vmatprep.subr.bf16.mxu0 0
        %2572 = vmatpush2.bf16.msra.mxu0 0
        %2573 = vmatprep.subr.bf16.mxu0 0
        %2574 = vmatpush2.bf16.msra.mxu0 0
        %2575 = vmatprep.mubr.bf16.mxu0 0
        %2576 = vmatmul.mubr.bf16.gmra.mxu0 %v2538
        %v2577 = vpop.f32.mrf.mxu0
        %v2578 = vadd.f32 0.0, %v2577
        %v2579 = vpop.f32.mrf.mxu0
        %v2580 = vpop.f32.mrf.mxu0
        %v2581 = vpop.f32.mrf.mxu0
        %2582 = vdwg.mxu0
        %2583 = vrot.lane.b32.xlu0 %v843, 112
        %v2584 = vpop.permute.xlu0 %2583
        %v2586 = vsel %vm1269, %v2246, 0
        %v2589 = vsel %vm1369, %v2584, 0
        %2591 = vmatprep.subr.bf16.mxu0 0
        %2592 = vmatpush1.bf16.msra.mxu0 0
        %2593 = vmatprep.subr.bf16.mxu0 0
        %2594 = vmatpush1.bf16.msra.mxu0 0
        %2595 = vmatprep.subr.bf16.mxu0 0
        %2596 = vmatpush1.bf16.msra.mxu0 0
        %2597 = vmatprep.subr.bf16.mxu0 0
        %2598 = vmatpush1.bf16.msra.mxu0 0
        %2599 = vmatprep.subr.bf16.mxu0 0
        %2600 = vmatpush1.bf16.msra.mxu0 0
        %2601 = vmatprep.subr.bf16.mxu0 0
        %2602 = vmatpush1.bf16.msra.mxu0 0
        %2603 = vmatprep.subr.bf16.mxu0 0
        %2604 = vmatpush1.bf16.msra.mxu0 0
        %2605 = vmatprep.subr.bf16.mxu0 0
        %2606 = vmatpush1.bf16.msra.mxu0 %v2589
        %2607 = vmatprep.subr.bf16.mxu0 0
        %2608 = vmatpush2.bf16.msra.mxu0 0
        %2609 = vmatprep.subr.bf16.mxu0 0
        %2610 = vmatpush2.bf16.msra.mxu0 0
        %2611 = vmatprep.subr.bf16.mxu0 0
        %2612 = vmatpush2.bf16.msra.mxu0 0
        %2613 = vmatprep.subr.bf16.mxu0 0
        %2614 = vmatpush2.bf16.msra.mxu0 0
        %2615 = vmatprep.subr.bf16.mxu0 0
        %2616 = vmatpush2.bf16.msra.mxu0 0
        %2617 = vmatprep.subr.bf16.mxu0 0
        %2618 = vmatpush2.bf16.msra.mxu0 0
        %2619 = vmatprep.subr.bf16.mxu0 0
        %2620 = vmatpush2.bf16.msra.mxu0 0
        %2621 = vmatprep.subr.bf16.mxu0 0
        %2622 = vmatpush2.bf16.msra.mxu0 0
        %2623 = vmatprep.mubr.bf16.mxu0 0
        %2624 = vmatmul.mubr.bf16.gmra.mxu0 %v2586
        %v2625 = vpop.f32.mrf.mxu0
        %v2626 = vadd.f32 0.0, %v2625
        %v2627 = vpop.f32.mrf.mxu0
        %v2628 = vpop.f32.mrf.mxu0
        %v2629 = vpop.f32.mrf.mxu0
        %2630 = vdwg.mxu0
        %2631 = vrot.lane.b32.xlu0 %v796, 96
        %v2632 = vpop.permute.xlu0 %2631
        %2633 = vrot.lane.b32.xlu0 %v816, 96
        %v2634 = vpop.permute.xlu0 %2633
        %v2636 = vsel %vm852, %v2632, 0
        %v2639 = vsel %vm852, %v2634, 0
        %2641 = vmatprep.subr.bf16.mxu0 0
        %2642 = vmatpush1.bf16.xpose.msra.mxu0 0
        %2643 = vmatprep.subr.bf16.mxu0 0
        %2644 = vmatpush1.bf16.xpose.msra.mxu0 0
        %2645 = vmatprep.subr.bf16.mxu0 0
        %2646 = vmatpush1.bf16.xpose.msra.mxu0 0
        %2647 = vmatprep.subr.bf16.mxu0 0
        %2648 = vmatpush1.bf16.xpose.msra.mxu0 0
        %2649 = vmatprep.subr.bf16.mxu0 0
        %2650 = vmatpush1.bf16.xpose.msra.mxu0 0
        %2651 = vmatprep.subr.bf16.mxu0 0
        %2652 = vmatpush1.bf16.xpose.msra.mxu0 0
        %2653 = vmatprep.subr.bf16.mxu0 0
        %2654 = vmatpush1.bf16.xpose.msra.mxu0 0
        %2655 = vmatprep.subr.bf16.mxu0 0
        %2656 = vmatpush1.bf16.xpose.msra.mxu0 %v2639
        %2657 = vmatprep.subr.bf16.mxu0 0
        %2658 = vmatpush2.bf16.xpose.msra.mxu0 0
        %2659 = vmatprep.subr.bf16.mxu0 0
        %2660 = vmatpush2.bf16.xpose.msra.mxu0 0
        %2661 = vmatprep.subr.bf16.mxu0 0
        %2662 = vmatpush2.bf16.xpose.msra.mxu0 0
        %2663 = vmatprep.subr.bf16.mxu0 0
        %2664 = vmatpush2.bf16.xpose.msra.mxu0 0
        %2665 = vmatprep.subr.bf16.mxu0 0
        %2666 = vmatpush2.bf16.xpose.msra.mxu0 0
        %2667 = vmatprep.subr.bf16.mxu0 0
        %2668 = vmatpush2.bf16.xpose.msra.mxu0 0
        %2669 = vmatprep.subr.bf16.mxu0 0
        %2670 = vmatpush2.bf16.xpose.msra.mxu0 0
        %2671 = vmatprep.subr.bf16.mxu0 0
        %2672 = vmatpush2.bf16.xpose.msra.mxu0 0
        %2673 = vmatprep.mubr.bf16.mxu0 0
        %2674 = vmatmul.mubr.bf16.gmra.mxu0 %v2636
        %v2675 = vpop.f32.mrf.mxu0
        %v2676 = vadd.f32 0.0, %v2675
        %v2677 = vpop.f32.mrf.mxu0
        %v2678 = vpop.f32.mrf.mxu0
        %v2679 = vpop.f32.mrf.mxu0
        %2680 = vdwg.mxu0
        %2681 = vrot.lane.b32.xlu0 %v797, 96
        %v2682 = vpop.permute.xlu0 %2681
        %2683 = vrot.lane.b32.xlu0 %v817, 96
        %v2684 = vpop.permute.xlu0 %2683
        %v2686 = vsel %vm852, %v2682, 0
        %v2689 = vsel %vm852, %v2684, 0
        %2691 = vmatprep.subr.bf16.mxu0 0
        %2692 = vmatpush1.bf16.xpose.msra.mxu0 0
        %2693 = vmatprep.subr.bf16.mxu0 0
        %2694 = vmatpush1.bf16.xpose.msra.mxu0 0
        %2695 = vmatprep.subr.bf16.mxu0 0
        %2696 = vmatpush1.bf16.xpose.msra.mxu0 0
        %2697 = vmatprep.subr.bf16.mxu0 0
        %2698 = vmatpush1.bf16.xpose.msra.mxu0 0
        %2699 = vmatprep.subr.bf16.mxu0 0
        %2700 = vmatpush1.bf16.xpose.msra.mxu0 0
        %2701 = vmatprep.subr.bf16.mxu0 0
        %2702 = vmatpush1.bf16.xpose.msra.mxu0 0
        %2703 = vmatprep.subr.bf16.mxu0 0
        %2704 = vmatpush1.bf16.xpose.msra.mxu0 0
        %2705 = vmatprep.subr.bf16.mxu0 0
        %2706 = vmatpush1.bf16.xpose.msra.mxu0 %v2689
        %2707 = vmatprep.subr.bf16.mxu0 0
        %2708 = vmatpush2.bf16.xpose.msra.mxu0 0
        %2709 = vmatprep.subr.bf16.mxu0 0
        %2710 = vmatpush2.bf16.xpose.msra.mxu0 0
        %2711 = vmatprep.subr.bf16.mxu0 0
        %2712 = vmatpush2.bf16.xpose.msra.mxu0 0
        %2713 = vmatprep.subr.bf16.mxu0 0
        %2714 = vmatpush2.bf16.xpose.msra.mxu0 0
        %2715 = vmatprep.subr.bf16.mxu0 0
        %2716 = vmatpush2.bf16.xpose.msra.mxu0 0
        %2717 = vmatprep.subr.bf16.mxu0 0
        %2718 = vmatpush2.bf16.xpose.msra.mxu0 0
        %2719 = vmatprep.subr.bf16.mxu0 0
        %2720 = vmatpush2.bf16.xpose.msra.mxu0 0
        %2721 = vmatprep.subr.bf16.mxu0 0
        %2722 = vmatpush2.bf16.xpose.msra.mxu0 0
        %2723 = vmatprep.mubr.bf16.mxu0 0
        %2724 = vmatmul.mubr.bf16.gmra.mxu0 %v2686
        %v2725 = vpop.f32.mrf.mxu0
        %v2726 = vadd.f32 0.0, %v2725
        %v2727 = vpop.f32.mrf.mxu0
        %v2728 = vpop.f32.mrf.mxu0
        %v2729 = vpop.f32.mrf.mxu0
        %2730 = vdwg.mxu0
        %2731 = vrot.lane.b32.xlu0 %v798, 96
        %v2732 = vpop.permute.xlu0 %2731
        %2733 = vrot.lane.b32.xlu0 %v818, 96
        %v2734 = vpop.permute.xlu0 %2733
        %v2736 = vsel %vm852, %v2732, 0
        %v2739 = vsel %vm852, %v2734, 0
        %2741 = vmatprep.subr.bf16.mxu0 0
        %2742 = vmatpush1.bf16.xpose.msra.mxu0 0
        %2743 = vmatprep.subr.bf16.mxu0 0
        %2744 = vmatpush1.bf16.xpose.msra.mxu0 0
        %2745 = vmatprep.subr.bf16.mxu0 0
        %2746 = vmatpush1.bf16.xpose.msra.mxu0 0
        %2747 = vmatprep.subr.bf16.mxu0 0
        %2748 = vmatpush1.bf16.xpose.msra.mxu0 0
        %2749 = vmatprep.subr.bf16.mxu0 0
        %2750 = vmatpush1.bf16.xpose.msra.mxu0 0
        %2751 = vmatprep.subr.bf16.mxu0 0
        %2752 = vmatpush1.bf16.xpose.msra.mxu0 0
        %2753 = vmatprep.subr.bf16.mxu0 0
        %2754 = vmatpush1.bf16.xpose.msra.mxu0 0
        %2755 = vmatprep.subr.bf16.mxu0 0
        %2756 = vmatpush1.bf16.xpose.msra.mxu0 %v2739
        %2757 = vmatprep.subr.bf16.mxu0 0
        %2758 = vmatpush2.bf16.xpose.msra.mxu0 0
        %2759 = vmatprep.subr.bf16.mxu0 0
        %2760 = vmatpush2.bf16.xpose.msra.mxu0 0
        %2761 = vmatprep.subr.bf16.mxu0 0
        %2762 = vmatpush2.bf16.xpose.msra.mxu0 0
        %2763 = vmatprep.subr.bf16.mxu0 0
        %2764 = vmatpush2.bf16.xpose.msra.mxu0 0
        %2765 = vmatprep.subr.bf16.mxu0 0
        %2766 = vmatpush2.bf16.xpose.msra.mxu0 0
        %2767 = vmatprep.subr.bf16.mxu0 0
        %2768 = vmatpush2.bf16.xpose.msra.mxu0 0
        %2769 = vmatprep.subr.bf16.mxu0 0
        %2770 = vmatpush2.bf16.xpose.msra.mxu0 0
        %2771 = vmatprep.subr.bf16.mxu0 0
        %2772 = vmatpush2.bf16.xpose.msra.mxu0 0
        %2773 = vmatprep.mubr.bf16.mxu0 0
        %2774 = vmatmul.mubr.bf16.gmra.mxu0 %v2736
        %v2775 = vpop.f32.mrf.mxu0
        %v2776 = vadd.f32 0.0, %v2775
        %v2777 = vpop.f32.mrf.mxu0
        %v2778 = vpop.f32.mrf.mxu0
        %v2779 = vpop.f32.mrf.mxu0
        %2780 = vdwg.mxu0
        %2781 = vrot.lane.b32.xlu0 %v799, 96
        %v2782 = vpop.permute.xlu0 %2781
        %2783 = vrot.lane.b32.xlu0 %v819, 96
        %v2784 = vpop.permute.xlu0 %2783
        %v2786 = vsel %vm852, %v2782, 0
        %v2789 = vsel %vm852, %v2784, 0
        %2791 = vmatprep.subr.bf16.mxu0 0
        %2792 = vmatpush1.bf16.xpose.msra.mxu0 0
        %2793 = vmatprep.subr.bf16.mxu0 0
        %2794 = vmatpush1.bf16.xpose.msra.mxu0 0
        %2795 = vmatprep.subr.bf16.mxu0 0
        %2796 = vmatpush1.bf16.xpose.msra.mxu0 0
        %2797 = vmatprep.subr.bf16.mxu0 0
        %2798 = vmatpush1.bf16.xpose.msra.mxu0 0
        %2799 = vmatprep.subr.bf16.mxu0 0
        %2800 = vmatpush1.bf16.xpose.msra.mxu0 0
        %2801 = vmatprep.subr.bf16.mxu0 0
        %2802 = vmatpush1.bf16.xpose.msra.mxu0 0
        %2803 = vmatprep.subr.bf16.mxu0 0
        %2804 = vmatpush1.bf16.xpose.msra.mxu0 0
        %2805 = vmatprep.subr.bf16.mxu0 0
        %2806 = vmatpush1.bf16.xpose.msra.mxu0 %v2789
        %2807 = vmatprep.subr.bf16.mxu0 0
        %2808 = vmatpush2.bf16.xpose.msra.mxu0 0
        %2809 = vmatprep.subr.bf16.mxu0 0
        %2810 = vmatpush2.bf16.xpose.msra.mxu0 0
        %2811 = vmatprep.subr.bf16.mxu0 0
        %2812 = vmatpush2.bf16.xpose.msra.mxu0 0
        %2813 = vmatprep.subr.bf16.mxu0 0
        %2814 = vmatpush2.bf16.xpose.msra.mxu0 0
        %2815 = vmatprep.subr.bf16.mxu0 0
        %2816 = vmatpush2.bf16.xpose.msra.mxu0 0
        %2817 = vmatprep.subr.bf16.mxu0 0
        %2818 = vmatpush2.bf16.xpose.msra.mxu0 0
        %2819 = vmatprep.subr.bf16.mxu0 0
        %2820 = vmatpush2.bf16.xpose.msra.mxu0 0
        %2821 = vmatprep.subr.bf16.mxu0 0
        %2822 = vmatpush2.bf16.xpose.msra.mxu0 0
        %2823 = vmatprep.mubr.bf16.mxu0 0
        %2824 = vmatmul.mubr.bf16.gmra.mxu0 %v2786
        %v2825 = vpop.f32.mrf.mxu0
        %v2826 = vadd.f32 0.0, %v2825
        %v2827 = vpop.f32.mrf.mxu0
        %v2828 = vpop.f32.mrf.mxu0
        %v2829 = vpop.f32.mrf.mxu0
        %2830 = vdwg.mxu0
        %2831 = vrot.lane.b32.xlu0 %v800, 96
        %v2832 = vpop.permute.xlu0 %2831
        %2833 = vrot.lane.b32.xlu0 %v820, 96
        %v2834 = vpop.permute.xlu0 %2833
        %v2836 = vsel %vm852, %v2832, 0
        %v2839 = vsel %vm852, %v2834, 0
        %2841 = vmatprep.subr.bf16.mxu0 0
        %2842 = vmatpush1.bf16.xpose.msra.mxu0 0
        %2843 = vmatprep.subr.bf16.mxu0 0
        %2844 = vmatpush1.bf16.xpose.msra.mxu0 0
        %2845 = vmatprep.subr.bf16.mxu0 0
        %2846 = vmatpush1.bf16.xpose.msra.mxu0 0
        %2847 = vmatprep.subr.bf16.mxu0 0
        %2848 = vmatpush1.bf16.xpose.msra.mxu0 0
        %2849 = vmatprep.subr.bf16.mxu0 0
        %2850 = vmatpush1.bf16.xpose.msra.mxu0 0
        %2851 = vmatprep.subr.bf16.mxu0 0
        %2852 = vmatpush1.bf16.xpose.msra.mxu0 0
        %2853 = vmatprep.subr.bf16.mxu0 0
        %2854 = vmatpush1.bf16.xpose.msra.mxu0 0
        %2855 = vmatprep.subr.bf16.mxu0 0
        %2856 = vmatpush1.bf16.xpose.msra.mxu0 %v2839
        %2857 = vmatprep.subr.bf16.mxu0 0
        %2858 = vmatpush2.bf16.xpose.msra.mxu0 0
        %2859 = vmatprep.subr.bf16.mxu0 0
        %2860 = vmatpush2.bf16.xpose.msra.mxu0 0
        %2861 = vmatprep.subr.bf16.mxu0 0
        %2862 = vmatpush2.bf16.xpose.msra.mxu0 0
        %2863 = vmatprep.subr.bf16.mxu0 0
        %2864 = vmatpush2.bf16.xpose.msra.mxu0 0
        %2865 = vmatprep.subr.bf16.mxu0 0
        %2866 = vmatpush2.bf16.xpose.msra.mxu0 0
        %2867 = vmatprep.subr.bf16.mxu0 0
        %2868 = vmatpush2.bf16.xpose.msra.mxu0 0
        %2869 = vmatprep.subr.bf16.mxu0 0
        %2870 = vmatpush2.bf16.xpose.msra.mxu0 0
        %2871 = vmatprep.subr.bf16.mxu0 0
        %2872 = vmatpush2.bf16.xpose.msra.mxu0 0
        %2873 = vmatprep.mubr.bf16.mxu0 0
        %2874 = vmatmul.mubr.bf16.gmra.mxu0 %v2836
        %v2875 = vpop.f32.mrf.mxu0
        %v2876 = vadd.f32 0.0, %v2875
        %v2877 = vpop.f32.mrf.mxu0
        %v2878 = vpop.f32.mrf.mxu0
        %v2879 = vpop.f32.mrf.mxu0
        %2880 = vdwg.mxu0
        %2881 = vrot.lane.b32.xlu0 %v801, 96
        %v2882 = vpop.permute.xlu0 %2881
        %2883 = vrot.lane.b32.xlu0 %v821, 96
        %v2884 = vpop.permute.xlu0 %2883
        %v2886 = vsel %vm852, %v2882, 0
        %v2889 = vsel %vm852, %v2884, 0
        %2891 = vmatprep.subr.bf16.mxu0 0
        %2892 = vmatpush1.bf16.xpose.msra.mxu0 0
        %2893 = vmatprep.subr.bf16.mxu0 0
        %2894 = vmatpush1.bf16.xpose.msra.mxu0 0
        %2895 = vmatprep.subr.bf16.mxu0 0
        %2896 = vmatpush1.bf16.xpose.msra.mxu0 0
        %2897 = vmatprep.subr.bf16.mxu0 0
        %2898 = vmatpush1.bf16.xpose.msra.mxu0 0
        %2899 = vmatprep.subr.bf16.mxu0 0
        %2900 = vmatpush1.bf16.xpose.msra.mxu0 0
        %2901 = vmatprep.subr.bf16.mxu0 0
        %2902 = vmatpush1.bf16.xpose.msra.mxu0 0
        %2903 = vmatprep.subr.bf16.mxu0 0
        %2904 = vmatpush1.bf16.xpose.msra.mxu0 0
        %2905 = vmatprep.subr.bf16.mxu0 0
        %2906 = vmatpush1.bf16.xpose.msra.mxu0 %v2889
        %2907 = vmatprep.subr.bf16.mxu0 0
        %2908 = vmatpush2.bf16.xpose.msra.mxu0 0
        %2909 = vmatprep.subr.bf16.mxu0 0
        %2910 = vmatpush2.bf16.xpose.msra.mxu0 0
        %2911 = vmatprep.subr.bf16.mxu0 0
        %2912 = vmatpush2.bf16.xpose.msra.mxu0 0
        %2913 = vmatprep.subr.bf16.mxu0 0
        %2914 = vmatpush2.bf16.xpose.msra.mxu0 0
        %2915 = vmatprep.subr.bf16.mxu0 0
        %2916 = vmatpush2.bf16.xpose.msra.mxu0 0
        %2917 = vmatprep.subr.bf16.mxu0 0
        %2918 = vmatpush2.bf16.xpose.msra.mxu0 0
        %2919 = vmatprep.subr.bf16.mxu0 0
        %2920 = vmatpush2.bf16.xpose.msra.mxu0 0
        %2921 = vmatprep.subr.bf16.mxu0 0
        %2922 = vmatpush2.bf16.xpose.msra.mxu0 0
        %2923 = vmatprep.mubr.bf16.mxu0 0
        %2924 = vmatmul.mubr.bf16.gmra.mxu0 %v2886
        %v2925 = vpop.f32.mrf.mxu0
        %v2926 = vadd.f32 0.0, %v2925
        %v2927 = vpop.f32.mrf.mxu0
        %v2928 = vpop.f32.mrf.mxu0
        %v2929 = vpop.f32.mrf.mxu0
        %2930 = vdwg.mxu0
        %2931 = vrot.lane.b32.xlu0 %v802, 96
        %v2932 = vpop.permute.xlu0 %2931
        %2933 = vrot.lane.b32.xlu0 %v822, 96
        %v2934 = vpop.permute.xlu0 %2933
        %v2936 = vsel %vm852, %v2932, 0
        %v2939 = vsel %vm852, %v2934, 0
        %2941 = vmatprep.subr.bf16.mxu0 0
        %2942 = vmatpush1.bf16.xpose.msra.mxu0 0
        %2943 = vmatprep.subr.bf16.mxu0 0
        %2944 = vmatpush1.bf16.xpose.msra.mxu0 0
        %2945 = vmatprep.subr.bf16.mxu0 0
        %2946 = vmatpush1.bf16.xpose.msra.mxu0 0
        %2947 = vmatprep.subr.bf16.mxu0 0
        %2948 = vmatpush1.bf16.xpose.msra.mxu0 0
        %2949 = vmatprep.subr.bf16.mxu0 0
        %2950 = vmatpush1.bf16.xpose.msra.mxu0 0
        %2951 = vmatprep.subr.bf16.mxu0 0
        %2952 = vmatpush1.bf16.xpose.msra.mxu0 0
        %2953 = vmatprep.subr.bf16.mxu0 0
        %2954 = vmatpush1.bf16.xpose.msra.mxu0 0
        %2955 = vmatprep.subr.bf16.mxu0 0
        %2956 = vmatpush1.bf16.xpose.msra.mxu0 %v2939
        %2957 = vmatprep.subr.bf16.mxu0 0
        %2958 = vmatpush2.bf16.xpose.msra.mxu0 0
        %2959 = vmatprep.subr.bf16.mxu0 0
        %2960 = vmatpush2.bf16.xpose.msra.mxu0 0
        %2961 = vmatprep.subr.bf16.mxu0 0
        %2962 = vmatpush2.bf16.xpose.msra.mxu0 0
        %2963 = vmatprep.subr.bf16.mxu0 0
        %2964 = vmatpush2.bf16.xpose.msra.mxu0 0
        %2965 = vmatprep.subr.bf16.mxu0 0
        %2966 = vmatpush2.bf16.xpose.msra.mxu0 0
        %2967 = vmatprep.subr.bf16.mxu0 0
        %2968 = vmatpush2.bf16.xpose.msra.mxu0 0
        %2969 = vmatprep.subr.bf16.mxu0 0
        %2970 = vmatpush2.bf16.xpose.msra.mxu0 0
        %2971 = vmatprep.subr.bf16.mxu0 0
        %2972 = vmatpush2.bf16.xpose.msra.mxu0 0
        %2973 = vmatprep.mubr.bf16.mxu0 0
        %2974 = vmatmul.mubr.bf16.gmra.mxu0 %v2936
        %v2975 = vpop.f32.mrf.mxu0
        %v2976 = vadd.f32 0.0, %v2975
        %v2977 = vpop.f32.mrf.mxu0
        %v2978 = vpop.f32.mrf.mxu0
        %v2979 = vpop.f32.mrf.mxu0
        %2980 = vdwg.mxu0
        %2981 = vrot.lane.b32.xlu0 %v803, 96
        %v2982 = vpop.permute.xlu0 %2981
        %2983 = vrot.lane.b32.xlu0 %v823, 96
        %v2984 = vpop.permute.xlu0 %2983
        %v2986 = vsel %vm852, %v2982, 0
        %v2989 = vsel %vm852, %v2984, 0
        %2991 = vmatprep.subr.bf16.mxu0 0
        %2992 = vmatpush1.bf16.xpose.msra.mxu0 0
        %2993 = vmatprep.subr.bf16.mxu0 0
        %2994 = vmatpush1.bf16.xpose.msra.mxu0 0
        %2995 = vmatprep.subr.bf16.mxu0 0
        %2996 = vmatpush1.bf16.xpose.msra.mxu0 0
        %2997 = vmatprep.subr.bf16.mxu0 0
        %2998 = vmatpush1.bf16.xpose.msra.mxu0 0
        %2999 = vmatprep.subr.bf16.mxu0 0
        %3000 = vmatpush1.bf16.xpose.msra.mxu0 0
        %3001 = vmatprep.subr.bf16.mxu0 0
        %3002 = vmatpush1.bf16.xpose.msra.mxu0 0
        %3003 = vmatprep.subr.bf16.mxu0 0
        %3004 = vmatpush1.bf16.xpose.msra.mxu0 0
        %3005 = vmatprep.subr.bf16.mxu0 0
        %3006 = vmatpush1.bf16.xpose.msra.mxu0 %v2989
        %3007 = vmatprep.subr.bf16.mxu0 0
        %3008 = vmatpush2.bf16.xpose.msra.mxu0 0
        %3009 = vmatprep.subr.bf16.mxu0 0
        %3010 = vmatpush2.bf16.xpose.msra.mxu0 0
        %3011 = vmatprep.subr.bf16.mxu0 0
        %3012 = vmatpush2.bf16.xpose.msra.mxu0 0
        %3013 = vmatprep.subr.bf16.mxu0 0
        %3014 = vmatpush2.bf16.xpose.msra.mxu0 0
        %3015 = vmatprep.subr.bf16.mxu0 0
        %3016 = vmatpush2.bf16.xpose.msra.mxu0 0
        %3017 = vmatprep.subr.bf16.mxu0 0
        %3018 = vmatpush2.bf16.xpose.msra.mxu0 0
        %3019 = vmatprep.subr.bf16.mxu0 0
        %3020 = vmatpush2.bf16.xpose.msra.mxu0 0
        %3021 = vmatprep.subr.bf16.mxu0 0
        %3022 = vmatpush2.bf16.xpose.msra.mxu0 0
        %3023 = vmatprep.mubr.bf16.mxu0 0
        %3024 = vmatmul.mubr.bf16.gmra.mxu0 %v2986
        %v3025 = vpop.f32.mrf.mxu0
        %v3026 = vadd.f32 0.0, %v3025
        %v3027 = vpop.f32.mrf.mxu0
        %v3028 = vpop.f32.mrf.mxu0
        %v3029 = vpop.f32.mrf.mxu0
        %3030 = vdwg.mxu0
        %v3031 = vmul.f32 %v2676, 0.25
        %v3032 = vmul.f32 %v2726, 0.25
        %v3033 = vmul.f32 %v2776, 0.25
        %v3034 = vmul.f32 %v2826, 0.25
        %v3035 = vmul.f32 %v2876, 0.25
        %v3036 = vmul.f32 %v2926, 0.25
        %v3037 = vmul.f32 %v2976, 0.25
        %v3038 = vmul.f32 %v3026, 0.25
        %v3039 = vadd.f32 %v3031, %v1232
        %v3040 = vadd.f32 %v3032, %v1236
        %v3041 = vadd.f32 %v3033, %v1240
        %v3042 = vadd.f32 %v3034, %v1244
        %v3043 = vadd.f32 %v3035, %v1248
        %v3044 = vadd.f32 %v3036, %v1252
        %v3045 = vadd.f32 %v3037, %v1256
        %v3046 = vadd.f32 %v3038, %v1260
        %v3047 = vsel %vm1269, %v3039, -inf
        %3048 = vmax.xlane.f32.xlu0 %v3047
        %v3049 = vpop.xlane.xlu0 %3048
        %v3050 = vsel %vm1269, %v3040, -inf
        %3051 = vmax.xlane.f32.xlu0 %v3050
        %v3052 = vpop.xlane.xlu0 %3051
        %v3053 = vsel %vm1269, %v3041, -inf
        %3054 = vmax.xlane.f32.xlu0 %v3053
        %v3055 = vpop.xlane.xlu0 %3054
        %v3056 = vsel %vm1269, %v3042, -inf
        %3057 = vmax.xlane.f32.xlu0 %v3056
        %v3058 = vpop.xlane.xlu0 %3057
        %v3059 = vsel %vm1269, %v3043, -inf
        %3060 = vmax.xlane.f32.xlu0 %v3059
        %v3061 = vpop.xlane.xlu0 %3060
        %v3062 = vsel %vm1269, %v3044, -inf
        %3063 = vmax.xlane.f32.xlu0 %v3062
        %v3064 = vpop.xlane.xlu0 %3063
        %v3065 = vsel %vm1269, %v3045, -inf
        %3066 = vmax.xlane.f32.xlu0 %v3065
        %v3067 = vpop.xlane.xlu0 %3066
        %v3068 = vsel %vm1269, %v3046, -inf
        %3069 = vmax.xlane.f32.xlu0 %v3068
        %v3070 = vpop.xlane.xlu0 %3069
        %v3071 = vsub.f32 %v3039, %v3049
        %v3072 = vsub.f32 %v3040, %v3052
        %v3073 = vsub.f32 %v3041, %v3055
        %v3074 = vsub.f32 %v3042, %v3058
        %v3075 = vsub.f32 %v3043, %v3061
        %v3076 = vsub.f32 %v3044, %v3064
        %v3077 = vsub.f32 %v3045, %v3067
        %v3078 = vsub.f32 %v3046, %v3070
        %v3079 = vmul.f32 %v3071, 1.442695
        %v3080 = vpow.pop %v3079
        %v3081 = vmul.f32 %v3072, 1.442695
        %v3082 = vpow.pop %v3081
        %v3083 = vmul.f32 %v3073, 1.442695
        %v3084 = vpow.pop %v3083
        %v3085 = vmul.f32 %v3074, 1.442695
        %v3086 = vpow.pop %v3085
        %v3087 = vmul.f32 %v3075, 1.442695
        %v3088 = vpow.pop %v3087
        %v3089 = vmul.f32 %v3076, 1.442695
        %v3090 = vpow.pop %v3089
        %v3091 = vmul.f32 %v3077, 1.442695
        %v3092 = vpow.pop %v3091
        %v3093 = vmul.f32 %v3078, 1.442695
        %v3094 = vpow.pop %v3093
        %v3095 = vsel %vm1269, %v3080, 0.0
        %3096 = vadd.xlane.f32.xlu0 %v3095
        %v3097 = vpop.xlane.xlu0 %3096
        %v3098 = vsel %vm1269, %v3082, 0.0
        %3099 = vadd.xlane.f32.xlu0 %v3098
        %v3100 = vpop.xlane.xlu0 %3099
        %v3101 = vsel %vm1269, %v3084, 0.0
        %3102 = vadd.xlane.f32.xlu0 %v3101
        %v3103 = vpop.xlane.xlu0 %3102
        %v3104 = vsel %vm1269, %v3086, 0.0
        %3105 = vadd.xlane.f32.xlu0 %v3104
        %v3106 = vpop.xlane.xlu0 %3105
        %v3107 = vsel %vm1269, %v3088, 0.0
        %3108 = vadd.xlane.f32.xlu0 %v3107
        %v3109 = vpop.xlane.xlu0 %3108
        %v3110 = vsel %vm1269, %v3090, 0.0
        %3111 = vadd.xlane.f32.xlu0 %v3110
        %v3112 = vpop.xlane.xlu0 %3111
        %v3113 = vsel %vm1269, %v3092, 0.0
        %3114 = vadd.xlane.f32.xlu0 %v3113
        %v3115 = vpop.xlane.xlu0 %3114
        %v3116 = vsel %vm1269, %v3094, 0.0
        %3117 = vadd.xlane.f32.xlu0 %v3116
        %v3118 = vpop.xlane.xlu0 %3117
        %v3119 = vrcp.pop %v3097
        %v3120 = vrcp.pop %v3100
        %v3121 = vrcp.pop %v3103
        %v3122 = vrcp.pop %v3106
        %v3123 = vrcp.pop %v3109
        %v3124 = vrcp.pop %v3112
        %v3125 = vrcp.pop %v3115
        %v3126 = vrcp.pop %v3118
        %v3127 = vmul.f32 %v3080, %v3119
        %v3128 = vmul.f32 %v3082, %v3120
        %v3129 = vmul.f32 %v3084, %v3121
        %v3130 = vmul.f32 %v3086, %v3122
        %v3131 = vmul.f32 %v3088, %v3123
        %v3132 = vmul.f32 %v3090, %v3124
        %v3133 = vmul.f32 %v3092, %v3125
        %v3134 = vmul.f32 %v3094, %v3126
        %v3135 = vpack.c.bf16 %v3127, %v3127
        %v3136 = vpack.c.bf16 %v3128, %v3128
        %v3137 = vpack.c.bf16 %v3129, %v3129
        %v3138 = vpack.c.bf16 %v3130, %v3130
        %v3139 = vpack.c.bf16 %v3131, %v3131
        %v3140 = vpack.c.bf16 %v3132, %v3132
        %v3141 = vpack.c.bf16 %v3133, %v3133
        %v3142 = vpack.c.bf16 %v3134, %v3134
        %3143 = vrot.lane.b32.xlu0 %v836, 96
        %v3144 = vpop.permute.xlu0 %3143
        %v3146 = vsel %vm1269, %v3135, 0
        %v3149 = vsel %vm1369, %v3144, 0
        %3151 = vmatprep.subr.bf16.mxu0 0
        %3152 = vmatpush1.bf16.msra.mxu0 0
        %3153 = vmatprep.subr.bf16.mxu0 0
        %3154 = vmatpush1.bf16.msra.mxu0 0
        %3155 = vmatprep.subr.bf16.mxu0 0
        %3156 = vmatpush1.bf16.msra.mxu0 0
        %3157 = vmatprep.subr.bf16.mxu0 0
        %3158 = vmatpush1.bf16.msra.mxu0 0
        %3159 = vmatprep.subr.bf16.mxu0 0
        %3160 = vmatpush1.bf16.msra.mxu0 0
        %3161 = vmatprep.subr.bf16.mxu0 0
        %3162 = vmatpush1.bf16.msra.mxu0 0
        %3163 = vmatprep.subr.bf16.mxu0 0
        %3164 = vmatpush1.bf16.msra.mxu0 0
        %3165 = vmatprep.subr.bf16.mxu0 0
        %3166 = vmatpush1.bf16.msra.mxu0 %v3149
        %3167 = vmatprep.subr.bf16.mxu0 0
        %3168 = vmatpush2.bf16.msra.mxu0 0
        %3169 = vmatprep.subr.bf16.mxu0 0
        %3170 = vmatpush2.bf16.msra.mxu0 0
        %3171 = vmatprep.subr.bf16.mxu0 0
        %3172 = vmatpush2.bf16.msra.mxu0 0
        %3173 = vmatprep.subr.bf16.mxu0 0
        %3174 = vmatpush2.bf16.msra.mxu0 0
        %3175 = vmatprep.subr.bf16.mxu0 0
        %3176 = vmatpush2.bf16.msra.mxu0 0
        %3177 = vmatprep.subr.bf16.mxu0 0
        %3178 = vmatpush2.bf16.msra.mxu0 0
        %3179 = vmatprep.subr.bf16.mxu0 0
        %3180 = vmatpush2.bf16.msra.mxu0 0
        %3181 = vmatprep.subr.bf16.mxu0 0
        %3182 = vmatpush2.bf16.msra.mxu0 0
        %3183 = vmatprep.mubr.bf16.mxu0 0
        %3184 = vmatmul.mubr.bf16.gmra.mxu0 %v3146
        %v3185 = vpop.f32.mrf.mxu0
        %v3186 = vadd.f32 0.0, %v3185
        %v3187 = vpop.f32.mrf.mxu0
        %v3188 = vpop.f32.mrf.mxu0
        %v3189 = vpop.f32.mrf.mxu0
        %3190 = vdwg.mxu0
        %3191 = vrot.lane.b32.xlu0 %v837, 96
        %v3192 = vpop.permute.xlu0 %3191
        %v3194 = vsel %vm1269, %v3136, 0
        %v3197 = vsel %vm1369, %v3192, 0
        %3199 = vmatprep.subr.bf16.mxu0 0
        %3200 = vmatpush1.bf16.msra.mxu0 0
        %3201 = vmatprep.subr.bf16.mxu0 0
        %3202 = vmatpush1.bf16.msra.mxu0 0
        %3203 = vmatprep.subr.bf16.mxu0 0
        %3204 = vmatpush1.bf16.msra.mxu0 0
        %3205 = vmatprep.subr.bf16.mxu0 0
        %3206 = vmatpush1.bf16.msra.mxu0 0
        %3207 = vmatprep.subr.bf16.mxu0 0
        %3208 = vmatpush1.bf16.msra.mxu0 0
        %3209 = vmatprep.subr.bf16.mxu0 0
        %3210 = vmatpush1.bf16.msra.mxu0 0
        %3211 = vmatprep.subr.bf16.mxu0 0
        %3212 = vmatpush1.bf16.msra.mxu0 0
        %3213 = vmatprep.subr.bf16.mxu0 0
        %3214 = vmatpush1.bf16.msra.mxu0 %v3197
        %3215 = vmatprep.subr.bf16.mxu0 0
        %3216 = vmatpush2.bf16.msra.mxu0 0
        %3217 = vmatprep.subr.bf16.mxu0 0
        %3218 = vmatpush2.bf16.msra.mxu0 0
        %3219 = vmatprep.subr.bf16.mxu0 0
        %3220 = vmatpush2.bf16.msra.mxu0 0
        %3221 = vmatprep.subr.bf16.mxu0 0
        %3222 = vmatpush2.bf16.msra.mxu0 0
        %3223 = vmatprep.subr.bf16.mxu0 0
        %3224 = vmatpush2.bf16.msra.mxu0 0
        %3225 = vmatprep.subr.bf16.mxu0 0
        %3226 = vmatpush2.bf16.msra.mxu0 0
        %3227 = vmatprep.subr.bf16.mxu0 0
        %3228 = vmatpush2.bf16.msra.mxu0 0
        %3229 = vmatprep.subr.bf16.mxu0 0
        %3230 = vmatpush2.bf16.msra.mxu0 0
        %3231 = vmatprep.mubr.bf16.mxu0 0
        %3232 = vmatmul.mubr.bf16.gmra.mxu0 %v3194
        %v3233 = vpop.f32.mrf.mxu0
        %v3234 = vadd.f32 0.0, %v3233
        %v3235 = vpop.f32.mrf.mxu0
        %v3236 = vpop.f32.mrf.mxu0
        %v3237 = vpop.f32.mrf.mxu0
        %3238 = vdwg.mxu0
        %3239 = vrot.lane.b32.xlu0 %v838, 96
        %v3240 = vpop.permute.xlu0 %3239
        %v3242 = vsel %vm1269, %v3137, 0
        %v3245 = vsel %vm1369, %v3240, 0
        %3247 = vmatprep.subr.bf16.mxu0 0
        %3248 = vmatpush1.bf16.msra.mxu0 0
        %3249 = vmatprep.subr.bf16.mxu0 0
        %3250 = vmatpush1.bf16.msra.mxu0 0
        %3251 = vmatprep.subr.bf16.mxu0 0
        %3252 = vmatpush1.bf16.msra.mxu0 0
        %3253 = vmatprep.subr.bf16.mxu0 0
        %3254 = vmatpush1.bf16.msra.mxu0 0
        %3255 = vmatprep.subr.bf16.mxu0 0
        %3256 = vmatpush1.bf16.msra.mxu0 0
        %3257 = vmatprep.subr.bf16.mxu0 0
        %3258 = vmatpush1.bf16.msra.mxu0 0
        %3259 = vmatprep.subr.bf16.mxu0 0
        %3260 = vmatpush1.bf16.msra.mxu0 0
        %3261 = vmatprep.subr.bf16.mxu0 0
        %3262 = vmatpush1.bf16.msra.mxu0 %v3245
        %3263 = vmatprep.subr.bf16.mxu0 0
        %3264 = vmatpush2.bf16.msra.mxu0 0
        %3265 = vmatprep.subr.bf16.mxu0 0
        %3266 = vmatpush2.bf16.msra.mxu0 0
        %3267 = vmatprep.subr.bf16.mxu0 0
        %3268 = vmatpush2.bf16.msra.mxu0 0
        %3269 = vmatprep.subr.bf16.mxu0 0
        %3270 = vmatpush2.bf16.msra.mxu0 0
        %3271 = vmatprep.subr.bf16.mxu0 0
        %3272 = vmatpush2.bf16.msra.mxu0 0
        %3273 = vmatprep.subr.bf16.mxu0 0
        %3274 = vmatpush2.bf16.msra.mxu0 0
        %3275 = vmatprep.subr.bf16.mxu0 0
        %3276 = vmatpush2.bf16.msra.mxu0 0
        %3277 = vmatprep.subr.bf16.mxu0 0
        %3278 = vmatpush2.bf16.msra.mxu0 0
        %3279 = vmatprep.mubr.bf16.mxu0 0
        %3280 = vmatmul.mubr.bf16.gmra.mxu0 %v3242
        %v3281 = vpop.f32.mrf.mxu0
        %v3282 = vadd.f32 0.0, %v3281
        %v3283 = vpop.f32.mrf.mxu0
        %v3284 = vpop.f32.mrf.mxu0
        %v3285 = vpop.f32.mrf.mxu0
        %3286 = vdwg.mxu0
        %3287 = vrot.lane.b32.xlu0 %v839, 96
        %v3288 = vpop.permute.xlu0 %3287
        %v3290 = vsel %vm1269, %v3138, 0
        %v3293 = vsel %vm1369, %v3288, 0
        %3295 = vmatprep.subr.bf16.mxu0 0
        %3296 = vmatpush1.bf16.msra.mxu0 0
        %3297 = vmatprep.subr.bf16.mxu0 0
        %3298 = vmatpush1.bf16.msra.mxu0 0
        %3299 = vmatprep.subr.bf16.mxu0 0
        %3300 = vmatpush1.bf16.msra.mxu0 0
        %3301 = vmatprep.subr.bf16.mxu0 0
        %3302 = vmatpush1.bf16.msra.mxu0 0
        %3303 = vmatprep.subr.bf16.mxu0 0
        %3304 = vmatpush1.bf16.msra.mxu0 0
        %3305 = vmatprep.subr.bf16.mxu0 0
        %3306 = vmatpush1.bf16.msra.mxu0 0
        %3307 = vmatprep.subr.bf16.mxu0 0
        %3308 = vmatpush1.bf16.msra.mxu0 0
        %3309 = vmatprep.subr.bf16.mxu0 0
        %3310 = vmatpush1.bf16.msra.mxu0 %v3293
        %3311 = vmatprep.subr.bf16.mxu0 0
        %3312 = vmatpush2.bf16.msra.mxu0 0
        %3313 = vmatprep.subr.bf16.mxu0 0
        %3314 = vmatpush2.bf16.msra.mxu0 0
        %3315 = vmatprep.subr.bf16.mxu0 0
        %3316 = vmatpush2.bf16.msra.mxu0 0
        %3317 = vmatprep.subr.bf16.mxu0 0
        %3318 = vmatpush2.bf16.msra.mxu0 0
        %3319 = vmatprep.subr.bf16.mxu0 0
        %3320 = vmatpush2.bf16.msra.mxu0 0
        %3321 = vmatprep.subr.bf16.mxu0 0
        %3322 = vmatpush2.bf16.msra.mxu0 0
        %3323 = vmatprep.subr.bf16.mxu0 0
        %3324 = vmatpush2.bf16.msra.mxu0 0
        %3325 = vmatprep.subr.bf16.mxu0 0
        %3326 = vmatpush2.bf16.msra.mxu0 0
        %3327 = vmatprep.mubr.bf16.mxu0 0
        %3328 = vmatmul.mubr.bf16.gmra.mxu0 %v3290
        %v3329 = vpop.f32.mrf.mxu0
        %v3330 = vadd.f32 0.0, %v3329
        %v3331 = vpop.f32.mrf.mxu0
        %v3332 = vpop.f32.mrf.mxu0
        %v3333 = vpop.f32.mrf.mxu0
        %3334 = vdwg.mxu0
        %3335 = vrot.lane.b32.xlu0 %v840, 96
        %v3336 = vpop.permute.xlu0 %3335
        %v3338 = vsel %vm1269, %v3139, 0
        %v3341 = vsel %vm1369, %v3336, 0
        %3343 = vmatprep.subr.bf16.mxu0 0
        %3344 = vmatpush1.bf16.msra.mxu0 0
        %3345 = vmatprep.subr.bf16.mxu0 0
        %3346 = vmatpush1.bf16.msra.mxu0 0
        %3347 = vmatprep.subr.bf16.mxu0 0
        %3348 = vmatpush1.bf16.msra.mxu0 0
        %3349 = vmatprep.subr.bf16.mxu0 0
        %3350 = vmatpush1.bf16.msra.mxu0 0
        %3351 = vmatprep.subr.bf16.mxu0 0
        %3352 = vmatpush1.bf16.msra.mxu0 0
        %3353 = vmatprep.subr.bf16.mxu0 0
        %3354 = vmatpush1.bf16.msra.mxu0 0
        %3355 = vmatprep.subr.bf16.mxu0 0
        %3356 = vmatpush1.bf16.msra.mxu0 0
        %3357 = vmatprep.subr.bf16.mxu0 0
        %3358 = vmatpush1.bf16.msra.mxu0 %v3341
        %3359 = vmatprep.subr.bf16.mxu0 0
        %3360 = vmatpush2.bf16.msra.mxu0 0
        %3361 = vmatprep.subr.bf16.mxu0 0
        %3362 = vmatpush2.bf16.msra.mxu0 0
        %3363 = vmatprep.subr.bf16.mxu0 0
        %3364 = vmatpush2.bf16.msra.mxu0 0
        %3365 = vmatprep.subr.bf16.mxu0 0
        %3366 = vmatpush2.bf16.msra.mxu0 0
        %3367 = vmatprep.subr.bf16.mxu0 0
        %3368 = vmatpush2.bf16.msra.mxu0 0
        %3369 = vmatprep.subr.bf16.mxu0 0
        %3370 = vmatpush2.bf16.msra.mxu0 0
        %3371 = vmatprep.subr.bf16.mxu0 0
        %3372 = vmatpush2.bf16.msra.mxu0 0
        %3373 = vmatprep.subr.bf16.mxu0 0
        %3374 = vmatpush2.bf16.msra.mxu0 0
        %3375 = vmatprep.mubr.bf16.mxu0 0
        %3376 = vmatmul.mubr.bf16.gmra.mxu0 %v3338
        %v3377 = vpop.f32.mrf.mxu0
        %v3378 = vadd.f32 0.0, %v3377
        %v3379 = vpop.f32.mrf.mxu0
        %v3380 = vpop.f32.mrf.mxu0
        %v3381 = vpop.f32.mrf.mxu0
        %3382 = vdwg.mxu0
        %3383 = vrot.lane.b32.xlu0 %v841, 96
        %v3384 = vpop.permute.xlu0 %3383
        %v3386 = vsel %vm1269, %v3140, 0
        %v3389 = vsel %vm1369, %v3384, 0
        %3391 = vmatprep.subr.bf16.mxu0 0
        %3392 = vmatpush1.bf16.msra.mxu0 0
        %3393 = vmatprep.subr.bf16.mxu0 0
        %3394 = vmatpush1.bf16.msra.mxu0 0
        %3395 = vmatprep.subr.bf16.mxu0 0
        %3396 = vmatpush1.bf16.msra.mxu0 0
        %3397 = vmatprep.subr.bf16.mxu0 0
        %3398 = vmatpush1.bf16.msra.mxu0 0
        %3399 = vmatprep.subr.bf16.mxu0 0
        %3400 = vmatpush1.bf16.msra.mxu0 0
        %3401 = vmatprep.subr.bf16.mxu0 0
        %3402 = vmatpush1.bf16.msra.mxu0 0
        %3403 = vmatprep.subr.bf16.mxu0 0
        %3404 = vmatpush1.bf16.msra.mxu0 0
        %3405 = vmatprep.subr.bf16.mxu0 0
        %3406 = vmatpush1.bf16.msra.mxu0 %v3389
        %3407 = vmatprep.subr.bf16.mxu0 0
        %3408 = vmatpush2.bf16.msra.mxu0 0
        %3409 = vmatprep.subr.bf16.mxu0 0
        %3410 = vmatpush2.bf16.msra.mxu0 0
        %3411 = vmatprep.subr.bf16.mxu0 0
        %3412 = vmatpush2.bf16.msra.mxu0 0
        %3413 = vmatprep.subr.bf16.mxu0 0
        %3414 = vmatpush2.bf16.msra.mxu0 0
        %3415 = vmatprep.subr.bf16.mxu0 0
        %3416 = vmatpush2.bf16.msra.mxu0 0
        %3417 = vmatprep.subr.bf16.mxu0 0
        %3418 = vmatpush2.bf16.msra.mxu0 0
        %3419 = vmatprep.subr.bf16.mxu0 0
        %3420 = vmatpush2.bf16.msra.mxu0 0
        %3421 = vmatprep.subr.bf16.mxu0 0
        %3422 = vmatpush2.bf16.msra.mxu0 0
        %3423 = vmatprep.mubr.bf16.mxu0 0
        %3424 = vmatmul.mubr.bf16.gmra.mxu0 %v3386
        %v3425 = vpop.f32.mrf.mxu0
        %v3426 = vadd.f32 0.0, %v3425
        %v3427 = vpop.f32.mrf.mxu0
        %v3428 = vpop.f32.mrf.mxu0
        %v3429 = vpop.f32.mrf.mxu0
        %3430 = vdwg.mxu0
        %3431 = vrot.lane.b32.xlu0 %v842, 96
        %v3432 = vpop.permute.xlu0 %3431
        %v3434 = vsel %vm1269, %v3141, 0
        %v3437 = vsel %vm1369, %v3432, 0
        %3439 = vmatprep.subr.bf16.mxu0 0
        %3440 = vmatpush1.bf16.msra.mxu0 0
        %3441 = vmatprep.subr.bf16.mxu0 0
        %3442 = vmatpush1.bf16.msra.mxu0 0
        %3443 = vmatprep.subr.bf16.mxu0 0
        %3444 = vmatpush1.bf16.msra.mxu0 0
        %3445 = vmatprep.subr.bf16.mxu0 0
        %3446 = vmatpush1.bf16.msra.mxu0 0
        %3447 = vmatprep.subr.bf16.mxu0 0
        %3448 = vmatpush1.bf16.msra.mxu0 0
        %3449 = vmatprep.subr.bf16.mxu0 0
        %3450 = vmatpush1.bf16.msra.mxu0 0
        %3451 = vmatprep.subr.bf16.mxu0 0
        %3452 = vmatpush1.bf16.msra.mxu0 0
        %3453 = vmatprep.subr.bf16.mxu0 0
        %3454 = vmatpush1.bf16.msra.mxu0 %v3437
        %3455 = vmatprep.subr.bf16.mxu0 0
        %3456 = vmatpush2.bf16.msra.mxu0 0
        %3457 = vmatprep.subr.bf16.mxu0 0
        %3458 = vmatpush2.bf16.msra.mxu0 0
        %3459 = vmatprep.subr.bf16.mxu0 0
        %3460 = vmatpush2.bf16.msra.mxu0 0
        %3461 = vmatprep.subr.bf16.mxu0 0
        %3462 = vmatpush2.bf16.msra.mxu0 0
        %3463 = vmatprep.subr.bf16.mxu0 0
        %3464 = vmatpush2.bf16.msra.mxu0 0
        %3465 = vmatprep.subr.bf16.mxu0 0
        %3466 = vmatpush2.bf16.msra.mxu0 0
        %3467 = vmatprep.subr.bf16.mxu0 0
        %3468 = vmatpush2.bf16.msra.mxu0 0
        %3469 = vmatprep.subr.bf16.mxu0 0
        %3470 = vmatpush2.bf16.msra.mxu0 0
        %3471 = vmatprep.mubr.bf16.mxu0 0
        %3472 = vmatmul.mubr.bf16.gmra.mxu0 %v3434
        %v3473 = vpop.f32.mrf.mxu0
        %v3474 = vadd.f32 0.0, %v3473
        %v3475 = vpop.f32.mrf.mxu0
        %v3476 = vpop.f32.mrf.mxu0
        %v3477 = vpop.f32.mrf.mxu0
        %3478 = vdwg.mxu0
        %3479 = vrot.lane.b32.xlu0 %v843, 96
        %v3480 = vpop.permute.xlu0 %3479
        %v3482 = vsel %vm1269, %v3142, 0
        %v3485 = vsel %vm1369, %v3480, 0
        %3487 = vmatprep.subr.bf16.mxu0 0
        %3488 = vmatpush1.bf16.msra.mxu0 0
        %3489 = vmatprep.subr.bf16.mxu0 0
        %3490 = vmatpush1.bf16.msra.mxu0 0
        %3491 = vmatprep.subr.bf16.mxu0 0
        %3492 = vmatpush1.bf16.msra.mxu0 0
        %3493 = vmatprep.subr.bf16.mxu0 0
        %3494 = vmatpush1.bf16.msra.mxu0 0
        %3495 = vmatprep.subr.bf16.mxu0 0
        %3496 = vmatpush1.bf16.msra.mxu0 0
        %3497 = vmatprep.subr.bf16.mxu0 0
        %3498 = vmatpush1.bf16.msra.mxu0 0
        %3499 = vmatprep.subr.bf16.mxu0 0
        %3500 = vmatpush1.bf16.msra.mxu0 0
        %3501 = vmatprep.subr.bf16.mxu0 0
        %3502 = vmatpush1.bf16.msra.mxu0 %v3485
        %3503 = vmatprep.subr.bf16.mxu0 0
        %3504 = vmatpush2.bf16.msra.mxu0 0
        %3505 = vmatprep.subr.bf16.mxu0 0
        %3506 = vmatpush2.bf16.msra.mxu0 0
        %3507 = vmatprep.subr.bf16.mxu0 0
        %3508 = vmatpush2.bf16.msra.mxu0 0
        %3509 = vmatprep.subr.bf16.mxu0 0
        %3510 = vmatpush2.bf16.msra.mxu0 0
        %3511 = vmatprep.subr.bf16.mxu0 0
        %3512 = vmatpush2.bf16.msra.mxu0 0
        %3513 = vmatprep.subr.bf16.mxu0 0
        %3514 = vmatpush2.bf16.msra.mxu0 0
        %3515 = vmatprep.subr.bf16.mxu0 0
        %3516 = vmatpush2.bf16.msra.mxu0 0
        %3517 = vmatprep.subr.bf16.mxu0 0
        %3518 = vmatpush2.bf16.msra.mxu0 0
        %3519 = vmatprep.mubr.bf16.mxu0 0
        %3520 = vmatmul.mubr.bf16.gmra.mxu0 %v3482
        %v3521 = vpop.f32.mrf.mxu0
        %v3522 = vadd.f32 0.0, %v3521
        %v3523 = vpop.f32.mrf.mxu0
        %v3524 = vpop.f32.mrf.mxu0
        %v3525 = vpop.f32.mrf.mxu0
        %3526 = vdwg.mxu0
        %3527 = vrot.lane.b32.xlu0 %v796, 80
        %v3528 = vpop.permute.xlu0 %3527
        %3529 = vrot.lane.b32.xlu0 %v816, 80
        %v3530 = vpop.permute.xlu0 %3529
        %v3532 = vsel %vm852, %v3528, 0
        %v3535 = vsel %vm852, %v3530, 0
        %3537 = vmatprep.subr.bf16.mxu0 0
        %3538 = vmatpush1.bf16.xpose.msra.mxu0 0
        %3539 = vmatprep.subr.bf16.mxu0 0
        %3540 = vmatpush1.bf16.xpose.msra.mxu0 0
        %3541 = vmatprep.subr.bf16.mxu0 0
        %3542 = vmatpush1.bf16.xpose.msra.mxu0 0
        %3543 = vmatprep.subr.bf16.mxu0 0
        %3544 = vmatpush1.bf16.xpose.msra.mxu0 0
        %3545 = vmatprep.subr.bf16.mxu0 0
        %3546 = vmatpush1.bf16.xpose.msra.mxu0 0
        %3547 = vmatprep.subr.bf16.mxu0 0
        %3548 = vmatpush1.bf16.xpose.msra.mxu0 0
        %3549 = vmatprep.subr.bf16.mxu0 0
        %3550 = vmatpush1.bf16.xpose.msra.mxu0 0
        %3551 = vmatprep.subr.bf16.mxu0 0
        %3552 = vmatpush1.bf16.xpose.msra.mxu0 %v3535
        %3553 = vmatprep.subr.bf16.mxu0 0
        %3554 = vmatpush2.bf16.xpose.msra.mxu0 0
        %3555 = vmatprep.subr.bf16.mxu0 0
        %3556 = vmatpush2.bf16.xpose.msra.mxu0 0
        %3557 = vmatprep.subr.bf16.mxu0 0
        %3558 = vmatpush2.bf16.xpose.msra.mxu0 0
        %3559 = vmatprep.subr.bf16.mxu0 0
        %3560 = vmatpush2.bf16.xpose.msra.mxu0 0
        %3561 = vmatprep.subr.bf16.mxu0 0
        %3562 = vmatpush2.bf16.xpose.msra.mxu0 0
        %3563 = vmatprep.subr.bf16.mxu0 0
        %3564 = vmatpush2.bf16.xpose.msra.mxu0 0
        %3565 = vmatprep.subr.bf16.mxu0 0
        %3566 = vmatpush2.bf16.xpose.msra.mxu0 0
        %3567 = vmatprep.subr.bf16.mxu0 0
        %3568 = vmatpush2.bf16.xpose.msra.mxu0 0
        %3569 = vmatprep.mubr.bf16.mxu0 0
        %3570 = vmatmul.mubr.bf16.gmra.mxu0 %v3532
        %v3571 = vpop.f32.mrf.mxu0
        %v3572 = vadd.f32 0.0, %v3571
        %v3573 = vpop.f32.mrf.mxu0
        %v3574 = vpop.f32.mrf.mxu0
        %v3575 = vpop.f32.mrf.mxu0
        %3576 = vdwg.mxu0
        %3577 = vrot.lane.b32.xlu0 %v797, 80
        %v3578 = vpop.permute.xlu0 %3577
        %3579 = vrot.lane.b32.xlu0 %v817, 80
        %v3580 = vpop.permute.xlu0 %3579
        %v3582 = vsel %vm852, %v3578, 0
        %v3585 = vsel %vm852, %v3580, 0
        %3587 = vmatprep.subr.bf16.mxu0 0
        %3588 = vmatpush1.bf16.xpose.msra.mxu0 0
        %3589 = vmatprep.subr.bf16.mxu0 0
        %3590 = vmatpush1.bf16.xpose.msra.mxu0 0
        %3591 = vmatprep.subr.bf16.mxu0 0
        %3592 = vmatpush1.bf16.xpose.msra.mxu0 0
        %3593 = vmatprep.subr.bf16.mxu0 0
        %3594 = vmatpush1.bf16.xpose.msra.mxu0 0
        %3595 = vmatprep.subr.bf16.mxu0 0
        %3596 = vmatpush1.bf16.xpose.msra.mxu0 0
        %3597 = vmatprep.subr.bf16.mxu0 0
        %3598 = vmatpush1.bf16.xpose.msra.mxu0 0
        %3599 = vmatprep.subr.bf16.mxu0 0
        %3600 = vmatpush1.bf16.xpose.msra.mxu0 0
        %3601 = vmatprep.subr.bf16.mxu0 0
        %3602 = vmatpush1.bf16.xpose.msra.mxu0 %v3585
        %3603 = vmatprep.subr.bf16.mxu0 0
        %3604 = vmatpush2.bf16.xpose.msra.mxu0 0
        %3605 = vmatprep.subr.bf16.mxu0 0
        %3606 = vmatpush2.bf16.xpose.msra.mxu0 0
        %3607 = vmatprep.subr.bf16.mxu0 0
        %3608 = vmatpush2.bf16.xpose.msra.mxu0 0
        %3609 = vmatprep.subr.bf16.mxu0 0
        %3610 = vmatpush2.bf16.xpose.msra.mxu0 0
        %3611 = vmatprep.subr.bf16.mxu0 0
        %3612 = vmatpush2.bf16.xpose.msra.mxu0 0
        %3613 = vmatprep.subr.bf16.mxu0 0
        %3614 = vmatpush2.bf16.xpose.msra.mxu0 0
        %3615 = vmatprep.subr.bf16.mxu0 0
        %3616 = vmatpush2.bf16.xpose.msra.mxu0 0
        %3617 = vmatprep.subr.bf16.mxu0 0
        %3618 = vmatpush2.bf16.xpose.msra.mxu0 0
        %3619 = vmatprep.mubr.bf16.mxu0 0
        %3620 = vmatmul.mubr.bf16.gmra.mxu0 %v3582
        %v3621 = vpop.f32.mrf.mxu0
        %v3622 = vadd.f32 0.0, %v3621
        %v3623 = vpop.f32.mrf.mxu0
        %v3624 = vpop.f32.mrf.mxu0
        %v3625 = vpop.f32.mrf.mxu0
        %3626 = vdwg.mxu0
        %3627 = vrot.lane.b32.xlu0 %v798, 80
        %v3628 = vpop.permute.xlu0 %3627
        %3629 = vrot.lane.b32.xlu0 %v818, 80
        %v3630 = vpop.permute.xlu0 %3629
        %v3632 = vsel %vm852, %v3628, 0
        %v3635 = vsel %vm852, %v3630, 0
        %3637 = vmatprep.subr.bf16.mxu0 0
        %3638 = vmatpush1.bf16.xpose.msra.mxu0 0
        %3639 = vmatprep.subr.bf16.mxu0 0
        %3640 = vmatpush1.bf16.xpose.msra.mxu0 0
        %3641 = vmatprep.subr.bf16.mxu0 0
        %3642 = vmatpush1.bf16.xpose.msra.mxu0 0
        %3643 = vmatprep.subr.bf16.mxu0 0
        %3644 = vmatpush1.bf16.xpose.msra.mxu0 0
        %3645 = vmatprep.subr.bf16.mxu0 0
        %3646 = vmatpush1.bf16.xpose.msra.mxu0 0
        %3647 = vmatprep.subr.bf16.mxu0 0
        %3648 = vmatpush1.bf16.xpose.msra.mxu0 0
        %3649 = vmatprep.subr.bf16.mxu0 0
        %3650 = vmatpush1.bf16.xpose.msra.mxu0 0
        %3651 = vmatprep.subr.bf16.mxu0 0
        %3652 = vmatpush1.bf16.xpose.msra.mxu0 %v3635
        %3653 = vmatprep.subr.bf16.mxu0 0
        %3654 = vmatpush2.bf16.xpose.msra.mxu0 0
        %3655 = vmatprep.subr.bf16.mxu0 0
        %3656 = vmatpush2.bf16.xpose.msra.mxu0 0
        %3657 = vmatprep.subr.bf16.mxu0 0
        %3658 = vmatpush2.bf16.xpose.msra.mxu0 0
        %3659 = vmatprep.subr.bf16.mxu0 0
        %3660 = vmatpush2.bf16.xpose.msra.mxu0 0
        %3661 = vmatprep.subr.bf16.mxu0 0
        %3662 = vmatpush2.bf16.xpose.msra.mxu0 0
        %3663 = vmatprep.subr.bf16.mxu0 0
        %3664 = vmatpush2.bf16.xpose.msra.mxu0 0
        %3665 = vmatprep.subr.bf16.mxu0 0
        %3666 = vmatpush2.bf16.xpose.msra.mxu0 0
        %3667 = vmatprep.subr.bf16.mxu0 0
        %3668 = vmatpush2.bf16.xpose.msra.mxu0 0
        %3669 = vmatprep.mubr.bf16.mxu0 0
        %3670 = vmatmul.mubr.bf16.gmra.mxu0 %v3632
        %v3671 = vpop.f32.mrf.mxu0
        %v3672 = vadd.f32 0.0, %v3671
        %v3673 = vpop.f32.mrf.mxu0
        %v3674 = vpop.f32.mrf.mxu0
        %v3675 = vpop.f32.mrf.mxu0
        %3676 = vdwg.mxu0
        %3677 = vrot.lane.b32.xlu0 %v799, 80
        %v3678 = vpop.permute.xlu0 %3677
        %3679 = vrot.lane.b32.xlu0 %v819, 80
        %v3680 = vpop.permute.xlu0 %3679
        %v3682 = vsel %vm852, %v3678, 0
        %v3685 = vsel %vm852, %v3680, 0
        %3687 = vmatprep.subr.bf16.mxu0 0
        %3688 = vmatpush1.bf16.xpose.msra.mxu0 0
        %3689 = vmatprep.subr.bf16.mxu0 0
        %3690 = vmatpush1.bf16.xpose.msra.mxu0 0
        %3691 = vmatprep.subr.bf16.mxu0 0
        %3692 = vmatpush1.bf16.xpose.msra.mxu0 0
        %3693 = vmatprep.subr.bf16.mxu0 0
        %3694 = vmatpush1.bf16.xpose.msra.mxu0 0
        %3695 = vmatprep.subr.bf16.mxu0 0
        %3696 = vmatpush1.bf16.xpose.msra.mxu0 0
        %3697 = vmatprep.subr.bf16.mxu0 0
        %3698 = vmatpush1.bf16.xpose.msra.mxu0 0
        %3699 = vmatprep.subr.bf16.mxu0 0
        %3700 = vmatpush1.bf16.xpose.msra.mxu0 0
        %3701 = vmatprep.subr.bf16.mxu0 0
        %3702 = vmatpush1.bf16.xpose.msra.mxu0 %v3685
        %3703 = vmatprep.subr.bf16.mxu0 0
        %3704 = vmatpush2.bf16.xpose.msra.mxu0 0
        %3705 = vmatprep.subr.bf16.mxu0 0
        %3706 = vmatpush2.bf16.xpose.msra.mxu0 0
        %3707 = vmatprep.subr.bf16.mxu0 0
        %3708 = vmatpush2.bf16.xpose.msra.mxu0 0
        %3709 = vmatprep.subr.bf16.mxu0 0
        %3710 = vmatpush2.bf16.xpose.msra.mxu0 0
        %3711 = vmatprep.subr.bf16.mxu0 0
        %3712 = vmatpush2.bf16.xpose.msra.mxu0 0
        %3713 = vmatprep.subr.bf16.mxu0 0
        %3714 = vmatpush2.bf16.xpose.msra.mxu0 0
        %3715 = vmatprep.subr.bf16.mxu0 0
        %3716 = vmatpush2.bf16.xpose.msra.mxu0 0
        %3717 = vmatprep.subr.bf16.mxu0 0
        %3718 = vmatpush2.bf16.xpose.msra.mxu0 0
        %3719 = vmatprep.mubr.bf16.mxu0 0
        %3720 = vmatmul.mubr.bf16.gmra.mxu0 %v3682
        %v3721 = vpop.f32.mrf.mxu0
        %v3722 = vadd.f32 0.0, %v3721
        %v3723 = vpop.f32.mrf.mxu0
        %v3724 = vpop.f32.mrf.mxu0
        %v3725 = vpop.f32.mrf.mxu0
        %3726 = vdwg.mxu0
        %3727 = vrot.lane.b32.xlu0 %v800, 80
        %v3728 = vpop.permute.xlu0 %3727
        %3729 = vrot.lane.b32.xlu0 %v820, 80
        %v3730 = vpop.permute.xlu0 %3729
        %v3732 = vsel %vm852, %v3728, 0
        %v3735 = vsel %vm852, %v3730, 0
        %3737 = vmatprep.subr.bf16.mxu0 0
        %3738 = vmatpush1.bf16.xpose.msra.mxu0 0
        %3739 = vmatprep.subr.bf16.mxu0 0
        %3740 = vmatpush1.bf16.xpose.msra.mxu0 0
        %3741 = vmatprep.subr.bf16.mxu0 0
        %3742 = vmatpush1.bf16.xpose.msra.mxu0 0
        %3743 = vmatprep.subr.bf16.mxu0 0
        %3744 = vmatpush1.bf16.xpose.msra.mxu0 0
        %3745 = vmatprep.subr.bf16.mxu0 0
        %3746 = vmatpush1.bf16.xpose.msra.mxu0 0
        %3747 = vmatprep.subr.bf16.mxu0 0
        %3748 = vmatpush1.bf16.xpose.msra.mxu0 0
        %3749 = vmatprep.subr.bf16.mxu0 0
        %3750 = vmatpush1.bf16.xpose.msra.mxu0 0
        %3751 = vmatprep.subr.bf16.mxu0 0
        %3752 = vmatpush1.bf16.xpose.msra.mxu0 %v3735
        %3753 = vmatprep.subr.bf16.mxu0 0
        %3754 = vmatpush2.bf16.xpose.msra.mxu0 0
        %3755 = vmatprep.subr.bf16.mxu0 0
        %3756 = vmatpush2.bf16.xpose.msra.mxu0 0
        %3757 = vmatprep.subr.bf16.mxu0 0
        %3758 = vmatpush2.bf16.xpose.msra.mxu0 0
        %3759 = vmatprep.subr.bf16.mxu0 0
        %3760 = vmatpush2.bf16.xpose.msra.mxu0 0
        %3761 = vmatprep.subr.bf16.mxu0 0
        %3762 = vmatpush2.bf16.xpose.msra.mxu0 0
        %3763 = vmatprep.subr.bf16.mxu0 0
        %3764 = vmatpush2.bf16.xpose.msra.mxu0 0
        %3765 = vmatprep.subr.bf16.mxu0 0
        %3766 = vmatpush2.bf16.xpose.msra.mxu0 0
        %3767 = vmatprep.subr.bf16.mxu0 0
        %3768 = vmatpush2.bf16.xpose.msra.mxu0 0
        %3769 = vmatprep.mubr.bf16.mxu0 0
        %3770 = vmatmul.mubr.bf16.gmra.mxu0 %v3732
        %v3771 = vpop.f32.mrf.mxu0
        %v3772 = vadd.f32 0.0, %v3771
        %v3773 = vpop.f32.mrf.mxu0
        %v3774 = vpop.f32.mrf.mxu0
        %v3775 = vpop.f32.mrf.mxu0
        %3776 = vdwg.mxu0
        %3777 = vrot.lane.b32.xlu0 %v801, 80
        %v3778 = vpop.permute.xlu0 %3777
        %3779 = vrot.lane.b32.xlu0 %v821, 80
        %v3780 = vpop.permute.xlu0 %3779
        %v3782 = vsel %vm852, %v3778, 0
        %v3785 = vsel %vm852, %v3780, 0
        %3787 = vmatprep.subr.bf16.mxu0 0
        %3788 = vmatpush1.bf16.xpose.msra.mxu0 0
        %3789 = vmatprep.subr.bf16.mxu0 0
        %3790 = vmatpush1.bf16.xpose.msra.mxu0 0
        %3791 = vmatprep.subr.bf16.mxu0 0
        %3792 = vmatpush1.bf16.xpose.msra.mxu0 0
        %3793 = vmatprep.subr.bf16.mxu0 0
        %3794 = vmatpush1.bf16.xpose.msra.mxu0 0
        %3795 = vmatprep.subr.bf16.mxu0 0
        %3796 = vmatpush1.bf16.xpose.msra.mxu0 0
        %3797 = vmatprep.subr.bf16.mxu0 0
        %3798 = vmatpush1.bf16.xpose.msra.mxu0 0
        %3799 = vmatprep.subr.bf16.mxu0 0
        %3800 = vmatpush1.bf16.xpose.msra.mxu0 0
        %3801 = vmatprep.subr.bf16.mxu0 0
        %3802 = vmatpush1.bf16.xpose.msra.mxu0 %v3785
        %3803 = vmatprep.subr.bf16.mxu0 0
        %3804 = vmatpush2.bf16.xpose.msra.mxu0 0
        %3805 = vmatprep.subr.bf16.mxu0 0
        %3806 = vmatpush2.bf16.xpose.msra.mxu0 0
        %3807 = vmatprep.subr.bf16.mxu0 0
        %3808 = vmatpush2.bf16.xpose.msra.mxu0 0
        %3809 = vmatprep.subr.bf16.mxu0 0
        %3810 = vmatpush2.bf16.xpose.msra.mxu0 0
        %3811 = vmatprep.subr.bf16.mxu0 0
        %3812 = vmatpush2.bf16.xpose.msra.mxu0 0
        %3813 = vmatprep.subr.bf16.mxu0 0
        %3814 = vmatpush2.bf16.xpose.msra.mxu0 0
        %3815 = vmatprep.subr.bf16.mxu0 0
        %3816 = vmatpush2.bf16.xpose.msra.mxu0 0
        %3817 = vmatprep.subr.bf16.mxu0 0
        %3818 = vmatpush2.bf16.xpose.msra.mxu0 0
        %3819 = vmatprep.mubr.bf16.mxu0 0
        %3820 = vmatmul.mubr.bf16.gmra.mxu0 %v3782
        %v3821 = vpop.f32.mrf.mxu0
        %v3822 = vadd.f32 0.0, %v3821
        %v3823 = vpop.f32.mrf.mxu0
        %v3824 = vpop.f32.mrf.mxu0
        %v3825 = vpop.f32.mrf.mxu0
        %3826 = vdwg.mxu0
        %3827 = vrot.lane.b32.xlu0 %v802, 80
        %v3828 = vpop.permute.xlu0 %3827
        %3829 = vrot.lane.b32.xlu0 %v822, 80
        %v3830 = vpop.permute.xlu0 %3829
        %v3832 = vsel %vm852, %v3828, 0
        %v3835 = vsel %vm852, %v3830, 0
        %3837 = vmatprep.subr.bf16.mxu0 0
        %3838 = vmatpush1.bf16.xpose.msra.mxu0 0
        %3839 = vmatprep.subr.bf16.mxu0 0
        %3840 = vmatpush1.bf16.xpose.msra.mxu0 0
        %3841 = vmatprep.subr.bf16.mxu0 0
        %3842 = vmatpush1.bf16.xpose.msra.mxu0 0
        %3843 = vmatprep.subr.bf16.mxu0 0
        %3844 = vmatpush1.bf16.xpose.msra.mxu0 0
        %3845 = vmatprep.subr.bf16.mxu0 0
        %3846 = vmatpush1.bf16.xpose.msra.mxu0 0
        %3847 = vmatprep.subr.bf16.mxu0 0
        %3848 = vmatpush1.bf16.xpose.msra.mxu0 0
        %3849 = vmatprep.subr.bf16.mxu0 0
        %3850 = vmatpush1.bf16.xpose.msra.mxu0 0
        %3851 = vmatprep.subr.bf16.mxu0 0
        %3852 = vmatpush1.bf16.xpose.msra.mxu0 %v3835
        %3853 = vmatprep.subr.bf16.mxu0 0
        %3854 = vmatpush2.bf16.xpose.msra.mxu0 0
        %3855 = vmatprep.subr.bf16.mxu0 0
        %3856 = vmatpush2.bf16.xpose.msra.mxu0 0
        %3857 = vmatprep.subr.bf16.mxu0 0
        %3858 = vmatpush2.bf16.xpose.msra.mxu0 0
        %3859 = vmatprep.subr.bf16.mxu0 0
        %3860 = vmatpush2.bf16.xpose.msra.mxu0 0
        %3861 = vmatprep.subr.bf16.mxu0 0
        %3862 = vmatpush2.bf16.xpose.msra.mxu0 0
        %3863 = vmatprep.subr.bf16.mxu0 0
        %3864 = vmatpush2.bf16.xpose.msra.mxu0 0
        %3865 = vmatprep.subr.bf16.mxu0 0
        %3866 = vmatpush2.bf16.xpose.msra.mxu0 0
        %3867 = vmatprep.subr.bf16.mxu0 0
        %3868 = vmatpush2.bf16.xpose.msra.mxu0 0
        %3869 = vmatprep.mubr.bf16.mxu0 0
        %3870 = vmatmul.mubr.bf16.gmra.mxu0 %v3832
        %v3871 = vpop.f32.mrf.mxu0
        %v3872 = vadd.f32 0.0, %v3871
        %v3873 = vpop.f32.mrf.mxu0
        %v3874 = vpop.f32.mrf.mxu0
        %v3875 = vpop.f32.mrf.mxu0
        %3876 = vdwg.mxu0
        %3877 = vrot.lane.b32.xlu0 %v803, 80
        %v3878 = vpop.permute.xlu0 %3877
        %3879 = vrot.lane.b32.xlu0 %v823, 80
        %v3880 = vpop.permute.xlu0 %3879
        %v3882 = vsel %vm852, %v3878, 0
        %v3885 = vsel %vm852, %v3880, 0
        %3887 = vmatprep.subr.bf16.mxu0 0
        %3888 = vmatpush1.bf16.xpose.msra.mxu0 0
        %3889 = vmatprep.subr.bf16.mxu0 0
        %3890 = vmatpush1.bf16.xpose.msra.mxu0 0
        %3891 = vmatprep.subr.bf16.mxu0 0
        %3892 = vmatpush1.bf16.xpose.msra.mxu0 0
        %3893 = vmatprep.subr.bf16.mxu0 0
        %3894 = vmatpush1.bf16.xpose.msra.mxu0 0
        %3895 = vmatprep.subr.bf16.mxu0 0
        %3896 = vmatpush1.bf16.xpose.msra.mxu0 0
        %3897 = vmatprep.subr.bf16.mxu0 0
        %3898 = vmatpush1.bf16.xpose.msra.mxu0 0
        %3899 = vmatprep.subr.bf16.mxu0 0
        %3900 = vmatpush1.bf16.xpose.msra.mxu0 0
        %3901 = vmatprep.subr.bf16.mxu0 0
        %3902 = vmatpush1.bf16.xpose.msra.mxu0 %v3885
        %3903 = vmatprep.subr.bf16.mxu0 0
        %3904 = vmatpush2.bf16.xpose.msra.mxu0 0
        %3905 = vmatprep.subr.bf16.mxu0 0
        %3906 = vmatpush2.bf16.xpose.msra.mxu0 0
        %3907 = vmatprep.subr.bf16.mxu0 0
        %3908 = vmatpush2.bf16.xpose.msra.mxu0 0
        %3909 = vmatprep.subr.bf16.mxu0 0
        %3910 = vmatpush2.bf16.xpose.msra.mxu0 0
        %3911 = vmatprep.subr.bf16.mxu0 0
        %3912 = vmatpush2.bf16.xpose.msra.mxu0 0
        %3913 = vmatprep.subr.bf16.mxu0 0
        %3914 = vmatpush2.bf16.xpose.msra.mxu0 0
        %3915 = vmatprep.subr.bf16.mxu0 0
        %3916 = vmatpush2.bf16.xpose.msra.mxu0 0
        %3917 = vmatprep.subr.bf16.mxu0 0
        %3918 = vmatpush2.bf16.xpose.msra.mxu0 0
        %3919 = vmatprep.mubr.bf16.mxu0 0
        %3920 = vmatmul.mubr.bf16.gmra.mxu0 %v3882
        %v3921 = vpop.f32.mrf.mxu0
        %v3922 = vadd.f32 0.0, %v3921
        %v3923 = vpop.f32.mrf.mxu0
        %v3924 = vpop.f32.mrf.mxu0
        %v3925 = vpop.f32.mrf.mxu0
        %3926 = vdwg.mxu0
        %v3927 = vmul.f32 %v3572, 0.25
        %v3928 = vmul.f32 %v3622, 0.25
        %v3929 = vmul.f32 %v3672, 0.25
        %v3930 = vmul.f32 %v3722, 0.25
        %v3931 = vmul.f32 %v3772, 0.25
        %v3932 = vmul.f32 %v3822, 0.25
        %v3933 = vmul.f32 %v3872, 0.25
        %v3934 = vmul.f32 %v3922, 0.25
        %v3935 = vadd.f32 %v3927, %v1232
        %v3936 = vadd.f32 %v3928, %v1236
        %v3937 = vadd.f32 %v3929, %v1240
        %v3938 = vadd.f32 %v3930, %v1244
        %v3939 = vadd.f32 %v3931, %v1248
        %v3940 = vadd.f32 %v3932, %v1252
        %v3941 = vadd.f32 %v3933, %v1256
        %v3942 = vadd.f32 %v3934, %v1260
        %v3943 = vsel %vm1269, %v3935, -inf
        %3944 = vmax.xlane.f32.xlu0 %v3943
        %v3945 = vpop.xlane.xlu0 %3944
        %v3946 = vsel %vm1269, %v3936, -inf
        %3947 = vmax.xlane.f32.xlu0 %v3946
        %v3948 = vpop.xlane.xlu0 %3947
        %v3949 = vsel %vm1269, %v3937, -inf
        %3950 = vmax.xlane.f32.xlu0 %v3949
        %v3951 = vpop.xlane.xlu0 %3950
        %v3952 = vsel %vm1269, %v3938, -inf
        %3953 = vmax.xlane.f32.xlu0 %v3952
        %v3954 = vpop.xlane.xlu0 %3953
        %v3955 = vsel %vm1269, %v3939, -inf
        %3956 = vmax.xlane.f32.xlu0 %v3955
        %v3957 = vpop.xlane.xlu0 %3956
        %v3958 = vsel %vm1269, %v3940, -inf
        %3959 = vmax.xlane.f32.xlu0 %v3958
        %v3960 = vpop.xlane.xlu0 %3959
        %v3961 = vsel %vm1269, %v3941, -inf
        %3962 = vmax.xlane.f32.xlu0 %v3961
        %v3963 = vpop.xlane.xlu0 %3962
        %v3964 = vsel %vm1269, %v3942, -inf
        %3965 = vmax.xlane.f32.xlu0 %v3964
        %v3966 = vpop.xlane.xlu0 %3965
        %v3967 = vsub.f32 %v3935, %v3945
        %v3968 = vsub.f32 %v3936, %v3948
        %v3969 = vsub.f32 %v3937, %v3951
        %v3970 = vsub.f32 %v3938, %v3954
        %v3971 = vsub.f32 %v3939, %v3957
        %v3972 = vsub.f32 %v3940, %v3960
        %v3973 = vsub.f32 %v3941, %v3963
        %v3974 = vsub.f32 %v3942, %v3966
        %v3975 = vmul.f32 %v3967, 1.442695
        %v3976 = vpow.pop %v3975
        %v3977 = vmul.f32 %v3968, 1.442695
        %v3978 = vpow.pop %v3977
        %v3979 = vmul.f32 %v3969, 1.442695
        %v3980 = vpow.pop %v3979
        %v3981 = vmul.f32 %v3970, 1.442695
        %v3982 = vpow.pop %v3981
        %v3983 = vmul.f32 %v3971, 1.442695
        %v3984 = vpow.pop %v3983
        %v3985 = vmul.f32 %v3972, 1.442695
        %v3986 = vpow.pop %v3985
        %v3987 = vmul.f32 %v3973, 1.442695
        %v3988 = vpow.pop %v3987
        %v3989 = vmul.f32 %v3974, 1.442695
        %v3990 = vpow.pop %v3989
        %v3991 = vsel %vm1269, %v3976, 0.0
        %3992 = vadd.xlane.f32.xlu0 %v3991
        %v3993 = vpop.xlane.xlu0 %3992
        %v3994 = vsel %vm1269, %v3978, 0.0
        %3995 = vadd.xlane.f32.xlu0 %v3994
        %v3996 = vpop.xlane.xlu0 %3995
        %v3997 = vsel %vm1269, %v3980, 0.0
        %3998 = vadd.xlane.f32.xlu0 %v3997
        %v3999 = vpop.xlane.xlu0 %3998
        %v4000 = vsel %vm1269, %v3982, 0.0
        %4001 = vadd.xlane.f32.xlu0 %v4000
        %v4002 = vpop.xlane.xlu0 %4001
        %v4003 = vsel %vm1269, %v3984, 0.0
        %4004 = vadd.xlane.f32.xlu0 %v4003
        %v4005 = vpop.xlane.xlu0 %4004
        %v4006 = vsel %vm1269, %v3986, 0.0
        %4007 = vadd.xlane.f32.xlu0 %v4006
        %v4008 = vpop.xlane.xlu0 %4007
        %v4009 = vsel %vm1269, %v3988, 0.0
        %4010 = vadd.xlane.f32.xlu0 %v4009
        %v4011 = vpop.xlane.xlu0 %4010
        %v4012 = vsel %vm1269, %v3990, 0.0
        %4013 = vadd.xlane.f32.xlu0 %v4012
        %v4014 = vpop.xlane.xlu0 %4013
        %v4015 = vrcp.pop %v3993
        %v4016 = vrcp.pop %v3996
        %v4017 = vrcp.pop %v3999
        %v4018 = vrcp.pop %v4002
        %v4019 = vrcp.pop %v4005
        %v4020 = vrcp.pop %v4008
        %v4021 = vrcp.pop %v4011
        %v4022 = vrcp.pop %v4014
        %v4023 = vmul.f32 %v3976, %v4015
        %v4024 = vmul.f32 %v3978, %v4016
        %v4025 = vmul.f32 %v3980, %v4017
        %v4026 = vmul.f32 %v3982, %v4018
        %v4027 = vmul.f32 %v3984, %v4019
        %v4028 = vmul.f32 %v3986, %v4020
        %v4029 = vmul.f32 %v3988, %v4021
        %v4030 = vmul.f32 %v3990, %v4022
        %v4031 = vpack.c.bf16 %v4023, %v4023
        %v4032 = vpack.c.bf16 %v4024, %v4024
        %v4033 = vpack.c.bf16 %v4025, %v4025
        %v4034 = vpack.c.bf16 %v4026, %v4026
        %v4035 = vpack.c.bf16 %v4027, %v4027
        %v4036 = vpack.c.bf16 %v4028, %v4028
        %v4037 = vpack.c.bf16 %v4029, %v4029
        %v4038 = vpack.c.bf16 %v4030, %v4030
        %4039 = vrot.lane.b32.xlu0 %v836, 80
        %v4040 = vpop.permute.xlu0 %4039
        %v4042 = vsel %vm1269, %v4031, 0
        %v4045 = vsel %vm1369, %v4040, 0
        %4047 = vmatprep.subr.bf16.mxu0 0
        %4048 = vmatpush1.bf16.msra.mxu0 0
        %4049 = vmatprep.subr.bf16.mxu0 0
        %4050 = vmatpush1.bf16.msra.mxu0 0
        %4051 = vmatprep.subr.bf16.mxu0 0
        %4052 = vmatpush1.bf16.msra.mxu0 0
        %4053 = vmatprep.subr.bf16.mxu0 0
        %4054 = vmatpush1.bf16.msra.mxu0 0
        %4055 = vmatprep.subr.bf16.mxu0 0
        %4056 = vmatpush1.bf16.msra.mxu0 0
        %4057 = vmatprep.subr.bf16.mxu0 0
        %4058 = vmatpush1.bf16.msra.mxu0 0
        %4059 = vmatprep.subr.bf16.mxu0 0
        %4060 = vmatpush1.bf16.msra.mxu0 0
        %4061 = vmatprep.subr.bf16.mxu0 0
        %4062 = vmatpush1.bf16.msra.mxu0 %v4045
        %4063 = vmatprep.subr.bf16.mxu0 0
        %4064 = vmatpush2.bf16.msra.mxu0 0
        %4065 = vmatprep.subr.bf16.mxu0 0
        %4066 = vmatpush2.bf16.msra.mxu0 0
        %4067 = vmatprep.subr.bf16.mxu0 0
        %4068 = vmatpush2.bf16.msra.mxu0 0
        %4069 = vmatprep.subr.bf16.mxu0 0
        %4070 = vmatpush2.bf16.msra.mxu0 0
        %4071 = vmatprep.subr.bf16.mxu0 0
        %4072 = vmatpush2.bf16.msra.mxu0 0
        %4073 = vmatprep.subr.bf16.mxu0 0
        %4074 = vmatpush2.bf16.msra.mxu0 0
        %4075 = vmatprep.subr.bf16.mxu0 0
        %4076 = vmatpush2.bf16.msra.mxu0 0
        %4077 = vmatprep.subr.bf16.mxu0 0
        %4078 = vmatpush2.bf16.msra.mxu0 0
        %4079 = vmatprep.mubr.bf16.mxu0 0
        %4080 = vmatmul.mubr.bf16.gmra.mxu0 %v4042
        %v4081 = vpop.f32.mrf.mxu0
        %v4082 = vadd.f32 0.0, %v4081
        %v4083 = vpop.f32.mrf.mxu0
        %v4084 = vpop.f32.mrf.mxu0
        %v4085 = vpop.f32.mrf.mxu0
        %4086 = vdwg.mxu0
        %4087 = vrot.lane.b32.xlu0 %v837, 80
        %v4088 = vpop.permute.xlu0 %4087
        %v4090 = vsel %vm1269, %v4032, 0
        %v4093 = vsel %vm1369, %v4088, 0
        %4095 = vmatprep.subr.bf16.mxu0 0
        %4096 = vmatpush1.bf16.msra.mxu0 0
        %4097 = vmatprep.subr.bf16.mxu0 0
        %4098 = vmatpush1.bf16.msra.mxu0 0
        %4099 = vmatprep.subr.bf16.mxu0 0
        %4100 = vmatpush1.bf16.msra.mxu0 0
        %4101 = vmatprep.subr.bf16.mxu0 0
        %4102 = vmatpush1.bf16.msra.mxu0 0
        %4103 = vmatprep.subr.bf16.mxu0 0
        %4104 = vmatpush1.bf16.msra.mxu0 0
        %4105 = vmatprep.subr.bf16.mxu0 0
        %4106 = vmatpush1.bf16.msra.mxu0 0
        %4107 = vmatprep.subr.bf16.mxu0 0
        %4108 = vmatpush1.bf16.msra.mxu0 0
        %4109 = vmatprep.subr.bf16.mxu0 0
        %4110 = vmatpush1.bf16.msra.mxu0 %v4093
        %4111 = vmatprep.subr.bf16.mxu0 0
        %4112 = vmatpush2.bf16.msra.mxu0 0
        %4113 = vmatprep.subr.bf16.mxu0 0
        %4114 = vmatpush2.bf16.msra.mxu0 0
        %4115 = vmatprep.subr.bf16.mxu0 0
        %4116 = vmatpush2.bf16.msra.mxu0 0
        %4117 = vmatprep.subr.bf16.mxu0 0
        %4118 = vmatpush2.bf16.msra.mxu0 0
        %4119 = vmatprep.subr.bf16.mxu0 0
        %4120 = vmatpush2.bf16.msra.mxu0 0
        %4121 = vmatprep.subr.bf16.mxu0 0
        %4122 = vmatpush2.bf16.msra.mxu0 0
        %4123 = vmatprep.subr.bf16.mxu0 0
        %4124 = vmatpush2.bf16.msra.mxu0 0
        %4125 = vmatprep.subr.bf16.mxu0 0
        %4126 = vmatpush2.bf16.msra.mxu0 0
        %4127 = vmatprep.mubr.bf16.mxu0 0
        %4128 = vmatmul.mubr.bf16.gmra.mxu0 %v4090
        %v4129 = vpop.f32.mrf.mxu0
        %v4130 = vadd.f32 0.0, %v4129
        %v4131 = vpop.f32.mrf.mxu0
        %v4132 = vpop.f32.mrf.mxu0
        %v4133 = vpop.f32.mrf.mxu0
        %4134 = vdwg.mxu0
        %4135 = vrot.lane.b32.xlu0 %v838, 80
        %v4136 = vpop.permute.xlu0 %4135
        %v4138 = vsel %vm1269, %v4033, 0
        %v4141 = vsel %vm1369, %v4136, 0
        %4143 = vmatprep.subr.bf16.mxu0 0
        %4144 = vmatpush1.bf16.msra.mxu0 0
        %4145 = vmatprep.subr.bf16.mxu0 0
        %4146 = vmatpush1.bf16.msra.mxu0 0
        %4147 = vmatprep.subr.bf16.mxu0 0
        %4148 = vmatpush1.bf16.msra.mxu0 0
        %4149 = vmatprep.subr.bf16.mxu0 0
        %4150 = vmatpush1.bf16.msra.mxu0 0
        %4151 = vmatprep.subr.bf16.mxu0 0
        %4152 = vmatpush1.bf16.msra.mxu0 0
        %4153 = vmatprep.subr.bf16.mxu0 0
        %4154 = vmatpush1.bf16.msra.mxu0 0
        %4155 = vmatprep.subr.bf16.mxu0 0
        %4156 = vmatpush1.bf16.msra.mxu0 0
        %4157 = vmatprep.subr.bf16.mxu0 0
        %4158 = vmatpush1.bf16.msra.mxu0 %v4141
        %4159 = vmatprep.subr.bf16.mxu0 0
        %4160 = vmatpush2.bf16.msra.mxu0 0
        %4161 = vmatprep.subr.bf16.mxu0 0
        %4162 = vmatpush2.bf16.msra.mxu0 0
        %4163 = vmatprep.subr.bf16.mxu0 0
        %4164 = vmatpush2.bf16.msra.mxu0 0
        %4165 = vmatprep.subr.bf16.mxu0 0
        %4166 = vmatpush2.bf16.msra.mxu0 0
        %4167 = vmatprep.subr.bf16.mxu0 0
        %4168 = vmatpush2.bf16.msra.mxu0 0
        %4169 = vmatprep.subr.bf16.mxu0 0
        %4170 = vmatpush2.bf16.msra.mxu0 0
        %4171 = vmatprep.subr.bf16.mxu0 0
        %4172 = vmatpush2.bf16.msra.mxu0 0
        %4173 = vmatprep.subr.bf16.mxu0 0
        %4174 = vmatpush2.bf16.msra.mxu0 0
        %4175 = vmatprep.mubr.bf16.mxu0 0
        %4176 = vmatmul.mubr.bf16.gmra.mxu0 %v4138
        %v4177 = vpop.f32.mrf.mxu0
        %v4178 = vadd.f32 0.0, %v4177
        %v4179 = vpop.f32.mrf.mxu0
        %v4180 = vpop.f32.mrf.mxu0
        %v4181 = vpop.f32.mrf.mxu0
        %4182 = vdwg.mxu0
        %4183 = vrot.lane.b32.xlu0 %v839, 80
        %v4184 = vpop.permute.xlu0 %4183
        %v4186 = vsel %vm1269, %v4034, 0
        %v4189 = vsel %vm1369, %v4184, 0
        %4191 = vmatprep.subr.bf16.mxu0 0
        %4192 = vmatpush1.bf16.msra.mxu0 0
        %4193 = vmatprep.subr.bf16.mxu0 0
        %4194 = vmatpush1.bf16.msra.mxu0 0
        %4195 = vmatprep.subr.bf16.mxu0 0
        %4196 = vmatpush1.bf16.msra.mxu0 0
        %4197 = vmatprep.subr.bf16.mxu0 0
        %4198 = vmatpush1.bf16.msra.mxu0 0
        %4199 = vmatprep.subr.bf16.mxu0 0
        %4200 = vmatpush1.bf16.msra.mxu0 0
        %4201 = vmatprep.subr.bf16.mxu0 0
        %4202 = vmatpush1.bf16.msra.mxu0 0
        %4203 = vmatprep.subr.bf16.mxu0 0
        %4204 = vmatpush1.bf16.msra.mxu0 0
        %4205 = vmatprep.subr.bf16.mxu0 0
        %4206 = vmatpush1.bf16.msra.mxu0 %v4189
        %4207 = vmatprep.subr.bf16.mxu0 0
        %4208 = vmatpush2.bf16.msra.mxu0 0
        %4209 = vmatprep.subr.bf16.mxu0 0
        %4210 = vmatpush2.bf16.msra.mxu0 0
        %4211 = vmatprep.subr.bf16.mxu0 0
        %4212 = vmatpush2.bf16.msra.mxu0 0
        %4213 = vmatprep.subr.bf16.mxu0 0
        %4214 = vmatpush2.bf16.msra.mxu0 0
        %4215 = vmatprep.subr.bf16.mxu0 0
        %4216 = vmatpush2.bf16.msra.mxu0 0
        %4217 = vmatprep.subr.bf16.mxu0 0
        %4218 = vmatpush2.bf16.msra.mxu0 0
        %4219 = vmatprep.subr.bf16.mxu0 0
        %4220 = vmatpush2.bf16.msra.mxu0 0
        %4221 = vmatprep.subr.bf16.mxu0 0
        %4222 = vmatpush2.bf16.msra.mxu0 0
        %4223 = vmatprep.mubr.bf16.mxu0 0
        %4224 = vmatmul.mubr.bf16.gmra.mxu0 %v4186
        %v4225 = vpop.f32.mrf.mxu0
        %v4226 = vadd.f32 0.0, %v4225
        %v4227 = vpop.f32.mrf.mxu0
        %v4228 = vpop.f32.mrf.mxu0
        %v4229 = vpop.f32.mrf.mxu0
        %4230 = vdwg.mxu0
        %4231 = vrot.lane.b32.xlu0 %v840, 80
        %v4232 = vpop.permute.xlu0 %4231
        %v4234 = vsel %vm1269, %v4035, 0
        %v4237 = vsel %vm1369, %v4232, 0
        %4239 = vmatprep.subr.bf16.mxu0 0
        %4240 = vmatpush1.bf16.msra.mxu0 0
        %4241 = vmatprep.subr.bf16.mxu0 0
        %4242 = vmatpush1.bf16.msra.mxu0 0
        %4243 = vmatprep.subr.bf16.mxu0 0
        %4244 = vmatpush1.bf16.msra.mxu0 0
        %4245 = vmatprep.subr.bf16.mxu0 0
        %4246 = vmatpush1.bf16.msra.mxu0 0
        %4247 = vmatprep.subr.bf16.mxu0 0
        %4248 = vmatpush1.bf16.msra.mxu0 0
        %4249 = vmatprep.subr.bf16.mxu0 0
        %4250 = vmatpush1.bf16.msra.mxu0 0
        %4251 = vmatprep.subr.bf16.mxu0 0
        %4252 = vmatpush1.bf16.msra.mxu0 0
        %4253 = vmatprep.subr.bf16.mxu0 0
        %4254 = vmatpush1.bf16.msra.mxu0 %v4237
        %4255 = vmatprep.subr.bf16.mxu0 0
        %4256 = vmatpush2.bf16.msra.mxu0 0
        %4257 = vmatprep.subr.bf16.mxu0 0
        %4258 = vmatpush2.bf16.msra.mxu0 0
        %4259 = vmatprep.subr.bf16.mxu0 0
        %4260 = vmatpush2.bf16.msra.mxu0 0
        %4261 = vmatprep.subr.bf16.mxu0 0
        %4262 = vmatpush2.bf16.msra.mxu0 0
        %4263 = vmatprep.subr.bf16.mxu0 0
        %4264 = vmatpush2.bf16.msra.mxu0 0
        %4265 = vmatprep.subr.bf16.mxu0 0
        %4266 = vmatpush2.bf16.msra.mxu0 0
        %4267 = vmatprep.subr.bf16.mxu0 0
        %4268 = vmatpush2.bf16.msra.mxu0 0
        %4269 = vmatprep.subr.bf16.mxu0 0
        %4270 = vmatpush2.bf16.msra.mxu0 0
        %4271 = vmatprep.mubr.bf16.mxu0 0
        %4272 = vmatmul.mubr.bf16.gmra.mxu0 %v4234
        %v4273 = vpop.f32.mrf.mxu0
        %v4274 = vadd.f32 0.0, %v4273
        %v4275 = vpop.f32.mrf.mxu0
        %v4276 = vpop.f32.mrf.mxu0
        %v4277 = vpop.f32.mrf.mxu0
        %4278 = vdwg.mxu0
        %4279 = vrot.lane.b32.xlu0 %v841, 80
        %v4280 = vpop.permute.xlu0 %4279
        %v4282 = vsel %vm1269, %v4036, 0
        %v4285 = vsel %vm1369, %v4280, 0
        %4287 = vmatprep.subr.bf16.mxu0 0
        %4288 = vmatpush1.bf16.msra.mxu0 0
        %4289 = vmatprep.subr.bf16.mxu0 0
        %4290 = vmatpush1.bf16.msra.mxu0 0
        %4291 = vmatprep.subr.bf16.mxu0 0
        %4292 = vmatpush1.bf16.msra.mxu0 0
        %4293 = vmatprep.subr.bf16.mxu0 0
        %4294 = vmatpush1.bf16.msra.mxu0 0
        %4295 = vmatprep.subr.bf16.mxu0 0
        %4296 = vmatpush1.bf16.msra.mxu0 0
        %4297 = vmatprep.subr.bf16.mxu0 0
        %4298 = vmatpush1.bf16.msra.mxu0 0
        %4299 = vmatprep.subr.bf16.mxu0 0
        %4300 = vmatpush1.bf16.msra.mxu0 0
        %4301 = vmatprep.subr.bf16.mxu0 0
        %4302 = vmatpush1.bf16.msra.mxu0 %v4285
        %4303 = vmatprep.subr.bf16.mxu0 0
        %4304 = vmatpush2.bf16.msra.mxu0 0
        %4305 = vmatprep.subr.bf16.mxu0 0
        %4306 = vmatpush2.bf16.msra.mxu0 0
        %4307 = vmatprep.subr.bf16.mxu0 0
        %4308 = vmatpush2.bf16.msra.mxu0 0
        %4309 = vmatprep.subr.bf16.mxu0 0
        %4310 = vmatpush2.bf16.msra.mxu0 0
        %4311 = vmatprep.subr.bf16.mxu0 0
        %4312 = vmatpush2.bf16.msra.mxu0 0
        %4313 = vmatprep.subr.bf16.mxu0 0
        %4314 = vmatpush2.bf16.msra.mxu0 0
        %4315 = vmatprep.subr.bf16.mxu0 0
        %4316 = vmatpush2.bf16.msra.mxu0 0
        %4317 = vmatprep.subr.bf16.mxu0 0
        %4318 = vmatpush2.bf16.msra.mxu0 0
        %4319 = vmatprep.mubr.bf16.mxu0 0
        %4320 = vmatmul.mubr.bf16.gmra.mxu0 %v4282
        %v4321 = vpop.f32.mrf.mxu0
        %v4322 = vadd.f32 0.0, %v4321
        %v4323 = vpop.f32.mrf.mxu0
        %v4324 = vpop.f32.mrf.mxu0
        %v4325 = vpop.f32.mrf.mxu0
        %4326 = vdwg.mxu0
        %4327 = vrot.lane.b32.xlu0 %v842, 80
        %v4328 = vpop.permute.xlu0 %4327
        %v4330 = vsel %vm1269, %v4037, 0
        %v4333 = vsel %vm1369, %v4328, 0
        %4335 = vmatprep.subr.bf16.mxu0 0
        %4336 = vmatpush1.bf16.msra.mxu0 0
        %4337 = vmatprep.subr.bf16.mxu0 0
        %4338 = vmatpush1.bf16.msra.mxu0 0
        %4339 = vmatprep.subr.bf16.mxu0 0
        %4340 = vmatpush1.bf16.msra.mxu0 0
        %4341 = vmatprep.subr.bf16.mxu0 0
        %4342 = vmatpush1.bf16.msra.mxu0 0
        %4343 = vmatprep.subr.bf16.mxu0 0
        %4344 = vmatpush1.bf16.msra.mxu0 0
        %4345 = vmatprep.subr.bf16.mxu0 0
        %4346 = vmatpush1.bf16.msra.mxu0 0
        %4347 = vmatprep.subr.bf16.mxu0 0
        %4348 = vmatpush1.bf16.msra.mxu0 0
        %4349 = vmatprep.subr.bf16.mxu0 0
        %4350 = vmatpush1.bf16.msra.mxu0 %v4333
        %4351 = vmatprep.subr.bf16.mxu0 0
        %4352 = vmatpush2.bf16.msra.mxu0 0
        %4353 = vmatprep.subr.bf16.mxu0 0
        %4354 = vmatpush2.bf16.msra.mxu0 0
        %4355 = vmatprep.subr.bf16.mxu0 0
        %4356 = vmatpush2.bf16.msra.mxu0 0
        %4357 = vmatprep.subr.bf16.mxu0 0
        %4358 = vmatpush2.bf16.msra.mxu0 0
        %4359 = vmatprep.subr.bf16.mxu0 0
        %4360 = vmatpush2.bf16.msra.mxu0 0
        %4361 = vmatprep.subr.bf16.mxu0 0
        %4362 = vmatpush2.bf16.msra.mxu0 0
        %4363 = vmatprep.subr.bf16.mxu0 0
        %4364 = vmatpush2.bf16.msra.mxu0 0
        %4365 = vmatprep.subr.bf16.mxu0 0
        %4366 = vmatpush2.bf16.msra.mxu0 0
        %4367 = vmatprep.mubr.bf16.mxu0 0
        %4368 = vmatmul.mubr.bf16.gmra.mxu0 %v4330
        %v4369 = vpop.f32.mrf.mxu0
        %v4370 = vadd.f32 0.0, %v4369
        %v4371 = vpop.f32.mrf.mxu0
        %v4372 = vpop.f32.mrf.mxu0
        %v4373 = vpop.f32.mrf.mxu0
        %4374 = vdwg.mxu0
        %4375 = vrot.lane.b32.xlu0 %v843, 80
        %v4376 = vpop.permute.xlu0 %4375
        %v4378 = vsel %vm1269, %v4038, 0
        %v4381 = vsel %vm1369, %v4376, 0
        %4383 = vmatprep.subr.bf16.mxu0 0
        %4384 = vmatpush1.bf16.msra.mxu0 0
        %4385 = vmatprep.subr.bf16.mxu0 0
        %4386 = vmatpush1.bf16.msra.mxu0 0
        %4387 = vmatprep.subr.bf16.mxu0 0
        %4388 = vmatpush1.bf16.msra.mxu0 0
        %4389 = vmatprep.subr.bf16.mxu0 0
        %4390 = vmatpush1.bf16.msra.mxu0 0
        %4391 = vmatprep.subr.bf16.mxu0 0
        %4392 = vmatpush1.bf16.msra.mxu0 0
        %4393 = vmatprep.subr.bf16.mxu0 0
        %4394 = vmatpush1.bf16.msra.mxu0 0
        %4395 = vmatprep.subr.bf16.mxu0 0
        %4396 = vmatpush1.bf16.msra.mxu0 0
        %4397 = vmatprep.subr.bf16.mxu0 0
        %4398 = vmatpush1.bf16.msra.mxu0 %v4381
        %4399 = vmatprep.subr.bf16.mxu0 0
        %4400 = vmatpush2.bf16.msra.mxu0 0
        %4401 = vmatprep.subr.bf16.mxu0 0
        %4402 = vmatpush2.bf16.msra.mxu0 0
        %4403 = vmatprep.subr.bf16.mxu0 0
        %4404 = vmatpush2.bf16.msra.mxu0 0
        %4405 = vmatprep.subr.bf16.mxu0 0
        %4406 = vmatpush2.bf16.msra.mxu0 0
        %4407 = vmatprep.subr.bf16.mxu0 0
        %4408 = vmatpush2.bf16.msra.mxu0 0
        %4409 = vmatprep.subr.bf16.mxu0 0
        %4410 = vmatpush2.bf16.msra.mxu0 0
        %4411 = vmatprep.subr.bf16.mxu0 0
        %4412 = vmatpush2.bf16.msra.mxu0 0
        %4413 = vmatprep.subr.bf16.mxu0 0
        %4414 = vmatpush2.bf16.msra.mxu0 0
        %4415 = vmatprep.mubr.bf16.mxu0 0
        %4416 = vmatmul.mubr.bf16.gmra.mxu0 %v4378
        %v4417 = vpop.f32.mrf.mxu0
        %v4418 = vadd.f32 0.0, %v4417
        %v4419 = vpop.f32.mrf.mxu0
        %v4420 = vpop.f32.mrf.mxu0
        %v4421 = vpop.f32.mrf.mxu0
        %4422 = vdwg.mxu0
        %4423 = vrot.lane.b32.xlu0 %v796, 64
        %v4424 = vpop.permute.xlu0 %4423
        %4425 = vrot.lane.b32.xlu0 %v816, 64
        %v4426 = vpop.permute.xlu0 %4425
        %v4428 = vsel %vm852, %v4424, 0
        %v4431 = vsel %vm852, %v4426, 0
        %4433 = vmatprep.subr.bf16.mxu0 0
        %4434 = vmatpush1.bf16.xpose.msra.mxu0 0
        %4435 = vmatprep.subr.bf16.mxu0 0
        %4436 = vmatpush1.bf16.xpose.msra.mxu0 0
        %4437 = vmatprep.subr.bf16.mxu0 0
        %4438 = vmatpush1.bf16.xpose.msra.mxu0 0
        %4439 = vmatprep.subr.bf16.mxu0 0
        %4440 = vmatpush1.bf16.xpose.msra.mxu0 0
        %4441 = vmatprep.subr.bf16.mxu0 0
        %4442 = vmatpush1.bf16.xpose.msra.mxu0 0
        %4443 = vmatprep.subr.bf16.mxu0 0
        %4444 = vmatpush1.bf16.xpose.msra.mxu0 0
        %4445 = vmatprep.subr.bf16.mxu0 0
        %4446 = vmatpush1.bf16.xpose.msra.mxu0 0
        %4447 = vmatprep.subr.bf16.mxu0 0
        %4448 = vmatpush1.bf16.xpose.msra.mxu0 %v4431
        %4449 = vmatprep.subr.bf16.mxu0 0
        %4450 = vmatpush2.bf16.xpose.msra.mxu0 0
        %4451 = vmatprep.subr.bf16.mxu0 0
        %4452 = vmatpush2.bf16.xpose.msra.mxu0 0
        %4453 = vmatprep.subr.bf16.mxu0 0
        %4454 = vmatpush2.bf16.xpose.msra.mxu0 0
        %4455 = vmatprep.subr.bf16.mxu0 0
        %4456 = vmatpush2.bf16.xpose.msra.mxu0 0
        %4457 = vmatprep.subr.bf16.mxu0 0
        %4458 = vmatpush2.bf16.xpose.msra.mxu0 0
        %4459 = vmatprep.subr.bf16.mxu0 0
        %4460 = vmatpush2.bf16.xpose.msra.mxu0 0
        %4461 = vmatprep.subr.bf16.mxu0 0
        %4462 = vmatpush2.bf16.xpose.msra.mxu0 0
        %4463 = vmatprep.subr.bf16.mxu0 0
        %4464 = vmatpush2.bf16.xpose.msra.mxu0 0
        %4465 = vmatprep.mubr.bf16.mxu0 0
        %4466 = vmatmul.mubr.bf16.gmra.mxu0 %v4428
        %v4467 = vpop.f32.mrf.mxu0
        %v4468 = vadd.f32 0.0, %v4467
        %v4469 = vpop.f32.mrf.mxu0
        %v4470 = vpop.f32.mrf.mxu0
        %v4471 = vpop.f32.mrf.mxu0
        %4472 = vdwg.mxu0
        %4473 = vrot.lane.b32.xlu0 %v797, 64
        %v4474 = vpop.permute.xlu0 %4473
        %4475 = vrot.lane.b32.xlu0 %v817, 64
        %v4476 = vpop.permute.xlu0 %4475
        %v4478 = vsel %vm852, %v4474, 0
        %v4481 = vsel %vm852, %v4476, 0
        %4483 = vmatprep.subr.bf16.mxu0 0
        %4484 = vmatpush1.bf16.xpose.msra.mxu0 0
        %4485 = vmatprep.subr.bf16.mxu0 0
        %4486 = vmatpush1.bf16.xpose.msra.mxu0 0
        %4487 = vmatprep.subr.bf16.mxu0 0
        %4488 = vmatpush1.bf16.xpose.msra.mxu0 0
        %4489 = vmatprep.subr.bf16.mxu0 0
        %4490 = vmatpush1.bf16.xpose.msra.mxu0 0
        %4491 = vmatprep.subr.bf16.mxu0 0
        %4492 = vmatpush1.bf16.xpose.msra.mxu0 0
        %4493 = vmatprep.subr.bf16.mxu0 0
        %4494 = vmatpush1.bf16.xpose.msra.mxu0 0
        %4495 = vmatprep.subr.bf16.mxu0 0
        %4496 = vmatpush1.bf16.xpose.msra.mxu0 0
        %4497 = vmatprep.subr.bf16.mxu0 0
        %4498 = vmatpush1.bf16.xpose.msra.mxu0 %v4481
        %4499 = vmatprep.subr.bf16.mxu0 0
        %4500 = vmatpush2.bf16.xpose.msra.mxu0 0
        %4501 = vmatprep.subr.bf16.mxu0 0
        %4502 = vmatpush2.bf16.xpose.msra.mxu0 0
        %4503 = vmatprep.subr.bf16.mxu0 0
        %4504 = vmatpush2.bf16.xpose.msra.mxu0 0
        %4505 = vmatprep.subr.bf16.mxu0 0
        %4506 = vmatpush2.bf16.xpose.msra.mxu0 0
        %4507 = vmatprep.subr.bf16.mxu0 0
        %4508 = vmatpush2.bf16.xpose.msra.mxu0 0
        %4509 = vmatprep.subr.bf16.mxu0 0
        %4510 = vmatpush2.bf16.xpose.msra.mxu0 0
        %4511 = vmatprep.subr.bf16.mxu0 0
        %4512 = vmatpush2.bf16.xpose.msra.mxu0 0
        %4513 = vmatprep.subr.bf16.mxu0 0
        %4514 = vmatpush2.bf16.xpose.msra.mxu0 0
        %4515 = vmatprep.mubr.bf16.mxu0 0
        %4516 = vmatmul.mubr.bf16.gmra.mxu0 %v4478
        %v4517 = vpop.f32.mrf.mxu0
        %v4518 = vadd.f32 0.0, %v4517
        %v4519 = vpop.f32.mrf.mxu0
        %v4520 = vpop.f32.mrf.mxu0
        %v4521 = vpop.f32.mrf.mxu0
        %4522 = vdwg.mxu0
        %4523 = vrot.lane.b32.xlu0 %v798, 64
        %v4524 = vpop.permute.xlu0 %4523
        %4525 = vrot.lane.b32.xlu0 %v818, 64
        %v4526 = vpop.permute.xlu0 %4525
        %v4528 = vsel %vm852, %v4524, 0
        %v4531 = vsel %vm852, %v4526, 0
        %4533 = vmatprep.subr.bf16.mxu0 0
        %4534 = vmatpush1.bf16.xpose.msra.mxu0 0
        %4535 = vmatprep.subr.bf16.mxu0 0
        %4536 = vmatpush1.bf16.xpose.msra.mxu0 0
        %4537 = vmatprep.subr.bf16.mxu0 0
        %4538 = vmatpush1.bf16.xpose.msra.mxu0 0
        %4539 = vmatprep.subr.bf16.mxu0 0
        %4540 = vmatpush1.bf16.xpose.msra.mxu0 0
        %4541 = vmatprep.subr.bf16.mxu0 0
        %4542 = vmatpush1.bf16.xpose.msra.mxu0 0
        %4543 = vmatprep.subr.bf16.mxu0 0
        %4544 = vmatpush1.bf16.xpose.msra.mxu0 0
        %4545 = vmatprep.subr.bf16.mxu0 0
        %4546 = vmatpush1.bf16.xpose.msra.mxu0 0
        %4547 = vmatprep.subr.bf16.mxu0 0
        %4548 = vmatpush1.bf16.xpose.msra.mxu0 %v4531
        %4549 = vmatprep.subr.bf16.mxu0 0
        %4550 = vmatpush2.bf16.xpose.msra.mxu0 0
        %4551 = vmatprep.subr.bf16.mxu0 0
        %4552 = vmatpush2.bf16.xpose.msra.mxu0 0
        %4553 = vmatprep.subr.bf16.mxu0 0
        %4554 = vmatpush2.bf16.xpose.msra.mxu0 0
        %4555 = vmatprep.subr.bf16.mxu0 0
        %4556 = vmatpush2.bf16.xpose.msra.mxu0 0
        %4557 = vmatprep.subr.bf16.mxu0 0
        %4558 = vmatpush2.bf16.xpose.msra.mxu0 0
        %4559 = vmatprep.subr.bf16.mxu0 0
        %4560 = vmatpush2.bf16.xpose.msra.mxu0 0
        %4561 = vmatprep.subr.bf16.mxu0 0
        %4562 = vmatpush2.bf16.xpose.msra.mxu0 0
        %4563 = vmatprep.subr.bf16.mxu0 0
        %4564 = vmatpush2.bf16.xpose.msra.mxu0 0
        %4565 = vmatprep.mubr.bf16.mxu0 0
        %4566 = vmatmul.mubr.bf16.gmra.mxu0 %v4528
        %v4567 = vpop.f32.mrf.mxu0
        %v4568 = vadd.f32 0.0, %v4567
        %v4569 = vpop.f32.mrf.mxu0
        %v4570 = vpop.f32.mrf.mxu0
        %v4571 = vpop.f32.mrf.mxu0
        %4572 = vdwg.mxu0
        %4573 = vrot.lane.b32.xlu0 %v799, 64
        %v4574 = vpop.permute.xlu0 %4573
        %4575 = vrot.lane.b32.xlu0 %v819, 64
        %v4576 = vpop.permute.xlu0 %4575
        %v4578 = vsel %vm852, %v4574, 0
        %v4581 = vsel %vm852, %v4576, 0
        %4583 = vmatprep.subr.bf16.mxu0 0
        %4584 = vmatpush1.bf16.xpose.msra.mxu0 0
        %4585 = vmatprep.subr.bf16.mxu0 0
        %4586 = vmatpush1.bf16.xpose.msra.mxu0 0
        %4587 = vmatprep.subr.bf16.mxu0 0
        %4588 = vmatpush1.bf16.xpose.msra.mxu0 0
        %4589 = vmatprep.subr.bf16.mxu0 0
        %4590 = vmatpush1.bf16.xpose.msra.mxu0 0
        %4591 = vmatprep.subr.bf16.mxu0 0
        %4592 = vmatpush1.bf16.xpose.msra.mxu0 0
        %4593 = vmatprep.subr.bf16.mxu0 0
        %4594 = vmatpush1.bf16.xpose.msra.mxu0 0
        %4595 = vmatprep.subr.bf16.mxu0 0
        %4596 = vmatpush1.bf16.xpose.msra.mxu0 0
        %4597 = vmatprep.subr.bf16.mxu0 0
        %4598 = vmatpush1.bf16.xpose.msra.mxu0 %v4581
        %4599 = vmatprep.subr.bf16.mxu0 0
        %4600 = vmatpush2.bf16.xpose.msra.mxu0 0
        %4601 = vmatprep.subr.bf16.mxu0 0
        %4602 = vmatpush2.bf16.xpose.msra.mxu0 0
        %4603 = vmatprep.subr.bf16.mxu0 0
        %4604 = vmatpush2.bf16.xpose.msra.mxu0 0
        %4605 = vmatprep.subr.bf16.mxu0 0
        %4606 = vmatpush2.bf16.xpose.msra.mxu0 0
        %4607 = vmatprep.subr.bf16.mxu0 0
        %4608 = vmatpush2.bf16.xpose.msra.mxu0 0
        %4609 = vmatprep.subr.bf16.mxu0 0
        %4610 = vmatpush2.bf16.xpose.msra.mxu0 0
        %4611 = vmatprep.subr.bf16.mxu0 0
        %4612 = vmatpush2.bf16.xpose.msra.mxu0 0
        %4613 = vmatprep.subr.bf16.mxu0 0
        %4614 = vmatpush2.bf16.xpose.msra.mxu0 0
        %4615 = vmatprep.mubr.bf16.mxu0 0
        %4616 = vmatmul.mubr.bf16.gmra.mxu0 %v4578
        %v4617 = vpop.f32.mrf.mxu0
        %v4618 = vadd.f32 0.0, %v4617
        %v4619 = vpop.f32.mrf.mxu0
        %v4620 = vpop.f32.mrf.mxu0
        %v4621 = vpop.f32.mrf.mxu0
        %4622 = vdwg.mxu0
        %4623 = vrot.lane.b32.xlu0 %v800, 64
        %v4624 = vpop.permute.xlu0 %4623
        %4625 = vrot.lane.b32.xlu0 %v820, 64
        %v4626 = vpop.permute.xlu0 %4625
        %v4628 = vsel %vm852, %v4624, 0
        %v4631 = vsel %vm852, %v4626, 0
        %4633 = vmatprep.subr.bf16.mxu0 0
        %4634 = vmatpush1.bf16.xpose.msra.mxu0 0
        %4635 = vmatprep.subr.bf16.mxu0 0
        %4636 = vmatpush1.bf16.xpose.msra.mxu0 0
        %4637 = vmatprep.subr.bf16.mxu0 0
        %4638 = vmatpush1.bf16.xpose.msra.mxu0 0
        %4639 = vmatprep.subr.bf16.mxu0 0
        %4640 = vmatpush1.bf16.xpose.msra.mxu0 0
        %4641 = vmatprep.subr.bf16.mxu0 0
        %4642 = vmatpush1.bf16.xpose.msra.mxu0 0
        %4643 = vmatprep.subr.bf16.mxu0 0
        %4644 = vmatpush1.bf16.xpose.msra.mxu0 0
        %4645 = vmatprep.subr.bf16.mxu0 0
        %4646 = vmatpush1.bf16.xpose.msra.mxu0 0
        %4647 = vmatprep.subr.bf16.mxu0 0
        %4648 = vmatpush1.bf16.xpose.msra.mxu0 %v4631
        %4649 = vmatprep.subr.bf16.mxu0 0
        %4650 = vmatpush2.bf16.xpose.msra.mxu0 0
        %4651 = vmatprep.subr.bf16.mxu0 0
        %4652 = vmatpush2.bf16.xpose.msra.mxu0 0
        %4653 = vmatprep.subr.bf16.mxu0 0
        %4654 = vmatpush2.bf16.xpose.msra.mxu0 0
        %4655 = vmatprep.subr.bf16.mxu0 0
        %4656 = vmatpush2.bf16.xpose.msra.mxu0 0
        %4657 = vmatprep.subr.bf16.mxu0 0
        %4658 = vmatpush2.bf16.xpose.msra.mxu0 0
        %4659 = vmatprep.subr.bf16.mxu0 0
        %4660 = vmatpush2.bf16.xpose.msra.mxu0 0
        %4661 = vmatprep.subr.bf16.mxu0 0
        %4662 = vmatpush2.bf16.xpose.msra.mxu0 0
        %4663 = vmatprep.subr.bf16.mxu0 0
        %4664 = vmatpush2.bf16.xpose.msra.mxu0 0
        %4665 = vmatprep.mubr.bf16.mxu0 0
        %4666 = vmatmul.mubr.bf16.gmra.mxu0 %v4628
        %v4667 = vpop.f32.mrf.mxu0
        %v4668 = vadd.f32 0.0, %v4667
        %v4669 = vpop.f32.mrf.mxu0
        %v4670 = vpop.f32.mrf.mxu0
        %v4671 = vpop.f32.mrf.mxu0
        %4672 = vdwg.mxu0
        %4673 = vrot.lane.b32.xlu0 %v801, 64
        %v4674 = vpop.permute.xlu0 %4673
        %4675 = vrot.lane.b32.xlu0 %v821, 64
        %v4676 = vpop.permute.xlu0 %4675
        %v4678 = vsel %vm852, %v4674, 0
        %v4681 = vsel %vm852, %v4676, 0
        %4683 = vmatprep.subr.bf16.mxu0 0
        %4684 = vmatpush1.bf16.xpose.msra.mxu0 0
        %4685 = vmatprep.subr.bf16.mxu0 0
        %4686 = vmatpush1.bf16.xpose.msra.mxu0 0
        %4687 = vmatprep.subr.bf16.mxu0 0
        %4688 = vmatpush1.bf16.xpose.msra.mxu0 0
        %4689 = vmatprep.subr.bf16.mxu0 0
        %4690 = vmatpush1.bf16.xpose.msra.mxu0 0
        %4691 = vmatprep.subr.bf16.mxu0 0
        %4692 = vmatpush1.bf16.xpose.msra.mxu0 0
        %4693 = vmatprep.subr.bf16.mxu0 0
        %4694 = vmatpush1.bf16.xpose.msra.mxu0 0
        %4695 = vmatprep.subr.bf16.mxu0 0
        %4696 = vmatpush1.bf16.xpose.msra.mxu0 0
        %4697 = vmatprep.subr.bf16.mxu0 0
        %4698 = vmatpush1.bf16.xpose.msra.mxu0 %v4681
        %4699 = vmatprep.subr.bf16.mxu0 0
        %4700 = vmatpush2.bf16.xpose.msra.mxu0 0
        %4701 = vmatprep.subr.bf16.mxu0 0
        %4702 = vmatpush2.bf16.xpose.msra.mxu0 0
        %4703 = vmatprep.subr.bf16.mxu0 0
        %4704 = vmatpush2.bf16.xpose.msra.mxu0 0
        %4705 = vmatprep.subr.bf16.mxu0 0
        %4706 = vmatpush2.bf16.xpose.msra.mxu0 0
        %4707 = vmatprep.subr.bf16.mxu0 0
        %4708 = vmatpush2.bf16.xpose.msra.mxu0 0
        %4709 = vmatprep.subr.bf16.mxu0 0
        %4710 = vmatpush2.bf16.xpose.msra.mxu0 0
        %4711 = vmatprep.subr.bf16.mxu0 0
        %4712 = vmatpush2.bf16.xpose.msra.mxu0 0
        %4713 = vmatprep.subr.bf16.mxu0 0
        %4714 = vmatpush2.bf16.xpose.msra.mxu0 0
        %4715 = vmatprep.mubr.bf16.mxu0 0
        %4716 = vmatmul.mubr.bf16.gmra.mxu0 %v4678
        %v4717 = vpop.f32.mrf.mxu0
        %v4718 = vadd.f32 0.0, %v4717
        %v4719 = vpop.f32.mrf.mxu0
        %v4720 = vpop.f32.mrf.mxu0
        %v4721 = vpop.f32.mrf.mxu0
        %4722 = vdwg.mxu0
        %4723 = vrot.lane.b32.xlu0 %v802, 64
        %v4724 = vpop.permute.xlu0 %4723
        %4725 = vrot.lane.b32.xlu0 %v822, 64
        %v4726 = vpop.permute.xlu0 %4725
        %v4728 = vsel %vm852, %v4724, 0
        %v4731 = vsel %vm852, %v4726, 0
        %4733 = vmatprep.subr.bf16.mxu0 0
        %4734 = vmatpush1.bf16.xpose.msra.mxu0 0
        %4735 = vmatprep.subr.bf16.mxu0 0
        %4736 = vmatpush1.bf16.xpose.msra.mxu0 0
        %4737 = vmatprep.subr.bf16.mxu0 0
        %4738 = vmatpush1.bf16.xpose.msra.mxu0 0
        %4739 = vmatprep.subr.bf16.mxu0 0
        %4740 = vmatpush1.bf16.xpose.msra.mxu0 0
        %4741 = vmatprep.subr.bf16.mxu0 0
        %4742 = vmatpush1.bf16.xpose.msra.mxu0 0
        %4743 = vmatprep.subr.bf16.mxu0 0
        %4744 = vmatpush1.bf16.xpose.msra.mxu0 0
        %4745 = vmatprep.subr.bf16.mxu0 0
        %4746 = vmatpush1.bf16.xpose.msra.mxu0 0
        %4747 = vmatprep.subr.bf16.mxu0 0
        %4748 = vmatpush1.bf16.xpose.msra.mxu0 %v4731
        %4749 = vmatprep.subr.bf16.mxu0 0
        %4750 = vmatpush2.bf16.xpose.msra.mxu0 0
        %4751 = vmatprep.subr.bf16.mxu0 0
        %4752 = vmatpush2.bf16.xpose.msra.mxu0 0
        %4753 = vmatprep.subr.bf16.mxu0 0
        %4754 = vmatpush2.bf16.xpose.msra.mxu0 0
        %4755 = vmatprep.subr.bf16.mxu0 0
        %4756 = vmatpush2.bf16.xpose.msra.mxu0 0
        %4757 = vmatprep.subr.bf16.mxu0 0
        %4758 = vmatpush2.bf16.xpose.msra.mxu0 0
        %4759 = vmatprep.subr.bf16.mxu0 0
        %4760 = vmatpush2.bf16.xpose.msra.mxu0 0
        %4761 = vmatprep.subr.bf16.mxu0 0
        %4762 = vmatpush2.bf16.xpose.msra.mxu0 0
        %4763 = vmatprep.subr.bf16.mxu0 0
        %4764 = vmatpush2.bf16.xpose.msra.mxu0 0
        %4765 = vmatprep.mubr.bf16.mxu0 0
        %4766 = vmatmul.mubr.bf16.gmra.mxu0 %v4728
        %v4767 = vpop.f32.mrf.mxu0
        %v4768 = vadd.f32 0.0, %v4767
        %v4769 = vpop.f32.mrf.mxu0
        %v4770 = vpop.f32.mrf.mxu0
        %v4771 = vpop.f32.mrf.mxu0
        %4772 = vdwg.mxu0
        %4773 = vrot.lane.b32.xlu0 %v803, 64
        %v4774 = vpop.permute.xlu0 %4773
        %4775 = vrot.lane.b32.xlu0 %v823, 64
        %v4776 = vpop.permute.xlu0 %4775
        %v4778 = vsel %vm852, %v4774, 0
        %v4781 = vsel %vm852, %v4776, 0
        %4783 = vmatprep.subr.bf16.mxu0 0
        %4784 = vmatpush1.bf16.xpose.msra.mxu0 0
        %4785 = vmatprep.subr.bf16.mxu0 0
        %4786 = vmatpush1.bf16.xpose.msra.mxu0 0
        %4787 = vmatprep.subr.bf16.mxu0 0
        %4788 = vmatpush1.bf16.xpose.msra.mxu0 0
        %4789 = vmatprep.subr.bf16.mxu0 0
        %4790 = vmatpush1.bf16.xpose.msra.mxu0 0
        %4791 = vmatprep.subr.bf16.mxu0 0
        %4792 = vmatpush1.bf16.xpose.msra.mxu0 0
        %4793 = vmatprep.subr.bf16.mxu0 0
        %4794 = vmatpush1.bf16.xpose.msra.mxu0 0
        %4795 = vmatprep.subr.bf16.mxu0 0
        %4796 = vmatpush1.bf16.xpose.msra.mxu0 0
        %4797 = vmatprep.subr.bf16.mxu0 0
        %4798 = vmatpush1.bf16.xpose.msra.mxu0 %v4781
        %4799 = vmatprep.subr.bf16.mxu0 0
        %4800 = vmatpush2.bf16.xpose.msra.mxu0 0
        %4801 = vmatprep.subr.bf16.mxu0 0
        %4802 = vmatpush2.bf16.xpose.msra.mxu0 0
        %4803 = vmatprep.subr.bf16.mxu0 0
        %4804 = vmatpush2.bf16.xpose.msra.mxu0 0
        %4805 = vmatprep.subr.bf16.mxu0 0
        %4806 = vmatpush2.bf16.xpose.msra.mxu0 0
        %4807 = vmatprep.subr.bf16.mxu0 0
        %4808 = vmatpush2.bf16.xpose.msra.mxu0 0
        %4809 = vmatprep.subr.bf16.mxu0 0
        %4810 = vmatpush2.bf16.xpose.msra.mxu0 0
        %4811 = vmatprep.subr.bf16.mxu0 0
        %4812 = vmatpush2.bf16.xpose.msra.mxu0 0
        %4813 = vmatprep.subr.bf16.mxu0 0
        %4814 = vmatpush2.bf16.xpose.msra.mxu0 0
        %4815 = vmatprep.mubr.bf16.mxu0 0
        %4816 = vmatmul.mubr.bf16.gmra.mxu0 %v4778
        %v4817 = vpop.f32.mrf.mxu0
        %v4818 = vadd.f32 0.0, %v4817
        %v4819 = vpop.f32.mrf.mxu0
        %v4820 = vpop.f32.mrf.mxu0
        %v4821 = vpop.f32.mrf.mxu0
        %4822 = vdwg.mxu0
        %v4823 = vmul.f32 %v4468, 0.25
        %v4824 = vmul.f32 %v4518, 0.25
        %v4825 = vmul.f32 %v4568, 0.25
        %v4826 = vmul.f32 %v4618, 0.25
        %v4827 = vmul.f32 %v4668, 0.25
        %v4828 = vmul.f32 %v4718, 0.25
        %v4829 = vmul.f32 %v4768, 0.25
        %v4830 = vmul.f32 %v4818, 0.25
        %v4831 = vadd.f32 %v4823, %v1232
        %v4832 = vadd.f32 %v4824, %v1236
        %v4833 = vadd.f32 %v4825, %v1240
        %v4834 = vadd.f32 %v4826, %v1244
        %v4835 = vadd.f32 %v4827, %v1248
        %v4836 = vadd.f32 %v4828, %v1252
        %v4837 = vadd.f32 %v4829, %v1256
        %v4838 = vadd.f32 %v4830, %v1260
        %v4839 = vsel %vm1269, %v4831, -inf
        %4840 = vmax.xlane.f32.xlu0 %v4839
        %v4841 = vpop.xlane.xlu0 %4840
        %v4842 = vsel %vm1269, %v4832, -inf
        %4843 = vmax.xlane.f32.xlu0 %v4842
        %v4844 = vpop.xlane.xlu0 %4843
        %v4845 = vsel %vm1269, %v4833, -inf
        %4846 = vmax.xlane.f32.xlu0 %v4845
        %v4847 = vpop.xlane.xlu0 %4846
        %v4848 = vsel %vm1269, %v4834, -inf
        %4849 = vmax.xlane.f32.xlu0 %v4848
        %v4850 = vpop.xlane.xlu0 %4849
        %v4851 = vsel %vm1269, %v4835, -inf
        %4852 = vmax.xlane.f32.xlu0 %v4851
        %v4853 = vpop.xlane.xlu0 %4852
        %v4854 = vsel %vm1269, %v4836, -inf
        %4855 = vmax.xlane.f32.xlu0 %v4854
        %v4856 = vpop.xlane.xlu0 %4855
        %v4857 = vsel %vm1269, %v4837, -inf
        %4858 = vmax.xlane.f32.xlu0 %v4857
        %v4859 = vpop.xlane.xlu0 %4858
        %v4860 = vsel %vm1269, %v4838, -inf
        %4861 = vmax.xlane.f32.xlu0 %v4860
        %v4862 = vpop.xlane.xlu0 %4861
        %v4863 = vsub.f32 %v4831, %v4841
        %v4864 = vsub.f32 %v4832, %v4844
        %v4865 = vsub.f32 %v4833, %v4847
        %v4866 = vsub.f32 %v4834, %v4850
        %v4867 = vsub.f32 %v4835, %v4853
        %v4868 = vsub.f32 %v4836, %v4856
        %v4869 = vsub.f32 %v4837, %v4859
        %v4870 = vsub.f32 %v4838, %v4862
        %v4871 = vmul.f32 %v4863, 1.442695
        %v4872 = vpow.pop %v4871
        %v4873 = vmul.f32 %v4864, 1.442695
        %v4874 = vpow.pop %v4873
        %v4875 = vmul.f32 %v4865, 1.442695
        %v4876 = vpow.pop %v4875
        %v4877 = vmul.f32 %v4866, 1.442695
        %v4878 = vpow.pop %v4877
        %v4879 = vmul.f32 %v4867, 1.442695
        %v4880 = vpow.pop %v4879
        %v4881 = vmul.f32 %v4868, 1.442695
        %v4882 = vpow.pop %v4881
        %v4883 = vmul.f32 %v4869, 1.442695
        %v4884 = vpow.pop %v4883
        %v4885 = vmul.f32 %v4870, 1.442695
        %v4886 = vpow.pop %v4885
        %v4887 = vsel %vm1269, %v4872, 0.0
        %4888 = vadd.xlane.f32.xlu0 %v4887
        %v4889 = vpop.xlane.xlu0 %4888
        %v4890 = vsel %vm1269, %v4874, 0.0
        %4891 = vadd.xlane.f32.xlu0 %v4890
        %v4892 = vpop.xlane.xlu0 %4891
        %v4893 = vsel %vm1269, %v4876, 0.0
        %4894 = vadd.xlane.f32.xlu0 %v4893
        %v4895 = vpop.xlane.xlu0 %4894
        %v4896 = vsel %vm1269, %v4878, 0.0
        %4897 = vadd.xlane.f32.xlu0 %v4896
        %v4898 = vpop.xlane.xlu0 %4897
        %v4899 = vsel %vm1269, %v4880, 0.0
        %4900 = vadd.xlane.f32.xlu0 %v4899
        %v4901 = vpop.xlane.xlu0 %4900
        %v4902 = vsel %vm1269, %v4882, 0.0
        %4903 = vadd.xlane.f32.xlu0 %v4902
        %v4904 = vpop.xlane.xlu0 %4903
        %v4905 = vsel %vm1269, %v4884, 0.0
        %4906 = vadd.xlane.f32.xlu0 %v4905
        %v4907 = vpop.xlane.xlu0 %4906
        %v4908 = vsel %vm1269, %v4886, 0.0
        %4909 = vadd.xlane.f32.xlu0 %v4908
        %v4910 = vpop.xlane.xlu0 %4909
        %v4911 = vrcp.pop %v4889
        %v4912 = vrcp.pop %v4892
        %v4913 = vrcp.pop %v4895
        %v4914 = vrcp.pop %v4898
        %v4915 = vrcp.pop %v4901
        %v4916 = vrcp.pop %v4904
        %v4917 = vrcp.pop %v4907
        %v4918 = vrcp.pop %v4910
        %v4919 = vmul.f32 %v4872, %v4911
        %v4920 = vmul.f32 %v4874, %v4912
        %v4921 = vmul.f32 %v4876, %v4913
        %v4922 = vmul.f32 %v4878, %v4914
        %v4923 = vmul.f32 %v4880, %v4915
        %v4924 = vmul.f32 %v4882, %v4916
        %v4925 = vmul.f32 %v4884, %v4917
        %v4926 = vmul.f32 %v4886, %v4918
        %v4927 = vpack.c.bf16 %v4919, %v4919
        %v4928 = vpack.c.bf16 %v4920, %v4920
        %v4929 = vpack.c.bf16 %v4921, %v4921
        %v4930 = vpack.c.bf16 %v4922, %v4922
        %v4931 = vpack.c.bf16 %v4923, %v4923
        %v4932 = vpack.c.bf16 %v4924, %v4924
        %v4933 = vpack.c.bf16 %v4925, %v4925
        %v4934 = vpack.c.bf16 %v4926, %v4926
        %4935 = vrot.lane.b32.xlu0 %v836, 64
        %v4936 = vpop.permute.xlu0 %4935
        %v4938 = vsel %vm1269, %v4927, 0
        %v4941 = vsel %vm1369, %v4936, 0
        %4943 = vmatprep.subr.bf16.mxu0 0
        %4944 = vmatpush1.bf16.msra.mxu0 0
        %4945 = vmatprep.subr.bf16.mxu0 0
        %4946 = vmatpush1.bf16.msra.mxu0 0
        %4947 = vmatprep.subr.bf16.mxu0 0
        %4948 = vmatpush1.bf16.msra.mxu0 0
        %4949 = vmatprep.subr.bf16.mxu0 0
        %4950 = vmatpush1.bf16.msra.mxu0 0
        %4951 = vmatprep.subr.bf16.mxu0 0
        %4952 = vmatpush1.bf16.msra.mxu0 0
        %4953 = vmatprep.subr.bf16.mxu0 0
        %4954 = vmatpush1.bf16.msra.mxu0 0
        %4955 = vmatprep.subr.bf16.mxu0 0
        %4956 = vmatpush1.bf16.msra.mxu0 0
        %4957 = vmatprep.subr.bf16.mxu0 0
        %4958 = vmatpush1.bf16.msra.mxu0 %v4941
        %4959 = vmatprep.subr.bf16.mxu0 0
        %4960 = vmatpush2.bf16.msra.mxu0 0
        %4961 = vmatprep.subr.bf16.mxu0 0
        %4962 = vmatpush2.bf16.msra.mxu0 0
        %4963 = vmatprep.subr.bf16.mxu0 0
        %4964 = vmatpush2.bf16.msra.mxu0 0
        %4965 = vmatprep.subr.bf16.mxu0 0
        %4966 = vmatpush2.bf16.msra.mxu0 0
        %4967 = vmatprep.subr.bf16.mxu0 0
        %4968 = vmatpush2.bf16.msra.mxu0 0
        %4969 = vmatprep.subr.bf16.mxu0 0
        %4970 = vmatpush2.bf16.msra.mxu0 0
        %4971 = vmatprep.subr.bf16.mxu0 0
        %4972 = vmatpush2.bf16.msra.mxu0 0
        %4973 = vmatprep.subr.bf16.mxu0 0
        %4974 = vmatpush2.bf16.msra.mxu0 0
        %4975 = vmatprep.mubr.bf16.mxu0 0
        %4976 = vmatmul.mubr.bf16.gmra.mxu0 %v4938
        %v4977 = vpop.f32.mrf.mxu0
        %v4978 = vadd.f32 0.0, %v4977
        %v4979 = vpop.f32.mrf.mxu0
        %v4980 = vpop.f32.mrf.mxu0
        %v4981 = vpop.f32.mrf.mxu0
        %4982 = vdwg.mxu0
        %4983 = vrot.lane.b32.xlu0 %v837, 64
        %v4984 = vpop.permute.xlu0 %4983
        %v4986 = vsel %vm1269, %v4928, 0
        %v4989 = vsel %vm1369, %v4984, 0
        %4991 = vmatprep.subr.bf16.mxu0 0
        %4992 = vmatpush1.bf16.msra.mxu0 0
        %4993 = vmatprep.subr.bf16.mxu0 0
        %4994 = vmatpush1.bf16.msra.mxu0 0
        %4995 = vmatprep.subr.bf16.mxu0 0
        %4996 = vmatpush1.bf16.msra.mxu0 0
        %4997 = vmatprep.subr.bf16.mxu0 0
        %4998 = vmatpush1.bf16.msra.mxu0 0
        %4999 = vmatprep.subr.bf16.mxu0 0
        %5000 = vmatpush1.bf16.msra.mxu0 0
        %5001 = vmatprep.subr.bf16.mxu0 0
        %5002 = vmatpush1.bf16.msra.mxu0 0
        %5003 = vmatprep.subr.bf16.mxu0 0
        %5004 = vmatpush1.bf16.msra.mxu0 0
        %5005 = vmatprep.subr.bf16.mxu0 0
        %5006 = vmatpush1.bf16.msra.mxu0 %v4989
        %5007 = vmatprep.subr.bf16.mxu0 0
        %5008 = vmatpush2.bf16.msra.mxu0 0
        %5009 = vmatprep.subr.bf16.mxu0 0
        %5010 = vmatpush2.bf16.msra.mxu0 0
        %5011 = vmatprep.subr.bf16.mxu0 0
        %5012 = vmatpush2.bf16.msra.mxu0 0
        %5013 = vmatprep.subr.bf16.mxu0 0
        %5014 = vmatpush2.bf16.msra.mxu0 0
        %5015 = vmatprep.subr.bf16.mxu0 0
        %5016 = vmatpush2.bf16.msra.mxu0 0
        %5017 = vmatprep.subr.bf16.mxu0 0
        %5018 = vmatpush2.bf16.msra.mxu0 0
        %5019 = vmatprep.subr.bf16.mxu0 0
        %5020 = vmatpush2.bf16.msra.mxu0 0
        %5021 = vmatprep.subr.bf16.mxu0 0
        %5022 = vmatpush2.bf16.msra.mxu0 0
        %5023 = vmatprep.mubr.bf16.mxu0 0
        %5024 = vmatmul.mubr.bf16.gmra.mxu0 %v4986
        %v5025 = vpop.f32.mrf.mxu0
        %v5026 = vadd.f32 0.0, %v5025
        %v5027 = vpop.f32.mrf.mxu0
        %v5028 = vpop.f32.mrf.mxu0
        %v5029 = vpop.f32.mrf.mxu0
        %5030 = vdwg.mxu0
        %5031 = vrot.lane.b32.xlu0 %v838, 64
        %v5032 = vpop.permute.xlu0 %5031
        %v5034 = vsel %vm1269, %v4929, 0
        %v5037 = vsel %vm1369, %v5032, 0
        %5039 = vmatprep.subr.bf16.mxu0 0
        %5040 = vmatpush1.bf16.msra.mxu0 0
        %5041 = vmatprep.subr.bf16.mxu0 0
        %5042 = vmatpush1.bf16.msra.mxu0 0
        %5043 = vmatprep.subr.bf16.mxu0 0
        %5044 = vmatpush1.bf16.msra.mxu0 0
        %5045 = vmatprep.subr.bf16.mxu0 0
        %5046 = vmatpush1.bf16.msra.mxu0 0
        %5047 = vmatprep.subr.bf16.mxu0 0
        %5048 = vmatpush1.bf16.msra.mxu0 0
        %5049 = vmatprep.subr.bf16.mxu0 0
        %5050 = vmatpush1.bf16.msra.mxu0 0
        %5051 = vmatprep.subr.bf16.mxu0 0
        %5052 = vmatpush1.bf16.msra.mxu0 0
        %5053 = vmatprep.subr.bf16.mxu0 0
        %5054 = vmatpush1.bf16.msra.mxu0 %v5037
        %5055 = vmatprep.subr.bf16.mxu0 0
        %5056 = vmatpush2.bf16.msra.mxu0 0
        %5057 = vmatprep.subr.bf16.mxu0 0
        %5058 = vmatpush2.bf16.msra.mxu0 0
        %5059 = vmatprep.subr.bf16.mxu0 0
        %5060 = vmatpush2.bf16.msra.mxu0 0
        %5061 = vmatprep.subr.bf16.mxu0 0
        %5062 = vmatpush2.bf16.msra.mxu0 0
        %5063 = vmatprep.subr.bf16.mxu0 0
        %5064 = vmatpush2.bf16.msra.mxu0 0
        %5065 = vmatprep.subr.bf16.mxu0 0
        %5066 = vmatpush2.bf16.msra.mxu0 0
        %5067 = vmatprep.subr.bf16.mxu0 0
        %5068 = vmatpush2.bf16.msra.mxu0 0
        %5069 = vmatprep.subr.bf16.mxu0 0
        %5070 = vmatpush2.bf16.msra.mxu0 0
        %5071 = vmatprep.mubr.bf16.mxu0 0
        %5072 = vmatmul.mubr.bf16.gmra.mxu0 %v5034
        %v5073 = vpop.f32.mrf.mxu0
        %v5074 = vadd.f32 0.0, %v5073
        %v5075 = vpop.f32.mrf.mxu0
        %v5076 = vpop.f32.mrf.mxu0
        %v5077 = vpop.f32.mrf.mxu0
        %5078 = vdwg.mxu0
        %5079 = vrot.lane.b32.xlu0 %v839, 64
        %v5080 = vpop.permute.xlu0 %5079
        %v5082 = vsel %vm1269, %v4930, 0
        %v5085 = vsel %vm1369, %v5080, 0
        %5087 = vmatprep.subr.bf16.mxu0 0
        %5088 = vmatpush1.bf16.msra.mxu0 0
        %5089 = vmatprep.subr.bf16.mxu0 0
        %5090 = vmatpush1.bf16.msra.mxu0 0
        %5091 = vmatprep.subr.bf16.mxu0 0
        %5092 = vmatpush1.bf16.msra.mxu0 0
        %5093 = vmatprep.subr.bf16.mxu0 0
        %5094 = vmatpush1.bf16.msra.mxu0 0
        %5095 = vmatprep.subr.bf16.mxu0 0
        %5096 = vmatpush1.bf16.msra.mxu0 0
        %5097 = vmatprep.subr.bf16.mxu0 0
        %5098 = vmatpush1.bf16.msra.mxu0 0
        %5099 = vmatprep.subr.bf16.mxu0 0
        %5100 = vmatpush1.bf16.msra.mxu0 0
        %5101 = vmatprep.subr.bf16.mxu0 0
        %5102 = vmatpush1.bf16.msra.mxu0 %v5085
        %5103 = vmatprep.subr.bf16.mxu0 0
        %5104 = vmatpush2.bf16.msra.mxu0 0
        %5105 = vmatprep.subr.bf16.mxu0 0
        %5106 = vmatpush2.bf16.msra.mxu0 0
        %5107 = vmatprep.subr.bf16.mxu0 0
        %5108 = vmatpush2.bf16.msra.mxu0 0
        %5109 = vmatprep.subr.bf16.mxu0 0
        %5110 = vmatpush2.bf16.msra.mxu0 0
        %5111 = vmatprep.subr.bf16.mxu0 0
        %5112 = vmatpush2.bf16.msra.mxu0 0
        %5113 = vmatprep.subr.bf16.mxu0 0
        %5114 = vmatpush2.bf16.msra.mxu0 0
        %5115 = vmatprep.subr.bf16.mxu0 0
        %5116 = vmatpush2.bf16.msra.mxu0 0
        %5117 = vmatprep.subr.bf16.mxu0 0
        %5118 = vmatpush2.bf16.msra.mxu0 0
        %5119 = vmatprep.mubr.bf16.mxu0 0
        %5120 = vmatmul.mubr.bf16.gmra.mxu0 %v5082
        %v5121 = vpop.f32.mrf.mxu0
        %v5122 = vadd.f32 0.0, %v5121
        %v5123 = vpop.f32.mrf.mxu0
        %v5124 = vpop.f32.mrf.mxu0
        %v5125 = vpop.f32.mrf.mxu0
        %5126 = vdwg.mxu0
        %5127 = vrot.lane.b32.xlu0 %v840, 64
        %v5128 = vpop.permute.xlu0 %5127
        %v5130 = vsel %vm1269, %v4931, 0
        %v5133 = vsel %vm1369, %v5128, 0
        %5135 = vmatprep.subr.bf16.mxu0 0
        %5136 = vmatpush1.bf16.msra.mxu0 0
        %5137 = vmatprep.subr.bf16.mxu0 0
        %5138 = vmatpush1.bf16.msra.mxu0 0
        %5139 = vmatprep.subr.bf16.mxu0 0
        %5140 = vmatpush1.bf16.msra.mxu0 0
        %5141 = vmatprep.subr.bf16.mxu0 0
        %5142 = vmatpush1.bf16.msra.mxu0 0
        %5143 = vmatprep.subr.bf16.mxu0 0
        %5144 = vmatpush1.bf16.msra.mxu0 0
        %5145 = vmatprep.subr.bf16.mxu0 0
        %5146 = vmatpush1.bf16.msra.mxu0 0
        %5147 = vmatprep.subr.bf16.mxu0 0
        %5148 = vmatpush1.bf16.msra.mxu0 0
        %5149 = vmatprep.subr.bf16.mxu0 0
        %5150 = vmatpush1.bf16.msra.mxu0 %v5133
        %5151 = vmatprep.subr.bf16.mxu0 0
        %5152 = vmatpush2.bf16.msra.mxu0 0
        %5153 = vmatprep.subr.bf16.mxu0 0
        %5154 = vmatpush2.bf16.msra.mxu0 0
        %5155 = vmatprep.subr.bf16.mxu0 0
        %5156 = vmatpush2.bf16.msra.mxu0 0
        %5157 = vmatprep.subr.bf16.mxu0 0
        %5158 = vmatpush2.bf16.msra.mxu0 0
        %5159 = vmatprep.subr.bf16.mxu0 0
        %5160 = vmatpush2.bf16.msra.mxu0 0
        %5161 = vmatprep.subr.bf16.mxu0 0
        %5162 = vmatpush2.bf16.msra.mxu0 0
        %5163 = vmatprep.subr.bf16.mxu0 0
        %5164 = vmatpush2.bf16.msra.mxu0 0
        %5165 = vmatprep.subr.bf16.mxu0 0
        %5166 = vmatpush2.bf16.msra.mxu0 0
        %5167 = vmatprep.mubr.bf16.mxu0 0
        %5168 = vmatmul.mubr.bf16.gmra.mxu0 %v5130
        %v5169 = vpop.f32.mrf.mxu0
        %v5170 = vadd.f32 0.0, %v5169
        %v5171 = vpop.f32.mrf.mxu0
        %v5172 = vpop.f32.mrf.mxu0
        %v5173 = vpop.f32.mrf.mxu0
        %5174 = vdwg.mxu0
        %5175 = vrot.lane.b32.xlu0 %v841, 64
        %v5176 = vpop.permute.xlu0 %5175
        %v5178 = vsel %vm1269, %v4932, 0
        %v5181 = vsel %vm1369, %v5176, 0
        %5183 = vmatprep.subr.bf16.mxu0 0
        %5184 = vmatpush1.bf16.msra.mxu0 0
        %5185 = vmatprep.subr.bf16.mxu0 0
        %5186 = vmatpush1.bf16.msra.mxu0 0
        %5187 = vmatprep.subr.bf16.mxu0 0
        %5188 = vmatpush1.bf16.msra.mxu0 0
        %5189 = vmatprep.subr.bf16.mxu0 0
        %5190 = vmatpush1.bf16.msra.mxu0 0
        %5191 = vmatprep.subr.bf16.mxu0 0
        %5192 = vmatpush1.bf16.msra.mxu0 0
        %5193 = vmatprep.subr.bf16.mxu0 0
        %5194 = vmatpush1.bf16.msra.mxu0 0
        %5195 = vmatprep.subr.bf16.mxu0 0
        %5196 = vmatpush1.bf16.msra.mxu0 0
        %5197 = vmatprep.subr.bf16.mxu0 0
        %5198 = vmatpush1.bf16.msra.mxu0 %v5181
        %5199 = vmatprep.subr.bf16.mxu0 0
        %5200 = vmatpush2.bf16.msra.mxu0 0
        %5201 = vmatprep.subr.bf16.mxu0 0
        %5202 = vmatpush2.bf16.msra.mxu0 0
        %5203 = vmatprep.subr.bf16.mxu0 0
        %5204 = vmatpush2.bf16.msra.mxu0 0
        %5205 = vmatprep.subr.bf16.mxu0 0
        %5206 = vmatpush2.bf16.msra.mxu0 0
        %5207 = vmatprep.subr.bf16.mxu0 0
        %5208 = vmatpush2.bf16.msra.mxu0 0
        %5209 = vmatprep.subr.bf16.mxu0 0
        %5210 = vmatpush2.bf16.msra.mxu0 0
        %5211 = vmatprep.subr.bf16.mxu0 0
        %5212 = vmatpush2.bf16.msra.mxu0 0
        %5213 = vmatprep.subr.bf16.mxu0 0
        %5214 = vmatpush2.bf16.msra.mxu0 0
        %5215 = vmatprep.mubr.bf16.mxu0 0
        %5216 = vmatmul.mubr.bf16.gmra.mxu0 %v5178
        %v5217 = vpop.f32.mrf.mxu0
        %v5218 = vadd.f32 0.0, %v5217
        %v5219 = vpop.f32.mrf.mxu0
        %v5220 = vpop.f32.mrf.mxu0
        %v5221 = vpop.f32.mrf.mxu0
        %5222 = vdwg.mxu0
        %5223 = vrot.lane.b32.xlu0 %v842, 64
        %v5224 = vpop.permute.xlu0 %5223
        %v5226 = vsel %vm1269, %v4933, 0
        %v5229 = vsel %vm1369, %v5224, 0
        %5231 = vmatprep.subr.bf16.mxu0 0
        %5232 = vmatpush1.bf16.msra.mxu0 0
        %5233 = vmatprep.subr.bf16.mxu0 0
        %5234 = vmatpush1.bf16.msra.mxu0 0
        %5235 = vmatprep.subr.bf16.mxu0 0
        %5236 = vmatpush1.bf16.msra.mxu0 0
        %5237 = vmatprep.subr.bf16.mxu0 0
        %5238 = vmatpush1.bf16.msra.mxu0 0
        %5239 = vmatprep.subr.bf16.mxu0 0
        %5240 = vmatpush1.bf16.msra.mxu0 0
        %5241 = vmatprep.subr.bf16.mxu0 0
        %5242 = vmatpush1.bf16.msra.mxu0 0
        %5243 = vmatprep.subr.bf16.mxu0 0
        %5244 = vmatpush1.bf16.msra.mxu0 0
        %5245 = vmatprep.subr.bf16.mxu0 0
        %5246 = vmatpush1.bf16.msra.mxu0 %v5229
        %5247 = vmatprep.subr.bf16.mxu0 0
        %5248 = vmatpush2.bf16.msra.mxu0 0
        %5249 = vmatprep.subr.bf16.mxu0 0
        %5250 = vmatpush2.bf16.msra.mxu0 0
        %5251 = vmatprep.subr.bf16.mxu0 0
        %5252 = vmatpush2.bf16.msra.mxu0 0
        %5253 = vmatprep.subr.bf16.mxu0 0
        %5254 = vmatpush2.bf16.msra.mxu0 0
        %5255 = vmatprep.subr.bf16.mxu0 0
        %5256 = vmatpush2.bf16.msra.mxu0 0
        %5257 = vmatprep.subr.bf16.mxu0 0
        %5258 = vmatpush2.bf16.msra.mxu0 0
        %5259 = vmatprep.subr.bf16.mxu0 0
        %5260 = vmatpush2.bf16.msra.mxu0 0
        %5261 = vmatprep.subr.bf16.mxu0 0
        %5262 = vmatpush2.bf16.msra.mxu0 0
        %5263 = vmatprep.mubr.bf16.mxu0 0
        %5264 = vmatmul.mubr.bf16.gmra.mxu0 %v5226
        %v5265 = vpop.f32.mrf.mxu0
        %v5266 = vadd.f32 0.0, %v5265
        %v5267 = vpop.f32.mrf.mxu0
        %v5268 = vpop.f32.mrf.mxu0
        %v5269 = vpop.f32.mrf.mxu0
        %5270 = vdwg.mxu0
        %5271 = vrot.lane.b32.xlu0 %v843, 64
        %v5272 = vpop.permute.xlu0 %5271
        %v5274 = vsel %vm1269, %v4934, 0
        %v5277 = vsel %vm1369, %v5272, 0
        %5279 = vmatprep.subr.bf16.mxu0 0
        %5280 = vmatpush1.bf16.msra.mxu0 0
        %5281 = vmatprep.subr.bf16.mxu0 0
        %5282 = vmatpush1.bf16.msra.mxu0 0
        %5283 = vmatprep.subr.bf16.mxu0 0
        %5284 = vmatpush1.bf16.msra.mxu0 0
        %5285 = vmatprep.subr.bf16.mxu0 0
        %5286 = vmatpush1.bf16.msra.mxu0 0
        %5287 = vmatprep.subr.bf16.mxu0 0
        %5288 = vmatpush1.bf16.msra.mxu0 0
        %5289 = vmatprep.subr.bf16.mxu0 0
        %5290 = vmatpush1.bf16.msra.mxu0 0
        %5291 = vmatprep.subr.bf16.mxu0 0
        %5292 = vmatpush1.bf16.msra.mxu0 0
        %5293 = vmatprep.subr.bf16.mxu0 0
        %5294 = vmatpush1.bf16.msra.mxu0 %v5277
        %5295 = vmatprep.subr.bf16.mxu0 0
        %5296 = vmatpush2.bf16.msra.mxu0 0
        %5297 = vmatprep.subr.bf16.mxu0 0
        %5298 = vmatpush2.bf16.msra.mxu0 0
        %5299 = vmatprep.subr.bf16.mxu0 0
        %5300 = vmatpush2.bf16.msra.mxu0 0
        %5301 = vmatprep.subr.bf16.mxu0 0
        %5302 = vmatpush2.bf16.msra.mxu0 0
        %5303 = vmatprep.subr.bf16.mxu0 0
        %5304 = vmatpush2.bf16.msra.mxu0 0
        %5305 = vmatprep.subr.bf16.mxu0 0
        %5306 = vmatpush2.bf16.msra.mxu0 0
        %5307 = vmatprep.subr.bf16.mxu0 0
        %5308 = vmatpush2.bf16.msra.mxu0 0
        %5309 = vmatprep.subr.bf16.mxu0 0
        %5310 = vmatpush2.bf16.msra.mxu0 0
        %5311 = vmatprep.mubr.bf16.mxu0 0
        %5312 = vmatmul.mubr.bf16.gmra.mxu0 %v5274
        %v5313 = vpop.f32.mrf.mxu0
        %v5314 = vadd.f32 0.0, %v5313
        %v5315 = vpop.f32.mrf.mxu0
        %v5316 = vpop.f32.mrf.mxu0
        %v5317 = vpop.f32.mrf.mxu0
        %5318 = vdwg.mxu0
        %5319 = vrot.lane.b32.xlu0 %v796, 48
        %v5320 = vpop.permute.xlu0 %5319
        %5321 = vrot.lane.b32.xlu0 %v816, 48
        %v5322 = vpop.permute.xlu0 %5321
        %v5324 = vsel %vm852, %v5320, 0
        %v5327 = vsel %vm852, %v5322, 0
        %5329 = vmatprep.subr.bf16.mxu0 0
        %5330 = vmatpush1.bf16.xpose.msra.mxu0 0
        %5331 = vmatprep.subr.bf16.mxu0 0
        %5332 = vmatpush1.bf16.xpose.msra.mxu0 0
        %5333 = vmatprep.subr.bf16.mxu0 0
        %5334 = vmatpush1.bf16.xpose.msra.mxu0 0
        %5335 = vmatprep.subr.bf16.mxu0 0
        %5336 = vmatpush1.bf16.xpose.msra.mxu0 0
        %5337 = vmatprep.subr.bf16.mxu0 0
        %5338 = vmatpush1.bf16.xpose.msra.mxu0 0
        %5339 = vmatprep.subr.bf16.mxu0 0
        %5340 = vmatpush1.bf16.xpose.msra.mxu0 0
        %5341 = vmatprep.subr.bf16.mxu0 0
        %5342 = vmatpush1.bf16.xpose.msra.mxu0 0
        %5343 = vmatprep.subr.bf16.mxu0 0
        %5344 = vmatpush1.bf16.xpose.msra.mxu0 %v5327
        %5345 = vmatprep.subr.bf16.mxu0 0
        %5346 = vmatpush2.bf16.xpose.msra.mxu0 0
        %5347 = vmatprep.subr.bf16.mxu0 0
        %5348 = vmatpush2.bf16.xpose.msra.mxu0 0
        %5349 = vmatprep.subr.bf16.mxu0 0
        %5350 = vmatpush2.bf16.xpose.msra.mxu0 0
        %5351 = vmatprep.subr.bf16.mxu0 0
        %5352 = vmatpush2.bf16.xpose.msra.mxu0 0
        %5353 = vmatprep.subr.bf16.mxu0 0
        %5354 = vmatpush2.bf16.xpose.msra.mxu0 0
        %5355 = vmatprep.subr.bf16.mxu0 0
        %5356 = vmatpush2.bf16.xpose.msra.mxu0 0
        %5357 = vmatprep.subr.bf16.mxu0 0
        %5358 = vmatpush2.bf16.xpose.msra.mxu0 0
        %5359 = vmatprep.subr.bf16.mxu0 0
        %5360 = vmatpush2.bf16.xpose.msra.mxu0 0
        %5361 = vmatprep.mubr.bf16.mxu0 0
        %5362 = vmatmul.mubr.bf16.gmra.mxu0 %v5324
        %v5363 = vpop.f32.mrf.mxu0
        %v5364 = vadd.f32 0.0, %v5363
        %v5365 = vpop.f32.mrf.mxu0
        %v5366 = vpop.f32.mrf.mxu0
        %v5367 = vpop.f32.mrf.mxu0
        %5368 = vdwg.mxu0
        %5369 = vrot.lane.b32.xlu0 %v797, 48
        %v5370 = vpop.permute.xlu0 %5369
        %5371 = vrot.lane.b32.xlu0 %v817, 48
        %v5372 = vpop.permute.xlu0 %5371
        %v5374 = vsel %vm852, %v5370, 0
        %v5377 = vsel %vm852, %v5372, 0
        %5379 = vmatprep.subr.bf16.mxu0 0
        %5380 = vmatpush1.bf16.xpose.msra.mxu0 0
        %5381 = vmatprep.subr.bf16.mxu0 0
        %5382 = vmatpush1.bf16.xpose.msra.mxu0 0
        %5383 = vmatprep.subr.bf16.mxu0 0
        %5384 = vmatpush1.bf16.xpose.msra.mxu0 0
        %5385 = vmatprep.subr.bf16.mxu0 0
        %5386 = vmatpush1.bf16.xpose.msra.mxu0 0
        %5387 = vmatprep.subr.bf16.mxu0 0
        %5388 = vmatpush1.bf16.xpose.msra.mxu0 0
        %5389 = vmatprep.subr.bf16.mxu0 0
        %5390 = vmatpush1.bf16.xpose.msra.mxu0 0
        %5391 = vmatprep.subr.bf16.mxu0 0
        %5392 = vmatpush1.bf16.xpose.msra.mxu0 0
        %5393 = vmatprep.subr.bf16.mxu0 0
        %5394 = vmatpush1.bf16.xpose.msra.mxu0 %v5377
        %5395 = vmatprep.subr.bf16.mxu0 0
        %5396 = vmatpush2.bf16.xpose.msra.mxu0 0
        %5397 = vmatprep.subr.bf16.mxu0 0
        %5398 = vmatpush2.bf16.xpose.msra.mxu0 0
        %5399 = vmatprep.subr.bf16.mxu0 0
        %5400 = vmatpush2.bf16.xpose.msra.mxu0 0
        %5401 = vmatprep.subr.bf16.mxu0 0
        %5402 = vmatpush2.bf16.xpose.msra.mxu0 0
        %5403 = vmatprep.subr.bf16.mxu0 0
        %5404 = vmatpush2.bf16.xpose.msra.mxu0 0
        %5405 = vmatprep.subr.bf16.mxu0 0
        %5406 = vmatpush2.bf16.xpose.msra.mxu0 0
        %5407 = vmatprep.subr.bf16.mxu0 0
        %5408 = vmatpush2.bf16.xpose.msra.mxu0 0
        %5409 = vmatprep.subr.bf16.mxu0 0
        %5410 = vmatpush2.bf16.xpose.msra.mxu0 0
        %5411 = vmatprep.mubr.bf16.mxu0 0
        %5412 = vmatmul.mubr.bf16.gmra.mxu0 %v5374
        %v5413 = vpop.f32.mrf.mxu0
        %v5414 = vadd.f32 0.0, %v5413
        %v5415 = vpop.f32.mrf.mxu0
        %v5416 = vpop.f32.mrf.mxu0
        %v5417 = vpop.f32.mrf.mxu0
        %5418 = vdwg.mxu0
        %5419 = vrot.lane.b32.xlu0 %v798, 48
        %v5420 = vpop.permute.xlu0 %5419
        %5421 = vrot.lane.b32.xlu0 %v818, 48
        %v5422 = vpop.permute.xlu0 %5421
        %v5424 = vsel %vm852, %v5420, 0
        %v5427 = vsel %vm852, %v5422, 0
        %5429 = vmatprep.subr.bf16.mxu0 0
        %5430 = vmatpush1.bf16.xpose.msra.mxu0 0
        %5431 = vmatprep.subr.bf16.mxu0 0
        %5432 = vmatpush1.bf16.xpose.msra.mxu0 0
        %5433 = vmatprep.subr.bf16.mxu0 0
        %5434 = vmatpush1.bf16.xpose.msra.mxu0 0
        %5435 = vmatprep.subr.bf16.mxu0 0
        %5436 = vmatpush1.bf16.xpose.msra.mxu0 0
        %5437 = vmatprep.subr.bf16.mxu0 0
        %5438 = vmatpush1.bf16.xpose.msra.mxu0 0
        %5439 = vmatprep.subr.bf16.mxu0 0
        %5440 = vmatpush1.bf16.xpose.msra.mxu0 0
        %5441 = vmatprep.subr.bf16.mxu0 0
        %5442 = vmatpush1.bf16.xpose.msra.mxu0 0
        %5443 = vmatprep.subr.bf16.mxu0 0
        %5444 = vmatpush1.bf16.xpose.msra.mxu0 %v5427
        %5445 = vmatprep.subr.bf16.mxu0 0
        %5446 = vmatpush2.bf16.xpose.msra.mxu0 0
        %5447 = vmatprep.subr.bf16.mxu0 0
        %5448 = vmatpush2.bf16.xpose.msra.mxu0 0
        %5449 = vmatprep.subr.bf16.mxu0 0
        %5450 = vmatpush2.bf16.xpose.msra.mxu0 0
        %5451 = vmatprep.subr.bf16.mxu0 0
        %5452 = vmatpush2.bf16.xpose.msra.mxu0 0
        %5453 = vmatprep.subr.bf16.mxu0 0
        %5454 = vmatpush2.bf16.xpose.msra.mxu0 0
        %5455 = vmatprep.subr.bf16.mxu0 0
        %5456 = vmatpush2.bf16.xpose.msra.mxu0 0
        %5457 = vmatprep.subr.bf16.mxu0 0
        %5458 = vmatpush2.bf16.xpose.msra.mxu0 0
        %5459 = vmatprep.subr.bf16.mxu0 0
        %5460 = vmatpush2.bf16.xpose.msra.mxu0 0
        %5461 = vmatprep.mubr.bf16.mxu0 0
        %5462 = vmatmul.mubr.bf16.gmra.mxu0 %v5424
        %v5463 = vpop.f32.mrf.mxu0
        %v5464 = vadd.f32 0.0, %v5463
        %v5465 = vpop.f32.mrf.mxu0
        %v5466 = vpop.f32.mrf.mxu0
        %v5467 = vpop.f32.mrf.mxu0
        %5468 = vdwg.mxu0
        %5469 = vrot.lane.b32.xlu0 %v799, 48
        %v5470 = vpop.permute.xlu0 %5469
        %5471 = vrot.lane.b32.xlu0 %v819, 48
        %v5472 = vpop.permute.xlu0 %5471
        %v5474 = vsel %vm852, %v5470, 0
        %v5477 = vsel %vm852, %v5472, 0
        %5479 = vmatprep.subr.bf16.mxu0 0
        %5480 = vmatpush1.bf16.xpose.msra.mxu0 0
        %5481 = vmatprep.subr.bf16.mxu0 0
        %5482 = vmatpush1.bf16.xpose.msra.mxu0 0
        %5483 = vmatprep.subr.bf16.mxu0 0
        %5484 = vmatpush1.bf16.xpose.msra.mxu0 0
        %5485 = vmatprep.subr.bf16.mxu0 0
        %5486 = vmatpush1.bf16.xpose.msra.mxu0 0
        %5487 = vmatprep.subr.bf16.mxu0 0
        %5488 = vmatpush1.bf16.xpose.msra.mxu0 0
        %5489 = vmatprep.subr.bf16.mxu0 0
        %5490 = vmatpush1.bf16.xpose.msra.mxu0 0
        %5491 = vmatprep.subr.bf16.mxu0 0
        %5492 = vmatpush1.bf16.xpose.msra.mxu0 0
        %5493 = vmatprep.subr.bf16.mxu0 0
        %5494 = vmatpush1.bf16.xpose.msra.mxu0 %v5477
        %5495 = vmatprep.subr.bf16.mxu0 0
        %5496 = vmatpush2.bf16.xpose.msra.mxu0 0
        %5497 = vmatprep.subr.bf16.mxu0 0
        %5498 = vmatpush2.bf16.xpose.msra.mxu0 0
        %5499 = vmatprep.subr.bf16.mxu0 0
        %5500 = vmatpush2.bf16.xpose.msra.mxu0 0
        %5501 = vmatprep.subr.bf16.mxu0 0
        %5502 = vmatpush2.bf16.xpose.msra.mxu0 0
        %5503 = vmatprep.subr.bf16.mxu0 0
        %5504 = vmatpush2.bf16.xpose.msra.mxu0 0
        %5505 = vmatprep.subr.bf16.mxu0 0
        %5506 = vmatpush2.bf16.xpose.msra.mxu0 0
        %5507 = vmatprep.subr.bf16.mxu0 0
        %5508 = vmatpush2.bf16.xpose.msra.mxu0 0
        %5509 = vmatprep.subr.bf16.mxu0 0
        %5510 = vmatpush2.bf16.xpose.msra.mxu0 0
        %5511 = vmatprep.mubr.bf16.mxu0 0
        %5512 = vmatmul.mubr.bf16.gmra.mxu0 %v5474
        %v5513 = vpop.f32.mrf.mxu0
        %v5514 = vadd.f32 0.0, %v5513
        %v5515 = vpop.f32.mrf.mxu0
        %v5516 = vpop.f32.mrf.mxu0
        %v5517 = vpop.f32.mrf.mxu0
        %5518 = vdwg.mxu0
        %5519 = vrot.lane.b32.xlu0 %v800, 48
        %v5520 = vpop.permute.xlu0 %5519
        %5521 = vrot.lane.b32.xlu0 %v820, 48
        %v5522 = vpop.permute.xlu0 %5521
        %v5524 = vsel %vm852, %v5520, 0
        %v5527 = vsel %vm852, %v5522, 0
        %5529 = vmatprep.subr.bf16.mxu0 0
        %5530 = vmatpush1.bf16.xpose.msra.mxu0 0
        %5531 = vmatprep.subr.bf16.mxu0 0
        %5532 = vmatpush1.bf16.xpose.msra.mxu0 0
        %5533 = vmatprep.subr.bf16.mxu0 0
        %5534 = vmatpush1.bf16.xpose.msra.mxu0 0
        %5535 = vmatprep.subr.bf16.mxu0 0
        %5536 = vmatpush1.bf16.xpose.msra.mxu0 0
        %5537 = vmatprep.subr.bf16.mxu0 0
        %5538 = vmatpush1.bf16.xpose.msra.mxu0 0
        %5539 = vmatprep.subr.bf16.mxu0 0
        %5540 = vmatpush1.bf16.xpose.msra.mxu0 0
        %5541 = vmatprep.subr.bf16.mxu0 0
        %5542 = vmatpush1.bf16.xpose.msra.mxu0 0
        %5543 = vmatprep.subr.bf16.mxu0 0
        %5544 = vmatpush1.bf16.xpose.msra.mxu0 %v5527
        %5545 = vmatprep.subr.bf16.mxu0 0
        %5546 = vmatpush2.bf16.xpose.msra.mxu0 0
        %5547 = vmatprep.subr.bf16.mxu0 0
        %5548 = vmatpush2.bf16.xpose.msra.mxu0 0
        %5549 = vmatprep.subr.bf16.mxu0 0
        %5550 = vmatpush2.bf16.xpose.msra.mxu0 0
        %5551 = vmatprep.subr.bf16.mxu0 0
        %5552 = vmatpush2.bf16.xpose.msra.mxu0 0
        %5553 = vmatprep.subr.bf16.mxu0 0
        %5554 = vmatpush2.bf16.xpose.msra.mxu0 0
        %5555 = vmatprep.subr.bf16.mxu0 0
        %5556 = vmatpush2.bf16.xpose.msra.mxu0 0
        %5557 = vmatprep.subr.bf16.mxu0 0
        %5558 = vmatpush2.bf16.xpose.msra.mxu0 0
        %5559 = vmatprep.subr.bf16.mxu0 0
        %5560 = vmatpush2.bf16.xpose.msra.mxu0 0
        %5561 = vmatprep.mubr.bf16.mxu0 0
        %5562 = vmatmul.mubr.bf16.gmra.mxu0 %v5524
        %v5563 = vpop.f32.mrf.mxu0
        %v5564 = vadd.f32 0.0, %v5563
        %v5565 = vpop.f32.mrf.mxu0
        %v5566 = vpop.f32.mrf.mxu0
        %v5567 = vpop.f32.mrf.mxu0
        %5568 = vdwg.mxu0
        %5569 = vrot.lane.b32.xlu0 %v801, 48
        %v5570 = vpop.permute.xlu0 %5569
        %5571 = vrot.lane.b32.xlu0 %v821, 48
        %v5572 = vpop.permute.xlu0 %5571
        %v5574 = vsel %vm852, %v5570, 0
        %v5577 = vsel %vm852, %v5572, 0
        %5579 = vmatprep.subr.bf16.mxu0 0
        %5580 = vmatpush1.bf16.xpose.msra.mxu0 0
        %5581 = vmatprep.subr.bf16.mxu0 0
        %5582 = vmatpush1.bf16.xpose.msra.mxu0 0
        %5583 = vmatprep.subr.bf16.mxu0 0
        %5584 = vmatpush1.bf16.xpose.msra.mxu0 0
        %5585 = vmatprep.subr.bf16.mxu0 0
        %5586 = vmatpush1.bf16.xpose.msra.mxu0 0
        %5587 = vmatprep.subr.bf16.mxu0 0
        %5588 = vmatpush1.bf16.xpose.msra.mxu0 0
        %5589 = vmatprep.subr.bf16.mxu0 0
        %5590 = vmatpush1.bf16.xpose.msra.mxu0 0
        %5591 = vmatprep.subr.bf16.mxu0 0
        %5592 = vmatpush1.bf16.xpose.msra.mxu0 0
        %5593 = vmatprep.subr.bf16.mxu0 0
        %5594 = vmatpush1.bf16.xpose.msra.mxu0 %v5577
        %5595 = vmatprep.subr.bf16.mxu0 0
        %5596 = vmatpush2.bf16.xpose.msra.mxu0 0
        %5597 = vmatprep.subr.bf16.mxu0 0
        %5598 = vmatpush2.bf16.xpose.msra.mxu0 0
        %5599 = vmatprep.subr.bf16.mxu0 0
        %5600 = vmatpush2.bf16.xpose.msra.mxu0 0
        %5601 = vmatprep.subr.bf16.mxu0 0
        %5602 = vmatpush2.bf16.xpose.msra.mxu0 0
        %5603 = vmatprep.subr.bf16.mxu0 0
        %5604 = vmatpush2.bf16.xpose.msra.mxu0 0
        %5605 = vmatprep.subr.bf16.mxu0 0
        %5606 = vmatpush2.bf16.xpose.msra.mxu0 0
        %5607 = vmatprep.subr.bf16.mxu0 0
        %5608 = vmatpush2.bf16.xpose.msra.mxu0 0
        %5609 = vmatprep.subr.bf16.mxu0 0
        %5610 = vmatpush2.bf16.xpose.msra.mxu0 0
        %5611 = vmatprep.mubr.bf16.mxu0 0
        %5612 = vmatmul.mubr.bf16.gmra.mxu0 %v5574
        %v5613 = vpop.f32.mrf.mxu0
        %v5614 = vadd.f32 0.0, %v5613
        %v5615 = vpop.f32.mrf.mxu0
        %v5616 = vpop.f32.mrf.mxu0
        %v5617 = vpop.f32.mrf.mxu0
        %5618 = vdwg.mxu0
        %5619 = vrot.lane.b32.xlu0 %v802, 48
        %v5620 = vpop.permute.xlu0 %5619
        %5621 = vrot.lane.b32.xlu0 %v822, 48
        %v5622 = vpop.permute.xlu0 %5621
        %v5624 = vsel %vm852, %v5620, 0
        %v5627 = vsel %vm852, %v5622, 0
        %5629 = vmatprep.subr.bf16.mxu0 0
        %5630 = vmatpush1.bf16.xpose.msra.mxu0 0
        %5631 = vmatprep.subr.bf16.mxu0 0
        %5632 = vmatpush1.bf16.xpose.msra.mxu0 0
        %5633 = vmatprep.subr.bf16.mxu0 0
        %5634 = vmatpush1.bf16.xpose.msra.mxu0 0
        %5635 = vmatprep.subr.bf16.mxu0 0
        %5636 = vmatpush1.bf16.xpose.msra.mxu0 0
        %5637 = vmatprep.subr.bf16.mxu0 0
        %5638 = vmatpush1.bf16.xpose.msra.mxu0 0
        %5639 = vmatprep.subr.bf16.mxu0 0
        %5640 = vmatpush1.bf16.xpose.msra.mxu0 0
        %5641 = vmatprep.subr.bf16.mxu0 0
        %5642 = vmatpush1.bf16.xpose.msra.mxu0 0
        %5643 = vmatprep.subr.bf16.mxu0 0
        %5644 = vmatpush1.bf16.xpose.msra.mxu0 %v5627
        %5645 = vmatprep.subr.bf16.mxu0 0
        %5646 = vmatpush2.bf16.xpose.msra.mxu0 0
        %5647 = vmatprep.subr.bf16.mxu0 0
        %5648 = vmatpush2.bf16.xpose.msra.mxu0 0
        %5649 = vmatprep.subr.bf16.mxu0 0
        %5650 = vmatpush2.bf16.xpose.msra.mxu0 0
        %5651 = vmatprep.subr.bf16.mxu0 0
        %5652 = vmatpush2.bf16.xpose.msra.mxu0 0
        %5653 = vmatprep.subr.bf16.mxu0 0
        %5654 = vmatpush2.bf16.xpose.msra.mxu0 0
        %5655 = vmatprep.subr.bf16.mxu0 0
        %5656 = vmatpush2.bf16.xpose.msra.mxu0 0
        %5657 = vmatprep.subr.bf16.mxu0 0
        %5658 = vmatpush2.bf16.xpose.msra.mxu0 0
        %5659 = vmatprep.subr.bf16.mxu0 0
        %5660 = vmatpush2.bf16.xpose.msra.mxu0 0
        %5661 = vmatprep.mubr.bf16.mxu0 0
        %5662 = vmatmul.mubr.bf16.gmra.mxu0 %v5624
        %v5663 = vpop.f32.mrf.mxu0
        %v5664 = vadd.f32 0.0, %v5663
        %v5665 = vpop.f32.mrf.mxu0
        %v5666 = vpop.f32.mrf.mxu0
        %v5667 = vpop.f32.mrf.mxu0
        %5668 = vdwg.mxu0
        %5669 = vrot.lane.b32.xlu0 %v803, 48
        %v5670 = vpop.permute.xlu0 %5669
        %5671 = vrot.lane.b32.xlu0 %v823, 48
        %v5672 = vpop.permute.xlu0 %5671
        %v5674 = vsel %vm852, %v5670, 0
        %v5677 = vsel %vm852, %v5672, 0
        %5679 = vmatprep.subr.bf16.mxu0 0
        %5680 = vmatpush1.bf16.xpose.msra.mxu0 0
        %5681 = vmatprep.subr.bf16.mxu0 0
        %5682 = vmatpush1.bf16.xpose.msra.mxu0 0
        %5683 = vmatprep.subr.bf16.mxu0 0
        %5684 = vmatpush1.bf16.xpose.msra.mxu0 0
        %5685 = vmatprep.subr.bf16.mxu0 0
        %5686 = vmatpush1.bf16.xpose.msra.mxu0 0
        %5687 = vmatprep.subr.bf16.mxu0 0
        %5688 = vmatpush1.bf16.xpose.msra.mxu0 0
        %5689 = vmatprep.subr.bf16.mxu0 0
        %5690 = vmatpush1.bf16.xpose.msra.mxu0 0
        %5691 = vmatprep.subr.bf16.mxu0 0
        %5692 = vmatpush1.bf16.xpose.msra.mxu0 0
        %5693 = vmatprep.subr.bf16.mxu0 0
        %5694 = vmatpush1.bf16.xpose.msra.mxu0 %v5677
        %5695 = vmatprep.subr.bf16.mxu0 0
        %5696 = vmatpush2.bf16.xpose.msra.mxu0 0
        %5697 = vmatprep.subr.bf16.mxu0 0
        %5698 = vmatpush2.bf16.xpose.msra.mxu0 0
        %5699 = vmatprep.subr.bf16.mxu0 0
        %5700 = vmatpush2.bf16.xpose.msra.mxu0 0
        %5701 = vmatprep.subr.bf16.mxu0 0
        %5702 = vmatpush2.bf16.xpose.msra.mxu0 0
        %5703 = vmatprep.subr.bf16.mxu0 0
        %5704 = vmatpush2.bf16.xpose.msra.mxu0 0
        %5705 = vmatprep.subr.bf16.mxu0 0
        %5706 = vmatpush2.bf16.xpose.msra.mxu0 0
        %5707 = vmatprep.subr.bf16.mxu0 0
        %5708 = vmatpush2.bf16.xpose.msra.mxu0 0
        %5709 = vmatprep.subr.bf16.mxu0 0
        %5710 = vmatpush2.bf16.xpose.msra.mxu0 0
        %5711 = vmatprep.mubr.bf16.mxu0 0
        %5712 = vmatmul.mubr.bf16.gmra.mxu0 %v5674
        %v5713 = vpop.f32.mrf.mxu0
        %v5714 = vadd.f32 0.0, %v5713
        %v5715 = vpop.f32.mrf.mxu0
        %v5716 = vpop.f32.mrf.mxu0
        %v5717 = vpop.f32.mrf.mxu0
        %5718 = vdwg.mxu0
        %v5719 = vmul.f32 %v5364, 0.25
        %v5720 = vmul.f32 %v5414, 0.25
        %v5721 = vmul.f32 %v5464, 0.25
        %v5722 = vmul.f32 %v5514, 0.25
        %v5723 = vmul.f32 %v5564, 0.25
        %v5724 = vmul.f32 %v5614, 0.25
        %v5725 = vmul.f32 %v5664, 0.25
        %v5726 = vmul.f32 %v5714, 0.25
        %v5727 = vadd.f32 %v5719, %v1232
        %v5728 = vadd.f32 %v5720, %v1236
        %v5729 = vadd.f32 %v5721, %v1240
        %v5730 = vadd.f32 %v5722, %v1244
        %v5731 = vadd.f32 %v5723, %v1248
        %v5732 = vadd.f32 %v5724, %v1252
        %v5733 = vadd.f32 %v5725, %v1256
        %v5734 = vadd.f32 %v5726, %v1260
        %v5735 = vsel %vm1269, %v5727, -inf
        %5736 = vmax.xlane.f32.xlu0 %v5735
        %v5737 = vpop.xlane.xlu0 %5736
        %v5738 = vsel %vm1269, %v5728, -inf
        %5739 = vmax.xlane.f32.xlu0 %v5738
        %v5740 = vpop.xlane.xlu0 %5739
        %v5741 = vsel %vm1269, %v5729, -inf
        %5742 = vmax.xlane.f32.xlu0 %v5741
        %v5743 = vpop.xlane.xlu0 %5742
        %v5744 = vsel %vm1269, %v5730, -inf
        %5745 = vmax.xlane.f32.xlu0 %v5744
        %v5746 = vpop.xlane.xlu0 %5745
        %v5747 = vsel %vm1269, %v5731, -inf
        %5748 = vmax.xlane.f32.xlu0 %v5747
        %v5749 = vpop.xlane.xlu0 %5748
        %v5750 = vsel %vm1269, %v5732, -inf
        %5751 = vmax.xlane.f32.xlu0 %v5750
        %v5752 = vpop.xlane.xlu0 %5751
        %v5753 = vsel %vm1269, %v5733, -inf
        %5754 = vmax.xlane.f32.xlu0 %v5753
        %v5755 = vpop.xlane.xlu0 %5754
        %v5756 = vsel %vm1269, %v5734, -inf
        %5757 = vmax.xlane.f32.xlu0 %v5756
        %v5758 = vpop.xlane.xlu0 %5757
        %v5759 = vsub.f32 %v5727, %v5737
        %v5760 = vsub.f32 %v5728, %v5740
        %v5761 = vsub.f32 %v5729, %v5743
        %v5762 = vsub.f32 %v5730, %v5746
        %v5763 = vsub.f32 %v5731, %v5749
        %v5764 = vsub.f32 %v5732, %v5752
        %v5765 = vsub.f32 %v5733, %v5755
        %v5766 = vsub.f32 %v5734, %v5758
        %v5767 = vmul.f32 %v5759, 1.442695
        %v5768 = vpow.pop %v5767
        %v5769 = vmul.f32 %v5760, 1.442695
        %v5770 = vpow.pop %v5769
        %v5771 = vmul.f32 %v5761, 1.442695
        %v5772 = vpow.pop %v5771
        %v5773 = vmul.f32 %v5762, 1.442695
        %v5774 = vpow.pop %v5773
        %v5775 = vmul.f32 %v5763, 1.442695
        %v5776 = vpow.pop %v5775
        %v5777 = vmul.f32 %v5764, 1.442695
        %v5778 = vpow.pop %v5777
        %v5779 = vmul.f32 %v5765, 1.442695
        %v5780 = vpow.pop %v5779
        %v5781 = vmul.f32 %v5766, 1.442695
        %v5782 = vpow.pop %v5781
        %v5783 = vsel %vm1269, %v5768, 0.0
        %5784 = vadd.xlane.f32.xlu0 %v5783
        %v5785 = vpop.xlane.xlu0 %5784
        %v5786 = vsel %vm1269, %v5770, 0.0
        %5787 = vadd.xlane.f32.xlu0 %v5786
        %v5788 = vpop.xlane.xlu0 %5787
        %v5789 = vsel %vm1269, %v5772, 0.0
        %5790 = vadd.xlane.f32.xlu0 %v5789
        %v5791 = vpop.xlane.xlu0 %5790
        %v5792 = vsel %vm1269, %v5774, 0.0
        %5793 = vadd.xlane.f32.xlu0 %v5792
        %v5794 = vpop.xlane.xlu0 %5793
        %v5795 = vsel %vm1269, %v5776, 0.0
        %5796 = vadd.xlane.f32.xlu0 %v5795
        %v5797 = vpop.xlane.xlu0 %5796
        %v5798 = vsel %vm1269, %v5778, 0.0
        %5799 = vadd.xlane.f32.xlu0 %v5798
        %v5800 = vpop.xlane.xlu0 %5799
        %v5801 = vsel %vm1269, %v5780, 0.0
        %5802 = vadd.xlane.f32.xlu0 %v5801
        %v5803 = vpop.xlane.xlu0 %5802
        %v5804 = vsel %vm1269, %v5782, 0.0
        %5805 = vadd.xlane.f32.xlu0 %v5804
        %v5806 = vpop.xlane.xlu0 %5805
        %v5807 = vrcp.pop %v5785
        %v5808 = vrcp.pop %v5788
        %v5809 = vrcp.pop %v5791
        %v5810 = vrcp.pop %v5794
        %v5811 = vrcp.pop %v5797
        %v5812 = vrcp.pop %v5800
        %v5813 = vrcp.pop %v5803
        %v5814 = vrcp.pop %v5806
        %v5815 = vmul.f32 %v5768, %v5807
        %v5816 = vmul.f32 %v5770, %v5808
        %v5817 = vmul.f32 %v5772, %v5809
        %v5818 = vmul.f32 %v5774, %v5810
        %v5819 = vmul.f32 %v5776, %v5811
        %v5820 = vmul.f32 %v5778, %v5812
        %v5821 = vmul.f32 %v5780, %v5813
        %v5822 = vmul.f32 %v5782, %v5814
        %v5823 = vpack.c.bf16 %v5815, %v5815
        %v5824 = vpack.c.bf16 %v5816, %v5816
        %v5825 = vpack.c.bf16 %v5817, %v5817
        %v5826 = vpack.c.bf16 %v5818, %v5818
        %v5827 = vpack.c.bf16 %v5819, %v5819
        %v5828 = vpack.c.bf16 %v5820, %v5820
        %v5829 = vpack.c.bf16 %v5821, %v5821
        %v5830 = vpack.c.bf16 %v5822, %v5822
        %5831 = vrot.lane.b32.xlu0 %v836, 48
        %v5832 = vpop.permute.xlu0 %5831
        %v5834 = vsel %vm1269, %v5823, 0
        %v5837 = vsel %vm1369, %v5832, 0
        %5839 = vmatprep.subr.bf16.mxu0 0
        %5840 = vmatpush1.bf16.msra.mxu0 0
        %5841 = vmatprep.subr.bf16.mxu0 0
        %5842 = vmatpush1.bf16.msra.mxu0 0
        %5843 = vmatprep.subr.bf16.mxu0 0
        %5844 = vmatpush1.bf16.msra.mxu0 0
        %5845 = vmatprep.subr.bf16.mxu0 0
        %5846 = vmatpush1.bf16.msra.mxu0 0
        %5847 = vmatprep.subr.bf16.mxu0 0
        %5848 = vmatpush1.bf16.msra.mxu0 0
        %5849 = vmatprep.subr.bf16.mxu0 0
        %5850 = vmatpush1.bf16.msra.mxu0 0
        %5851 = vmatprep.subr.bf16.mxu0 0
        %5852 = vmatpush1.bf16.msra.mxu0 0
        %5853 = vmatprep.subr.bf16.mxu0 0
        %5854 = vmatpush1.bf16.msra.mxu0 %v5837
        %5855 = vmatprep.subr.bf16.mxu0 0
        %5856 = vmatpush2.bf16.msra.mxu0 0
        %5857 = vmatprep.subr.bf16.mxu0 0
        %5858 = vmatpush2.bf16.msra.mxu0 0
        %5859 = vmatprep.subr.bf16.mxu0 0
        %5860 = vmatpush2.bf16.msra.mxu0 0
        %5861 = vmatprep.subr.bf16.mxu0 0
        %5862 = vmatpush2.bf16.msra.mxu0 0
        %5863 = vmatprep.subr.bf16.mxu0 0
        %5864 = vmatpush2.bf16.msra.mxu0 0
        %5865 = vmatprep.subr.bf16.mxu0 0
        %5866 = vmatpush2.bf16.msra.mxu0 0
        %5867 = vmatprep.subr.bf16.mxu0 0
        %5868 = vmatpush2.bf16.msra.mxu0 0
        %5869 = vmatprep.subr.bf16.mxu0 0
        %5870 = vmatpush2.bf16.msra.mxu0 0
        %5871 = vmatprep.mubr.bf16.mxu0 0
        %5872 = vmatmul.mubr.bf16.gmra.mxu0 %v5834
        %v5873 = vpop.f32.mrf.mxu0
        %v5874 = vadd.f32 0.0, %v5873
        %v5875 = vpop.f32.mrf.mxu0
        %v5876 = vpop.f32.mrf.mxu0
        %v5877 = vpop.f32.mrf.mxu0
        %5878 = vdwg.mxu0
        %5879 = vrot.lane.b32.xlu0 %v837, 48
        %v5880 = vpop.permute.xlu0 %5879
        %v5882 = vsel %vm1269, %v5824, 0
        %v5885 = vsel %vm1369, %v5880, 0
        %5887 = vmatprep.subr.bf16.mxu0 0
        %5888 = vmatpush1.bf16.msra.mxu0 0
        %5889 = vmatprep.subr.bf16.mxu0 0
        %5890 = vmatpush1.bf16.msra.mxu0 0
        %5891 = vmatprep.subr.bf16.mxu0 0
        %5892 = vmatpush1.bf16.msra.mxu0 0
        %5893 = vmatprep.subr.bf16.mxu0 0
        %5894 = vmatpush1.bf16.msra.mxu0 0
        %5895 = vmatprep.subr.bf16.mxu0 0
        %5896 = vmatpush1.bf16.msra.mxu0 0
        %5897 = vmatprep.subr.bf16.mxu0 0
        %5898 = vmatpush1.bf16.msra.mxu0 0
        %5899 = vmatprep.subr.bf16.mxu0 0
        %5900 = vmatpush1.bf16.msra.mxu0 0
        %5901 = vmatprep.subr.bf16.mxu0 0
        %5902 = vmatpush1.bf16.msra.mxu0 %v5885
        %5903 = vmatprep.subr.bf16.mxu0 0
        %5904 = vmatpush2.bf16.msra.mxu0 0
        %5905 = vmatprep.subr.bf16.mxu0 0
        %5906 = vmatpush2.bf16.msra.mxu0 0
        %5907 = vmatprep.subr.bf16.mxu0 0
        %5908 = vmatpush2.bf16.msra.mxu0 0
        %5909 = vmatprep.subr.bf16.mxu0 0
        %5910 = vmatpush2.bf16.msra.mxu0 0
        %5911 = vmatprep.subr.bf16.mxu0 0
        %5912 = vmatpush2.bf16.msra.mxu0 0
        %5913 = vmatprep.subr.bf16.mxu0 0
        %5914 = vmatpush2.bf16.msra.mxu0 0
        %5915 = vmatprep.subr.bf16.mxu0 0
        %5916 = vmatpush2.bf16.msra.mxu0 0
        %5917 = vmatprep.subr.bf16.mxu0 0
        %5918 = vmatpush2.bf16.msra.mxu0 0
        %5919 = vmatprep.mubr.bf16.mxu0 0
        %5920 = vmatmul.mubr.bf16.gmra.mxu0 %v5882
        %v5921 = vpop.f32.mrf.mxu0
        %v5922 = vadd.f32 0.0, %v5921
        %v5923 = vpop.f32.mrf.mxu0
        %v5924 = vpop.f32.mrf.mxu0
        %v5925 = vpop.f32.mrf.mxu0
        %5926 = vdwg.mxu0
        %5927 = vrot.lane.b32.xlu0 %v838, 48
        %v5928 = vpop.permute.xlu0 %5927
        %v5930 = vsel %vm1269, %v5825, 0
        %v5933 = vsel %vm1369, %v5928, 0
        %5935 = vmatprep.subr.bf16.mxu0 0
        %5936 = vmatpush1.bf16.msra.mxu0 0
        %5937 = vmatprep.subr.bf16.mxu0 0
        %5938 = vmatpush1.bf16.msra.mxu0 0
        %5939 = vmatprep.subr.bf16.mxu0 0
        %5940 = vmatpush1.bf16.msra.mxu0 0
        %5941 = vmatprep.subr.bf16.mxu0 0
        %5942 = vmatpush1.bf16.msra.mxu0 0
        %5943 = vmatprep.subr.bf16.mxu0 0
        %5944 = vmatpush1.bf16.msra.mxu0 0
        %5945 = vmatprep.subr.bf16.mxu0 0
        %5946 = vmatpush1.bf16.msra.mxu0 0
        %5947 = vmatprep.subr.bf16.mxu0 0
        %5948 = vmatpush1.bf16.msra.mxu0 0
        %5949 = vmatprep.subr.bf16.mxu0 0
        %5950 = vmatpush1.bf16.msra.mxu0 %v5933
        %5951 = vmatprep.subr.bf16.mxu0 0
        %5952 = vmatpush2.bf16.msra.mxu0 0
        %5953 = vmatprep.subr.bf16.mxu0 0
        %5954 = vmatpush2.bf16.msra.mxu0 0
        %5955 = vmatprep.subr.bf16.mxu0 0
        %5956 = vmatpush2.bf16.msra.mxu0 0
        %5957 = vmatprep.subr.bf16.mxu0 0
        %5958 = vmatpush2.bf16.msra.mxu0 0
        %5959 = vmatprep.subr.bf16.mxu0 0
        %5960 = vmatpush2.bf16.msra.mxu0 0
        %5961 = vmatprep.subr.bf16.mxu0 0
        %5962 = vmatpush2.bf16.msra.mxu0 0
        %5963 = vmatprep.subr.bf16.mxu0 0
        %5964 = vmatpush2.bf16.msra.mxu0 0
        %5965 = vmatprep.subr.bf16.mxu0 0
        %5966 = vmatpush2.bf16.msra.mxu0 0
        %5967 = vmatprep.mubr.bf16.mxu0 0
        %5968 = vmatmul.mubr.bf16.gmra.mxu0 %v5930
        %v5969 = vpop.f32.mrf.mxu0
        %v5970 = vadd.f32 0.0, %v5969
        %v5971 = vpop.f32.mrf.mxu0
        %v5972 = vpop.f32.mrf.mxu0
        %v5973 = vpop.f32.mrf.mxu0
        %5974 = vdwg.mxu0
        %5975 = vrot.lane.b32.xlu0 %v839, 48
        %v5976 = vpop.permute.xlu0 %5975
        %v5978 = vsel %vm1269, %v5826, 0
        %v5981 = vsel %vm1369, %v5976, 0
        %5983 = vmatprep.subr.bf16.mxu0 0
        %5984 = vmatpush1.bf16.msra.mxu0 0
        %5985 = vmatprep.subr.bf16.mxu0 0
        %5986 = vmatpush1.bf16.msra.mxu0 0
        %5987 = vmatprep.subr.bf16.mxu0 0
        %5988 = vmatpush1.bf16.msra.mxu0 0
        %5989 = vmatprep.subr.bf16.mxu0 0
        %5990 = vmatpush1.bf16.msra.mxu0 0
        %5991 = vmatprep.subr.bf16.mxu0 0
        %5992 = vmatpush1.bf16.msra.mxu0 0
        %5993 = vmatprep.subr.bf16.mxu0 0
        %5994 = vmatpush1.bf16.msra.mxu0 0
        %5995 = vmatprep.subr.bf16.mxu0 0
        %5996 = vmatpush1.bf16.msra.mxu0 0
        %5997 = vmatprep.subr.bf16.mxu0 0
        %5998 = vmatpush1.bf16.msra.mxu0 %v5981
        %5999 = vmatprep.subr.bf16.mxu0 0
        %6000 = vmatpush2.bf16.msra.mxu0 0
        %6001 = vmatprep.subr.bf16.mxu0 0
        %6002 = vmatpush2.bf16.msra.mxu0 0
        %6003 = vmatprep.subr.bf16.mxu0 0
        %6004 = vmatpush2.bf16.msra.mxu0 0
        %6005 = vmatprep.subr.bf16.mxu0 0
        %6006 = vmatpush2.bf16.msra.mxu0 0
        %6007 = vmatprep.subr.bf16.mxu0 0
        %6008 = vmatpush2.bf16.msra.mxu0 0
        %6009 = vmatprep.subr.bf16.mxu0 0
        %6010 = vmatpush2.bf16.msra.mxu0 0
        %6011 = vmatprep.subr.bf16.mxu0 0
        %6012 = vmatpush2.bf16.msra.mxu0 0
        %6013 = vmatprep.subr.bf16.mxu0 0
        %6014 = vmatpush2.bf16.msra.mxu0 0
        %6015 = vmatprep.mubr.bf16.mxu0 0
        %6016 = vmatmul.mubr.bf16.gmra.mxu0 %v5978
        %v6017 = vpop.f32.mrf.mxu0
        %v6018 = vadd.f32 0.0, %v6017
        %v6019 = vpop.f32.mrf.mxu0
        %v6020 = vpop.f32.mrf.mxu0
        %v6021 = vpop.f32.mrf.mxu0
        %6022 = vdwg.mxu0
        %6023 = vrot.lane.b32.xlu0 %v840, 48
        %v6024 = vpop.permute.xlu0 %6023
        %v6026 = vsel %vm1269, %v5827, 0
        %v6029 = vsel %vm1369, %v6024, 0
        %6031 = vmatprep.subr.bf16.mxu0 0
        %6032 = vmatpush1.bf16.msra.mxu0 0
        %6033 = vmatprep.subr.bf16.mxu0 0
        %6034 = vmatpush1.bf16.msra.mxu0 0
        %6035 = vmatprep.subr.bf16.mxu0 0
        %6036 = vmatpush1.bf16.msra.mxu0 0
        %6037 = vmatprep.subr.bf16.mxu0 0
        %6038 = vmatpush1.bf16.msra.mxu0 0
        %6039 = vmatprep.subr.bf16.mxu0 0
        %6040 = vmatpush1.bf16.msra.mxu0 0
        %6041 = vmatprep.subr.bf16.mxu0 0
        %6042 = vmatpush1.bf16.msra.mxu0 0
        %6043 = vmatprep.subr.bf16.mxu0 0
        %6044 = vmatpush1.bf16.msra.mxu0 0
        %6045 = vmatprep.subr.bf16.mxu0 0
        %6046 = vmatpush1.bf16.msra.mxu0 %v6029
        %6047 = vmatprep.subr.bf16.mxu0 0
        %6048 = vmatpush2.bf16.msra.mxu0 0
        %6049 = vmatprep.subr.bf16.mxu0 0
        %6050 = vmatpush2.bf16.msra.mxu0 0
        %6051 = vmatprep.subr.bf16.mxu0 0
        %6052 = vmatpush2.bf16.msra.mxu0 0
        %6053 = vmatprep.subr.bf16.mxu0 0
        %6054 = vmatpush2.bf16.msra.mxu0 0
        %6055 = vmatprep.subr.bf16.mxu0 0
        %6056 = vmatpush2.bf16.msra.mxu0 0
        %6057 = vmatprep.subr.bf16.mxu0 0
        %6058 = vmatpush2.bf16.msra.mxu0 0
        %6059 = vmatprep.subr.bf16.mxu0 0
        %6060 = vmatpush2.bf16.msra.mxu0 0
        %6061 = vmatprep.subr.bf16.mxu0 0
        %6062 = vmatpush2.bf16.msra.mxu0 0
        %6063 = vmatprep.mubr.bf16.mxu0 0
        %6064 = vmatmul.mubr.bf16.gmra.mxu0 %v6026
        %v6065 = vpop.f32.mrf.mxu0
        %v6066 = vadd.f32 0.0, %v6065
        %v6067 = vpop.f32.mrf.mxu0
        %v6068 = vpop.f32.mrf.mxu0
        %v6069 = vpop.f32.mrf.mxu0
        %6070 = vdwg.mxu0
        %6071 = vrot.lane.b32.xlu0 %v841, 48
        %v6072 = vpop.permute.xlu0 %6071
        %v6074 = vsel %vm1269, %v5828, 0
        %v6077 = vsel %vm1369, %v6072, 0
        %6079 = vmatprep.subr.bf16.mxu0 0
        %6080 = vmatpush1.bf16.msra.mxu0 0
        %6081 = vmatprep.subr.bf16.mxu0 0
        %6082 = vmatpush1.bf16.msra.mxu0 0
        %6083 = vmatprep.subr.bf16.mxu0 0
        %6084 = vmatpush1.bf16.msra.mxu0 0
        %6085 = vmatprep.subr.bf16.mxu0 0
        %6086 = vmatpush1.bf16.msra.mxu0 0
        %6087 = vmatprep.subr.bf16.mxu0 0
        %6088 = vmatpush1.bf16.msra.mxu0 0
        %6089 = vmatprep.subr.bf16.mxu0 0
        %6090 = vmatpush1.bf16.msra.mxu0 0
        %6091 = vmatprep.subr.bf16.mxu0 0
        %6092 = vmatpush1.bf16.msra.mxu0 0
        %6093 = vmatprep.subr.bf16.mxu0 0
        %6094 = vmatpush1.bf16.msra.mxu0 %v6077
        %6095 = vmatprep.subr.bf16.mxu0 0
        %6096 = vmatpush2.bf16.msra.mxu0 0
        %6097 = vmatprep.subr.bf16.mxu0 0
        %6098 = vmatpush2.bf16.msra.mxu0 0
        %6099 = vmatprep.subr.bf16.mxu0 0
        %6100 = vmatpush2.bf16.msra.mxu0 0
        %6101 = vmatprep.subr.bf16.mxu0 0
        %6102 = vmatpush2.bf16.msra.mxu0 0
        %6103 = vmatprep.subr.bf16.mxu0 0
        %6104 = vmatpush2.bf16.msra.mxu0 0
        %6105 = vmatprep.subr.bf16.mxu0 0
        %6106 = vmatpush2.bf16.msra.mxu0 0
        %6107 = vmatprep.subr.bf16.mxu0 0
        %6108 = vmatpush2.bf16.msra.mxu0 0
        %6109 = vmatprep.subr.bf16.mxu0 0
        %6110 = vmatpush2.bf16.msra.mxu0 0
        %6111 = vmatprep.mubr.bf16.mxu0 0
        %6112 = vmatmul.mubr.bf16.gmra.mxu0 %v6074
        %v6113 = vpop.f32.mrf.mxu0
        %v6114 = vadd.f32 0.0, %v6113
        %v6115 = vpop.f32.mrf.mxu0
        %v6116 = vpop.f32.mrf.mxu0
        %v6117 = vpop.f32.mrf.mxu0
        %6118 = vdwg.mxu0
        %6119 = vrot.lane.b32.xlu0 %v842, 48
        %v6120 = vpop.permute.xlu0 %6119
        %v6122 = vsel %vm1269, %v5829, 0
        %v6125 = vsel %vm1369, %v6120, 0
        %6127 = vmatprep.subr.bf16.mxu0 0
        %6128 = vmatpush1.bf16.msra.mxu0 0
        %6129 = vmatprep.subr.bf16.mxu0 0
        %6130 = vmatpush1.bf16.msra.mxu0 0
        %6131 = vmatprep.subr.bf16.mxu0 0
        %6132 = vmatpush1.bf16.msra.mxu0 0
        %6133 = vmatprep.subr.bf16.mxu0 0
        %6134 = vmatpush1.bf16.msra.mxu0 0
        %6135 = vmatprep.subr.bf16.mxu0 0
        %6136 = vmatpush1.bf16.msra.mxu0 0
        %6137 = vmatprep.subr.bf16.mxu0 0
        %6138 = vmatpush1.bf16.msra.mxu0 0
        %6139 = vmatprep.subr.bf16.mxu0 0
        %6140 = vmatpush1.bf16.msra.mxu0 0
        %6141 = vmatprep.subr.bf16.mxu0 0
        %6142 = vmatpush1.bf16.msra.mxu0 %v6125
        %6143 = vmatprep.subr.bf16.mxu0 0
        %6144 = vmatpush2.bf16.msra.mxu0 0
        %6145 = vmatprep.subr.bf16.mxu0 0
        %6146 = vmatpush2.bf16.msra.mxu0 0
        %6147 = vmatprep.subr.bf16.mxu0 0
        %6148 = vmatpush2.bf16.msra.mxu0 0
        %6149 = vmatprep.subr.bf16.mxu0 0
        %6150 = vmatpush2.bf16.msra.mxu0 0
        %6151 = vmatprep.subr.bf16.mxu0 0
        %6152 = vmatpush2.bf16.msra.mxu0 0
        %6153 = vmatprep.subr.bf16.mxu0 0
        %6154 = vmatpush2.bf16.msra.mxu0 0
        %6155 = vmatprep.subr.bf16.mxu0 0
        %6156 = vmatpush2.bf16.msra.mxu0 0
        %6157 = vmatprep.subr.bf16.mxu0 0
        %6158 = vmatpush2.bf16.msra.mxu0 0
        %6159 = vmatprep.mubr.bf16.mxu0 0
        %6160 = vmatmul.mubr.bf16.gmra.mxu0 %v6122
        %v6161 = vpop.f32.mrf.mxu0
        %v6162 = vadd.f32 0.0, %v6161
        %v6163 = vpop.f32.mrf.mxu0
        %v6164 = vpop.f32.mrf.mxu0
        %v6165 = vpop.f32.mrf.mxu0
        %6166 = vdwg.mxu0
        %6167 = vrot.lane.b32.xlu0 %v843, 48
        %v6168 = vpop.permute.xlu0 %6167
        %v6170 = vsel %vm1269, %v5830, 0
        %v6173 = vsel %vm1369, %v6168, 0
        %6175 = vmatprep.subr.bf16.mxu0 0
        %6176 = vmatpush1.bf16.msra.mxu0 0
        %6177 = vmatprep.subr.bf16.mxu0 0
        %6178 = vmatpush1.bf16.msra.mxu0 0
        %6179 = vmatprep.subr.bf16.mxu0 0
        %6180 = vmatpush1.bf16.msra.mxu0 0
        %6181 = vmatprep.subr.bf16.mxu0 0
        %6182 = vmatpush1.bf16.msra.mxu0 0
        %6183 = vmatprep.subr.bf16.mxu0 0
        %6184 = vmatpush1.bf16.msra.mxu0 0
        %6185 = vmatprep.subr.bf16.mxu0 0
        %6186 = vmatpush1.bf16.msra.mxu0 0
        %6187 = vmatprep.subr.bf16.mxu0 0
        %6188 = vmatpush1.bf16.msra.mxu0 0
        %6189 = vmatprep.subr.bf16.mxu0 0
        %6190 = vmatpush1.bf16.msra.mxu0 %v6173
        %6191 = vmatprep.subr.bf16.mxu0 0
        %6192 = vmatpush2.bf16.msra.mxu0 0
        %6193 = vmatprep.subr.bf16.mxu0 0
        %6194 = vmatpush2.bf16.msra.mxu0 0
        %6195 = vmatprep.subr.bf16.mxu0 0
        %6196 = vmatpush2.bf16.msra.mxu0 0
        %6197 = vmatprep.subr.bf16.mxu0 0
        %6198 = vmatpush2.bf16.msra.mxu0 0
        %6199 = vmatprep.subr.bf16.mxu0 0
        %6200 = vmatpush2.bf16.msra.mxu0 0
        %6201 = vmatprep.subr.bf16.mxu0 0
        %6202 = vmatpush2.bf16.msra.mxu0 0
        %6203 = vmatprep.subr.bf16.mxu0 0
        %6204 = vmatpush2.bf16.msra.mxu0 0
        %6205 = vmatprep.subr.bf16.mxu0 0
        %6206 = vmatpush2.bf16.msra.mxu0 0
        %6207 = vmatprep.mubr.bf16.mxu0 0
        %6208 = vmatmul.mubr.bf16.gmra.mxu0 %v6170
        %v6209 = vpop.f32.mrf.mxu0
        %v6210 = vadd.f32 0.0, %v6209
        %v6211 = vpop.f32.mrf.mxu0
        %v6212 = vpop.f32.mrf.mxu0
        %v6213 = vpop.f32.mrf.mxu0
        %6214 = vdwg.mxu0
        %6215 = vrot.lane.b32.xlu0 %v796, 32
        %v6216 = vpop.permute.xlu0 %6215
        %6217 = vrot.lane.b32.xlu0 %v816, 32
        %v6218 = vpop.permute.xlu0 %6217
        %v6220 = vsel %vm852, %v6216, 0
        %v6223 = vsel %vm852, %v6218, 0
        %6225 = vmatprep.subr.bf16.mxu0 0
        %6226 = vmatpush1.bf16.xpose.msra.mxu0 0
        %6227 = vmatprep.subr.bf16.mxu0 0
        %6228 = vmatpush1.bf16.xpose.msra.mxu0 0
        %6229 = vmatprep.subr.bf16.mxu0 0
        %6230 = vmatpush1.bf16.xpose.msra.mxu0 0
        %6231 = vmatprep.subr.bf16.mxu0 0
        %6232 = vmatpush1.bf16.xpose.msra.mxu0 0
        %6233 = vmatprep.subr.bf16.mxu0 0
        %6234 = vmatpush1.bf16.xpose.msra.mxu0 0
        %6235 = vmatprep.subr.bf16.mxu0 0
        %6236 = vmatpush1.bf16.xpose.msra.mxu0 0
        %6237 = vmatprep.subr.bf16.mxu0 0
        %6238 = vmatpush1.bf16.xpose.msra.mxu0 0
        %6239 = vmatprep.subr.bf16.mxu0 0
        %6240 = vmatpush1.bf16.xpose.msra.mxu0 %v6223
        %6241 = vmatprep.subr.bf16.mxu0 0
        %6242 = vmatpush2.bf16.xpose.msra.mxu0 0
        %6243 = vmatprep.subr.bf16.mxu0 0
        %6244 = vmatpush2.bf16.xpose.msra.mxu0 0
        %6245 = vmatprep.subr.bf16.mxu0 0
        %6246 = vmatpush2.bf16.xpose.msra.mxu0 0
        %6247 = vmatprep.subr.bf16.mxu0 0
        %6248 = vmatpush2.bf16.xpose.msra.mxu0 0
        %6249 = vmatprep.subr.bf16.mxu0 0
        %6250 = vmatpush2.bf16.xpose.msra.mxu0 0
        %6251 = vmatprep.subr.bf16.mxu0 0
        %6252 = vmatpush2.bf16.xpose.msra.mxu0 0
        %6253 = vmatprep.subr.bf16.mxu0 0
        %6254 = vmatpush2.bf16.xpose.msra.mxu0 0
        %6255 = vmatprep.subr.bf16.mxu0 0
        %6256 = vmatpush2.bf16.xpose.msra.mxu0 0
        %6257 = vmatprep.mubr.bf16.mxu0 0
        %6258 = vmatmul.mubr.bf16.gmra.mxu0 %v6220
        %v6259 = vpop.f32.mrf.mxu0
        %v6260 = vadd.f32 0.0, %v6259
        %v6261 = vpop.f32.mrf.mxu0
        %v6262 = vpop.f32.mrf.mxu0
        %v6263 = vpop.f32.mrf.mxu0
        %6264 = vdwg.mxu0
        %6265 = vrot.lane.b32.xlu0 %v797, 32
        %v6266 = vpop.permute.xlu0 %6265
        %6267 = vrot.lane.b32.xlu0 %v817, 32
        %v6268 = vpop.permute.xlu0 %6267
        %v6270 = vsel %vm852, %v6266, 0
        %v6273 = vsel %vm852, %v6268, 0
        %6275 = vmatprep.subr.bf16.mxu0 0
        %6276 = vmatpush1.bf16.xpose.msra.mxu0 0
        %6277 = vmatprep.subr.bf16.mxu0 0
        %6278 = vmatpush1.bf16.xpose.msra.mxu0 0
        %6279 = vmatprep.subr.bf16.mxu0 0
        %6280 = vmatpush1.bf16.xpose.msra.mxu0 0
        %6281 = vmatprep.subr.bf16.mxu0 0
        %6282 = vmatpush1.bf16.xpose.msra.mxu0 0
        %6283 = vmatprep.subr.bf16.mxu0 0
        %6284 = vmatpush1.bf16.xpose.msra.mxu0 0
        %6285 = vmatprep.subr.bf16.mxu0 0
        %6286 = vmatpush1.bf16.xpose.msra.mxu0 0
        %6287 = vmatprep.subr.bf16.mxu0 0
        %6288 = vmatpush1.bf16.xpose.msra.mxu0 0
        %6289 = vmatprep.subr.bf16.mxu0 0
        %6290 = vmatpush1.bf16.xpose.msra.mxu0 %v6273
        %6291 = vmatprep.subr.bf16.mxu0 0
        %6292 = vmatpush2.bf16.xpose.msra.mxu0 0
        %6293 = vmatprep.subr.bf16.mxu0 0
        %6294 = vmatpush2.bf16.xpose.msra.mxu0 0
        %6295 = vmatprep.subr.bf16.mxu0 0
        %6296 = vmatpush2.bf16.xpose.msra.mxu0 0
        %6297 = vmatprep.subr.bf16.mxu0 0
        %6298 = vmatpush2.bf16.xpose.msra.mxu0 0
        %6299 = vmatprep.subr.bf16.mxu0 0
        %6300 = vmatpush2.bf16.xpose.msra.mxu0 0
        %6301 = vmatprep.subr.bf16.mxu0 0
        %6302 = vmatpush2.bf16.xpose.msra.mxu0 0
        %6303 = vmatprep.subr.bf16.mxu0 0
        %6304 = vmatpush2.bf16.xpose.msra.mxu0 0
        %6305 = vmatprep.subr.bf16.mxu0 0
        %6306 = vmatpush2.bf16.xpose.msra.mxu0 0
        %6307 = vmatprep.mubr.bf16.mxu0 0
        %6308 = vmatmul.mubr.bf16.gmra.mxu0 %v6270
        %v6309 = vpop.f32.mrf.mxu0
        %v6310 = vadd.f32 0.0, %v6309
        %v6311 = vpop.f32.mrf.mxu0
        %v6312 = vpop.f32.mrf.mxu0
        %v6313 = vpop.f32.mrf.mxu0
        %6314 = vdwg.mxu0
        %6315 = vrot.lane.b32.xlu0 %v798, 32
        %v6316 = vpop.permute.xlu0 %6315
        %6317 = vrot.lane.b32.xlu0 %v818, 32
        %v6318 = vpop.permute.xlu0 %6317
        %v6320 = vsel %vm852, %v6316, 0
        %v6323 = vsel %vm852, %v6318, 0
        %6325 = vmatprep.subr.bf16.mxu0 0
        %6326 = vmatpush1.bf16.xpose.msra.mxu0 0
        %6327 = vmatprep.subr.bf16.mxu0 0
        %6328 = vmatpush1.bf16.xpose.msra.mxu0 0
        %6329 = vmatprep.subr.bf16.mxu0 0
        %6330 = vmatpush1.bf16.xpose.msra.mxu0 0
        %6331 = vmatprep.subr.bf16.mxu0 0
        %6332 = vmatpush1.bf16.xpose.msra.mxu0 0
        %6333 = vmatprep.subr.bf16.mxu0 0
        %6334 = vmatpush1.bf16.xpose.msra.mxu0 0
        %6335 = vmatprep.subr.bf16.mxu0 0
        %6336 = vmatpush1.bf16.xpose.msra.mxu0 0
        %6337 = vmatprep.subr.bf16.mxu0 0
        %6338 = vmatpush1.bf16.xpose.msra.mxu0 0
        %6339 = vmatprep.subr.bf16.mxu0 0
        %6340 = vmatpush1.bf16.xpose.msra.mxu0 %v6323
        %6341 = vmatprep.subr.bf16.mxu0 0
        %6342 = vmatpush2.bf16.xpose.msra.mxu0 0
        %6343 = vmatprep.subr.bf16.mxu0 0
        %6344 = vmatpush2.bf16.xpose.msra.mxu0 0
        %6345 = vmatprep.subr.bf16.mxu0 0
        %6346 = vmatpush2.bf16.xpose.msra.mxu0 0
        %6347 = vmatprep.subr.bf16.mxu0 0
        %6348 = vmatpush2.bf16.xpose.msra.mxu0 0
        %6349 = vmatprep.subr.bf16.mxu0 0
        %6350 = vmatpush2.bf16.xpose.msra.mxu0 0
        %6351 = vmatprep.subr.bf16.mxu0 0
        %6352 = vmatpush2.bf16.xpose.msra.mxu0 0
        %6353 = vmatprep.subr.bf16.mxu0 0
        %6354 = vmatpush2.bf16.xpose.msra.mxu0 0
        %6355 = vmatprep.subr.bf16.mxu0 0
        %6356 = vmatpush2.bf16.xpose.msra.mxu0 0
        %6357 = vmatprep.mubr.bf16.mxu0 0
        %6358 = vmatmul.mubr.bf16.gmra.mxu0 %v6320
        %v6359 = vpop.f32.mrf.mxu0
        %v6360 = vadd.f32 0.0, %v6359
        %v6361 = vpop.f32.mrf.mxu0
        %v6362 = vpop.f32.mrf.mxu0
        %v6363 = vpop.f32.mrf.mxu0
        %6364 = vdwg.mxu0
        %6365 = vrot.lane.b32.xlu0 %v799, 32
        %v6366 = vpop.permute.xlu0 %6365
        %6367 = vrot.lane.b32.xlu0 %v819, 32
        %v6368 = vpop.permute.xlu0 %6367
        %v6370 = vsel %vm852, %v6366, 0
        %v6373 = vsel %vm852, %v6368, 0
        %6375 = vmatprep.subr.bf16.mxu0 0
        %6376 = vmatpush1.bf16.xpose.msra.mxu0 0
        %6377 = vmatprep.subr.bf16.mxu0 0
        %6378 = vmatpush1.bf16.xpose.msra.mxu0 0
        %6379 = vmatprep.subr.bf16.mxu0 0
        %6380 = vmatpush1.bf16.xpose.msra.mxu0 0
        %6381 = vmatprep.subr.bf16.mxu0 0
        %6382 = vmatpush1.bf16.xpose.msra.mxu0 0
        %6383 = vmatprep.subr.bf16.mxu0 0
        %6384 = vmatpush1.bf16.xpose.msra.mxu0 0
        %6385 = vmatprep.subr.bf16.mxu0 0
        %6386 = vmatpush1.bf16.xpose.msra.mxu0 0
        %6387 = vmatprep.subr.bf16.mxu0 0
        %6388 = vmatpush1.bf16.xpose.msra.mxu0 0
        %6389 = vmatprep.subr.bf16.mxu0 0
        %6390 = vmatpush1.bf16.xpose.msra.mxu0 %v6373
        %6391 = vmatprep.subr.bf16.mxu0 0
        %6392 = vmatpush2.bf16.xpose.msra.mxu0 0
        %6393 = vmatprep.subr.bf16.mxu0 0
        %6394 = vmatpush2.bf16.xpose.msra.mxu0 0
        %6395 = vmatprep.subr.bf16.mxu0 0
        %6396 = vmatpush2.bf16.xpose.msra.mxu0 0
        %6397 = vmatprep.subr.bf16.mxu0 0
        %6398 = vmatpush2.bf16.xpose.msra.mxu0 0
        %6399 = vmatprep.subr.bf16.mxu0 0
        %6400 = vmatpush2.bf16.xpose.msra.mxu0 0
        %6401 = vmatprep.subr.bf16.mxu0 0
        %6402 = vmatpush2.bf16.xpose.msra.mxu0 0
        %6403 = vmatprep.subr.bf16.mxu0 0
        %6404 = vmatpush2.bf16.xpose.msra.mxu0 0
        %6405 = vmatprep.subr.bf16.mxu0 0
        %6406 = vmatpush2.bf16.xpose.msra.mxu0 0
        %6407 = vmatprep.mubr.bf16.mxu0 0
        %6408 = vmatmul.mubr.bf16.gmra.mxu0 %v6370
        %v6409 = vpop.f32.mrf.mxu0
        %v6410 = vadd.f32 0.0, %v6409
        %v6411 = vpop.f32.mrf.mxu0
        %v6412 = vpop.f32.mrf.mxu0
        %v6413 = vpop.f32.mrf.mxu0
        %6414 = vdwg.mxu0
        %6415 = vrot.lane.b32.xlu0 %v800, 32
        %v6416 = vpop.permute.xlu0 %6415
        %6417 = vrot.lane.b32.xlu0 %v820, 32
        %v6418 = vpop.permute.xlu0 %6417
        %v6420 = vsel %vm852, %v6416, 0
        %v6423 = vsel %vm852, %v6418, 0
        %6425 = vmatprep.subr.bf16.mxu0 0
        %6426 = vmatpush1.bf16.xpose.msra.mxu0 0
        %6427 = vmatprep.subr.bf16.mxu0 0
        %6428 = vmatpush1.bf16.xpose.msra.mxu0 0
        %6429 = vmatprep.subr.bf16.mxu0 0
        %6430 = vmatpush1.bf16.xpose.msra.mxu0 0
        %6431 = vmatprep.subr.bf16.mxu0 0
        %6432 = vmatpush1.bf16.xpose.msra.mxu0 0
        %6433 = vmatprep.subr.bf16.mxu0 0
        %6434 = vmatpush1.bf16.xpose.msra.mxu0 0
        %6435 = vmatprep.subr.bf16.mxu0 0
        %6436 = vmatpush1.bf16.xpose.msra.mxu0 0
        %6437 = vmatprep.subr.bf16.mxu0 0
        %6438 = vmatpush1.bf16.xpose.msra.mxu0 0
        %6439 = vmatprep.subr.bf16.mxu0 0
        %6440 = vmatpush1.bf16.xpose.msra.mxu0 %v6423
        %6441 = vmatprep.subr.bf16.mxu0 0
        %6442 = vmatpush2.bf16.xpose.msra.mxu0 0
        %6443 = vmatprep.subr.bf16.mxu0 0
        %6444 = vmatpush2.bf16.xpose.msra.mxu0 0
        %6445 = vmatprep.subr.bf16.mxu0 0
        %6446 = vmatpush2.bf16.xpose.msra.mxu0 0
        %6447 = vmatprep.subr.bf16.mxu0 0
        %6448 = vmatpush2.bf16.xpose.msra.mxu0 0
        %6449 = vmatprep.subr.bf16.mxu0 0
        %6450 = vmatpush2.bf16.xpose.msra.mxu0 0
        %6451 = vmatprep.subr.bf16.mxu0 0
        %6452 = vmatpush2.bf16.xpose.msra.mxu0 0
        %6453 = vmatprep.subr.bf16.mxu0 0
        %6454 = vmatpush2.bf16.xpose.msra.mxu0 0
        %6455 = vmatprep.subr.bf16.mxu0 0
        %6456 = vmatpush2.bf16.xpose.msra.mxu0 0
        %6457 = vmatprep.mubr.bf16.mxu0 0
        %6458 = vmatmul.mubr.bf16.gmra.mxu0 %v6420
        %v6459 = vpop.f32.mrf.mxu0
        %v6460 = vadd.f32 0.0, %v6459
        %v6461 = vpop.f32.mrf.mxu0
        %v6462 = vpop.f32.mrf.mxu0
        %v6463 = vpop.f32.mrf.mxu0
        %6464 = vdwg.mxu0
        %6465 = vrot.lane.b32.xlu0 %v801, 32
        %v6466 = vpop.permute.xlu0 %6465
        %6467 = vrot.lane.b32.xlu0 %v821, 32
        %v6468 = vpop.permute.xlu0 %6467
        %v6470 = vsel %vm852, %v6466, 0
        %v6473 = vsel %vm852, %v6468, 0
        %6475 = vmatprep.subr.bf16.mxu0 0
        %6476 = vmatpush1.bf16.xpose.msra.mxu0 0
        %6477 = vmatprep.subr.bf16.mxu0 0
        %6478 = vmatpush1.bf16.xpose.msra.mxu0 0
        %6479 = vmatprep.subr.bf16.mxu0 0
        %6480 = vmatpush1.bf16.xpose.msra.mxu0 0
        %6481 = vmatprep.subr.bf16.mxu0 0
        %6482 = vmatpush1.bf16.xpose.msra.mxu0 0
        %6483 = vmatprep.subr.bf16.mxu0 0
        %6484 = vmatpush1.bf16.xpose.msra.mxu0 0
        %6485 = vmatprep.subr.bf16.mxu0 0
        %6486 = vmatpush1.bf16.xpose.msra.mxu0 0
        %6487 = vmatprep.subr.bf16.mxu0 0
        %6488 = vmatpush1.bf16.xpose.msra.mxu0 0
        %6489 = vmatprep.subr.bf16.mxu0 0
        %6490 = vmatpush1.bf16.xpose.msra.mxu0 %v6473
        %6491 = vmatprep.subr.bf16.mxu0 0
        %6492 = vmatpush2.bf16.xpose.msra.mxu0 0
        %6493 = vmatprep.subr.bf16.mxu0 0
        %6494 = vmatpush2.bf16.xpose.msra.mxu0 0
        %6495 = vmatprep.subr.bf16.mxu0 0
        %6496 = vmatpush2.bf16.xpose.msra.mxu0 0
        %6497 = vmatprep.subr.bf16.mxu0 0
        %6498 = vmatpush2.bf16.xpose.msra.mxu0 0
        %6499 = vmatprep.subr.bf16.mxu0 0
        %6500 = vmatpush2.bf16.xpose.msra.mxu0 0
        %6501 = vmatprep.subr.bf16.mxu0 0
        %6502 = vmatpush2.bf16.xpose.msra.mxu0 0
        %6503 = vmatprep.subr.bf16.mxu0 0
        %6504 = vmatpush2.bf16.xpose.msra.mxu0 0
        %6505 = vmatprep.subr.bf16.mxu0 0
        %6506 = vmatpush2.bf16.xpose.msra.mxu0 0
        %6507 = vmatprep.mubr.bf16.mxu0 0
        %6508 = vmatmul.mubr.bf16.gmra.mxu0 %v6470
        %v6509 = vpop.f32.mrf.mxu0
        %v6510 = vadd.f32 0.0, %v6509
        %v6511 = vpop.f32.mrf.mxu0
        %v6512 = vpop.f32.mrf.mxu0
        %v6513 = vpop.f32.mrf.mxu0
        %6514 = vdwg.mxu0
        %6515 = vrot.lane.b32.xlu0 %v802, 32
        %v6516 = vpop.permute.xlu0 %6515
        %6517 = vrot.lane.b32.xlu0 %v822, 32
        %v6518 = vpop.permute.xlu0 %6517
        %v6520 = vsel %vm852, %v6516, 0
        %v6523 = vsel %vm852, %v6518, 0
        %6525 = vmatprep.subr.bf16.mxu0 0
        %6526 = vmatpush1.bf16.xpose.msra.mxu0 0
        %6527 = vmatprep.subr.bf16.mxu0 0
        %6528 = vmatpush1.bf16.xpose.msra.mxu0 0
        %6529 = vmatprep.subr.bf16.mxu0 0
        %6530 = vmatpush1.bf16.xpose.msra.mxu0 0
        %6531 = vmatprep.subr.bf16.mxu0 0
        %6532 = vmatpush1.bf16.xpose.msra.mxu0 0
        %6533 = vmatprep.subr.bf16.mxu0 0
        %6534 = vmatpush1.bf16.xpose.msra.mxu0 0
        %6535 = vmatprep.subr.bf16.mxu0 0
        %6536 = vmatpush1.bf16.xpose.msra.mxu0 0
        %6537 = vmatprep.subr.bf16.mxu0 0
        %6538 = vmatpush1.bf16.xpose.msra.mxu0 0
        %6539 = vmatprep.subr.bf16.mxu0 0
        %6540 = vmatpush1.bf16.xpose.msra.mxu0 %v6523
        %6541 = vmatprep.subr.bf16.mxu0 0
        %6542 = vmatpush2.bf16.xpose.msra.mxu0 0
        %6543 = vmatprep.subr.bf16.mxu0 0
        %6544 = vmatpush2.bf16.xpose.msra.mxu0 0
        %6545 = vmatprep.subr.bf16.mxu0 0
        %6546 = vmatpush2.bf16.xpose.msra.mxu0 0
        %6547 = vmatprep.subr.bf16.mxu0 0
        %6548 = vmatpush2.bf16.xpose.msra.mxu0 0
        %6549 = vmatprep.subr.bf16.mxu0 0
        %6550 = vmatpush2.bf16.xpose.msra.mxu0 0
        %6551 = vmatprep.subr.bf16.mxu0 0
        %6552 = vmatpush2.bf16.xpose.msra.mxu0 0
        %6553 = vmatprep.subr.bf16.mxu0 0
        %6554 = vmatpush2.bf16.xpose.msra.mxu0 0
        %6555 = vmatprep.subr.bf16.mxu0 0
        %6556 = vmatpush2.bf16.xpose.msra.mxu0 0
        %6557 = vmatprep.mubr.bf16.mxu0 0
        %6558 = vmatmul.mubr.bf16.gmra.mxu0 %v6520
        %v6559 = vpop.f32.mrf.mxu0
        %v6560 = vadd.f32 0.0, %v6559
        %v6561 = vpop.f32.mrf.mxu0
        %v6562 = vpop.f32.mrf.mxu0
        %v6563 = vpop.f32.mrf.mxu0
        %6564 = vdwg.mxu0
        %6565 = vrot.lane.b32.xlu0 %v803, 32
        %v6566 = vpop.permute.xlu0 %6565
        %6567 = vrot.lane.b32.xlu0 %v823, 32
        %v6568 = vpop.permute.xlu0 %6567
        %v6570 = vsel %vm852, %v6566, 0
        %v6573 = vsel %vm852, %v6568, 0
        %6575 = vmatprep.subr.bf16.mxu0 0
        %6576 = vmatpush1.bf16.xpose.msra.mxu0 0
        %6577 = vmatprep.subr.bf16.mxu0 0
        %6578 = vmatpush1.bf16.xpose.msra.mxu0 0
        %6579 = vmatprep.subr.bf16.mxu0 0
        %6580 = vmatpush1.bf16.xpose.msra.mxu0 0
        %6581 = vmatprep.subr.bf16.mxu0 0
        %6582 = vmatpush1.bf16.xpose.msra.mxu0 0
        %6583 = vmatprep.subr.bf16.mxu0 0
        %6584 = vmatpush1.bf16.xpose.msra.mxu0 0
        %6585 = vmatprep.subr.bf16.mxu0 0
        %6586 = vmatpush1.bf16.xpose.msra.mxu0 0
        %6587 = vmatprep.subr.bf16.mxu0 0
        %6588 = vmatpush1.bf16.xpose.msra.mxu0 0
        %6589 = vmatprep.subr.bf16.mxu0 0
        %6590 = vmatpush1.bf16.xpose.msra.mxu0 %v6573
        %6591 = vmatprep.subr.bf16.mxu0 0
        %6592 = vmatpush2.bf16.xpose.msra.mxu0 0
        %6593 = vmatprep.subr.bf16.mxu0 0
        %6594 = vmatpush2.bf16.xpose.msra.mxu0 0
        %6595 = vmatprep.subr.bf16.mxu0 0
        %6596 = vmatpush2.bf16.xpose.msra.mxu0 0
        %6597 = vmatprep.subr.bf16.mxu0 0
        %6598 = vmatpush2.bf16.xpose.msra.mxu0 0
        %6599 = vmatprep.subr.bf16.mxu0 0
        %6600 = vmatpush2.bf16.xpose.msra.mxu0 0
        %6601 = vmatprep.subr.bf16.mxu0 0
        %6602 = vmatpush2.bf16.xpose.msra.mxu0 0
        %6603 = vmatprep.subr.bf16.mxu0 0
        %6604 = vmatpush2.bf16.xpose.msra.mxu0 0
        %6605 = vmatprep.subr.bf16.mxu0 0
        %6606 = vmatpush2.bf16.xpose.msra.mxu0 0
        %6607 = vmatprep.mubr.bf16.mxu0 0
        %6608 = vmatmul.mubr.bf16.gmra.mxu0 %v6570
        %v6609 = vpop.f32.mrf.mxu0
        %v6610 = vadd.f32 0.0, %v6609
        %v6611 = vpop.f32.mrf.mxu0
        %v6612 = vpop.f32.mrf.mxu0
        %v6613 = vpop.f32.mrf.mxu0
        %6614 = vdwg.mxu0
        %v6615 = vmul.f32 %v6260, 0.25
        %v6616 = vmul.f32 %v6310, 0.25
        %v6617 = vmul.f32 %v6360, 0.25
        %v6618 = vmul.f32 %v6410, 0.25
        %v6619 = vmul.f32 %v6460, 0.25
        %v6620 = vmul.f32 %v6510, 0.25
        %v6621 = vmul.f32 %v6560, 0.25
        %v6622 = vmul.f32 %v6610, 0.25
        %v6623 = vadd.f32 %v6615, %v1232
        %v6624 = vadd.f32 %v6616, %v1236
        %v6625 = vadd.f32 %v6617, %v1240
        %v6626 = vadd.f32 %v6618, %v1244
        %v6627 = vadd.f32 %v6619, %v1248
        %v6628 = vadd.f32 %v6620, %v1252
        %v6629 = vadd.f32 %v6621, %v1256
        %v6630 = vadd.f32 %v6622, %v1260
        %v6631 = vsel %vm1269, %v6623, -inf
        %6632 = vmax.xlane.f32.xlu0 %v6631
        %v6633 = vpop.xlane.xlu0 %6632
        %v6634 = vsel %vm1269, %v6624, -inf
        %6635 = vmax.xlane.f32.xlu0 %v6634
        %v6636 = vpop.xlane.xlu0 %6635
        %v6637 = vsel %vm1269, %v6625, -inf
        %6638 = vmax.xlane.f32.xlu0 %v6637
        %v6639 = vpop.xlane.xlu0 %6638
        %v6640 = vsel %vm1269, %v6626, -inf
        %6641 = vmax.xlane.f32.xlu0 %v6640
        %v6642 = vpop.xlane.xlu0 %6641
        %v6643 = vsel %vm1269, %v6627, -inf
        %6644 = vmax.xlane.f32.xlu0 %v6643
        %v6645 = vpop.xlane.xlu0 %6644
        %v6646 = vsel %vm1269, %v6628, -inf
        %6647 = vmax.xlane.f32.xlu0 %v6646
        %v6648 = vpop.xlane.xlu0 %6647
        %v6649 = vsel %vm1269, %v6629, -inf
        %6650 = vmax.xlane.f32.xlu0 %v6649
        %v6651 = vpop.xlane.xlu0 %6650
        %v6652 = vsel %vm1269, %v6630, -inf
        %6653 = vmax.xlane.f32.xlu0 %v6652
        %v6654 = vpop.xlane.xlu0 %6653
        %v6655 = vsub.f32 %v6623, %v6633
        %v6656 = vsub.f32 %v6624, %v6636
        %v6657 = vsub.f32 %v6625, %v6639
        %v6658 = vsub.f32 %v6626, %v6642
        %v6659 = vsub.f32 %v6627, %v6645
        %v6660 = vsub.f32 %v6628, %v6648
        %v6661 = vsub.f32 %v6629, %v6651
        %v6662 = vsub.f32 %v6630, %v6654
        %v6663 = vmul.f32 %v6655, 1.442695
        %v6664 = vpow.pop %v6663
        %v6665 = vmul.f32 %v6656, 1.442695
        %v6666 = vpow.pop %v6665
        %v6667 = vmul.f32 %v6657, 1.442695
        %v6668 = vpow.pop %v6667
        %v6669 = vmul.f32 %v6658, 1.442695
        %v6670 = vpow.pop %v6669
        %v6671 = vmul.f32 %v6659, 1.442695
        %v6672 = vpow.pop %v6671
        %v6673 = vmul.f32 %v6660, 1.442695
        %v6674 = vpow.pop %v6673
        %v6675 = vmul.f32 %v6661, 1.442695
        %v6676 = vpow.pop %v6675
        %v6677 = vmul.f32 %v6662, 1.442695
        %v6678 = vpow.pop %v6677
        %v6679 = vsel %vm1269, %v6664, 0.0
        %6680 = vadd.xlane.f32.xlu0 %v6679
        %v6681 = vpop.xlane.xlu0 %6680
        %v6682 = vsel %vm1269, %v6666, 0.0
        %6683 = vadd.xlane.f32.xlu0 %v6682
        %v6684 = vpop.xlane.xlu0 %6683
        %v6685 = vsel %vm1269, %v6668, 0.0
        %6686 = vadd.xlane.f32.xlu0 %v6685
        %v6687 = vpop.xlane.xlu0 %6686
        %v6688 = vsel %vm1269, %v6670, 0.0
        %6689 = vadd.xlane.f32.xlu0 %v6688
        %v6690 = vpop.xlane.xlu0 %6689
        %v6691 = vsel %vm1269, %v6672, 0.0
        %6692 = vadd.xlane.f32.xlu0 %v6691
        %v6693 = vpop.xlane.xlu0 %6692
        %v6694 = vsel %vm1269, %v6674, 0.0
        %6695 = vadd.xlane.f32.xlu0 %v6694
        %v6696 = vpop.xlane.xlu0 %6695
        %v6697 = vsel %vm1269, %v6676, 0.0
        %6698 = vadd.xlane.f32.xlu0 %v6697
        %v6699 = vpop.xlane.xlu0 %6698
        %v6700 = vsel %vm1269, %v6678, 0.0
        %6701 = vadd.xlane.f32.xlu0 %v6700
        %v6702 = vpop.xlane.xlu0 %6701
        %v6703 = vrcp.pop %v6681
        %v6704 = vrcp.pop %v6684
        %v6705 = vrcp.pop %v6687
        %v6706 = vrcp.pop %v6690
        %v6707 = vrcp.pop %v6693
        %v6708 = vrcp.pop %v6696
        %v6709 = vrcp.pop %v6699
        %v6710 = vrcp.pop %v6702
        %v6711 = vmul.f32 %v6664, %v6703
        %v6712 = vmul.f32 %v6666, %v6704
        %v6713 = vmul.f32 %v6668, %v6705
        %v6714 = vmul.f32 %v6670, %v6706
        %v6715 = vmul.f32 %v6672, %v6707
        %v6716 = vmul.f32 %v6674, %v6708
        %v6717 = vmul.f32 %v6676, %v6709
        %v6718 = vmul.f32 %v6678, %v6710
        %v6719 = vpack.c.bf16 %v6711, %v6711
        %v6720 = vpack.c.bf16 %v6712, %v6712
        %v6721 = vpack.c.bf16 %v6713, %v6713
        %v6722 = vpack.c.bf16 %v6714, %v6714
        %v6723 = vpack.c.bf16 %v6715, %v6715
        %v6724 = vpack.c.bf16 %v6716, %v6716
        %v6725 = vpack.c.bf16 %v6717, %v6717
        %v6726 = vpack.c.bf16 %v6718, %v6718
        %6727 = vrot.lane.b32.xlu0 %v836, 32
        %v6728 = vpop.permute.xlu0 %6727
        %v6730 = vsel %vm1269, %v6719, 0
        %v6733 = vsel %vm1369, %v6728, 0
        %6735 = vmatprep.subr.bf16.mxu0 0
        %6736 = vmatpush1.bf16.msra.mxu0 0
        %6737 = vmatprep.subr.bf16.mxu0 0
        %6738 = vmatpush1.bf16.msra.mxu0 0
        %6739 = vmatprep.subr.bf16.mxu0 0
        %6740 = vmatpush1.bf16.msra.mxu0 0
        %6741 = vmatprep.subr.bf16.mxu0 0
        %6742 = vmatpush1.bf16.msra.mxu0 0
        %6743 = vmatprep.subr.bf16.mxu0 0
        %6744 = vmatpush1.bf16.msra.mxu0 0
        %6745 = vmatprep.subr.bf16.mxu0 0
        %6746 = vmatpush1.bf16.msra.mxu0 0
        %6747 = vmatprep.subr.bf16.mxu0 0
        %6748 = vmatpush1.bf16.msra.mxu0 0
        %6749 = vmatprep.subr.bf16.mxu0 0
        %6750 = vmatpush1.bf16.msra.mxu0 %v6733
        %6751 = vmatprep.subr.bf16.mxu0 0
        %6752 = vmatpush2.bf16.msra.mxu0 0
        %6753 = vmatprep.subr.bf16.mxu0 0
        %6754 = vmatpush2.bf16.msra.mxu0 0
        %6755 = vmatprep.subr.bf16.mxu0 0
        %6756 = vmatpush2.bf16.msra.mxu0 0
        %6757 = vmatprep.subr.bf16.mxu0 0
        %6758 = vmatpush2.bf16.msra.mxu0 0
        %6759 = vmatprep.subr.bf16.mxu0 0
        %6760 = vmatpush2.bf16.msra.mxu0 0
        %6761 = vmatprep.subr.bf16.mxu0 0
        %6762 = vmatpush2.bf16.msra.mxu0 0
        %6763 = vmatprep.subr.bf16.mxu0 0
        %6764 = vmatpush2.bf16.msra.mxu0 0
        %6765 = vmatprep.subr.bf16.mxu0 0
        %6766 = vmatpush2.bf16.msra.mxu0 0
        %6767 = vmatprep.mubr.bf16.mxu0 0
        %6768 = vmatmul.mubr.bf16.gmra.mxu0 %v6730
        %v6769 = vpop.f32.mrf.mxu0
        %v6770 = vadd.f32 0.0, %v6769
        %v6771 = vpop.f32.mrf.mxu0
        %v6772 = vpop.f32.mrf.mxu0
        %v6773 = vpop.f32.mrf.mxu0
        %6774 = vdwg.mxu0
        %6775 = vrot.lane.b32.xlu0 %v837, 32
        %v6776 = vpop.permute.xlu0 %6775
        %v6778 = vsel %vm1269, %v6720, 0
        %v6781 = vsel %vm1369, %v6776, 0
        %6783 = vmatprep.subr.bf16.mxu0 0
        %6784 = vmatpush1.bf16.msra.mxu0 0
        %6785 = vmatprep.subr.bf16.mxu0 0
        %6786 = vmatpush1.bf16.msra.mxu0 0
        %6787 = vmatprep.subr.bf16.mxu0 0
        %6788 = vmatpush1.bf16.msra.mxu0 0
        %6789 = vmatprep.subr.bf16.mxu0 0
        %6790 = vmatpush1.bf16.msra.mxu0 0
        %6791 = vmatprep.subr.bf16.mxu0 0
        %6792 = vmatpush1.bf16.msra.mxu0 0
        %6793 = vmatprep.subr.bf16.mxu0 0
        %6794 = vmatpush1.bf16.msra.mxu0 0
        %6795 = vmatprep.subr.bf16.mxu0 0
        %6796 = vmatpush1.bf16.msra.mxu0 0
        %6797 = vmatprep.subr.bf16.mxu0 0
        %6798 = vmatpush1.bf16.msra.mxu0 %v6781
        %6799 = vmatprep.subr.bf16.mxu0 0
        %6800 = vmatpush2.bf16.msra.mxu0 0
        %6801 = vmatprep.subr.bf16.mxu0 0
        %6802 = vmatpush2.bf16.msra.mxu0 0
        %6803 = vmatprep.subr.bf16.mxu0 0
        %6804 = vmatpush2.bf16.msra.mxu0 0
        %6805 = vmatprep.subr.bf16.mxu0 0
        %6806 = vmatpush2.bf16.msra.mxu0 0
        %6807 = vmatprep.subr.bf16.mxu0 0
        %6808 = vmatpush2.bf16.msra.mxu0 0
        %6809 = vmatprep.subr.bf16.mxu0 0
        %6810 = vmatpush2.bf16.msra.mxu0 0
        %6811 = vmatprep.subr.bf16.mxu0 0
        %6812 = vmatpush2.bf16.msra.mxu0 0
        %6813 = vmatprep.subr.bf16.mxu0 0
        %6814 = vmatpush2.bf16.msra.mxu0 0
        %6815 = vmatprep.mubr.bf16.mxu0 0
        %6816 = vmatmul.mubr.bf16.gmra.mxu0 %v6778
        %v6817 = vpop.f32.mrf.mxu0
        %v6818 = vadd.f32 0.0, %v6817
        %v6819 = vpop.f32.mrf.mxu0
        %v6820 = vpop.f32.mrf.mxu0
        %v6821 = vpop.f32.mrf.mxu0
        %6822 = vdwg.mxu0
        %6823 = vrot.lane.b32.xlu0 %v838, 32
        %v6824 = vpop.permute.xlu0 %6823
        %v6826 = vsel %vm1269, %v6721, 0
        %v6829 = vsel %vm1369, %v6824, 0
        %6831 = vmatprep.subr.bf16.mxu0 0
        %6832 = vmatpush1.bf16.msra.mxu0 0
        %6833 = vmatprep.subr.bf16.mxu0 0
        %6834 = vmatpush1.bf16.msra.mxu0 0
        %6835 = vmatprep.subr.bf16.mxu0 0
        %6836 = vmatpush1.bf16.msra.mxu0 0
        %6837 = vmatprep.subr.bf16.mxu0 0
        %6838 = vmatpush1.bf16.msra.mxu0 0
        %6839 = vmatprep.subr.bf16.mxu0 0
        %6840 = vmatpush1.bf16.msra.mxu0 0
        %6841 = vmatprep.subr.bf16.mxu0 0
        %6842 = vmatpush1.bf16.msra.mxu0 0
        %6843 = vmatprep.subr.bf16.mxu0 0
        %6844 = vmatpush1.bf16.msra.mxu0 0
        %6845 = vmatprep.subr.bf16.mxu0 0
        %6846 = vmatpush1.bf16.msra.mxu0 %v6829
        %6847 = vmatprep.subr.bf16.mxu0 0
        %6848 = vmatpush2.bf16.msra.mxu0 0
        %6849 = vmatprep.subr.bf16.mxu0 0
        %6850 = vmatpush2.bf16.msra.mxu0 0
        %6851 = vmatprep.subr.bf16.mxu0 0
        %6852 = vmatpush2.bf16.msra.mxu0 0
        %6853 = vmatprep.subr.bf16.mxu0 0
        %6854 = vmatpush2.bf16.msra.mxu0 0
        %6855 = vmatprep.subr.bf16.mxu0 0
        %6856 = vmatpush2.bf16.msra.mxu0 0
        %6857 = vmatprep.subr.bf16.mxu0 0
        %6858 = vmatpush2.bf16.msra.mxu0 0
        %6859 = vmatprep.subr.bf16.mxu0 0
        %6860 = vmatpush2.bf16.msra.mxu0 0
        %6861 = vmatprep.subr.bf16.mxu0 0
        %6862 = vmatpush2.bf16.msra.mxu0 0
        %6863 = vmatprep.mubr.bf16.mxu0 0
        %6864 = vmatmul.mubr.bf16.gmra.mxu0 %v6826
        %v6865 = vpop.f32.mrf.mxu0
        %v6866 = vadd.f32 0.0, %v6865
        %v6867 = vpop.f32.mrf.mxu0
        %v6868 = vpop.f32.mrf.mxu0
        %v6869 = vpop.f32.mrf.mxu0
        %6870 = vdwg.mxu0
        %6871 = vrot.lane.b32.xlu0 %v839, 32
        %v6872 = vpop.permute.xlu0 %6871
        %v6874 = vsel %vm1269, %v6722, 0
        %v6877 = vsel %vm1369, %v6872, 0
        %6879 = vmatprep.subr.bf16.mxu0 0
        %6880 = vmatpush1.bf16.msra.mxu0 0
        %6881 = vmatprep.subr.bf16.mxu0 0
        %6882 = vmatpush1.bf16.msra.mxu0 0
        %6883 = vmatprep.subr.bf16.mxu0 0
        %6884 = vmatpush1.bf16.msra.mxu0 0
        %6885 = vmatprep.subr.bf16.mxu0 0
        %6886 = vmatpush1.bf16.msra.mxu0 0
        %6887 = vmatprep.subr.bf16.mxu0 0
        %6888 = vmatpush1.bf16.msra.mxu0 0
        %6889 = vmatprep.subr.bf16.mxu0 0
        %6890 = vmatpush1.bf16.msra.mxu0 0
        %6891 = vmatprep.subr.bf16.mxu0 0
        %6892 = vmatpush1.bf16.msra.mxu0 0
        %6893 = vmatprep.subr.bf16.mxu0 0
        %6894 = vmatpush1.bf16.msra.mxu0 %v6877
        %6895 = vmatprep.subr.bf16.mxu0 0
        %6896 = vmatpush2.bf16.msra.mxu0 0
        %6897 = vmatprep.subr.bf16.mxu0 0
        %6898 = vmatpush2.bf16.msra.mxu0 0
        %6899 = vmatprep.subr.bf16.mxu0 0
        %6900 = vmatpush2.bf16.msra.mxu0 0
        %6901 = vmatprep.subr.bf16.mxu0 0
        %6902 = vmatpush2.bf16.msra.mxu0 0
        %6903 = vmatprep.subr.bf16.mxu0 0
        %6904 = vmatpush2.bf16.msra.mxu0 0
        %6905 = vmatprep.subr.bf16.mxu0 0
        %6906 = vmatpush2.bf16.msra.mxu0 0
        %6907 = vmatprep.subr.bf16.mxu0 0
        %6908 = vmatpush2.bf16.msra.mxu0 0
        %6909 = vmatprep.subr.bf16.mxu0 0
        %6910 = vmatpush2.bf16.msra.mxu0 0
        %6911 = vmatprep.mubr.bf16.mxu0 0
        %6912 = vmatmul.mubr.bf16.gmra.mxu0 %v6874
        %v6913 = vpop.f32.mrf.mxu0
        %v6914 = vadd.f32 0.0, %v6913
        %v6915 = vpop.f32.mrf.mxu0
        %v6916 = vpop.f32.mrf.mxu0
        %v6917 = vpop.f32.mrf.mxu0
        %6918 = vdwg.mxu0
        %6919 = vrot.lane.b32.xlu0 %v840, 32
        %v6920 = vpop.permute.xlu0 %6919
        %v6922 = vsel %vm1269, %v6723, 0
        %v6925 = vsel %vm1369, %v6920, 0
        %6927 = vmatprep.subr.bf16.mxu0 0
        %6928 = vmatpush1.bf16.msra.mxu0 0
        %6929 = vmatprep.subr.bf16.mxu0 0
        %6930 = vmatpush1.bf16.msra.mxu0 0
        %6931 = vmatprep.subr.bf16.mxu0 0
        %6932 = vmatpush1.bf16.msra.mxu0 0
        %6933 = vmatprep.subr.bf16.mxu0 0
        %6934 = vmatpush1.bf16.msra.mxu0 0
        %6935 = vmatprep.subr.bf16.mxu0 0
        %6936 = vmatpush1.bf16.msra.mxu0 0
        %6937 = vmatprep.subr.bf16.mxu0 0
        %6938 = vmatpush1.bf16.msra.mxu0 0
        %6939 = vmatprep.subr.bf16.mxu0 0
        %6940 = vmatpush1.bf16.msra.mxu0 0
        %6941 = vmatprep.subr.bf16.mxu0 0
        %6942 = vmatpush1.bf16.msra.mxu0 %v6925
        %6943 = vmatprep.subr.bf16.mxu0 0
        %6944 = vmatpush2.bf16.msra.mxu0 0
        %6945 = vmatprep.subr.bf16.mxu0 0
        %6946 = vmatpush2.bf16.msra.mxu0 0
        %6947 = vmatprep.subr.bf16.mxu0 0
        %6948 = vmatpush2.bf16.msra.mxu0 0
        %6949 = vmatprep.subr.bf16.mxu0 0
        %6950 = vmatpush2.bf16.msra.mxu0 0
        %6951 = vmatprep.subr.bf16.mxu0 0
        %6952 = vmatpush2.bf16.msra.mxu0 0
        %6953 = vmatprep.subr.bf16.mxu0 0
        %6954 = vmatpush2.bf16.msra.mxu0 0
        %6955 = vmatprep.subr.bf16.mxu0 0
        %6956 = vmatpush2.bf16.msra.mxu0 0
        %6957 = vmatprep.subr.bf16.mxu0 0
        %6958 = vmatpush2.bf16.msra.mxu0 0
        %6959 = vmatprep.mubr.bf16.mxu0 0
        %6960 = vmatmul.mubr.bf16.gmra.mxu0 %v6922
        %v6961 = vpop.f32.mrf.mxu0
        %v6962 = vadd.f32 0.0, %v6961
        %v6963 = vpop.f32.mrf.mxu0
        %v6964 = vpop.f32.mrf.mxu0
        %v6965 = vpop.f32.mrf.mxu0
        %6966 = vdwg.mxu0
        %6967 = vrot.lane.b32.xlu0 %v841, 32
        %v6968 = vpop.permute.xlu0 %6967
        %v6970 = vsel %vm1269, %v6724, 0
        %v6973 = vsel %vm1369, %v6968, 0
        %6975 = vmatprep.subr.bf16.mxu0 0
        %6976 = vmatpush1.bf16.msra.mxu0 0
        %6977 = vmatprep.subr.bf16.mxu0 0
        %6978 = vmatpush1.bf16.msra.mxu0 0
        %6979 = vmatprep.subr.bf16.mxu0 0
        %6980 = vmatpush1.bf16.msra.mxu0 0
        %6981 = vmatprep.subr.bf16.mxu0 0
        %6982 = vmatpush1.bf16.msra.mxu0 0
        %6983 = vmatprep.subr.bf16.mxu0 0
        %6984 = vmatpush1.bf16.msra.mxu0 0
        %6985 = vmatprep.subr.bf16.mxu0 0
        %6986 = vmatpush1.bf16.msra.mxu0 0
        %6987 = vmatprep.subr.bf16.mxu0 0
        %6988 = vmatpush1.bf16.msra.mxu0 0
        %6989 = vmatprep.subr.bf16.mxu0 0
        %6990 = vmatpush1.bf16.msra.mxu0 %v6973
        %6991 = vmatprep.subr.bf16.mxu0 0
        %6992 = vmatpush2.bf16.msra.mxu0 0
        %6993 = vmatprep.subr.bf16.mxu0 0
        %6994 = vmatpush2.bf16.msra.mxu0 0
        %6995 = vmatprep.subr.bf16.mxu0 0
        %6996 = vmatpush2.bf16.msra.mxu0 0
        %6997 = vmatprep.subr.bf16.mxu0 0
        %6998 = vmatpush2.bf16.msra.mxu0 0
        %6999 = vmatprep.subr.bf16.mxu0 0
        %7000 = vmatpush2.bf16.msra.mxu0 0
        %7001 = vmatprep.subr.bf16.mxu0 0
        %7002 = vmatpush2.bf16.msra.mxu0 0
        %7003 = vmatprep.subr.bf16.mxu0 0
        %7004 = vmatpush2.bf16.msra.mxu0 0
        %7005 = vmatprep.subr.bf16.mxu0 0
        %7006 = vmatpush2.bf16.msra.mxu0 0
        %7007 = vmatprep.mubr.bf16.mxu0 0
        %7008 = vmatmul.mubr.bf16.gmra.mxu0 %v6970
        %v7009 = vpop.f32.mrf.mxu0
        %v7010 = vadd.f32 0.0, %v7009
        %v7011 = vpop.f32.mrf.mxu0
        %v7012 = vpop.f32.mrf.mxu0
        %v7013 = vpop.f32.mrf.mxu0
        %7014 = vdwg.mxu0
        %7015 = vrot.lane.b32.xlu0 %v842, 32
        %v7016 = vpop.permute.xlu0 %7015
        %v7018 = vsel %vm1269, %v6725, 0
        %v7021 = vsel %vm1369, %v7016, 0
        %7023 = vmatprep.subr.bf16.mxu0 0
        %7024 = vmatpush1.bf16.msra.mxu0 0
        %7025 = vmatprep.subr.bf16.mxu0 0
        %7026 = vmatpush1.bf16.msra.mxu0 0
        %7027 = vmatprep.subr.bf16.mxu0 0
        %7028 = vmatpush1.bf16.msra.mxu0 0
        %7029 = vmatprep.subr.bf16.mxu0 0
        %7030 = vmatpush1.bf16.msra.mxu0 0
        %7031 = vmatprep.subr.bf16.mxu0 0
        %7032 = vmatpush1.bf16.msra.mxu0 0
        %7033 = vmatprep.subr.bf16.mxu0 0
        %7034 = vmatpush1.bf16.msra.mxu0 0
        %7035 = vmatprep.subr.bf16.mxu0 0
        %7036 = vmatpush1.bf16.msra.mxu0 0
        %7037 = vmatprep.subr.bf16.mxu0 0
        %7038 = vmatpush1.bf16.msra.mxu0 %v7021
        %7039 = vmatprep.subr.bf16.mxu0 0
        %7040 = vmatpush2.bf16.msra.mxu0 0
        %7041 = vmatprep.subr.bf16.mxu0 0
        %7042 = vmatpush2.bf16.msra.mxu0 0
        %7043 = vmatprep.subr.bf16.mxu0 0
        %7044 = vmatpush2.bf16.msra.mxu0 0
        %7045 = vmatprep.subr.bf16.mxu0 0
        %7046 = vmatpush2.bf16.msra.mxu0 0
        %7047 = vmatprep.subr.bf16.mxu0 0
        %7048 = vmatpush2.bf16.msra.mxu0 0
        %7049 = vmatprep.subr.bf16.mxu0 0
        %7050 = vmatpush2.bf16.msra.mxu0 0
        %7051 = vmatprep.subr.bf16.mxu0 0
        %7052 = vmatpush2.bf16.msra.mxu0 0
        %7053 = vmatprep.subr.bf16.mxu0 0
        %7054 = vmatpush2.bf16.msra.mxu0 0
        %7055 = vmatprep.mubr.bf16.mxu0 0
        %7056 = vmatmul.mubr.bf16.gmra.mxu0 %v7018
        %v7057 = vpop.f32.mrf.mxu0
        %v7058 = vadd.f32 0.0, %v7057
        %v7059 = vpop.f32.mrf.mxu0
        %v7060 = vpop.f32.mrf.mxu0
        %v7061 = vpop.f32.mrf.mxu0
        %7062 = vdwg.mxu0
        %7063 = vrot.lane.b32.xlu0 %v843, 32
        %v7064 = vpop.permute.xlu0 %7063
        %v7066 = vsel %vm1269, %v6726, 0
        %v7069 = vsel %vm1369, %v7064, 0
        %7071 = vmatprep.subr.bf16.mxu0 0
        %7072 = vmatpush1.bf16.msra.mxu0 0
        %7073 = vmatprep.subr.bf16.mxu0 0
        %7074 = vmatpush1.bf16.msra.mxu0 0
        %7075 = vmatprep.subr.bf16.mxu0 0
        %7076 = vmatpush1.bf16.msra.mxu0 0
        %7077 = vmatprep.subr.bf16.mxu0 0
        %7078 = vmatpush1.bf16.msra.mxu0 0
        %7079 = vmatprep.subr.bf16.mxu0 0
        %7080 = vmatpush1.bf16.msra.mxu0 0
        %7081 = vmatprep.subr.bf16.mxu0 0
        %7082 = vmatpush1.bf16.msra.mxu0 0
        %7083 = vmatprep.subr.bf16.mxu0 0
        %7084 = vmatpush1.bf16.msra.mxu0 0
        %7085 = vmatprep.subr.bf16.mxu0 0
        %7086 = vmatpush1.bf16.msra.mxu0 %v7069
        %7087 = vmatprep.subr.bf16.mxu0 0
        %7088 = vmatpush2.bf16.msra.mxu0 0
        %7089 = vmatprep.subr.bf16.mxu0 0
        %7090 = vmatpush2.bf16.msra.mxu0 0
        %7091 = vmatprep.subr.bf16.mxu0 0
        %7092 = vmatpush2.bf16.msra.mxu0 0
        %7093 = vmatprep.subr.bf16.mxu0 0
        %7094 = vmatpush2.bf16.msra.mxu0 0
        %7095 = vmatprep.subr.bf16.mxu0 0
        %7096 = vmatpush2.bf16.msra.mxu0 0
        %7097 = vmatprep.subr.bf16.mxu0 0
        %7098 = vmatpush2.bf16.msra.mxu0 0
        %7099 = vmatprep.subr.bf16.mxu0 0
        %7100 = vmatpush2.bf16.msra.mxu0 0
        %7101 = vmatprep.subr.bf16.mxu0 0
        %7102 = vmatpush2.bf16.msra.mxu0 0
        %7103 = vmatprep.mubr.bf16.mxu0 0
        %7104 = vmatmul.mubr.bf16.gmra.mxu0 %v7066
        %v7105 = vpop.f32.mrf.mxu0
        %v7106 = vadd.f32 0.0, %v7105
        %v7107 = vpop.f32.mrf.mxu0
        %v7108 = vpop.f32.mrf.mxu0
        %v7109 = vpop.f32.mrf.mxu0
        %7110 = vdwg.mxu0
        %7111 = vrot.lane.b32.xlu0 %v796, 16
        %v7112 = vpop.permute.xlu0 %7111
        %7113 = vrot.lane.b32.xlu0 %v816, 16
        %v7114 = vpop.permute.xlu0 %7113
        %v7116 = vsel %vm852, %v7112, 0
        %v7119 = vsel %vm852, %v7114, 0
        %7121 = vmatprep.subr.bf16.mxu0 0
        %7122 = vmatpush1.bf16.xpose.msra.mxu0 0
        %7123 = vmatprep.subr.bf16.mxu0 0
        %7124 = vmatpush1.bf16.xpose.msra.mxu0 0
        %7125 = vmatprep.subr.bf16.mxu0 0
        %7126 = vmatpush1.bf16.xpose.msra.mxu0 0
        %7127 = vmatprep.subr.bf16.mxu0 0
        %7128 = vmatpush1.bf16.xpose.msra.mxu0 0
        %7129 = vmatprep.subr.bf16.mxu0 0
        %7130 = vmatpush1.bf16.xpose.msra.mxu0 0
        %7131 = vmatprep.subr.bf16.mxu0 0
        %7132 = vmatpush1.bf16.xpose.msra.mxu0 0
        %7133 = vmatprep.subr.bf16.mxu0 0
        %7134 = vmatpush1.bf16.xpose.msra.mxu0 0
        %7135 = vmatprep.subr.bf16.mxu0 0
        %7136 = vmatpush1.bf16.xpose.msra.mxu0 %v7119
        %7137 = vmatprep.subr.bf16.mxu0 0
        %7138 = vmatpush2.bf16.xpose.msra.mxu0 0
        %7139 = vmatprep.subr.bf16.mxu0 0
        %7140 = vmatpush2.bf16.xpose.msra.mxu0 0
        %7141 = vmatprep.subr.bf16.mxu0 0
        %7142 = vmatpush2.bf16.xpose.msra.mxu0 0
        %7143 = vmatprep.subr.bf16.mxu0 0
        %7144 = vmatpush2.bf16.xpose.msra.mxu0 0
        %7145 = vmatprep.subr.bf16.mxu0 0
        %7146 = vmatpush2.bf16.xpose.msra.mxu0 0
        %7147 = vmatprep.subr.bf16.mxu0 0
        %7148 = vmatpush2.bf16.xpose.msra.mxu0 0
        %7149 = vmatprep.subr.bf16.mxu0 0
        %7150 = vmatpush2.bf16.xpose.msra.mxu0 0
        %7151 = vmatprep.subr.bf16.mxu0 0
        %7152 = vmatpush2.bf16.xpose.msra.mxu0 0
        %7153 = vmatprep.mubr.bf16.mxu0 0
        %7154 = vmatmul.mubr.bf16.gmra.mxu0 %v7116
        %v7155 = vpop.f32.mrf.mxu0
        %v7156 = vadd.f32 0.0, %v7155
        %v7157 = vpop.f32.mrf.mxu0
        %v7158 = vpop.f32.mrf.mxu0
        %v7159 = vpop.f32.mrf.mxu0
        %7160 = vdwg.mxu0
        %7161 = vrot.lane.b32.xlu0 %v797, 16
        %v7162 = vpop.permute.xlu0 %7161
        %7163 = vrot.lane.b32.xlu0 %v817, 16
        %v7164 = vpop.permute.xlu0 %7163
        %v7166 = vsel %vm852, %v7162, 0
        %v7169 = vsel %vm852, %v7164, 0
        %7171 = vmatprep.subr.bf16.mxu0 0
        %7172 = vmatpush1.bf16.xpose.msra.mxu0 0
        %7173 = vmatprep.subr.bf16.mxu0 0
        %7174 = vmatpush1.bf16.xpose.msra.mxu0 0
        %7175 = vmatprep.subr.bf16.mxu0 0
        %7176 = vmatpush1.bf16.xpose.msra.mxu0 0
        %7177 = vmatprep.subr.bf16.mxu0 0
        %7178 = vmatpush1.bf16.xpose.msra.mxu0 0
        %7179 = vmatprep.subr.bf16.mxu0 0
        %7180 = vmatpush1.bf16.xpose.msra.mxu0 0
        %7181 = vmatprep.subr.bf16.mxu0 0
        %7182 = vmatpush1.bf16.xpose.msra.mxu0 0
        %7183 = vmatprep.subr.bf16.mxu0 0
        %7184 = vmatpush1.bf16.xpose.msra.mxu0 0
        %7185 = vmatprep.subr.bf16.mxu0 0
        %7186 = vmatpush1.bf16.xpose.msra.mxu0 %v7169
        %7187 = vmatprep.subr.bf16.mxu0 0
        %7188 = vmatpush2.bf16.xpose.msra.mxu0 0
        %7189 = vmatprep.subr.bf16.mxu0 0
        %7190 = vmatpush2.bf16.xpose.msra.mxu0 0
        %7191 = vmatprep.subr.bf16.mxu0 0
        %7192 = vmatpush2.bf16.xpose.msra.mxu0 0
        %7193 = vmatprep.subr.bf16.mxu0 0
        %7194 = vmatpush2.bf16.xpose.msra.mxu0 0
        %7195 = vmatprep.subr.bf16.mxu0 0
        %7196 = vmatpush2.bf16.xpose.msra.mxu0 0
        %7197 = vmatprep.subr.bf16.mxu0 0
        %7198 = vmatpush2.bf16.xpose.msra.mxu0 0
        %7199 = vmatprep.subr.bf16.mxu0 0
        %7200 = vmatpush2.bf16.xpose.msra.mxu0 0
        %7201 = vmatprep.subr.bf16.mxu0 0
        %7202 = vmatpush2.bf16.xpose.msra.mxu0 0
        %7203 = vmatprep.mubr.bf16.mxu0 0
        %7204 = vmatmul.mubr.bf16.gmra.mxu0 %v7166
        %v7205 = vpop.f32.mrf.mxu0
        %v7206 = vadd.f32 0.0, %v7205
        %v7207 = vpop.f32.mrf.mxu0
        %v7208 = vpop.f32.mrf.mxu0
        %v7209 = vpop.f32.mrf.mxu0
        %7210 = vdwg.mxu0
        %7211 = vrot.lane.b32.xlu0 %v798, 16
        %v7212 = vpop.permute.xlu0 %7211
        %7213 = vrot.lane.b32.xlu0 %v818, 16
        %v7214 = vpop.permute.xlu0 %7213
        %v7216 = vsel %vm852, %v7212, 0
        %v7219 = vsel %vm852, %v7214, 0
        %7221 = vmatprep.subr.bf16.mxu0 0
        %7222 = vmatpush1.bf16.xpose.msra.mxu0 0
        %7223 = vmatprep.subr.bf16.mxu0 0
        %7224 = vmatpush1.bf16.xpose.msra.mxu0 0
        %7225 = vmatprep.subr.bf16.mxu0 0
        %7226 = vmatpush1.bf16.xpose.msra.mxu0 0
        %7227 = vmatprep.subr.bf16.mxu0 0
        %7228 = vmatpush1.bf16.xpose.msra.mxu0 0
        %7229 = vmatprep.subr.bf16.mxu0 0
        %7230 = vmatpush1.bf16.xpose.msra.mxu0 0
        %7231 = vmatprep.subr.bf16.mxu0 0
        %7232 = vmatpush1.bf16.xpose.msra.mxu0 0
        %7233 = vmatprep.subr.bf16.mxu0 0
        %7234 = vmatpush1.bf16.xpose.msra.mxu0 0
        %7235 = vmatprep.subr.bf16.mxu0 0
        %7236 = vmatpush1.bf16.xpose.msra.mxu0 %v7219
        %7237 = vmatprep.subr.bf16.mxu0 0
        %7238 = vmatpush2.bf16.xpose.msra.mxu0 0
        %7239 = vmatprep.subr.bf16.mxu0 0
        %7240 = vmatpush2.bf16.xpose.msra.mxu0 0
        %7241 = vmatprep.subr.bf16.mxu0 0
        %7242 = vmatpush2.bf16.xpose.msra.mxu0 0
        %7243 = vmatprep.subr.bf16.mxu0 0
        %7244 = vmatpush2.bf16.xpose.msra.mxu0 0
        %7245 = vmatprep.subr.bf16.mxu0 0
        %7246 = vmatpush2.bf16.xpose.msra.mxu0 0
        %7247 = vmatprep.subr.bf16.mxu0 0
        %7248 = vmatpush2.bf16.xpose.msra.mxu0 0
        %7249 = vmatprep.subr.bf16.mxu0 0
        %7250 = vmatpush2.bf16.xpose.msra.mxu0 0
        %7251 = vmatprep.subr.bf16.mxu0 0
        %7252 = vmatpush2.bf16.xpose.msra.mxu0 0
        %7253 = vmatprep.mubr.bf16.mxu0 0
        %7254 = vmatmul.mubr.bf16.gmra.mxu0 %v7216
        %v7255 = vpop.f32.mrf.mxu0
        %v7256 = vadd.f32 0.0, %v7255
        %v7257 = vpop.f32.mrf.mxu0
        %v7258 = vpop.f32.mrf.mxu0
        %v7259 = vpop.f32.mrf.mxu0
        %7260 = vdwg.mxu0
        %7261 = vrot.lane.b32.xlu0 %v799, 16
        %v7262 = vpop.permute.xlu0 %7261
        %7263 = vrot.lane.b32.xlu0 %v819, 16
        %v7264 = vpop.permute.xlu0 %7263
        %v7266 = vsel %vm852, %v7262, 0
        %v7269 = vsel %vm852, %v7264, 0
        %7271 = vmatprep.subr.bf16.mxu0 0
        %7272 = vmatpush1.bf16.xpose.msra.mxu0 0
        %7273 = vmatprep.subr.bf16.mxu0 0
        %7274 = vmatpush1.bf16.xpose.msra.mxu0 0
        %7275 = vmatprep.subr.bf16.mxu0 0
        %7276 = vmatpush1.bf16.xpose.msra.mxu0 0
        %7277 = vmatprep.subr.bf16.mxu0 0
        %7278 = vmatpush1.bf16.xpose.msra.mxu0 0
        %7279 = vmatprep.subr.bf16.mxu0 0
        %7280 = vmatpush1.bf16.xpose.msra.mxu0 0
        %7281 = vmatprep.subr.bf16.mxu0 0
        %7282 = vmatpush1.bf16.xpose.msra.mxu0 0
        %7283 = vmatprep.subr.bf16.mxu0 0
        %7284 = vmatpush1.bf16.xpose.msra.mxu0 0
        %7285 = vmatprep.subr.bf16.mxu0 0
        %7286 = vmatpush1.bf16.xpose.msra.mxu0 %v7269
        %7287 = vmatprep.subr.bf16.mxu0 0
        %7288 = vmatpush2.bf16.xpose.msra.mxu0 0
        %7289 = vmatprep.subr.bf16.mxu0 0
        %7290 = vmatpush2.bf16.xpose.msra.mxu0 0
        %7291 = vmatprep.subr.bf16.mxu0 0
        %7292 = vmatpush2.bf16.xpose.msra.mxu0 0
        %7293 = vmatprep.subr.bf16.mxu0 0
        %7294 = vmatpush2.bf16.xpose.msra.mxu0 0
        %7295 = vmatprep.subr.bf16.mxu0 0
        %7296 = vmatpush2.bf16.xpose.msra.mxu0 0
        %7297 = vmatprep.subr.bf16.mxu0 0
        %7298 = vmatpush2.bf16.xpose.msra.mxu0 0
        %7299 = vmatprep.subr.bf16.mxu0 0
        %7300 = vmatpush2.bf16.xpose.msra.mxu0 0
        %7301 = vmatprep.subr.bf16.mxu0 0
        %7302 = vmatpush2.bf16.xpose.msra.mxu0 0
        %7303 = vmatprep.mubr.bf16.mxu0 0
        %7304 = vmatmul.mubr.bf16.gmra.mxu0 %v7266
        %v7305 = vpop.f32.mrf.mxu0
        %v7306 = vadd.f32 0.0, %v7305
        %v7307 = vpop.f32.mrf.mxu0
        %v7308 = vpop.f32.mrf.mxu0
        %v7309 = vpop.f32.mrf.mxu0
        %7310 = vdwg.mxu0
        %7311 = vrot.lane.b32.xlu0 %v800, 16
        %v7312 = vpop.permute.xlu0 %7311
        %7313 = vrot.lane.b32.xlu0 %v820, 16
        %v7314 = vpop.permute.xlu0 %7313
        %v7316 = vsel %vm852, %v7312, 0
        %v7319 = vsel %vm852, %v7314, 0
        %7321 = vmatprep.subr.bf16.mxu0 0
        %7322 = vmatpush1.bf16.xpose.msra.mxu0 0
        %7323 = vmatprep.subr.bf16.mxu0 0
        %7324 = vmatpush1.bf16.xpose.msra.mxu0 0
        %7325 = vmatprep.subr.bf16.mxu0 0
        %7326 = vmatpush1.bf16.xpose.msra.mxu0 0
        %7327 = vmatprep.subr.bf16.mxu0 0
        %7328 = vmatpush1.bf16.xpose.msra.mxu0 0
        %7329 = vmatprep.subr.bf16.mxu0 0
        %7330 = vmatpush1.bf16.xpose.msra.mxu0 0
        %7331 = vmatprep.subr.bf16.mxu0 0
        %7332 = vmatpush1.bf16.xpose.msra.mxu0 0
        %7333 = vmatprep.subr.bf16.mxu0 0
        %7334 = vmatpush1.bf16.xpose.msra.mxu0 0
        %7335 = vmatprep.subr.bf16.mxu0 0
        %7336 = vmatpush1.bf16.xpose.msra.mxu0 %v7319
        %7337 = vmatprep.subr.bf16.mxu0 0
        %7338 = vmatpush2.bf16.xpose.msra.mxu0 0
        %7339 = vmatprep.subr.bf16.mxu0 0
        %7340 = vmatpush2.bf16.xpose.msra.mxu0 0
        %7341 = vmatprep.subr.bf16.mxu0 0
        %7342 = vmatpush2.bf16.xpose.msra.mxu0 0
        %7343 = vmatprep.subr.bf16.mxu0 0
        %7344 = vmatpush2.bf16.xpose.msra.mxu0 0
        %7345 = vmatprep.subr.bf16.mxu0 0
        %7346 = vmatpush2.bf16.xpose.msra.mxu0 0
        %7347 = vmatprep.subr.bf16.mxu0 0
        %7348 = vmatpush2.bf16.xpose.msra.mxu0 0
        %7349 = vmatprep.subr.bf16.mxu0 0
        %7350 = vmatpush2.bf16.xpose.msra.mxu0 0
        %7351 = vmatprep.subr.bf16.mxu0 0
        %7352 = vmatpush2.bf16.xpose.msra.mxu0 0
        %7353 = vmatprep.mubr.bf16.mxu0 0
        %7354 = vmatmul.mubr.bf16.gmra.mxu0 %v7316
        %v7355 = vpop.f32.mrf.mxu0
        %v7356 = vadd.f32 0.0, %v7355
        %v7357 = vpop.f32.mrf.mxu0
        %v7358 = vpop.f32.mrf.mxu0
        %v7359 = vpop.f32.mrf.mxu0
        %7360 = vdwg.mxu0
        %7361 = vrot.lane.b32.xlu0 %v801, 16
        %v7362 = vpop.permute.xlu0 %7361
        %7363 = vrot.lane.b32.xlu0 %v821, 16
        %v7364 = vpop.permute.xlu0 %7363
        %v7366 = vsel %vm852, %v7362, 0
        %v7369 = vsel %vm852, %v7364, 0
        %7371 = vmatprep.subr.bf16.mxu0 0
        %7372 = vmatpush1.bf16.xpose.msra.mxu0 0
        %7373 = vmatprep.subr.bf16.mxu0 0
        %7374 = vmatpush1.bf16.xpose.msra.mxu0 0
        %7375 = vmatprep.subr.bf16.mxu0 0
        %7376 = vmatpush1.bf16.xpose.msra.mxu0 0
        %7377 = vmatprep.subr.bf16.mxu0 0
        %7378 = vmatpush1.bf16.xpose.msra.mxu0 0
        %7379 = vmatprep.subr.bf16.mxu0 0
        %7380 = vmatpush1.bf16.xpose.msra.mxu0 0
        %7381 = vmatprep.subr.bf16.mxu0 0
        %7382 = vmatpush1.bf16.xpose.msra.mxu0 0
        %7383 = vmatprep.subr.bf16.mxu0 0
        %7384 = vmatpush1.bf16.xpose.msra.mxu0 0
        %7385 = vmatprep.subr.bf16.mxu0 0
        %7386 = vmatpush1.bf16.xpose.msra.mxu0 %v7369
        %7387 = vmatprep.subr.bf16.mxu0 0
        %7388 = vmatpush2.bf16.xpose.msra.mxu0 0
        %7389 = vmatprep.subr.bf16.mxu0 0
        %7390 = vmatpush2.bf16.xpose.msra.mxu0 0
        %7391 = vmatprep.subr.bf16.mxu0 0
        %7392 = vmatpush2.bf16.xpose.msra.mxu0 0
        %7393 = vmatprep.subr.bf16.mxu0 0
        %7394 = vmatpush2.bf16.xpose.msra.mxu0 0
        %7395 = vmatprep.subr.bf16.mxu0 0
        %7396 = vmatpush2.bf16.xpose.msra.mxu0 0
        %7397 = vmatprep.subr.bf16.mxu0 0
        %7398 = vmatpush2.bf16.xpose.msra.mxu0 0
        %7399 = vmatprep.subr.bf16.mxu0 0
        %7400 = vmatpush2.bf16.xpose.msra.mxu0 0
        %7401 = vmatprep.subr.bf16.mxu0 0
        %7402 = vmatpush2.bf16.xpose.msra.mxu0 0
        %7403 = vmatprep.mubr.bf16.mxu0 0
        %7404 = vmatmul.mubr.bf16.gmra.mxu0 %v7366
        %v7405 = vpop.f32.mrf.mxu0
        %v7406 = vadd.f32 0.0, %v7405
        %v7407 = vpop.f32.mrf.mxu0
        %v7408 = vpop.f32.mrf.mxu0
        %v7409 = vpop.f32.mrf.mxu0
        %7410 = vdwg.mxu0
        %7411 = vrot.lane.b32.xlu0 %v802, 16
        %v7412 = vpop.permute.xlu0 %7411
        %7413 = vrot.lane.b32.xlu0 %v822, 16
        %v7414 = vpop.permute.xlu0 %7413
        %v7416 = vsel %vm852, %v7412, 0
        %v7419 = vsel %vm852, %v7414, 0
        %7421 = vmatprep.subr.bf16.mxu0 0
        %7422 = vmatpush1.bf16.xpose.msra.mxu0 0
        %7423 = vmatprep.subr.bf16.mxu0 0
        %7424 = vmatpush1.bf16.xpose.msra.mxu0 0
        %7425 = vmatprep.subr.bf16.mxu0 0
        %7426 = vmatpush1.bf16.xpose.msra.mxu0 0
        %7427 = vmatprep.subr.bf16.mxu0 0
        %7428 = vmatpush1.bf16.xpose.msra.mxu0 0
        %7429 = vmatprep.subr.bf16.mxu0 0
        %7430 = vmatpush1.bf16.xpose.msra.mxu0 0
        %7431 = vmatprep.subr.bf16.mxu0 0
        %7432 = vmatpush1.bf16.xpose.msra.mxu0 0
        %7433 = vmatprep.subr.bf16.mxu0 0
        %7434 = vmatpush1.bf16.xpose.msra.mxu0 0
        %7435 = vmatprep.subr.bf16.mxu0 0
        %7436 = vmatpush1.bf16.xpose.msra.mxu0 %v7419
        %7437 = vmatprep.subr.bf16.mxu0 0
        %7438 = vmatpush2.bf16.xpose.msra.mxu0 0
        %7439 = vmatprep.subr.bf16.mxu0 0
        %7440 = vmatpush2.bf16.xpose.msra.mxu0 0
        %7441 = vmatprep.subr.bf16.mxu0 0
        %7442 = vmatpush2.bf16.xpose.msra.mxu0 0
        %7443 = vmatprep.subr.bf16.mxu0 0
        %7444 = vmatpush2.bf16.xpose.msra.mxu0 0
        %7445 = vmatprep.subr.bf16.mxu0 0
        %7446 = vmatpush2.bf16.xpose.msra.mxu0 0
        %7447 = vmatprep.subr.bf16.mxu0 0
        %7448 = vmatpush2.bf16.xpose.msra.mxu0 0
        %7449 = vmatprep.subr.bf16.mxu0 0
        %7450 = vmatpush2.bf16.xpose.msra.mxu0 0
        %7451 = vmatprep.subr.bf16.mxu0 0
        %7452 = vmatpush2.bf16.xpose.msra.mxu0 0
        %7453 = vmatprep.mubr.bf16.mxu0 0
        %7454 = vmatmul.mubr.bf16.gmra.mxu0 %v7416
        %v7455 = vpop.f32.mrf.mxu0
        %v7456 = vadd.f32 0.0, %v7455
        %v7457 = vpop.f32.mrf.mxu0
        %v7458 = vpop.f32.mrf.mxu0
        %v7459 = vpop.f32.mrf.mxu0
        %7460 = vdwg.mxu0
        %7461 = vrot.lane.b32.xlu0 %v803, 16
        %v7462 = vpop.permute.xlu0 %7461
        %7463 = vrot.lane.b32.xlu0 %v823, 16
        %v7464 = vpop.permute.xlu0 %7463
        %v7466 = vsel %vm852, %v7462, 0
        %v7469 = vsel %vm852, %v7464, 0
        %7471 = vmatprep.subr.bf16.mxu0 0
        %7472 = vmatpush1.bf16.xpose.msra.mxu0 0
        %7473 = vmatprep.subr.bf16.mxu0 0
        %7474 = vmatpush1.bf16.xpose.msra.mxu0 0
        %7475 = vmatprep.subr.bf16.mxu0 0
        %7476 = vmatpush1.bf16.xpose.msra.mxu0 0
        %7477 = vmatprep.subr.bf16.mxu0 0
        %7478 = vmatpush1.bf16.xpose.msra.mxu0 0
        %7479 = vmatprep.subr.bf16.mxu0 0
        %7480 = vmatpush1.bf16.xpose.msra.mxu0 0
        %7481 = vmatprep.subr.bf16.mxu0 0
        %7482 = vmatpush1.bf16.xpose.msra.mxu0 0
        %7483 = vmatprep.subr.bf16.mxu0 0
        %7484 = vmatpush1.bf16.xpose.msra.mxu0 0
        %7485 = vmatprep.subr.bf16.mxu0 0
        %7486 = vmatpush1.bf16.xpose.msra.mxu0 %v7469
        %7487 = vmatprep.subr.bf16.mxu0 0
        %7488 = vmatpush2.bf16.xpose.msra.mxu0 0
        %7489 = vmatprep.subr.bf16.mxu0 0
        %7490 = vmatpush2.bf16.xpose.msra.mxu0 0
        %7491 = vmatprep.subr.bf16.mxu0 0
        %7492 = vmatpush2.bf16.xpose.msra.mxu0 0
        %7493 = vmatprep.subr.bf16.mxu0 0
        %7494 = vmatpush2.bf16.xpose.msra.mxu0 0
        %7495 = vmatprep.subr.bf16.mxu0 0
        %7496 = vmatpush2.bf16.xpose.msra.mxu0 0
        %7497 = vmatprep.subr.bf16.mxu0 0
        %7498 = vmatpush2.bf16.xpose.msra.mxu0 0
        %7499 = vmatprep.subr.bf16.mxu0 0
        %7500 = vmatpush2.bf16.xpose.msra.mxu0 0
        %7501 = vmatprep.subr.bf16.mxu0 0
        %7502 = vmatpush2.bf16.xpose.msra.mxu0 0
        %7503 = vmatprep.mubr.bf16.mxu0 0
        %7504 = vmatmul.mubr.bf16.gmra.mxu0 %v7466
        %v7505 = vpop.f32.mrf.mxu0
        %v7506 = vadd.f32 0.0, %v7505
        %v7507 = vpop.f32.mrf.mxu0
        %v7508 = vpop.f32.mrf.mxu0
        %v7509 = vpop.f32.mrf.mxu0
        %7510 = vdwg.mxu0
        %v7511 = vmul.f32 %v7156, 0.25
        %v7512 = vmul.f32 %v7206, 0.25
        %v7513 = vmul.f32 %v7256, 0.25
        %v7514 = vmul.f32 %v7306, 0.25
        %v7515 = vmul.f32 %v7356, 0.25
        %v7516 = vmul.f32 %v7406, 0.25
        %v7517 = vmul.f32 %v7456, 0.25
        %v7518 = vmul.f32 %v7506, 0.25
        %v7519 = vadd.f32 %v7511, %v1232
        %v7520 = vadd.f32 %v7512, %v1236
        %v7521 = vadd.f32 %v7513, %v1240
        %v7522 = vadd.f32 %v7514, %v1244
        %v7523 = vadd.f32 %v7515, %v1248
        %v7524 = vadd.f32 %v7516, %v1252
        %v7525 = vadd.f32 %v7517, %v1256
        %v7526 = vadd.f32 %v7518, %v1260
        %v7527 = vsel %vm1269, %v7519, -inf
        %7528 = vmax.xlane.f32.xlu0 %v7527
        %v7529 = vpop.xlane.xlu0 %7528
        %v7530 = vsel %vm1269, %v7520, -inf
        %7531 = vmax.xlane.f32.xlu0 %v7530
        %v7532 = vpop.xlane.xlu0 %7531
        %v7533 = vsel %vm1269, %v7521, -inf
        %7534 = vmax.xlane.f32.xlu0 %v7533
        %v7535 = vpop.xlane.xlu0 %7534
        %v7536 = vsel %vm1269, %v7522, -inf
        %7537 = vmax.xlane.f32.xlu0 %v7536
        %v7538 = vpop.xlane.xlu0 %7537
        %v7539 = vsel %vm1269, %v7523, -inf
        %7540 = vmax.xlane.f32.xlu0 %v7539
        %v7541 = vpop.xlane.xlu0 %7540
        %v7542 = vsel %vm1269, %v7524, -inf
        %7543 = vmax.xlane.f32.xlu0 %v7542
        %v7544 = vpop.xlane.xlu0 %7543
        %v7545 = vsel %vm1269, %v7525, -inf
        %7546 = vmax.xlane.f32.xlu0 %v7545
        %v7547 = vpop.xlane.xlu0 %7546
        %v7548 = vsel %vm1269, %v7526, -inf
        %7549 = vmax.xlane.f32.xlu0 %v7548
        %v7550 = vpop.xlane.xlu0 %7549
        %v7551 = vsub.f32 %v7519, %v7529
        %v7552 = vsub.f32 %v7520, %v7532
        %v7553 = vsub.f32 %v7521, %v7535
        %v7554 = vsub.f32 %v7522, %v7538
        %v7555 = vsub.f32 %v7523, %v7541
        %v7556 = vsub.f32 %v7524, %v7544
        %v7557 = vsub.f32 %v7525, %v7547
        %v7558 = vsub.f32 %v7526, %v7550
        %v7559 = vmul.f32 %v7551, 1.442695
        %v7560 = vpow.pop %v7559
        %v7561 = vmul.f32 %v7552, 1.442695
        %v7562 = vpow.pop %v7561
        %v7563 = vmul.f32 %v7553, 1.442695
        %v7564 = vpow.pop %v7563
        %v7565 = vmul.f32 %v7554, 1.442695
        %v7566 = vpow.pop %v7565
        %v7567 = vmul.f32 %v7555, 1.442695
        %v7568 = vpow.pop %v7567
        %v7569 = vmul.f32 %v7556, 1.442695
        %v7570 = vpow.pop %v7569
        %v7571 = vmul.f32 %v7557, 1.442695
        %v7572 = vpow.pop %v7571
        %v7573 = vmul.f32 %v7558, 1.442695
        %v7574 = vpow.pop %v7573
        %v7575 = vsel %vm1269, %v7560, 0.0
        %7576 = vadd.xlane.f32.xlu0 %v7575
        %v7577 = vpop.xlane.xlu0 %7576
        %v7578 = vsel %vm1269, %v7562, 0.0
        %7579 = vadd.xlane.f32.xlu0 %v7578
        %v7580 = vpop.xlane.xlu0 %7579
        %v7581 = vsel %vm1269, %v7564, 0.0
        %7582 = vadd.xlane.f32.xlu0 %v7581
        %v7583 = vpop.xlane.xlu0 %7582
        %v7584 = vsel %vm1269, %v7566, 0.0
        %7585 = vadd.xlane.f32.xlu0 %v7584
        %v7586 = vpop.xlane.xlu0 %7585
        %v7587 = vsel %vm1269, %v7568, 0.0
        %7588 = vadd.xlane.f32.xlu0 %v7587
        %v7589 = vpop.xlane.xlu0 %7588
        %v7590 = vsel %vm1269, %v7570, 0.0
        %7591 = vadd.xlane.f32.xlu0 %v7590
        %v7592 = vpop.xlane.xlu0 %7591
        %v7593 = vsel %vm1269, %v7572, 0.0
        %7594 = vadd.xlane.f32.xlu0 %v7593
        %v7595 = vpop.xlane.xlu0 %7594
        %v7596 = vsel %vm1269, %v7574, 0.0
        %7597 = vadd.xlane.f32.xlu0 %v7596
        %v7598 = vpop.xlane.xlu0 %7597
        %v7599 = vrcp.pop %v7577
        %v7600 = vrcp.pop %v7580
        %v7601 = vrcp.pop %v7583
        %v7602 = vrcp.pop %v7586
        %v7603 = vrcp.pop %v7589
        %v7604 = vrcp.pop %v7592
        %v7605 = vrcp.pop %v7595
        %v7606 = vrcp.pop %v7598
        %v7607 = vmul.f32 %v7560, %v7599
        %v7608 = vmul.f32 %v7562, %v7600
        %v7609 = vmul.f32 %v7564, %v7601
        %v7610 = vmul.f32 %v7566, %v7602
        %v7611 = vmul.f32 %v7568, %v7603
        %v7612 = vmul.f32 %v7570, %v7604
        %v7613 = vmul.f32 %v7572, %v7605
        %v7614 = vmul.f32 %v7574, %v7606
        %v7615 = vpack.c.bf16 %v7607, %v7607
        %v7616 = vpack.c.bf16 %v7608, %v7608
        %v7617 = vpack.c.bf16 %v7609, %v7609
        %v7618 = vpack.c.bf16 %v7610, %v7610
        %v7619 = vpack.c.bf16 %v7611, %v7611
        %v7620 = vpack.c.bf16 %v7612, %v7612
        %v7621 = vpack.c.bf16 %v7613, %v7613
        %v7622 = vpack.c.bf16 %v7614, %v7614
        %7623 = vrot.lane.b32.xlu0 %v836, 16
        %v7624 = vpop.permute.xlu0 %7623
        %v7626 = vsel %vm1269, %v7615, 0
        %v7629 = vsel %vm1369, %v7624, 0
        %7631 = vmatprep.subr.bf16.mxu0 0
        %7632 = vmatpush1.bf16.msra.mxu0 0
        %7633 = vmatprep.subr.bf16.mxu0 0
        %7634 = vmatpush1.bf16.msra.mxu0 0
        %7635 = vmatprep.subr.bf16.mxu0 0
        %7636 = vmatpush1.bf16.msra.mxu0 0
        %7637 = vmatprep.subr.bf16.mxu0 0
        %7638 = vmatpush1.bf16.msra.mxu0 0
        %7639 = vmatprep.subr.bf16.mxu0 0
        %7640 = vmatpush1.bf16.msra.mxu0 0
        %7641 = vmatprep.subr.bf16.mxu0 0
        %7642 = vmatpush1.bf16.msra.mxu0 0
        %7643 = vmatprep.subr.bf16.mxu0 0
        %7644 = vmatpush1.bf16.msra.mxu0 0
        %7645 = vmatprep.subr.bf16.mxu0 0
        %7646 = vmatpush1.bf16.msra.mxu0 %v7629
        %7647 = vmatprep.subr.bf16.mxu0 0
        %7648 = vmatpush2.bf16.msra.mxu0 0
        %7649 = vmatprep.subr.bf16.mxu0 0
        %7650 = vmatpush2.bf16.msra.mxu0 0
        %7651 = vmatprep.subr.bf16.mxu0 0
        %7652 = vmatpush2.bf16.msra.mxu0 0
        %7653 = vmatprep.subr.bf16.mxu0 0
        %7654 = vmatpush2.bf16.msra.mxu0 0
        %7655 = vmatprep.subr.bf16.mxu0 0
        %7656 = vmatpush2.bf16.msra.mxu0 0
        %7657 = vmatprep.subr.bf16.mxu0 0
        %7658 = vmatpush2.bf16.msra.mxu0 0
        %7659 = vmatprep.subr.bf16.mxu0 0
        %7660 = vmatpush2.bf16.msra.mxu0 0
        %7661 = vmatprep.subr.bf16.mxu0 0
        %7662 = vmatpush2.bf16.msra.mxu0 0
        %7663 = vmatprep.mubr.bf16.mxu0 0
        %7664 = vmatmul.mubr.bf16.gmra.mxu0 %v7626
        %v7665 = vpop.f32.mrf.mxu0
        %v7666 = vadd.f32 0.0, %v7665
        %v7667 = vpop.f32.mrf.mxu0
        %v7668 = vpop.f32.mrf.mxu0
        %v7669 = vpop.f32.mrf.mxu0
        %7670 = vdwg.mxu0
        %7671 = vrot.lane.b32.xlu0 %v837, 16
        %v7672 = vpop.permute.xlu0 %7671
        %v7674 = vsel %vm1269, %v7616, 0
        %v7677 = vsel %vm1369, %v7672, 0
        %7679 = vmatprep.subr.bf16.mxu0 0
        %7680 = vmatpush1.bf16.msra.mxu0 0
        %7681 = vmatprep.subr.bf16.mxu0 0
        %7682 = vmatpush1.bf16.msra.mxu0 0
        %7683 = vmatprep.subr.bf16.mxu0 0
        %7684 = vmatpush1.bf16.msra.mxu0 0
        %7685 = vmatprep.subr.bf16.mxu0 0
        %7686 = vmatpush1.bf16.msra.mxu0 0
        %7687 = vmatprep.subr.bf16.mxu0 0
        %7688 = vmatpush1.bf16.msra.mxu0 0
        %7689 = vmatprep.subr.bf16.mxu0 0
        %7690 = vmatpush1.bf16.msra.mxu0 0
        %7691 = vmatprep.subr.bf16.mxu0 0
        %7692 = vmatpush1.bf16.msra.mxu0 0
        %7693 = vmatprep.subr.bf16.mxu0 0
        %7694 = vmatpush1.bf16.msra.mxu0 %v7677
        %7695 = vmatprep.subr.bf16.mxu0 0
        %7696 = vmatpush2.bf16.msra.mxu0 0
        %7697 = vmatprep.subr.bf16.mxu0 0
        %7698 = vmatpush2.bf16.msra.mxu0 0
        %7699 = vmatprep.subr.bf16.mxu0 0
        %7700 = vmatpush2.bf16.msra.mxu0 0
        %7701 = vmatprep.subr.bf16.mxu0 0
        %7702 = vmatpush2.bf16.msra.mxu0 0
        %7703 = vmatprep.subr.bf16.mxu0 0
        %7704 = vmatpush2.bf16.msra.mxu0 0
        %7705 = vmatprep.subr.bf16.mxu0 0
        %7706 = vmatpush2.bf16.msra.mxu0 0
        %7707 = vmatprep.subr.bf16.mxu0 0
        %7708 = vmatpush2.bf16.msra.mxu0 0
        %7709 = vmatprep.subr.bf16.mxu0 0
        %7710 = vmatpush2.bf16.msra.mxu0 0
        %7711 = vmatprep.mubr.bf16.mxu0 0
        %7712 = vmatmul.mubr.bf16.gmra.mxu0 %v7674
        %v7713 = vpop.f32.mrf.mxu0
        %v7714 = vadd.f32 0.0, %v7713
        %v7715 = vpop.f32.mrf.mxu0
        %v7716 = vpop.f32.mrf.mxu0
        %v7717 = vpop.f32.mrf.mxu0
        %7718 = vdwg.mxu0
        %7719 = vrot.lane.b32.xlu0 %v838, 16
        %v7720 = vpop.permute.xlu0 %7719
        %v7722 = vsel %vm1269, %v7617, 0
        %v7725 = vsel %vm1369, %v7720, 0
        %7727 = vmatprep.subr.bf16.mxu0 0
        %7728 = vmatpush1.bf16.msra.mxu0 0
        %7729 = vmatprep.subr.bf16.mxu0 0
        %7730 = vmatpush1.bf16.msra.mxu0 0
        %7731 = vmatprep.subr.bf16.mxu0 0
        %7732 = vmatpush1.bf16.msra.mxu0 0
        %7733 = vmatprep.subr.bf16.mxu0 0
        %7734 = vmatpush1.bf16.msra.mxu0 0
        %7735 = vmatprep.subr.bf16.mxu0 0
        %7736 = vmatpush1.bf16.msra.mxu0 0
        %7737 = vmatprep.subr.bf16.mxu0 0
        %7738 = vmatpush1.bf16.msra.mxu0 0
        %7739 = vmatprep.subr.bf16.mxu0 0
        %7740 = vmatpush1.bf16.msra.mxu0 0
        %7741 = vmatprep.subr.bf16.mxu0 0
        %7742 = vmatpush1.bf16.msra.mxu0 %v7725
        %7743 = vmatprep.subr.bf16.mxu0 0
        %7744 = vmatpush2.bf16.msra.mxu0 0
        %7745 = vmatprep.subr.bf16.mxu0 0
        %7746 = vmatpush2.bf16.msra.mxu0 0
        %7747 = vmatprep.subr.bf16.mxu0 0
        %7748 = vmatpush2.bf16.msra.mxu0 0
        %7749 = vmatprep.subr.bf16.mxu0 0
        %7750 = vmatpush2.bf16.msra.mxu0 0
        %7751 = vmatprep.subr.bf16.mxu0 0
        %7752 = vmatpush2.bf16.msra.mxu0 0
        %7753 = vmatprep.subr.bf16.mxu0 0
        %7754 = vmatpush2.bf16.msra.mxu0 0
        %7755 = vmatprep.subr.bf16.mxu0 0
        %7756 = vmatpush2.bf16.msra.mxu0 0
        %7757 = vmatprep.subr.bf16.mxu0 0
        %7758 = vmatpush2.bf16.msra.mxu0 0
        %7759 = vmatprep.mubr.bf16.mxu0 0
        %7760 = vmatmul.mubr.bf16.gmra.mxu0 %v7722
        %v7761 = vpop.f32.mrf.mxu0
        %v7762 = vadd.f32 0.0, %v7761
        %v7763 = vpop.f32.mrf.mxu0
        %v7764 = vpop.f32.mrf.mxu0
        %v7765 = vpop.f32.mrf.mxu0
        %7766 = vdwg.mxu0
        %7767 = vrot.lane.b32.xlu0 %v839, 16
        %v7768 = vpop.permute.xlu0 %7767
        %v7770 = vsel %vm1269, %v7618, 0
        %v7773 = vsel %vm1369, %v7768, 0
        %7775 = vmatprep.subr.bf16.mxu0 0
        %7776 = vmatpush1.bf16.msra.mxu0 0
        %7777 = vmatprep.subr.bf16.mxu0 0
        %7778 = vmatpush1.bf16.msra.mxu0 0
        %7779 = vmatprep.subr.bf16.mxu0 0
        %7780 = vmatpush1.bf16.msra.mxu0 0
        %7781 = vmatprep.subr.bf16.mxu0 0
        %7782 = vmatpush1.bf16.msra.mxu0 0
        %7783 = vmatprep.subr.bf16.mxu0 0
        %7784 = vmatpush1.bf16.msra.mxu0 0
        %7785 = vmatprep.subr.bf16.mxu0 0
        %7786 = vmatpush1.bf16.msra.mxu0 0
        %7787 = vmatprep.subr.bf16.mxu0 0
        %7788 = vmatpush1.bf16.msra.mxu0 0
        %7789 = vmatprep.subr.bf16.mxu0 0
        %7790 = vmatpush1.bf16.msra.mxu0 %v7773
        %7791 = vmatprep.subr.bf16.mxu0 0
        %7792 = vmatpush2.bf16.msra.mxu0 0
        %7793 = vmatprep.subr.bf16.mxu0 0
        %7794 = vmatpush2.bf16.msra.mxu0 0
        %7795 = vmatprep.subr.bf16.mxu0 0
        %7796 = vmatpush2.bf16.msra.mxu0 0
        %7797 = vmatprep.subr.bf16.mxu0 0
        %7798 = vmatpush2.bf16.msra.mxu0 0
        %7799 = vmatprep.subr.bf16.mxu0 0
        %7800 = vmatpush2.bf16.msra.mxu0 0
        %7801 = vmatprep.subr.bf16.mxu0 0
        %7802 = vmatpush2.bf16.msra.mxu0 0
        %7803 = vmatprep.subr.bf16.mxu0 0
        %7804 = vmatpush2.bf16.msra.mxu0 0
        %7805 = vmatprep.subr.bf16.mxu0 0
        %7806 = vmatpush2.bf16.msra.mxu0 0
        %7807 = vmatprep.mubr.bf16.mxu0 0
        %7808 = vmatmul.mubr.bf16.gmra.mxu0 %v7770
        %v7809 = vpop.f32.mrf.mxu0
        %v7810 = vadd.f32 0.0, %v7809
        %v7811 = vpop.f32.mrf.mxu0
        %v7812 = vpop.f32.mrf.mxu0
        %v7813 = vpop.f32.mrf.mxu0
        %7814 = vdwg.mxu0
        %7815 = vrot.lane.b32.xlu0 %v840, 16
        %v7816 = vpop.permute.xlu0 %7815
        %v7818 = vsel %vm1269, %v7619, 0
        %v7821 = vsel %vm1369, %v7816, 0
        %7823 = vmatprep.subr.bf16.mxu0 0
        %7824 = vmatpush1.bf16.msra.mxu0 0
        %7825 = vmatprep.subr.bf16.mxu0 0
        %7826 = vmatpush1.bf16.msra.mxu0 0
        %7827 = vmatprep.subr.bf16.mxu0 0
        %7828 = vmatpush1.bf16.msra.mxu0 0
        %7829 = vmatprep.subr.bf16.mxu0 0
        %7830 = vmatpush1.bf16.msra.mxu0 0
        %7831 = vmatprep.subr.bf16.mxu0 0
        %7832 = vmatpush1.bf16.msra.mxu0 0
        %7833 = vmatprep.subr.bf16.mxu0 0
        %7834 = vmatpush1.bf16.msra.mxu0 0
        %7835 = vmatprep.subr.bf16.mxu0 0
        %7836 = vmatpush1.bf16.msra.mxu0 0
        %7837 = vmatprep.subr.bf16.mxu0 0
        %7838 = vmatpush1.bf16.msra.mxu0 %v7821
        %7839 = vmatprep.subr.bf16.mxu0 0
        %7840 = vmatpush2.bf16.msra.mxu0 0
        %7841 = vmatprep.subr.bf16.mxu0 0
        %7842 = vmatpush2.bf16.msra.mxu0 0
        %7843 = vmatprep.subr.bf16.mxu0 0
        %7844 = vmatpush2.bf16.msra.mxu0 0
        %7845 = vmatprep.subr.bf16.mxu0 0
        %7846 = vmatpush2.bf16.msra.mxu0 0
        %7847 = vmatprep.subr.bf16.mxu0 0
        %7848 = vmatpush2.bf16.msra.mxu0 0
        %7849 = vmatprep.subr.bf16.mxu0 0
        %7850 = vmatpush2.bf16.msra.mxu0 0
        %7851 = vmatprep.subr.bf16.mxu0 0
        %7852 = vmatpush2.bf16.msra.mxu0 0
        %7853 = vmatprep.subr.bf16.mxu0 0
        %7854 = vmatpush2.bf16.msra.mxu0 0
        %7855 = vmatprep.mubr.bf16.mxu0 0
        %7856 = vmatmul.mubr.bf16.gmra.mxu0 %v7818
        %v7857 = vpop.f32.mrf.mxu0
        %v7858 = vadd.f32 0.0, %v7857
        %v7859 = vpop.f32.mrf.mxu0
        %v7860 = vpop.f32.mrf.mxu0
        %v7861 = vpop.f32.mrf.mxu0
        %7862 = vdwg.mxu0
        %7863 = vrot.lane.b32.xlu0 %v841, 16
        %v7864 = vpop.permute.xlu0 %7863
        %v7866 = vsel %vm1269, %v7620, 0
        %v7869 = vsel %vm1369, %v7864, 0
        %7871 = vmatprep.subr.bf16.mxu0 0
        %7872 = vmatpush1.bf16.msra.mxu0 0
        %7873 = vmatprep.subr.bf16.mxu0 0
        %7874 = vmatpush1.bf16.msra.mxu0 0
        %7875 = vmatprep.subr.bf16.mxu0 0
        %7876 = vmatpush1.bf16.msra.mxu0 0
        %7877 = vmatprep.subr.bf16.mxu0 0
        %7878 = vmatpush1.bf16.msra.mxu0 0
        %7879 = vmatprep.subr.bf16.mxu0 0
        %7880 = vmatpush1.bf16.msra.mxu0 0
        %7881 = vmatprep.subr.bf16.mxu0 0
        %7882 = vmatpush1.bf16.msra.mxu0 0
        %7883 = vmatprep.subr.bf16.mxu0 0
        %7884 = vmatpush1.bf16.msra.mxu0 0
        %7885 = vmatprep.subr.bf16.mxu0 0
        %7886 = vmatpush1.bf16.msra.mxu0 %v7869
        %7887 = vmatprep.subr.bf16.mxu0 0
        %7888 = vmatpush2.bf16.msra.mxu0 0
        %7889 = vmatprep.subr.bf16.mxu0 0
        %7890 = vmatpush2.bf16.msra.mxu0 0
        %7891 = vmatprep.subr.bf16.mxu0 0
        %7892 = vmatpush2.bf16.msra.mxu0 0
        %7893 = vmatprep.subr.bf16.mxu0 0
        %7894 = vmatpush2.bf16.msra.mxu0 0
        %7895 = vmatprep.subr.bf16.mxu0 0
        %7896 = vmatpush2.bf16.msra.mxu0 0
        %7897 = vmatprep.subr.bf16.mxu0 0
        %7898 = vmatpush2.bf16.msra.mxu0 0
        %7899 = vmatprep.subr.bf16.mxu0 0
        %7900 = vmatpush2.bf16.msra.mxu0 0
        %7901 = vmatprep.subr.bf16.mxu0 0
        %7902 = vmatpush2.bf16.msra.mxu0 0
        %7903 = vmatprep.mubr.bf16.mxu0 0
        %7904 = vmatmul.mubr.bf16.gmra.mxu0 %v7866
        %v7905 = vpop.f32.mrf.mxu0
        %v7906 = vadd.f32 0.0, %v7905
        %v7907 = vpop.f32.mrf.mxu0
        %v7908 = vpop.f32.mrf.mxu0
        %v7909 = vpop.f32.mrf.mxu0
        %7910 = vdwg.mxu0
        %7911 = vrot.lane.b32.xlu0 %v842, 16
        %v7912 = vpop.permute.xlu0 %7911
        %v7914 = vsel %vm1269, %v7621, 0
        %v7917 = vsel %vm1369, %v7912, 0
        %7919 = vmatprep.subr.bf16.mxu0 0
        %7920 = vmatpush1.bf16.msra.mxu0 0
        %7921 = vmatprep.subr.bf16.mxu0 0
        %7922 = vmatpush1.bf16.msra.mxu0 0
        %7923 = vmatprep.subr.bf16.mxu0 0
        %7924 = vmatpush1.bf16.msra.mxu0 0
        %7925 = vmatprep.subr.bf16.mxu0 0
        %7926 = vmatpush1.bf16.msra.mxu0 0
        %7927 = vmatprep.subr.bf16.mxu0 0
        %7928 = vmatpush1.bf16.msra.mxu0 0
        %7929 = vmatprep.subr.bf16.mxu0 0
        %7930 = vmatpush1.bf16.msra.mxu0 0
        %7931 = vmatprep.subr.bf16.mxu0 0
        %7932 = vmatpush1.bf16.msra.mxu0 0
        %7933 = vmatprep.subr.bf16.mxu0 0
        %7934 = vmatpush1.bf16.msra.mxu0 %v7917
        %7935 = vmatprep.subr.bf16.mxu0 0
        %7936 = vmatpush2.bf16.msra.mxu0 0
        %7937 = vmatprep.subr.bf16.mxu0 0
        %7938 = vmatpush2.bf16.msra.mxu0 0
        %7939 = vmatprep.subr.bf16.mxu0 0
        %7940 = vmatpush2.bf16.msra.mxu0 0
        %7941 = vmatprep.subr.bf16.mxu0 0
        %7942 = vmatpush2.bf16.msra.mxu0 0
        %7943 = vmatprep.subr.bf16.mxu0 0
        %7944 = vmatpush2.bf16.msra.mxu0 0
        %7945 = vmatprep.subr.bf16.mxu0 0
        %7946 = vmatpush2.bf16.msra.mxu0 0
        %7947 = vmatprep.subr.bf16.mxu0 0
        %7948 = vmatpush2.bf16.msra.mxu0 0
        %7949 = vmatprep.subr.bf16.mxu0 0
        %7950 = vmatpush2.bf16.msra.mxu0 0
        %7951 = vmatprep.mubr.bf16.mxu0 0
        %7952 = vmatmul.mubr.bf16.gmra.mxu0 %v7914
        %v7953 = vpop.f32.mrf.mxu0
        %v7954 = vadd.f32 0.0, %v7953
        %v7955 = vpop.f32.mrf.mxu0
        %v7956 = vpop.f32.mrf.mxu0
        %v7957 = vpop.f32.mrf.mxu0
        %7958 = vdwg.mxu0
        %7959 = vrot.lane.b32.xlu0 %v843, 16
        %v7960 = vpop.permute.xlu0 %7959
        %v7962 = vsel %vm1269, %v7622, 0
        %v7965 = vsel %vm1369, %v7960, 0
        %7967 = vmatprep.subr.bf16.mxu0 0
        %7968 = vmatpush1.bf16.msra.mxu0 0
        %7969 = vmatprep.subr.bf16.mxu0 0
        %7970 = vmatpush1.bf16.msra.mxu0 0
        %7971 = vmatprep.subr.bf16.mxu0 0
        %7972 = vmatpush1.bf16.msra.mxu0 0
        %7973 = vmatprep.subr.bf16.mxu0 0
        %7974 = vmatpush1.bf16.msra.mxu0 0
        %7975 = vmatprep.subr.bf16.mxu0 0
        %7976 = vmatpush1.bf16.msra.mxu0 0
        %7977 = vmatprep.subr.bf16.mxu0 0
        %7978 = vmatpush1.bf16.msra.mxu0 0
        %7979 = vmatprep.subr.bf16.mxu0 0
        %7980 = vmatpush1.bf16.msra.mxu0 0
        %7981 = vmatprep.subr.bf16.mxu0 0
        %7982 = vmatpush1.bf16.msra.mxu0 %v7965
        %7983 = vmatprep.subr.bf16.mxu0 0
        %7984 = vmatpush2.bf16.msra.mxu0 0
        %7985 = vmatprep.subr.bf16.mxu0 0
        %7986 = vmatpush2.bf16.msra.mxu0 0
        %7987 = vmatprep.subr.bf16.mxu0 0
        %7988 = vmatpush2.bf16.msra.mxu0 0
        %7989 = vmatprep.subr.bf16.mxu0 0
        %7990 = vmatpush2.bf16.msra.mxu0 0
        %7991 = vmatprep.subr.bf16.mxu0 0
        %7992 = vmatpush2.bf16.msra.mxu0 0
        %7993 = vmatprep.subr.bf16.mxu0 0
        %7994 = vmatpush2.bf16.msra.mxu0 0
        %7995 = vmatprep.subr.bf16.mxu0 0
        %7996 = vmatpush2.bf16.msra.mxu0 0
        %7997 = vmatprep.subr.bf16.mxu0 0
        %7998 = vmatpush2.bf16.msra.mxu0 0
        %7999 = vmatprep.mubr.bf16.mxu0 0
        %8000 = vmatmul.mubr.bf16.gmra.mxu0 %v7962
        %v8001 = vpop.f32.mrf.mxu0
        %v8002 = vadd.f32 0.0, %v8001
        %v8003 = vpop.f32.mrf.mxu0
        %v8004 = vpop.f32.mrf.mxu0
        %v8005 = vpop.f32.mrf.mxu0
        %8006 = vdwg.mxu0
        %8015 = vrot.lane.b32.xlu0 %v2290, 16
        %v8016 = vpop.permute.xlu0 %8015
        %8017 = vrot.lane.b32.xlu0 %v2338, 16
        %v8018 = vpop.permute.xlu0 %8017
        %8019 = vrot.lane.b32.xlu0 %v2386, 16
        %v8020 = vpop.permute.xlu0 %8019
        %8021 = vrot.lane.b32.xlu0 %v2434, 16
        %v8022 = vpop.permute.xlu0 %8021
        %8023 = vrot.lane.b32.xlu0 %v2482, 16
        %v8024 = vpop.permute.xlu0 %8023
        %8025 = vrot.lane.b32.xlu0 %v2530, 16
        %v8026 = vpop.permute.xlu0 %8025
        %8027 = vrot.lane.b32.xlu0 %v2578, 16
        %v8028 = vpop.permute.xlu0 %8027
        %8029 = vrot.lane.b32.xlu0 %v2626, 16
        %v8030 = vpop.permute.xlu0 %8029
        %8047 = vrot.lane.b32.xlu0 %v3186, 32
        %v8048 = vpop.permute.xlu0 %8047
        %8049 = vrot.lane.b32.xlu0 %v3234, 32
        %v8050 = vpop.permute.xlu0 %8049
        %8051 = vrot.lane.b32.xlu0 %v3282, 32
        %v8052 = vpop.permute.xlu0 %8051
        %8053 = vrot.lane.b32.xlu0 %v3330, 32
        %v8054 = vpop.permute.xlu0 %8053
        %8055 = vrot.lane.b32.xlu0 %v3378, 32
        %v8056 = vpop.permute.xlu0 %8055
        %8057 = vrot.lane.b32.xlu0 %v3426, 32
        %v8058 = vpop.permute.xlu0 %8057
        %8059 = vrot.lane.b32.xlu0 %v3474, 32
        %v8060 = vpop.permute.xlu0 %8059
        %8061 = vrot.lane.b32.xlu0 %v3522, 32
        %v8062 = vpop.permute.xlu0 %8061
        %8079 = vrot.lane.b32.xlu0 %v4082, 48
        %v8080 = vpop.permute.xlu0 %8079
        %8081 = vrot.lane.b32.xlu0 %v4130, 48
        %v8082 = vpop.permute.xlu0 %8081
        %8083 = vrot.lane.b32.xlu0 %v4178, 48
        %v8084 = vpop.permute.xlu0 %8083
        %8085 = vrot.lane.b32.xlu0 %v4226, 48
        %v8086 = vpop.permute.xlu0 %8085
        %8087 = vrot.lane.b32.xlu0 %v4274, 48
        %v8088 = vpop.permute.xlu0 %8087
        %8089 = vrot.lane.b32.xlu0 %v4322, 48
        %v8090 = vpop.permute.xlu0 %8089
        %8091 = vrot.lane.b32.xlu0 %v4370, 48
        %v8092 = vpop.permute.xlu0 %8091
        %8093 = vrot.lane.b32.xlu0 %v4418, 48
        %v8094 = vpop.permute.xlu0 %8093
        %8111 = vrot.lane.b32.xlu0 %v4978, 64
        %v8112 = vpop.permute.xlu0 %8111
        %8113 = vrot.lane.b32.xlu0 %v5026, 64
        %v8114 = vpop.permute.xlu0 %8113
        %8115 = vrot.lane.b32.xlu0 %v5074, 64
        %v8116 = vpop.permute.xlu0 %8115
        %8117 = vrot.lane.b32.xlu0 %v5122, 64
        %v8118 = vpop.permute.xlu0 %8117
        %8119 = vrot.lane.b32.xlu0 %v5170, 64
        %v8120 = vpop.permute.xlu0 %8119
        %8121 = vrot.lane.b32.xlu0 %v5218, 64
        %v8122 = vpop.permute.xlu0 %8121
        %8123 = vrot.lane.b32.xlu0 %v5266, 64
        %v8124 = vpop.permute.xlu0 %8123
        %8125 = vrot.lane.b32.xlu0 %v5314, 64
        %v8126 = vpop.permute.xlu0 %8125
        %8143 = vrot.lane.b32.xlu0 %v5874, 80
        %v8144 = vpop.permute.xlu0 %8143
        %8145 = vrot.lane.b32.xlu0 %v5922, 80
        %v8146 = vpop.permute.xlu0 %8145
        %8147 = vrot.lane.b32.xlu0 %v5970, 80
        %v8148 = vpop.permute.xlu0 %8147
        %8149 = vrot.lane.b32.xlu0 %v6018, 80
        %v8150 = vpop.permute.xlu0 %8149
        %8151 = vrot.lane.b32.xlu0 %v6066, 80
        %v8152 = vpop.permute.xlu0 %8151
        %8153 = vrot.lane.b32.xlu0 %v6114, 80
        %v8154 = vpop.permute.xlu0 %8153
        %8155 = vrot.lane.b32.xlu0 %v6162, 80
        %v8156 = vpop.permute.xlu0 %8155
        %8157 = vrot.lane.b32.xlu0 %v6210, 80
        %v8158 = vpop.permute.xlu0 %8157
        %8175 = vrot.lane.b32.xlu0 %v6770, 96
        %v8176 = vpop.permute.xlu0 %8175
        %8177 = vrot.lane.b32.xlu0 %v6818, 96
        %v8178 = vpop.permute.xlu0 %8177
        %8179 = vrot.lane.b32.xlu0 %v6866, 96
        %v8180 = vpop.permute.xlu0 %8179
        %8181 = vrot.lane.b32.xlu0 %v6914, 96
        %v8182 = vpop.permute.xlu0 %8181
        %8183 = vrot.lane.b32.xlu0 %v6962, 96
        %v8184 = vpop.permute.xlu0 %8183
        %8185 = vrot.lane.b32.xlu0 %v7010, 96
        %v8186 = vpop.permute.xlu0 %8185
        %8187 = vrot.lane.b32.xlu0 %v7058, 96
        %v8188 = vpop.permute.xlu0 %8187
        %8189 = vrot.lane.b32.xlu0 %v7106, 96
        %v8190 = vpop.permute.xlu0 %8189
        %8207 = vrot.lane.b32.xlu0 %v7666, 112
        %v8208 = vpop.permute.xlu0 %8207
        %8209 = vrot.lane.b32.xlu0 %v7714, 112
        %v8210 = vpop.permute.xlu0 %8209
        %8211 = vrot.lane.b32.xlu0 %v7762, 112
        %v8212 = vpop.permute.xlu0 %8211
        %8213 = vrot.lane.b32.xlu0 %v7810, 112
        %v8214 = vpop.permute.xlu0 %8213
        %8215 = vrot.lane.b32.xlu0 %v7858, 112
        %v8216 = vpop.permute.xlu0 %8215
        %8217 = vrot.lane.b32.xlu0 %v7906, 112
        %v8218 = vpop.permute.xlu0 %8217
        %8219 = vrot.lane.b32.xlu0 %v7954, 112
        %v8220 = vpop.permute.xlu0 %8219
        %8221 = vrot.lane.b32.xlu0 %v8002, 112
        %v8222 = vpop.permute.xlu0 %8221
        %v8231 = vsel %vm852, %v1408, %v8016
        %v8232 = vsel %vm852, %v1454, %v8018
        %v8233 = vsel %vm852, %v1500, %v8020
        %v8234 = vsel %vm852, %v1546, %v8022
        %v8235 = vsel %vm852, %v1592, %v8024
        %v8236 = vsel %vm852, %v1638, %v8026
        %v8237 = vsel %vm852, %v1684, %v8028
        %v8238 = vsel %vm852, %v1730, %v8030
        %vm8239 = vcmask 261120
        %v8240 = vsel %vm8239, %v8231, %v8048
        %v8241 = vsel %vm8239, %v8232, %v8050
        %v8242 = vsel %vm8239, %v8233, %v8052
        %v8243 = vsel %vm8239, %v8234, %v8054
        %v8244 = vsel %vm8239, %v8235, %v8056
        %v8245 = vsel %vm8239, %v8236, %v8058
        %v8246 = vsel %vm8239, %v8237, %v8060
        %v8247 = vsel %vm8239, %v8238, %v8062
        %vm8248 = vcmask 392192
        %v8249 = vsel %vm8248, %v8240, %v8080
        %v8250 = vsel %vm8248, %v8241, %v8082
        %v8251 = vsel %vm8248, %v8242, %v8084
        %v8252 = vsel %vm8248, %v8243, %v8086
        %v8253 = vsel %vm8248, %v8244, %v8088
        %v8254 = vsel %vm8248, %v8245, %v8090
        %v8255 = vsel %vm8248, %v8246, %v8092
        %v8256 = vsel %vm8248, %v8247, %v8094
        %vm8257 = vcmask 523264
        %v8258 = vsel %vm8257, %v8249, %v8112
        %v8259 = vsel %vm8257, %v8250, %v8114
        %v8260 = vsel %vm8257, %v8251, %v8116
        %v8261 = vsel %vm8257, %v8252, %v8118
        %v8262 = vsel %vm8257, %v8253, %v8120
        %v8263 = vsel %vm8257, %v8254, %v8122
        %v8264 = vsel %vm8257, %v8255, %v8124
        %v8265 = vsel %vm8257, %v8256, %v8126
        %vm8266 = vcmask 654336
        %v8267 = vsel %vm8266, %v8258, %v8144
        %v8268 = vsel %vm8266, %v8259, %v8146
        %v8269 = vsel %vm8266, %v8260, %v8148
        %v8270 = vsel %vm8266, %v8261, %v8150
        %v8271 = vsel %vm8266, %v8262, %v8152
        %v8272 = vsel %vm8266, %v8263, %v8154
        %v8273 = vsel %vm8266, %v8264, %v8156
        %v8274 = vsel %vm8266, %v8265, %v8158
        %vm8275 = vcmask 785408
        %v8276 = vsel %vm8275, %v8267, %v8176
        %v8277 = vsel %vm8275, %v8268, %v8178
        %v8278 = vsel %vm8275, %v8269, %v8180
        %v8279 = vsel %vm8275, %v8270, %v8182
        %v8280 = vsel %vm8275, %v8271, %v8184
        %v8281 = vsel %vm8275, %v8272, %v8186
        %v8282 = vsel %vm8275, %v8273, %v8188
        %v8283 = vsel %vm8275, %v8274, %v8190
        %vm8284 = vcmask 916480
        %v8285 = vsel %vm8284, %v8276, %v8208
        %v8286 = vsel %vm8284, %v8277, %v8210
        %v8287 = vsel %vm8284, %v8278, %v8212
        %v8288 = vsel %vm8284, %v8279, %v8214
        %v8289 = vsel %vm8284, %v8280, %v8216
        %v8290 = vsel %vm8284, %v8281, %v8218
        %v8291 = vsel %vm8284, %v8282, %v8220
        %v8292 = vsel %vm8284, %v8283, %v8222
        %v8293 = vpack.c.bf16 %v8286, %v8285
        %v8294 = vpack.c.bf16 %v8288, %v8287
        %v8295 = vpack.c.bf16 %v8290, %v8289
        %v8296 = vpack.c.bf16 %v8292, %v8291
        %v8297 = vld [vmem:[%s4] sm:$0xf]
        %v8298 = vld [vmem:[%s4 + $0x4] sm:$0xf]
        %v8299 = vld [vmem:[%s4 + $0x8] sm:$0xf]
        %v8300 = vld [vmem:[%s4 + $0xc] sm:$0xf]
        %v8301 = vld [vmem:[%s4 + $0x10] sm:$0xf]
        %v8302 = vld [vmem:[%s4 + $0x14] sm:$0xf]
        %v8303 = vld [vmem:[%s4 + $0x18] sm:$0xf]
        %v8304 = vld [vmem:[%s4 + $0x1c] sm:$0xf]
        %v8305 = vld [vmem:[%s4 + $0x20] sm:$0xf]
        %v8306 = vld [vmem:[%s4 + $0x24] sm:$0xf]
        %v8307 = vld [vmem:[%s4 + $0x28] sm:$0xf]
        %v8308 = vld [vmem:[%s4 + $0x2c] sm:$0xf]
        %v8309 = vld [vmem:[%s4 + $0x30] sm:$0xf]
        %v8310 = vld [vmem:[%s4 + $0x34] sm:$0xf]
        %v8311 = vld [vmem:[%s4 + $0x38] sm:$0xf]
        %v8312 = vld [vmem:[%s4 + $0x3c] sm:$0xf]
        %v8329 = vunpack.c.l.b16 %v8297
        %v8330 = vunpack.c.l.b16 %v8298
        %v8331 = vunpack.c.l.b16 %v8299
        %v8332 = vunpack.c.l.b16 %v8300
        %v8333 = vunpack.c.l.b16 %v8301
        %v8334 = vunpack.c.l.b16 %v8302
        %v8335 = vunpack.c.l.b16 %v8303
        %v8336 = vunpack.c.l.b16 %v8304
        %v8337 = vunpack.c.l.b16 %v8305
        %v8338 = vunpack.c.l.b16 %v8306
        %v8339 = vunpack.c.l.b16 %v8307
        %v8340 = vunpack.c.l.b16 %v8308
        %v8341 = vunpack.c.l.b16 %v8309
        %v8342 = vunpack.c.l.b16 %v8310
        %v8343 = vunpack.c.l.b16 %v8311
        %v8344 = vunpack.c.l.b16 %v8312
        %v8345 = vpack.c.b16 %v8330, %v8329
        %v8346 = vpack.c.b16 %v8332, %v8331
        %v8347 = vpack.c.b16 %v8334, %v8333
        %v8348 = vpack.c.b16 %v8336, %v8335
        %v8349 = vpack.c.b16 %v8338, %v8337
        %v8350 = vpack.c.b16 %v8340, %v8339
        %v8351 = vpack.c.b16 %v8342, %v8341
        %v8352 = vpack.c.b16 %v8344, %v8343
        %8361 = vmatprep.subr.bf16.mxu0 0
        %8362 = vmatpush1.bf16.msra.mxu0 %v8352
        %8363 = vmatprep.subr.bf16.mxu0 0
        %8364 = vmatpush1.bf16.msra.mxu0 %v8351
        %8365 = vmatprep.subr.bf16.mxu0 0
        %8366 = vmatpush1.bf16.msra.mxu0 %v8350
        %8367 = vmatprep.subr.bf16.mxu0 0
        %8368 = vmatpush1.bf16.msra.mxu0 %v8349
        %8369 = vmatprep.subr.bf16.mxu0 0
        %8370 = vmatpush1.bf16.msra.mxu0 %v8348
        %8371 = vmatprep.subr.bf16.mxu0 0
        %8372 = vmatpush1.bf16.msra.mxu0 %v8347
        %8373 = vmatprep.subr.bf16.mxu0 0
        %8374 = vmatpush1.bf16.msra.mxu0 %v8346
        %8375 = vmatprep.subr.bf16.mxu0 0
        %8376 = vmatpush1.bf16.msra.mxu0 %v8345
        %8377 = vmatprep.subr.bf16.mxu0 0
        %8378 = vmatpush2.bf16.msra.mxu0 0
        %8379 = vmatprep.subr.bf16.mxu0 0
        %8380 = vmatpush2.bf16.msra.mxu0 0
        %8381 = vmatprep.subr.bf16.mxu0 0
        %8382 = vmatpush2.bf16.msra.mxu0 0
        %8383 = vmatprep.subr.bf16.mxu0 0
        %8384 = vmatpush2.bf16.msra.mxu0 0
        %8385 = vmatprep.subr.bf16.mxu0 0
        %8386 = vmatpush2.bf16.msra.mxu0 0
        %8387 = vmatprep.subr.bf16.mxu0 0
        %8388 = vmatpush2.bf16.msra.mxu0 0
        %8389 = vmatprep.subr.bf16.mxu0 0
        %8390 = vmatpush2.bf16.msra.mxu0 0
        %8391 = vmatprep.subr.bf16.mxu0 0
        %8392 = vmatpush2.bf16.msra.mxu0 0
        %8393 = vmatprep.mubr.bf16.mxu0 0
        %8394 = vmatmul.mubr.bf16.gmra.mxu0 %v8293
        %v8395 = vpop.f32.mrf.mxu0
        %v8396 = vadd.f32 0.0, %v8395
        %v8397 = vpop.f32.mrf.mxu0
        %v8398 = vpop.f32.mrf.mxu0
        %v8399 = vadd.f32 0.0, %v8398
        %v8400 = vpop.f32.mrf.mxu0
        %8401 = vmatprep.mubr.bf16.mxu0 0
        %8402 = vmatmul.mubr.bf16.gmra.mxu0 %v8294
        %v8403 = vpop.f32.mrf.mxu0
        %v8404 = vadd.f32 0.0, %v8403
        %v8405 = vpop.f32.mrf.mxu0
        %v8406 = vpop.f32.mrf.mxu0
        %v8407 = vadd.f32 0.0, %v8406
        %v8408 = vpop.f32.mrf.mxu0
        %8409 = vmatprep.mubr.bf16.mxu0 0
        %8410 = vmatmul.mubr.bf16.gmra.mxu0 %v8295
        %v8411 = vpop.f32.mrf.mxu0
        %v8412 = vadd.f32 0.0, %v8411
        %v8413 = vpop.f32.mrf.mxu0
        %v8414 = vpop.f32.mrf.mxu0
        %v8415 = vadd.f32 0.0, %v8414
        %v8416 = vpop.f32.mrf.mxu0
        %8417 = vmatprep.mubr.bf16.mxu0 0
        %8418 = vmatmul.mubr.bf16.gmra.mxu0 %v8296
        %v8419 = vpop.f32.mrf.mxu0
        %v8420 = vadd.f32 0.0, %v8419
        %v8421 = vpop.f32.mrf.mxu0
        %v8422 = vpop.f32.mrf.mxu0
        %v8423 = vadd.f32 0.0, %v8422
        %v8424 = vpop.f32.mrf.mxu0
        %8425 = vdwg.mxu0
        %v8426 = vsub.f32 1.0, %v433
        %v8427 = vsub.f32 1.0, %v434
        %v8428 = vsub.f32 1.0, %v435
        %v8429 = vsub.f32 1.0, %v436
        %v8430 = vsub.f32 1.0, %v437
        %v8431 = vsub.f32 1.0, %v438
        %v8432 = vsub.f32 1.0, %v439
        %v8433 = vsub.f32 1.0, %v440
        %v8442 = vrot.slane %v8427, 7
        %vm8443 = vcmask 1041409
        %v8444 = vsel %vm8443, %v8442, %v8426
        %v8445 = vrot.slane %v8428, 6
        %vm8446 = vcmask 1042434
        %v8447 = vsel %vm8446, %v8445, %v8444
        %v8448 = vrot.slane %v8429, 5
        %vm8449 = vcmask 1043459
        %v8450 = vsel %vm8449, %v8448, %v8447
        %v8451 = vrot.slane %v8430, 4
        %vm8452 = vcmask 1044484
        %v8453 = vsel %vm8452, %v8451, %v8450
        %v8454 = vrot.slane %v8431, 3
        %vm8455 = vcmask 1045509
        %v8456 = vsel %vm8455, %v8454, %v8453
        %v8457 = vrot.slane %v8432, 2
        %vm8458 = vcmask 1046534
        %v8459 = vsel %vm8458, %v8457, %v8456
        %v8460 = vrot.slane %v8433, 1
        %vm8461 = vcmask 1047559
        %v8462 = vsel %vm8461, %v8460, %v8459
        %v8464 = vsel %vm1269, %v8462, 0.0
        %8465 = vadd.xlane.f32.xlu0 %v8464
        %v8466 = vpop.xlane.xlu0 %8465
        %v8467 = vmax.f32 %v8466, 1.0
        %v8468 = vlaneseq
        %v8469 = vshrl.u32 %v8468, 7
        %v8470 = vsub.s32 0, %v8469
        %v8471 = vrot.slane %v8426, %v8470
        %8473 = vbcast.lane.b32.xlu0 %v8471, 256
        %v8474 = vpop.permute.xlu0 %8473
        %v8475 = vlaneseq
        %v8476 = vshrl.u32 %v8475, 7
        %v8477 = vsub.s32 0, %v8476
        %v8478 = vrot.slane %v8427, %v8477
        %8480 = vbcast.lane.b32.xlu0 %v8478, 256
        %v8481 = vpop.permute.xlu0 %8480
        %v8482 = vlaneseq
        %v8483 = vshrl.u32 %v8482, 7
        %v8484 = vsub.s32 0, %v8483
        %v8485 = vrot.slane %v8428, %v8484
        %8487 = vbcast.lane.b32.xlu0 %v8485, 256
        %v8488 = vpop.permute.xlu0 %8487
        %v8489 = vlaneseq
        %v8490 = vshrl.u32 %v8489, 7
        %v8491 = vsub.s32 0, %v8490
        %v8492 = vrot.slane %v8429, %v8491
        %8494 = vbcast.lane.b32.xlu0 %v8492, 256
        %v8495 = vpop.permute.xlu0 %8494
        %v8496 = vlaneseq
        %v8497 = vshrl.u32 %v8496, 7
        %v8498 = vsub.s32 0, %v8497
        %v8499 = vrot.slane %v8430, %v8498
        %8501 = vbcast.lane.b32.xlu0 %v8499, 256
        %v8502 = vpop.permute.xlu0 %8501
        %v8503 = vlaneseq
        %v8504 = vshrl.u32 %v8503, 7
        %v8505 = vsub.s32 0, %v8504
        %v8506 = vrot.slane %v8431, %v8505
        %8508 = vbcast.lane.b32.xlu0 %v8506, 256
        %v8509 = vpop.permute.xlu0 %8508
        %v8510 = vlaneseq
        %v8511 = vshrl.u32 %v8510, 7
        %v8512 = vsub.s32 0, %v8511
        %v8513 = vrot.slane %v8432, %v8512
        %8515 = vbcast.lane.b32.xlu0 %v8513, 256
        %v8516 = vpop.permute.xlu0 %8515
        %v8517 = vlaneseq
        %v8518 = vshrl.u32 %v8517, 7
        %v8519 = vsub.s32 0, %v8518
        %v8520 = vrot.slane %v8433, %v8519
        %8522 = vbcast.lane.b32.xlu0 %v8520, 256
        %v8523 = vpop.permute.xlu0 %8522
        %v8524 = vmul.f32 %v8396, %v8474
        %v8525 = vmul.f32 %v8399, %v8481
        %v8526 = vmul.f32 %v8404, %v8488
        %v8527 = vmul.f32 %v8407, %v8495
        %v8528 = vmul.f32 %v8412, %v8502
        %v8529 = vmul.f32 %v8415, %v8509
        %v8530 = vmul.f32 %v8420, %v8516
        %v8531 = vmul.f32 %v8423, %v8523
        %v8532 = vrot.slane %v8524, 4
        %v8533 = vadd.f32 %v8524, %v8532
        %v8534 = vrot.slane %v8533, 2
        %v8535 = vadd.f32 %v8533, %v8534
        %v8536 = vrot.slane %v8535, 1
        %v8537 = vadd.f32 %v8535, %v8536
        %v8538 = vrot.slane %v8525, 4
        %v8539 = vadd.f32 %v8525, %v8538
        %v8540 = vrot.slane %v8539, 2
        %v8541 = vadd.f32 %v8539, %v8540
        %v8542 = vrot.slane %v8541, 1
        %v8543 = vadd.f32 %v8541, %v8542
        %v8544 = vrot.slane %v8526, 4
        %v8545 = vadd.f32 %v8526, %v8544
        %v8546 = vrot.slane %v8545, 2
        %v8547 = vadd.f32 %v8545, %v8546
        %v8548 = vrot.slane %v8547, 1
        %v8549 = vadd.f32 %v8547, %v8548
        %v8550 = vrot.slane %v8527, 4
        %v8551 = vadd.f32 %v8527, %v8550
        %v8552 = vrot.slane %v8551, 2
        %v8553 = vadd.f32 %v8551, %v8552
        %v8554 = vrot.slane %v8553, 1
        %v8555 = vadd.f32 %v8553, %v8554
        %v8556 = vrot.slane %v8528, 4
        %v8557 = vadd.f32 %v8528, %v8556
        %v8558 = vrot.slane %v8557, 2
        %v8559 = vadd.f32 %v8557, %v8558
        %v8560 = vrot.slane %v8559, 1
        %v8561 = vadd.f32 %v8559, %v8560
        %v8562 = vrot.slane %v8529, 4
        %v8563 = vadd.f32 %v8529, %v8562
        %v8564 = vrot.slane %v8563, 2
        %v8565 = vadd.f32 %v8563, %v8564
        %v8566 = vrot.slane %v8565, 1
        %v8567 = vadd.f32 %v8565, %v8566
        %v8568 = vrot.slane %v8530, 4
        %v8569 = vadd.f32 %v8530, %v8568
        %v8570 = vrot.slane %v8569, 2
        %v8571 = vadd.f32 %v8569, %v8570
        %v8572 = vrot.slane %v8571, 1
        %v8573 = vadd.f32 %v8571, %v8572
        %v8574 = vrot.slane %v8531, 4
        %v8575 = vadd.f32 %v8531, %v8574
        %v8576 = vrot.slane %v8575, 2
        %v8577 = vadd.f32 %v8575, %v8576
        %v8578 = vrot.slane %v8577, 1
        %v8579 = vadd.f32 %v8577, %v8578
        %v8581 = vrot.slane %v8467, 1
        %v8582 = vrot.slane %v8467, 2
        %v8583 = vrot.slane %v8467, 3
        %v8584 = vrot.slane %v8467, 4
        %v8585 = vrot.slane %v8467, 5
        %v8586 = vrot.slane %v8467, 6
        %v8587 = vrot.slane %v8467, 7
        %v8596 = vrcp.pop %v8467
        %v8597 = vmul.f32 %v8537, %v8596
        %v8598 = vrcp.pop %v8581
        %v8599 = vmul.f32 %v8543, %v8598
        %v8600 = vrcp.pop %v8582
        %v8601 = vmul.f32 %v8549, %v8600
        %v8602 = vrcp.pop %v8583
        %v8603 = vmul.f32 %v8555, %v8602
        %v8604 = vrcp.pop %v8584
        %v8605 = vmul.f32 %v8561, %v8604
        %v8606 = vrcp.pop %v8585
        %v8607 = vmul.f32 %v8567, %v8606
        %v8608 = vrcp.pop %v8586
        %v8609 = vmul.f32 %v8573, %v8608
        %v8610 = vrcp.pop %v8587
        %v8611 = vmul.f32 %v8579, %v8610
        %v8620 = vrot.slane %v8599, 7
        %v8621 = vsel %vm8443, %v8620, %v8597
        %v8622 = vrot.slane %v8601, 6
        %v8623 = vsel %vm8446, %v8622, %v8621
        %v8624 = vrot.slane %v8603, 5
        %v8625 = vsel %vm8449, %v8624, %v8623
        %v8626 = vrot.slane %v8605, 4
        %v8627 = vsel %vm8452, %v8626, %v8625
        %v8628 = vrot.slane %v8607, 3
        %v8629 = vsel %vm8455, %v8628, %v8627
        %v8630 = vrot.slane %v8609, 2
        %v8631 = vsel %vm8458, %v8630, %v8629
        %v8632 = vrot.slane %v8611, 1
        %v8633 = vsel %vm8461, %v8632, %v8631
        %8635 = vst [vmem:[%s406] sm:$0xff] %v8633
        %v8636 = vpack.c.bf16 %v8597, %v8597
        %v8637 = vpack.c.bf16 %v8599, %v8599
        %v8638 = vpack.c.bf16 %v8601, %v8601
        %v8639 = vpack.c.bf16 %v8603, %v8603
        %v8640 = vpack.c.bf16 %v8605, %v8605
        %v8641 = vpack.c.bf16 %v8607, %v8607
        %v8642 = vpack.c.bf16 %v8609, %v8609
        %v8643 = vpack.c.bf16 %v8611, %v8611
        %v8644 = vld [vmem:[#allocation8] sm:$0xf]
        %v8645 = vld [vmem:[#allocation8 + $0x4] sm:$0xf]
        %v8646 = vld [vmem:[#allocation8 + $0x8] sm:$0xf]
        %v8647 = vld [vmem:[#allocation8 + $0xc] sm:$0xf]
        %v8648 = vld [vmem:[#allocation8 + $0x10] sm:$0xf]
        %v8649 = vld [vmem:[#allocation8 + $0x14] sm:$0xf]
        %v8650 = vld [vmem:[#allocation8 + $0x18] sm:$0xf]
        %v8651 = vld [vmem:[#allocation8 + $0x1c] sm:$0xf]
        %v8652 = vld [vmem:[#allocation8 + $0x20] sm:$0xf]
        %v8653 = vld [vmem:[#allocation8 + $0x24] sm:$0xf]
        %v8654 = vld [vmem:[#allocation8 + $0x28] sm:$0xf]
        %v8655 = vld [vmem:[#allocation8 + $0x2c] sm:$0xf]
        %v8656 = vld [vmem:[#allocation8 + $0x30] sm:$0xf]
        %v8657 = vld [vmem:[#allocation8 + $0x34] sm:$0xf]
        %v8658 = vld [vmem:[#allocation8 + $0x38] sm:$0xf]
        %v8659 = vld [vmem:[#allocation8 + $0x3c] sm:$0xf]
        %v8660 = vpack.c.bf16 %v449, %v449
        %v8661 = vld [vmem:[%s6] sm:$0xf]
        %v8662 = vld [vmem:[%s6 + $0x4] sm:$0xf]
        %v8663 = vld [vmem:[%s6 + $0x8] sm:$0xf]
        %v8664 = vld [vmem:[%s6 + $0xc] sm:$0xf]
        %v8669 = vunpack.c.l.b16 %v8661
        %v8670 = vunpack.c.l.b16 %v8662
        %v8671 = vunpack.c.l.b16 %v8663
        %v8672 = vunpack.c.l.b16 %v8664
        %v8673 = vpack.c.b16 %v8670, %v8669
        %v8674 = vpack.c.b16 %v8672, %v8671
        %v8678 = vsel %vm8239, %v8660, 0
        %8680 = vmatprep.subr.bf16.mxu0 0
        %8681 = vmatpush1.bf16.msra.mxu0 0
        %8682 = vmatprep.subr.bf16.mxu0 0
        %8683 = vmatpush1.bf16.msra.mxu0 0
        %8684 = vmatprep.subr.bf16.mxu0 0
        %8685 = vmatpush1.bf16.msra.mxu0 0
        %8686 = vmatprep.subr.bf16.mxu0 0
        %8687 = vmatpush1.bf16.msra.mxu0 0
        %8688 = vmatprep.subr.bf16.mxu0 0
        %8689 = vmatpush1.bf16.msra.mxu0 0
        %8690 = vmatprep.subr.bf16.mxu0 0
        %8691 = vmatpush1.bf16.msra.mxu0 0
        %8692 = vmatprep.subr.bf16.mxu0 0
        %8693 = vmatpush1.bf16.msra.mxu0 %v8674
        %8694 = vmatprep.subr.bf16.mxu0 0
        %8695 = vmatpush1.bf16.msra.mxu0 %v8673
        %8696 = vmatprep.subr.bf16.mxu0 0
        %8697 = vmatpush2.bf16.msra.mxu0 0
        %8698 = vmatprep.subr.bf16.mxu0 0
        %8699 = vmatpush2.bf16.msra.mxu0 0
        %8700 = vmatprep.subr.bf16.mxu0 0
        %8701 = vmatpush2.bf16.msra.mxu0 0
        %8702 = vmatprep.subr.bf16.mxu0 0
        %8703 = vmatpush2.bf16.msra.mxu0 0
        %8704 = vmatprep.subr.bf16.mxu0 0
        %8705 = vmatpush2.bf16.msra.mxu0 0
        %8706 = vmatprep.subr.bf16.mxu0 0
        %8707 = vmatpush2.bf16.msra.mxu0 0
        %8708 = vmatprep.subr.bf16.mxu0 0
        %8709 = vmatpush2.bf16.msra.mxu0 0
        %8710 = vmatprep.subr.bf16.mxu0 0
        %8711 = vmatpush2.bf16.msra.mxu0 0
        %8712 = vmatprep.mubr.bf16.mxu0 0
        %8713 = vmatmul.mubr.bf16.gmra.mxu0 %v8678
        %v8714 = vpop.f32.mrf.mxu0
        %v8715 = vadd.f32 0.0, %v8714
        %v8716 = vpop.f32.mrf.mxu0
        %v8717 = vpop.f32.mrf.mxu0
        %v8718 = vpop.f32.mrf.mxu0
        %8719 = vdwg.mxu0
        %v8728 = vunpack.c.l.b16 %v8636
        %v8729 = vunpack.c.l.b16 %v8637
        %v8730 = vunpack.c.l.b16 %v8638
        %v8731 = vunpack.c.l.b16 %v8639
        %v8732 = vunpack.c.l.b16 %v8640
        %v8733 = vunpack.c.l.b16 %v8641
        %v8734 = vunpack.c.l.b16 %v8642
        %v8735 = vunpack.c.l.b16 %v8643
        %v8736 = vrot.slane %v8729, 7
        %v8737 = vsel %vm8443, %v8736, %v8728
        %v8738 = vrot.slane %v8730, 6
        %v8739 = vsel %vm8446, %v8738, %v8737
        %v8740 = vrot.slane %v8731, 5
        %v8741 = vsel %vm8449, %v8740, %v8739
        %v8742 = vrot.slane %v8732, 4
        %v8743 = vsel %vm8452, %v8742, %v8741
        %v8744 = vrot.slane %v8733, 3
        %v8745 = vsel %vm8455, %v8744, %v8743
        %v8746 = vrot.slane %v8734, 2
        %v8747 = vsel %vm8458, %v8746, %v8745
        %v8748 = vrot.slane %v8735, 1
        %v8749 = vsel %vm8461, %v8748, %v8747
        %v8750 = vpack.c.b16 %v8749, %v8749
        %v8768 = vunpack.c.l.b16 %v8644
        %v8769 = vunpack.c.l.b16 %v8645
        %v8770 = vunpack.c.l.b16 %v8646
        %v8771 = vunpack.c.l.b16 %v8647
        %v8772 = vunpack.c.l.b16 %v8648
        %v8773 = vunpack.c.l.b16 %v8649
        %v8774 = vunpack.c.l.b16 %v8650
        %v8775 = vunpack.c.l.b16 %v8651
        %v8776 = vunpack.c.l.b16 %v8652
        %v8777 = vunpack.c.l.b16 %v8653
        %v8778 = vunpack.c.l.b16 %v8654
        %v8779 = vunpack.c.l.b16 %v8655
        %v8780 = vunpack.c.l.b16 %v8656
        %v8781 = vunpack.c.l.b16 %v8657
        %v8782 = vunpack.c.l.b16 %v8658
        %v8783 = vunpack.c.l.b16 %v8659
        %v8784 = vpack.c.b16 %v8769, %v8768
        %v8785 = vpack.c.b16 %v8771, %v8770
        %v8786 = vpack.c.b16 %v8773, %v8772
        %v8787 = vpack.c.b16 %v8775, %v8774
        %v8788 = vpack.c.b16 %v8777, %v8776
        %v8789 = vpack.c.b16 %v8779, %v8778
        %v8790 = vpack.c.b16 %v8781, %v8780
        %v8791 = vpack.c.b16 %v8783, %v8782
        %8800 = vmatprep.subr.bf16.mxu0 0
        %8801 = vmatpush1.bf16.msra.mxu0 %v8791
        %8802 = vmatprep.subr.bf16.mxu0 0
        %8803 = vmatpush1.bf16.msra.mxu0 %v8790
        %8804 = vmatprep.subr.bf16.mxu0 0
        %8805 = vmatpush1.bf16.msra.mxu0 %v8789
        %8806 = vmatprep.subr.bf16.mxu0 0
        %8807 = vmatpush1.bf16.msra.mxu0 %v8788
        %8808 = vmatprep.subr.bf16.mxu0 0
        %8809 = vmatpush1.bf16.msra.mxu0 %v8787
        %8810 = vmatprep.subr.bf16.mxu0 0
        %8811 = vmatpush1.bf16.msra.mxu0 %v8786
        %8812 = vmatprep.subr.bf16.mxu0 0
        %8813 = vmatpush1.bf16.msra.mxu0 %v8785
        %8814 = vmatprep.subr.bf16.mxu0 0
        %8815 = vmatpush1.bf16.msra.mxu0 %v8784
        %8816 = vmatprep.subr.bf16.mxu0 0
        %8817 = vmatpush2.bf16.msra.mxu0 0
        %8818 = vmatprep.subr.bf16.mxu0 0
        %8819 = vmatpush2.bf16.msra.mxu0 0
        %8820 = vmatprep.subr.bf16.mxu0 0
        %8821 = vmatpush2.bf16.msra.mxu0 0
        %8822 = vmatprep.subr.bf16.mxu0 0
        %8823 = vmatpush2.bf16.msra.mxu0 0
        %8824 = vmatprep.subr.bf16.mxu0 0
        %8825 = vmatpush2.bf16.msra.mxu0 0
        %8826 = vmatprep.subr.bf16.mxu0 0
        %8827 = vmatpush2.bf16.msra.mxu0 0
        %8828 = vmatprep.subr.bf16.mxu0 0
        %8829 = vmatpush2.bf16.msra.mxu0 0
        %8830 = vmatprep.subr.bf16.mxu0 0
        %8831 = vmatpush2.bf16.msra.mxu0 0
        %8832 = vmatprep.mubr.bf16.mxu0 0
        %8833 = vmatmul.mubr.bf16.gmra.mxu0 %v8750
        %v8834 = vpop.f32.mrf.mxu0
        %v8835 = vadd.f32 %v8715, %v8834
        %v8836 = vpop.f32.mrf.mxu0
        %v8837 = vpop.f32.mrf.mxu0
        %v8838 = vpop.f32.mrf.mxu0
        %8839 = vdwg.mxu0
        %v8840 = vmul.f32 %v8835, 0.088388346
        %v8841 = vunpack.c.l.bf16 %v425
        %v8842 = vunpack.c.l.bf16 %v426
        %v8843 = vunpack.c.l.bf16 %v427
        %v8844 = vunpack.c.l.bf16 %v428
        %v8845 = vunpack.c.l.bf16 %v429
        %v8846 = vunpack.c.l.bf16 %v430
        %v8847 = vunpack.c.l.bf16 %v431
        %v8848 = vunpack.c.l.bf16 %v432
        %v8850 = vcombine.high %v8840, %v8840
        %v8852 = vunpack.c.l.s4 1966171168
        %v8853 = vunpack.c.0.s8 %v8852
        %v8854 = vlaneseq
        %v8855 = vshrl.u32 %v8854, 7
        %v8856 = vsub.s32 %v8853, %v8855
        %v8857 = vrot.slane %v8840, %v8856
        %v8859 = vunpack.c.l.s4 1966171168
        %v8860 = vunpack.c.0.s8 %v8859
        %v8861 = vlaneseq
        %v8862 = vshrl.u32 %v8861, 7
        %v8863 = vsub.s32 %v8860, %v8862
        %v8864 = vrot.slane %v8850, %v8863
        %v8865 = vcombine.high %v8857, %v8857
        %v8866 = vcombine.high %v8864, %v8864
        %v8868 = vunpack.c.l.s4 1966171168
        %v8869 = vunpack.c.0.s8 %v8868
        %v8870 = vlaneseq
        %v8871 = vshrl.u32 %v8870, 7
        %v8872 = vsub.s32 %v8869, %v8871
        %v8873 = vrot.slane %v8857, %v8872
        %v8875 = vunpack.c.l.s4 1966171168
        %v8876 = vunpack.c.0.s8 %v8875
        %v8877 = vlaneseq
        %v8878 = vshrl.u32 %v8877, 7
        %v8879 = vsub.s32 %v8876, %v8878
        %v8880 = vrot.slane %v8864, %v8879
        %v8882 = vunpack.c.l.s4 1966171168
        %v8883 = vunpack.c.0.s8 %v8882
        %v8884 = vlaneseq
        %v8885 = vshrl.u32 %v8884, 7
        %v8886 = vsub.s32 %v8883, %v8885
        %v8887 = vrot.slane %v8865, %v8886
        %v8889 = vunpack.c.l.s4 1966171168
        %v8890 = vunpack.c.0.s8 %v8889
        %v8891 = vlaneseq
        %v8892 = vshrl.u32 %v8891, 7
        %v8893 = vsub.s32 %v8890, %v8892
        %v8894 = vrot.slane %v8866, %v8893
        %v8895 = vcombine.high %v8873, %v8873
        %v8896 = vcombine.high %v8880, %v8880
        %v8897 = vcombine.high %v8887, %v8887
        %v8898 = vcombine.high %v8894, %v8894
        %v8899 = vlaneseq
        %v8900 = vshrl.u32 %v8899, 7
        %v8901 = vsub.s32 0, %v8900
        %v8902 = vrot.slane %v8873, %v8901
        %v8903 = vlaneseq
        %v8904 = vshrl.u32 %v8903, 7
        %v8905 = vsub.s32 0, %v8904
        %v8906 = vrot.slane %v8887, %v8905
        %v8907 = vlaneseq
        %v8908 = vshrl.u32 %v8907, 7
        %v8909 = vsub.s32 0, %v8908
        %v8910 = vrot.slane %v8895, %v8909
        %v8911 = vlaneseq
        %v8912 = vshrl.u32 %v8911, 7
        %v8913 = vsub.s32 0, %v8912
        %v8914 = vrot.slane %v8897, %v8913
        %v8915 = vlaneseq
        %v8916 = vshrl.u32 %v8915, 7
        %v8917 = vsub.s32 0, %v8916
        %v8918 = vrot.slane %v8880, %v8917
        %v8919 = vlaneseq
        %v8920 = vshrl.u32 %v8919, 7
        %v8921 = vsub.s32 0, %v8920
        %v8922 = vrot.slane %v8894, %v8921
        %v8923 = vlaneseq
        %v8924 = vshrl.u32 %v8923, 7
        %v8925 = vsub.s32 0, %v8924
        %v8926 = vrot.slane %v8896, %v8925
        %v8927 = vlaneseq
        %v8928 = vshrl.u32 %v8927, 7
        %v8929 = vsub.s32 0, %v8928
        %v8930 = vrot.slane %v8898, %v8929
        %v8939 = vmul.f32 %v8841, %v8902
        %v8940 = vmul.f32 %v8842, %v8906
        %v8941 = vmul.f32 %v8843, %v8910
        %v8942 = vmul.f32 %v8844, %v8914
        %v8943 = vmul.f32 %v8845, %v8918
        %v8944 = vmul.f32 %v8846, %v8922
        %v8945 = vmul.f32 %v8847, %v8926
        %v8946 = vmul.f32 %v8848, %v8930
        %8947 = vadd.xlane.f32.xlu0 %v8939
        %v8948 = vpop.xlane.xlu0 %8947
        %8949 = vadd.xlane.f32.xlu0 %v8940
        %v8950 = vpop.xlane.xlu0 %8949
        %8951 = vadd.xlane.f32.xlu0 %v8941
        %v8952 = vpop.xlane.xlu0 %8951
        %8953 = vadd.xlane.f32.xlu0 %v8942
        %v8954 = vpop.xlane.xlu0 %8953
        %8955 = vadd.xlane.f32.xlu0 %v8943
        %v8956 = vpop.xlane.xlu0 %8955
        %8957 = vadd.xlane.f32.xlu0 %v8944
        %v8958 = vpop.xlane.xlu0 %8957
        %8959 = vadd.xlane.f32.xlu0 %v8945
        %v8960 = vpop.xlane.xlu0 %8959
        %8961 = vadd.xlane.f32.xlu0 %v8946
        %v8962 = vpop.xlane.xlu0 %8961
        %v8963 = vtanh.pop %v8948
        %v8964 = vtanh.pop %v8950
        %v8965 = vtanh.pop %v8952
        %v8966 = vtanh.pop %v8954
        %v8967 = vtanh.pop %v8956
        %v8968 = vtanh.pop %v8958
        %v8969 = vtanh.pop %v8960
        %v8970 = vtanh.pop %v8962
        %v8971 = vmul.f32 %v8963, 10.0
        %v8972 = vmul.f32 %v8964, 10.0
        %v8973 = vmul.f32 %v8965, 10.0
        %v8974 = vmul.f32 %v8966, 10.0
        %v8975 = vmul.f32 %v8967, 10.0
        %v8976 = vmul.f32 %v8968, 10.0
        %v8977 = vmul.f32 %v8969, 10.0
        %v8978 = vmul.f32 %v8970, 10.0
        %v8979 = vmul.f32 %v441, -1e+09
        %v8980 = vmul.f32 %v442, -1e+09
        %v8981 = vmul.f32 %v443, -1e+09
        %v8982 = vmul.f32 %v444, -1e+09
        %v8983 = vmul.f32 %v445, -1e+09
        %v8984 = vmul.f32 %v446, -1e+09
        %v8985 = vmul.f32 %v447, -1e+09
        %v8986 = vmul.f32 %v448, -1e+09
        %v8995 = vlaneseq
        %v8996 = vshrl.u32 %v8995, 7
        %v8997 = vsub.s32 0, %v8996
        %v8998 = vrot.slane %v8979, %v8997
        %9000 = vbcast.lane.b32.xlu0 %v8998, 256
        %v9001 = vpop.permute.xlu0 %9000
        %v9002 = vlaneseq
        %v9003 = vshrl.u32 %v9002, 7
        %v9004 = vsub.s32 0, %v9003
        %v9005 = vrot.slane %v8980, %v9004
        %9007 = vbcast.lane.b32.xlu0 %v9005, 256
        %v9008 = vpop.permute.xlu0 %9007
        %v9009 = vlaneseq
        %v9010 = vshrl.u32 %v9009, 7
        %v9011 = vsub.s32 0, %v9010
        %v9012 = vrot.slane %v8981, %v9011
        %9014 = vbcast.lane.b32.xlu0 %v9012, 256
        %v9015 = vpop.permute.xlu0 %9014
        %v9016 = vlaneseq
        %v9017 = vshrl.u32 %v9016, 7
        %v9018 = vsub.s32 0, %v9017
        %v9019 = vrot.slane %v8982, %v9018
        %9021 = vbcast.lane.b32.xlu0 %v9019, 256
        %v9022 = vpop.permute.xlu0 %9021
        %v9023 = vlaneseq
        %v9024 = vshrl.u32 %v9023, 7
        %v9025 = vsub.s32 0, %v9024
        %v9026 = vrot.slane %v8983, %v9025
        %9028 = vbcast.lane.b32.xlu0 %v9026, 256
        %v9029 = vpop.permute.xlu0 %9028
        %v9030 = vlaneseq
        %v9031 = vshrl.u32 %v9030, 7
        %v9032 = vsub.s32 0, %v9031
        %v9033 = vrot.slane %v8984, %v9032
        %9035 = vbcast.lane.b32.xlu0 %v9033, 256
        %v9036 = vpop.permute.xlu0 %9035
        %v9037 = vlaneseq
        %v9038 = vshrl.u32 %v9037, 7
        %v9039 = vsub.s32 0, %v9038
        %v9040 = vrot.slane %v8985, %v9039
        %9042 = vbcast.lane.b32.xlu0 %v9040, 256
        %v9043 = vpop.permute.xlu0 %9042
        %v9044 = vlaneseq
        %v9045 = vshrl.u32 %v9044, 7
        %v9046 = vsub.s32 0, %v9045
        %v9047 = vrot.slane %v8986, %v9046
        %9049 = vbcast.lane.b32.xlu0 %v9047, 256
        %v9050 = vpop.permute.xlu0 %9049
        %v9059 = vadd.f32 %v8971, %v9001
        %v9060 = vadd.f32 %v8972, %v9008
        %v9061 = vadd.f32 %v8973, %v9015
        %v9062 = vadd.f32 %v8974, %v9022
        %v9063 = vadd.f32 %v8975, %v9029
        %v9064 = vadd.f32 %v8976, %v9036
        %v9065 = vadd.f32 %v8977, %v9043
        %v9066 = vadd.f32 %v8978, %v9050
        %9075 = vset.pattern.permute.xlu0 0
        %9076 = vperm.xlu0 %9075, %v9059
        %v9077 = vpop.permute.xlu0 %9076
        %9078 = vset.pattern.permute.xlu0 0
        %9079 = vperm.xlu0 %9078, %v9060
        %v9080 = vpop.permute.xlu0 %9079
        %9081 = vset.pattern.permute.xlu0 0
        %9082 = vperm.xlu0 %9081, %v9061
        %v9083 = vpop.permute.xlu0 %9082
        %9084 = vset.pattern.permute.xlu0 0
        %9085 = vperm.xlu0 %9084, %v9062
        %v9086 = vpop.permute.xlu0 %9085
        %9087 = vset.pattern.permute.xlu0 0
        %9088 = vperm.xlu0 %9087, %v9063
        %v9089 = vpop.permute.xlu0 %9088
        %9090 = vset.pattern.permute.xlu0 0
        %9091 = vperm.xlu0 %9090, %v9064
        %v9092 = vpop.permute.xlu0 %9091
        %9093 = vset.pattern.permute.xlu0 0
        %9094 = vperm.xlu0 %9093, %v9065
        %v9095 = vpop.permute.xlu0 %9094
        %9096 = vset.pattern.permute.xlu0 0
        %9097 = vperm.xlu0 %9096, %v9066
        %v9098 = vpop.permute.xlu0 %9097
        %v9099 = vlaneseq
        %v9100 = vand.u32 %v9099, 127
        %v9101 = vlaneseq
        %v9102 = vshrl.u32 %v9101, 7
        %v9103 = vsub.s32 %v9100, %v9102
        %v9104 = vrot.slane %v9077, %v9103
        %v9105 = vlaneseq
        %v9106 = vshrl.u32 %v9105, 7
        %v9107 = vsub.s32 %v9100, %v9106
        %v9108 = vrot.slane %v9080, %v9107
        %v9109 = vlaneseq
        %v9110 = vshrl.u32 %v9109, 7
        %v9111 = vsub.s32 %v9100, %v9110
        %v9112 = vrot.slane %v9083, %v9111
        %v9113 = vlaneseq
        %v9114 = vshrl.u32 %v9113, 7
        %v9115 = vsub.s32 %v9100, %v9114
        %v9116 = vrot.slane %v9086, %v9115
        %v9117 = vlaneseq
        %v9118 = vshrl.u32 %v9117, 7
        %v9119 = vsub.s32 %v9100, %v9118
        %v9120 = vrot.slane %v9089, %v9119
        %v9121 = vlaneseq
        %v9122 = vshrl.u32 %v9121, 7
        %v9123 = vsub.s32 %v9100, %v9122
        %v9124 = vrot.slane %v9092, %v9123
        %v9125 = vlaneseq
        %v9126 = vshrl.u32 %v9125, 7
        %v9127 = vsub.s32 %v9100, %v9126
        %v9128 = vrot.slane %v9095, %v9127
        %v9129 = vlaneseq
        %v9130 = vshrl.u32 %v9129, 7
        %v9131 = vsub.s32 %v9100, %v9130
        %v9132 = vrot.slane %v9098, %v9131
        %v9133 = vsel %vm8443, %v9108, %v9104
        %v9134 = vsel %vm8446, %v9112, %v9133
        %v9135 = vsel %vm8449, %v9116, %v9134
        %v9136 = vsel %vm8452, %v9120, %v9135
        %v9137 = vsel %vm8455, %v9124, %v9136
        %v9138 = vsel %vm8458, %v9128, %v9137
        %v9139 = vsel %vm8461, %v9132, %v9138
        %v9141 = vsel %vm1269, %v9139, -inf
        %9142 = vmax.xlane.f32.xlu0 %v9141
        %v9143 = vpop.xlane.xlu0 %9142
        %v9145 = vlaneseq
        %v9146 = vshrl.u32 %v9145, 7
        %v9147 = vsub.s32 0, %v9146
        %v9148 = vrot.slane %v9143, %v9147
        %v9149 = vlaneseq
        %v9150 = vshrl.u32 %v9149, 7
        %v9151 = vsub.s32 1, %v9150
        %v9152 = vrot.slane %v9143, %v9151
        %v9153 = vlaneseq
        %v9154 = vshrl.u32 %v9153, 7
        %v9155 = vsub.s32 2, %v9154
        %v9156 = vrot.slane %v9143, %v9155
        %v9157 = vlaneseq
        %v9158 = vshrl.u32 %v9157, 7
        %v9159 = vsub.s32 3, %v9158
        %v9160 = vrot.slane %v9143, %v9159
        %v9161 = vlaneseq
        %v9162 = vshrl.u32 %v9161, 7
        %v9163 = vsub.s32 4, %v9162
        %v9164 = vrot.slane %v9143, %v9163
        %v9165 = vlaneseq
        %v9166 = vshrl.u32 %v9165, 7
        %v9167 = vsub.s32 5, %v9166
        %v9168 = vrot.slane %v9143, %v9167
        %v9169 = vlaneseq
        %v9170 = vshrl.u32 %v9169, 7
        %v9171 = vsub.s32 6, %v9170
        %v9172 = vrot.slane %v9143, %v9171
        %v9173 = vlaneseq
        %v9174 = vshrl.u32 %v9173, 7
        %v9175 = vsub.s32 7, %v9174
        %v9176 = vrot.slane %v9143, %v9175
        %v9185 = vsub.f32 %v9059, %v9148
        %v9186 = vsub.f32 %v9060, %v9152
        %v9187 = vsub.f32 %v9061, %v9156
        %v9188 = vsub.f32 %v9062, %v9160
        %v9189 = vsub.f32 %v9063, %v9164
        %v9190 = vsub.f32 %v9064, %v9168
        %v9191 = vsub.f32 %v9065, %v9172
        %v9192 = vsub.f32 %v9066, %v9176
        %v9193 = vmul.f32 %v9185, 1.442695
        %v9194 = vpow.pop %v9193
        %v9195 = vmul.f32 %v9186, 1.442695
        %v9196 = vpow.pop %v9195
        %v9197 = vmul.f32 %v9187, 1.442695
        %v9198 = vpow.pop %v9197
        %v9199 = vmul.f32 %v9188, 1.442695
        %v9200 = vpow.pop %v9199
        %v9201 = vmul.f32 %v9189, 1.442695
        %v9202 = vpow.pop %v9201
        %v9203 = vmul.f32 %v9190, 1.442695
        %v9204 = vpow.pop %v9203
        %v9205 = vmul.f32 %v9191, 1.442695
        %v9206 = vpow.pop %v9205
        %v9207 = vmul.f32 %v9192, 1.442695
        %v9208 = vpow.pop %v9207
        %9217 = vset.pattern.permute.xlu0 0
        %9218 = vperm.xlu0 %9217, %v9194
        %v9219 = vpop.permute.xlu0 %9218
        %9220 = vset.pattern.permute.xlu0 0
        %9221 = vperm.xlu0 %9220, %v9196
        %v9222 = vpop.permute.xlu0 %9221
        %9223 = vset.pattern.permute.xlu0 0
        %9224 = vperm.xlu0 %9223, %v9198
        %v9225 = vpop.permute.xlu0 %9224
        %9226 = vset.pattern.permute.xlu0 0
        %9227 = vperm.xlu0 %9226, %v9200
        %v9228 = vpop.permute.xlu0 %9227
        %9229 = vset.pattern.permute.xlu0 0
        %9230 = vperm.xlu0 %9229, %v9202
        %v9231 = vpop.permute.xlu0 %9230
        %9232 = vset.pattern.permute.xlu0 0
        %9233 = vperm.xlu0 %9232, %v9204
        %v9234 = vpop.permute.xlu0 %9233
        %9235 = vset.pattern.permute.xlu0 0
        %9236 = vperm.xlu0 %9235, %v9206
        %v9237 = vpop.permute.xlu0 %9236
        %9238 = vset.pattern.permute.xlu0 0
        %9239 = vperm.xlu0 %9238, %v9208
        %v9240 = vpop.permute.xlu0 %9239
        %v9241 = vlaneseq
        %v9242 = vshrl.u32 %v9241, 7
        %v9243 = vsub.s32 %v9100, %v9242
        %v9244 = vrot.slane %v9219, %v9243
        %v9245 = vlaneseq
        %v9246 = vshrl.u32 %v9245, 7
        %v9247 = vsub.s32 %v9100, %v9246
        %v9248 = vrot.slane %v9222, %v9247
        %v9249 = vlaneseq
        %v9250 = vshrl.u32 %v9249, 7
        %v9251 = vsub.s32 %v9100, %v9250
        %v9252 = vrot.slane %v9225, %v9251
        %v9253 = vlaneseq
        %v9254 = vshrl.u32 %v9253, 7
        %v9255 = vsub.s32 %v9100, %v9254
        %v9256 = vrot.slane %v9228, %v9255
        %v9257 = vlaneseq
        %v9258 = vshrl.u32 %v9257, 7
        %v9259 = vsub.s32 %v9100, %v9258
        %v9260 = vrot.slane %v9231, %v9259
        %v9261 = vlaneseq
        %v9262 = vshrl.u32 %v9261, 7
        %v9263 = vsub.s32 %v9100, %v9262
        %v9264 = vrot.slane %v9234, %v9263
        %v9265 = vlaneseq
        %v9266 = vshrl.u32 %v9265, 7
        %v9267 = vsub.s32 %v9100, %v9266
        %v9268 = vrot.slane %v9237, %v9267
        %v9269 = vlaneseq
        %v9270 = vshrl.u32 %v9269, 7
        %v9271 = vsub.s32 %v9100, %v9270
        %v9272 = vrot.slane %v9240, %v9271
        %v9273 = vsel %vm8443, %v9248, %v9244
        %v9274 = vsel %vm8446, %v9252, %v9273
        %v9275 = vsel %vm8449, %v9256, %v9274
        %v9276 = vsel %vm8452, %v9260, %v9275
        %v9277 = vsel %vm8455, %v9264, %v9276
        %v9278 = vsel %vm8458, %v9268, %v9277
        %v9279 = vsel %vm8461, %v9272, %v9278
        %v9281 = vsel %vm1269, %v9279, 0.0
        %9282 = vadd.xlane.f32.xlu0 %v9281
        %v9283 = vpop.xlane.xlu0 %9282
        %v9284 = vlog2.pop %v9283
        %v9285 = vmul.f32 %v9284, 0.6931472
        %v9287 = vlaneseq
        %v9288 = vshrl.u32 %v9287, 7
        %v9289 = vsub.s32 0, %v9288
        %v9290 = vrot.slane %v9285, %v9289
        %v9291 = vlaneseq
        %v9292 = vshrl.u32 %v9291, 7
        %v9293 = vsub.s32 1, %v9292
        %v9294 = vrot.slane %v9285, %v9293
        %v9295 = vlaneseq
        %v9296 = vshrl.u32 %v9295, 7
        %v9297 = vsub.s32 2, %v9296
        %v9298 = vrot.slane %v9285, %v9297
        %v9299 = vlaneseq
        %v9300 = vshrl.u32 %v9299, 7
        %v9301 = vsub.s32 3, %v9300
        %v9302 = vrot.slane %v9285, %v9301
        %v9303 = vlaneseq
        %v9304 = vshrl.u32 %v9303, 7
        %v9305 = vsub.s32 4, %v9304
        %v9306 = vrot.slane %v9285, %v9305
        %v9307 = vlaneseq
        %v9308 = vshrl.u32 %v9307, 7
        %v9309 = vsub.s32 5, %v9308
        %v9310 = vrot.slane %v9285, %v9309
        %v9311 = vlaneseq
        %v9312 = vshrl.u32 %v9311, 7
        %v9313 = vsub.s32 6, %v9312
        %v9314 = vrot.slane %v9285, %v9313
        %v9315 = vlaneseq
        %v9316 = vshrl.u32 %v9315, 7
        %v9317 = vsub.s32 7, %v9316
        %v9318 = vrot.slane %v9285, %v9317
        %v9327 = vsub.f32 %v9185, %v9290
        %v9328 = vsub.f32 %v9186, %v9294
        %v9329 = vsub.f32 %v9187, %v9298
        %v9330 = vsub.f32 %v9188, %v9302
        %v9331 = vsub.f32 %v9189, %v9306
        %v9332 = vsub.f32 %v9190, %v9310
        %v9333 = vsub.f32 %v9191, %v9314
        %v9334 = vsub.f32 %v9192, %v9318
        %9343 = vset.pattern.permute.xlu0 0
        %9344 = vperm.xlu0 %9343, %v9327
        %v9345 = vpop.permute.xlu0 %9344
        %9346 = vset.pattern.permute.xlu0 0
        %9347 = vperm.xlu0 %9346, %v9328
        %v9348 = vpop.permute.xlu0 %9347
        %9349 = vset.pattern.permute.xlu0 0
        %9350 = vperm.xlu0 %9349, %v9329
        %v9351 = vpop.permute.xlu0 %9350
        %9352 = vset.pattern.permute.xlu0 0
        %9353 = vperm.xlu0 %9352, %v9330
        %v9354 = vpop.permute.xlu0 %9353
        %9355 = vset.pattern.permute.xlu0 0
        %9356 = vperm.xlu0 %9355, %v9331
        %v9357 = vpop.permute.xlu0 %9356
        %9358 = vset.pattern.permute.xlu0 0
        %9359 = vperm.xlu0 %9358, %v9332
        %v9360 = vpop.permute.xlu0 %9359
        %9361 = vset.pattern.permute.xlu0 0
        %9362 = vperm.xlu0 %9361, %v9333
        %v9363 = vpop.permute.xlu0 %9362
        %9364 = vset.pattern.permute.xlu0 0
        %9365 = vperm.xlu0 %9364, %v9334
        %v9366 = vpop.permute.xlu0 %9365
        %v9367 = vlaneseq
        %v9368 = vshrl.u32 %v9367, 7
        %v9369 = vsub.s32 %v9100, %v9368
        %v9370 = vrot.slane %v9345, %v9369
        %v9371 = vlaneseq
        %v9372 = vshrl.u32 %v9371, 7
        %v9373 = vsub.s32 %v9100, %v9372
        %v9374 = vrot.slane %v9348, %v9373
        %v9375 = vlaneseq
        %v9376 = vshrl.u32 %v9375, 7
        %v9377 = vsub.s32 %v9100, %v9376
        %v9378 = vrot.slane %v9351, %v9377
        %v9379 = vlaneseq
        %v9380 = vshrl.u32 %v9379, 7
        %v9381 = vsub.s32 %v9100, %v9380
        %v9382 = vrot.slane %v9354, %v9381
        %v9383 = vlaneseq
        %v9384 = vshrl.u32 %v9383, 7
        %v9385 = vsub.s32 %v9100, %v9384
        %v9386 = vrot.slane %v9357, %v9385
        %v9387 = vlaneseq
        %v9388 = vshrl.u32 %v9387, 7
        %v9389 = vsub.s32 %v9100, %v9388
        %v9390 = vrot.slane %v9360, %v9389
        %v9391 = vlaneseq
        %v9392 = vshrl.u32 %v9391, 7
        %v9393 = vsub.s32 %v9100, %v9392
        %v9394 = vrot.slane %v9363, %v9393
        %v9395 = vlaneseq
        %v9396 = vshrl.u32 %v9395, 7
        %v9397 = vsub.s32 %v9100, %v9396
        %v9398 = vrot.slane %v9366, %v9397
        %v9399 = vsel %vm8443, %v9374, %v9370
        %v9400 = vsel %vm8446, %v9378, %v9399
        %v9401 = vsel %vm8449, %v9382, %v9400
        %v9402 = vsel %vm8452, %v9386, %v9401
        %v9403 = vsel %vm8455, %v9390, %v9402
        %v9404 = vsel %vm8458, %v9394, %v9403
        %v9405 = vsel %vm8461, %v9398, %v9404
        %9407 = vst.msk [vmem:[%s423] sm:$0xff] %vm1269, %v9405
        %s9408 = sand.u32 %s200, 1
        %s9409 = scalar_lea.sflag [#allocation4], %s9408
        %s9410 = sand.u32 %s200, 1
        %s9411 = smul.addr %s9410, 8
        %s9412 = scalar_lea.vmem [#allocation10], %s9411
        %p9413 = scmp.lt.s32.totalorder %s30, 3
        %s9414 = scalar_select %p9413, %s30, 3
        %s9415 = smul.addr %s9414, 8
        %s9416 = scalar_lea.vmem %s8, %s9415
        // Predicated region
        $region65: #{tpu_custom_call.1} parent=47 // pred_check
          %p9417 = pneg %p210
        $region66: #{tpu_custom_call.1} parent=47 // pred_check_branch
          %9419 = sbr.rel (%p9417) target = $region68
        $region67: #{tpu_custom_call.1} parent=47 // pred_region
          %s9421 = ssub.s32 128, 128
          %9422 = vsyncadd %s9409, %s9421
          %s9423 = smul.addr %s30, 128
          %s9424 = scalar_lea.hbm %s7, %s9423
          %s9426 = sshll.u32 %s9412, 4
          %s9427 = int_to_ptr.vmem [resolvable:$true] %s9426
          %9429 = dma.vmem_to_hbm [thread:$0]  %s9427, 128, %s9424, %s9409
        $region68: #{tpu_custom_call.1} parent=47 // pred_fallthru
          _
        // Predicated region
        $region69: #{tpu_custom_call.1} parent=47 // pred_check
          %p9430 = pneg %p236
        $region70: #{tpu_custom_call.1} parent=47 // pred_check_branch
          %9432 = sbr.rel (%p9430) target = $region72
        $region71: #{tpu_custom_call.1} parent=47 // pred_region
          _
        $region72: #{tpu_custom_call.1} parent=47 // pred_fallthru
          _
      $region48: #{tpu_custom_call.1} parent=5 // pred_fallthru
        _
      %p9433 = scmp.le.s32.totalorder 2, %s25
      // Predicated region
      $region73: #{tpu_custom_call.1} parent=5 // pred_check
        %p9434 = pneg %p9433
      $region74: #{tpu_custom_call.1} parent=5 // pred_check_branch
        %9436 = sbr.rel (%p9434) target = $region76
      $region75: #{tpu_custom_call.1} parent=5 // pred_region
        %s9437 = ssub.s32 %s25, 2
        // Predicated region
        $region77: #{tpu_custom_call.1} parent=75 // pred_check
          %p9438 = pneg %p216
        $region78: #{tpu_custom_call.1} parent=75 // pred_check_branch
          %9440 = sbr.rel (%p9438) target = $region80
        $region79: #{tpu_custom_call.1} parent=75 // pred_region
          %s9441 = sand.u32 %s201, 1
          %s9442 = scalar_lea.sflag [#allocation4], %s9441
          %s9443 = sand.u32 %s201, 1
          %s9444 = smul.addr %s9443, 8
          %s9445 = scalar_lea.vmem [#allocation10], %s9444
          %9446 = dma.done %s9442, 128
        $region80: #{tpu_custom_call.1} parent=75 // pred_fallthru
          _
        // Predicated region
        $region81: #{tpu_custom_call.1} parent=75 // pred_check
          %p9447 = pneg %p242
        $region82: #{tpu_custom_call.1} parent=75 // pred_check_branch
          %9449 = sbr.rel (%p9447) target = $region84
        $region83: #{tpu_custom_call.1} parent=75 // pred_region
          %p9450 = scmp.lt.s32.totalorder %s31, 3
          %s9451 = scalar_select %p9450, %s31, 3
          %s9452 = smul.addr %s9451, 8
          %s9453 = scalar_lea.vmem %s8, %s9452
        $region84: #{tpu_custom_call.1} parent=75 // pred_fallthru
          _
      $region76: #{tpu_custom_call.1} parent=5 // pred_fallthru
        _
    $region6: #{tpu_custom_call.1} parent=1 // loop_footer
      %s29 = sadd.s32 1, %s25
    $region7: #{tpu_custom_call.1} parent=1 // loop_footer_branch
      %24 = sbr.rel target = $region3
    $region8: #{tpu_custom_call.1} parent=1 // loop_exit
      _
    %9454 = vsyncpa [#allocation3], 1
    %s9455 = scalar_lea.sflag [#allocation3], 1
    %9456 = vsyncpa %s9455, 1
    %9457 = vsyncpa [#allocation6], 1
    %s9458 = scalar_lea.sflag [#allocation6], 1
    %9459 = vsyncpa %s9458, 1
    %9460 = vsyncpa [#allocation9], 1
    %9461 = vsyncpa [#allocation4], 1
    %s9462 = scalar_lea.sflag [#allocation4], 1
    %9463 = vsyncpa %s9462, 1

</llo_original>
